<compile_context>
chip_gen: v6e
topology: v6e:2x2x1
jax: 0.10.0
libtpu: 0.0.40
codegen_flags: <defaults>
</compile_context>

<pallas_src>
import math

import jax
import jax.numpy as jnp
from jax.experimental import pallas as pl
from jax.experimental.pallas import tpu as pltpu

_B = 8  # images per grid step (multiple of 8 -> aligned (8,128) output tiles)


# ------------------------------ Pallas kernel ------------------------------ #
def _letnet_kernel(x_ref, b1w_ref, b1b_ref, pw_ref, ph_ref,
                   b3w_ref, b3b_ref, w5_ref, b5_ref,
                   w6_ref, b6_ref, w7_ref, b7_ref, out_ref, feat_ref):
    """Whole LeNet forward for one block of B images; everything VMEM resident."""
    f32 = jnp.float32
    B = x_ref.shape[0]

    # Hoist constant weight loads out of the per-image loop.
    B1 = b1w_ref[...]          # (160, 168) conv1 band weights, K-stacked over kh
    b1b = b1b_ref[...]         # (1, 168)
    PW = pw_ref[...]           # (168, 84)  pool1 lane (W) pooling matrix
    PH = ph_ref[...]           # (14, 28)   pool1 sublane (H) pooling matrix
    B3 = b3w_ref[...]          # (420, 256) conv2 band weights (lanes padded to 256)
    b3b = b3b_ref[...]         # (1, 256)

    # --- per-image conv/pool pipeline (static unroll over the block) --------
    for b in range(B):
        x = x_ref[b]                                                   # (32, 32) padded image

        # conv1 (k=5, pad baked into x): one K-stacked matmul.
        lhs1 = jnp.concatenate([x[kh:kh + 28, :] for kh in range(5)], axis=1)      # (28, 160)
        y1 = jnp.maximum(jnp.dot(lhs1, B1, preferred_element_type=f32) + b1b, 0.0)  # (28, 168)

        # 2x2 average pool: lane (W) pooling then sublane (H) pooling on the MXU.
        yc = jnp.dot(y1, PW, preferred_element_type=f32)               # (28, 84)
        p1 = jnp.dot(PH, yc, preferred_element_type=f32)               # (14, 84) = (h, c*14+w)

        # conv2 (6->16, k=5): one K-stacked matmul, output lanes padded to 256.
        lhs2 = jnp.concatenate([p1[kh:kh + 10, :] for kh in range(5)], axis=1)      # (10, 420)
        y2 = jnp.maximum(jnp.dot(lhs2, B3, preferred_element_type=f32) + b3b, 0.0)  # (10, 256)

        # Flatten (pool2 + flatten permutation are folded into w5): 128-aligned
        # lane concat of the 10 rows, stored densely into the block scratch.
        flat = jnp.concatenate([y2[h:h + 1, :] for h in range(10)], axis=1)         # (1, 2560)
        feat_ref[pl.ds(b, 1), :] = flat

    # --- batched FC chain over the whole block (M = B matmuls) --------------
    feats = feat_ref[...]                                              # (B, 2560)
    y5 = jnp.maximum(
        jnp.dot(feats, w5_ref[...], preferred_element_type=f32) + b5_ref[...], 0.0)
    y6 = jnp.maximum(
        jnp.dot(y5, w6_ref[...], preferred_element_type=f32) + b6_ref[...], 0.0)
    out_ref[...] = jnp.dot(y6, w7_ref[...], preferred_element_type=f32) + b7_ref[...]


# ------------------- one-time host-side weight preparation ------------------ #
def prepare_params(p):
    """Re-arrange torch-layout params into MXU-friendly constants (run once)."""
    f32 = jnp.float32
    w1, b1 = p["w1"].astype(f32), p["b1"].astype(f32)      # (6,1,5,5), (6,)
    w3, b3 = p["w3"].astype(f32), p["b3"].astype(f32)      # (16,6,5,5), (16,)
    w5, b5 = p["w5"].astype(f32), p["b5"].astype(f32)      # (120,400), (120,)
    w6, b6 = p["w6"].astype(f32), p["b6"].astype(f32)      # (84,120), (84,)
    w7, b7 = p["w7"].astype(f32), p["b7"].astype(f32)      # (10,84), (10,)

    # conv1 K-stacked band weights: B1f[kh*32+wi, o*28+wo] = w1[o,0,kh,wi-wo] (band of 5)
    wi = jnp.arange(32)[:, None]
    wo = jnp.arange(28)[None, :]
    d = wi - wo
    mask1 = ((d >= 0) & (d < 5)).astype(f32)               # (32,28)
    dc1 = jnp.clip(d, 0, 4)
    blocks = []
    for kh in range(5):
        wk = w1[:, 0, kh, :]                               # (6,5)
        g = wk[:, dc1] * mask1[None]                       # (6,32,28)
        blocks.append(jnp.transpose(g, (1, 0, 2)).reshape(32, 6 * 28))
    B1f = jnp.concatenate(blocks, axis=0)                  # (160,168)
    b1row = jnp.repeat(b1, 28)[None, :]                    # (1,168)

    # pool1 matrices (0.5 * 0.5 = 0.25 average, exact)
    Pw = 0.5 * (jnp.arange(28)[:, None] // 2 == jnp.arange(14)[None, :]).astype(f32)
    PwBig = jnp.kron(jnp.eye(6, dtype=f32), Pw)            # (168,84) block diagonal
    Ph = 0.5 * (jnp.arange(28)[None, :] // 2 == jnp.arange(14)[:, None]).astype(f32)  # (14,28)

    # conv2 K-stacked band weights: B3f[kh*84+c*14+wi, o*10+wo] = w3[o,c,kh,wi-wo]
    wi2 = jnp.arange(14)[:, None]
    wo2 = jnp.arange(10)[None, :]
    d2 = wi2 - wo2
    mask2 = ((d2 >= 0) & (d2 < 5)).astype(f32)             # (14,10)
    dc2 = jnp.clip(d2, 0, 4)
    blocks = []
    for kh in range(5):
        wk = w3[:, :, kh, :]                               # (16,6,5)
        g = wk[:, :, dc2] * mask2[None, None]              # (16,6,14,10)
        blocks.append(jnp.transpose(g, (1, 2, 0, 3)).reshape(6 * 14, 16 * 10))
    B3f = jnp.concatenate(blocks, axis=0)                  # (420,160)
    B3f = jnp.pad(B3f, ((0, 0), (0, 96)))                  # (420,256) lane-padded (exact zeros)
    b3row = jnp.pad(jnp.repeat(b3, 10), (0, 96))[None, :]  # (1,256)

    # fc5 with pool2 (0.25 average) + flatten permutation folded in, flattened
    # to match the in-kernel feature layout feats[b, h*256 + o*10 + w]:
    #   W5f[h*256 + o*10 + w, j] = 0.25 * W5[j, o*25 + (h//2)*5 + (w//2)]
    o_i = jnp.arange(16)[None, :, None]
    h_i = jnp.arange(10)[:, None, None]
    w_i = jnp.arange(10)[None, None, :]
    col = o_i * 25 + (h_i // 2) * 5 + (w_i // 2)           # (10,16,10)
    W5e = 0.25 * w5[:, col]                                # (120,10,16,10)
    W5e = jnp.transpose(W5e, (1, 2, 3, 0)).reshape(10, 160, 120)
    W5e = jnp.pad(W5e, ((0, 0), (0, 96), (0, 8)))          # (10,256,128)
    W5f = W5e.reshape(2560, 128)
    b5row = jnp.pad(b5, (0, 8))[None, :]                   # (1,128)

    # fc6/fc7 zero padded to 128x128 (exact; padded lanes stay zero)
    W6p = jnp.zeros((128, 128), f32).at[:120, :84].set(w6.T)
    b6row = jnp.pad(b6, (0, 44))[None, :]
    W7p = jnp.zeros((128, 128), f32).at[:84, :10].set(w7.T)
    b7row = jnp.pad(b7, (0, 118))[None, :]

    return {"B1f": B1f, "b1row": b1row, "PwBig": PwBig, "Ph": Ph,
            "B3f": B3f, "b3row": b3row, "W5f": W5f, "b5row": b5row,
            "W6p": W6p, "b6row": b6row, "W7p": W7p, "b7row": b7row}


# --------------------------------- forward ---------------------------------- #
@jax.jit
def letnet_forward(x, prep):
    """x: (N,1,28,28) float32, prep: output of prepare_params -> (N,10) logits."""
    n, c, h, w = x.shape
    assert (c, h, w) == (1, 28, 28), (c, h, w)

    num_blocks = (n + _B - 1) // _B
    n_pad = num_blocks * _B
    # pad batch to a multiple of the block size, and spatially to 32x32 (conv pad=2)
    xp = jnp.pad(x[:, 0].astype(jnp.float32),
                 ((0, n_pad - n), (2, 2), (2, 2)))          # (n_pad, 32, 32)

    out = pl.pallas_call(
        _letnet_kernel,
        out_shape=jax.ShapeDtypeStruct((n_pad, 128), jnp.float32),
        grid=(num_blocks,),
        in_specs=[
            pl.BlockSpec((_B, 32, 32), lambda i: (i, 0, 0)),   # padded image block
            pl.BlockSpec((160, 168), lambda i: (0, 0)),        # conv1 band weights (K-stacked)
            pl.BlockSpec((1, 168), lambda i: (0, 0)),          # conv1 bias (lane layout)
            pl.BlockSpec((168, 84), lambda i: (0, 0)),         # pool1 lane matrix
            pl.BlockSpec((14, 28), lambda i: (0, 0)),          # pool1 sublane matrix
            pl.BlockSpec((420, 256), lambda i: (0, 0)),        # conv2 band weights (K-stacked)
            pl.BlockSpec((1, 256), lambda i: (0, 0)),          # conv2 bias
            pl.BlockSpec((2560, 128), lambda i: (0, 0)),       # fc5 (pool2 + flatten folded)
            pl.BlockSpec((1, 128), lambda i: (0, 0)),          # fc5 bias
            pl.BlockSpec((128, 128), lambda i: (0, 0)),        # fc6 weight
            pl.BlockSpec((1, 128), lambda i: (0, 0)),          # fc6 bias
            pl.BlockSpec((128, 128), lambda i: (0, 0)),        # fc7 weight
            pl.BlockSpec((1, 128), lambda i: (0, 0)),          # fc7 bias
        ],
        out_specs=pl.BlockSpec((_B, 128), lambda i: (i, 0)),   # full (8,128) tile store
        scratch_shapes=[pltpu.VMEM((_B, 2560), jnp.float32)],  # flattened conv2 features
        compiler_params=pltpu.CompilerParams(
            dimension_semantics=("parallel",)),
    )(xp, prep["B1f"], prep["b1row"], prep["PwBig"], prep["Ph"],
      prep["B3f"], prep["b3row"], prep["W5f"], prep["b5row"],
      prep["W6p"], prep["b6row"], prep["W7p"], prep["b7row"])

    return out[:n, :10]


# ---------------------------- pure-JAX reference ---------------------------- #
def ref_forward(x, p):
    prec = jax.lax.Precision.HIGHEST

    def conv(x, w, b, pad):
        y = jax.lax.conv_general_dilated(
            x, w, (1, 1), [(pad, pad), (pad, pad)],
            dimension_numbers=("NCHW", "OIHW", "NCHW"), precision=prec)
        return y + b[None, :, None, None]

    def pool(x):
        n, c, h, w = x.shape
        return x.reshape(n, c, h // 2, 2, w // 2, 2).mean(axis=(3, 5))

    x = jax.nn.relu(conv(x, p["w1"], p["b1"], 2))
    x = pool(x)
    x = jax.nn.relu(conv(x, p["w3"], p["b3"], 0))
    x = pool(x)
    x = x.reshape(x.shape[0], -1)
    x = jax.nn.relu(jnp.dot(x, p["w5"].T, precision=prec) + p["b5"])
    x = jax.nn.relu(jnp.dot(x, p["w6"].T, precision=prec) + p["b6"])
    return jnp.dot(x, p["w7"].T, precision=prec) + p["b7"]


# ----------------------------------- main ----------------------------------- #
if __name__ == "__main__":
    key = jax.random.PRNGKey(0)
    ks = jax.random.split(key, 11)

    def u(k, shape, fan_in):
        bound = 1.0 / math.sqrt(fan_in)
        return jax.random.uniform(k, shape, jnp.float32, -bound, bound)

    params = {
        # c1: Conv2d(1 -> 6, k=5, pad=2)
        "w1": u(ks[0], (6, 1, 5, 5), 1 * 5 * 5),
        "b1": u(ks[1], (6,), 1 * 5 * 5),
        # c3: Conv2d(6 -> 16, k=5)
        "w3": u(ks[2], (16, 6, 5, 5), 6 * 5 * 5),
        "b3": u(ks[3], (16,), 6 * 5 * 5),
        # f5: Linear(400 -> 120)
        "w5": u(ks[4], (120, 400), 400),
        "b5": u(ks[5], (120,), 400),
        # f6: Linear(120 -> 84)
        "w6": u(ks[6], (84, 120), 120),
        "b6": u(ks[7], (84,), 120),
        # f7: Linear(84 -> 10)
        "w7": u(ks[8], (10, 84), 84),
        "b7": u(ks[9], (10,), 84),
    }

    # LeNet forward implies 1-channel 28x28 inputs (pad=2 -> 32 -> ... -> 5*5*16=400).
    # batch=10 -> padded to 16 -> 2 grid steps (exercises padding + both v7x TCs).
    x = jax.random.normal(ks[10], (10, 1, 28, 28), jnp.float32)

    prep = prepare_params(params)            # one-time weight re-layout (host/XLA)
    out = jax.block_until_ready(letnet_forward(x, prep))
    assert out.shape == (10, 10), out.shape

    ref = jax.block_until_ready(ref_forward(x, params))
    assert jnp.allclose(out, ref, atol=1e-3, rtol=1e-3), (
        float(jnp.max(jnp.abs(out - ref))))

    print("KERNEL_OK")
</pallas_src>

<mosaic_0001>
module attributes {stable_mosaic.version = 11 : i64} {
  func.func @_letnet_kernel(%arg0: i32, %arg1: memref<8x32x32xf32, #tpu.memory_space<vmem>>, %arg2: memref<160x168xf32, #tpu.memory_space<vmem>>, %arg3: memref<1x168xf32, #tpu.memory_space<vmem>>, %arg4: memref<168x84xf32, #tpu.memory_space<vmem>>, %arg5: memref<14x28xf32, #tpu.memory_space<vmem>>, %arg6: memref<420x256xf32, #tpu.memory_space<vmem>>, %arg7: memref<1x256xf32, #tpu.memory_space<vmem>>, %arg8: memref<2560x128xf32, #tpu.memory_space<vmem>>, %arg9: memref<1x128xf32, #tpu.memory_space<vmem>>, %arg10: memref<128x128xf32, #tpu.memory_space<vmem>>, %arg11: memref<1x128xf32, #tpu.memory_space<vmem>>, %arg12: memref<128x128xf32, #tpu.memory_space<vmem>>, %arg13: memref<1x128xf32, #tpu.memory_space<vmem>>, %arg14: memref<8x128xf32, #tpu.memory_space<vmem>>, %arg15: memref<8x2560xf32, #tpu.memory_space<vmem>>) attributes {dimension_semantics = [#tpu.dimension_semantics<parallel>], iteration_bounds = array<i64: 2>, scalar_prefetch = 0 : i64, scratch_operands = 1 : i64, tpu.core_type = #tpu.core_type<tc>, window_params = [{transform_indices = @transform_0, window_bounds = array<i64: 8, 32, 32>}, {pipeline_mode = #tpu.pipeline_mode<synchronous>, transform_indices = @transform_1, window_bounds = array<i64: 160, 168>}, {pipeline_mode = #tpu.pipeline_mode<synchronous>, transform_indices = @transform_2, window_bounds = array<i64: 1, 168>}, {pipeline_mode = #tpu.pipeline_mode<synchronous>, transform_indices = @transform_3, window_bounds = array<i64: 168, 84>}, {pipeline_mode = #tpu.pipeline_mode<synchronous>, transform_indices = @transform_4, window_bounds = array<i64: 14, 28>}, {pipeline_mode = #tpu.pipeline_mode<synchronous>, transform_indices = @transform_5, window_bounds = array<i64: 420, 256>}, {pipeline_mode = #tpu.pipeline_mode<synchronous>, transform_indices = @transform_6, window_bounds = array<i64: 1, 256>}, {pipeline_mode = #tpu.pipeline_mode<synchronous>, transform_indices = @transform_7, window_bounds = array<i64: 2560, 128>}, {pipeline_mode = #tpu.pipeline_mode<synchronous>, transform_indices = @transform_8, window_bounds = array<i64: 1, 128>}, {pipeline_mode = #tpu.pipeline_mode<synchronous>, transform_indices = @transform_9, window_bounds = array<i64: 128, 128>}, {pipeline_mode = #tpu.pipeline_mode<synchronous>, transform_indices = @transform_10, window_bounds = array<i64: 1, 128>}, {pipeline_mode = #tpu.pipeline_mode<synchronous>, transform_indices = @transform_11, window_bounds = array<i64: 128, 128>}, {pipeline_mode = #tpu.pipeline_mode<synchronous>, transform_indices = @transform_12, window_bounds = array<i64: 1, 128>}, {transform_indices = @transform_13, window_bounds = array<i64: 8, 128>}]} {
    %c0 = arith.constant 0 : index
    %c0_0 = arith.constant 0 : index
    %0 = vector.load %arg2[%c0, %c0_0] : memref<160x168xf32, #tpu.memory_space<vmem>>, vector<160x168xf32>
    %c0_1 = arith.constant 0 : index
    %c0_2 = arith.constant 0 : index
    %1 = vector.load %arg3[%c0_1, %c0_2] : memref<1x168xf32, #tpu.memory_space<vmem>>, vector<1x168xf32>
    %c0_3 = arith.constant 0 : index
    %c0_4 = arith.constant 0 : index
    %2 = vector.load %arg4[%c0_3, %c0_4] : memref<168x84xf32, #tpu.memory_space<vmem>>, vector<168x84xf32>
    %c0_5 = arith.constant 0 : index
    %c0_6 = arith.constant 0 : index
    %3 = vector.load %arg5[%c0_5, %c0_6] : memref<14x28xf32, #tpu.memory_space<vmem>>, vector<14x28xf32>
    %c0_7 = arith.constant 0 : index
    %c0_8 = arith.constant 0 : index
    %4 = vector.load %arg6[%c0_7, %c0_8] : memref<420x256xf32, #tpu.memory_space<vmem>>, vector<420x256xf32>
    %c0_9 = arith.constant 0 : index
    %c0_10 = arith.constant 0 : index
    %5 = vector.load %arg7[%c0_9, %c0_10] : memref<1x256xf32, #tpu.memory_space<vmem>>, vector<1x256xf32>
    %c0_11 = arith.constant 0 : index
    %c0_12 = arith.constant 0 : index
    %c0_13 = arith.constant 0 : index
    %6 = vector.load %arg1[%c0_11, %c0_12, %c0_13] : memref<8x32x32xf32, #tpu.memory_space<vmem>>, vector<1x32x32xf32>
    %7 = vector.shape_cast %6 : vector<1x32x32xf32> to vector<32x32xf32>
    %8 = vector.extract_strided_slice %7 {offsets = [0, 0], sizes = [28, 32], strides = [1, 1]} : vector<32x32xf32> to vector<28x32xf32>
    %9 = vector.extract_strided_slice %7 {offsets = [1, 0], sizes = [28, 32], strides = [1, 1]} : vector<32x32xf32> to vector<28x32xf32>
    %10 = vector.extract_strided_slice %7 {offsets = [2, 0], sizes = [28, 32], strides = [1, 1]} : vector<32x32xf32> to vector<28x32xf32>
    %11 = vector.extract_strided_slice %7 {offsets = [3, 0], sizes = [28, 32], strides = [1, 1]} : vector<32x32xf32> to vector<28x32xf32>
    %12 = vector.extract_strided_slice %7 {offsets = [4, 0], sizes = [28, 32], strides = [1, 1]} : vector<32x32xf32> to vector<28x32xf32>
    %13 = tpu.concatenate %8, %9, %10, %11, %12 in 1 : vector<28x32xf32>, vector<28x32xf32>, vector<28x32xf32>, vector<28x32xf32>, vector<28x32xf32> -> vector<28x160xf32>
    %cst = arith.constant dense<0.000000e+00> : vector<28x168xf32>
    %14 = tpu.matmul %13, %0, %cst {dimension_numbers = #tpu.dot_dimension_numbers<[1], [0], [0], [1], [0, 0, 1, 1], [], []>} : vector<28x160xf32>, vector<160x168xf32>, vector<28x168xf32> -> vector<28x168xf32>
    %15 = vector.broadcast %1 : vector<1x168xf32> to vector<28x168xf32>
    %16 = arith.addf %14, %15 : vector<28x168xf32>
    %cst_14 = arith.constant 0.000000e+00 : f32
    %17 = vector.broadcast %cst_14 : f32 to vector<28x168xf32>
    %18 = arith.maximumf %16, %17 : vector<28x168xf32>
    %cst_15 = arith.constant dense<0.000000e+00> : vector<28x84xf32>
    %19 = tpu.matmul %18, %2, %cst_15 {dimension_numbers = #tpu.dot_dimension_numbers<[1], [0], [0], [1], [0, 0, 1, 1], [], []>} : vector<28x168xf32>, vector<168x84xf32>, vector<28x84xf32> -> vector<28x84xf32>
    %cst_16 = arith.constant dense<0.000000e+00> : vector<14x84xf32>
    %20 = tpu.matmul %3, %19, %cst_16 {dimension_numbers = #tpu.dot_dimension_numbers<[1], [0], [0], [1], [0, 0, 1, 1], [], []>} : vector<14x28xf32>, vector<28x84xf32>, vector<14x84xf32> -> vector<14x84xf32>
    %21 = vector.extract_strided_slice %20 {offsets = [0, 0], sizes = [10, 84], strides = [1, 1]} : vector<14x84xf32> to vector<10x84xf32>
    %22 = vector.extract_strided_slice %20 {offsets = [1, 0], sizes = [10, 84], strides = [1, 1]} : vector<14x84xf32> to vector<10x84xf32>
    %23 = vector.extract_strided_slice %20 {offsets = [2, 0], sizes = [10, 84], strides = [1, 1]} : vector<14x84xf32> to vector<10x84xf32>
    %24 = vector.extract_strided_slice %20 {offsets = [3, 0], sizes = [10, 84], strides = [1, 1]} : vector<14x84xf32> to vector<10x84xf32>
    %25 = vector.extract_strided_slice %20 {offsets = [4, 0], sizes = [10, 84], strides = [1, 1]} : vector<14x84xf32> to vector<10x84xf32>
    %26 = tpu.concatenate %21, %22, %23, %24, %25 in 1 : vector<10x84xf32>, vector<10x84xf32>, vector<10x84xf32>, vector<10x84xf32>, vector<10x84xf32> -> vector<10x420xf32>
    %cst_17 = arith.constant dense<0.000000e+00> : vector<10x256xf32>
    %27 = tpu.matmul %26, %4, %cst_17 {dimension_numbers = #tpu.dot_dimension_numbers<[1], [0], [0], [1], [0, 0, 1, 1], [], []>} : vector<10x420xf32>, vector<420x256xf32>, vector<10x256xf32> -> vector<10x256xf32>
    %28 = vector.broadcast %5 : vector<1x256xf32> to vector<10x256xf32>
    %29 = arith.addf %27, %28 : vector<10x256xf32>
    %cst_18 = arith.constant 0.000000e+00 : f32
    %30 = vector.broadcast %cst_18 : f32 to vector<10x256xf32>
    %31 = arith.maximumf %29, %30 : vector<10x256xf32>
    %32 = vector.extract_strided_slice %31 {offsets = [0, 0], sizes = [1, 256], strides = [1, 1]} : vector<10x256xf32> to vector<1x256xf32>
    %33 = vector.extract_strided_slice %31 {offsets = [1, 0], sizes = [1, 256], strides = [1, 1]} : vector<10x256xf32> to vector<1x256xf32>
    %34 = vector.extract_strided_slice %31 {offsets = [2, 0], sizes = [1, 256], strides = [1, 1]} : vector<10x256xf32> to vector<1x256xf32>
    %35 = vector.extract_strided_slice %31 {offsets = [3, 0], sizes = [1, 256], strides = [1, 1]} : vector<10x256xf32> to vector<1x256xf32>
    %36 = vector.extract_strided_slice %31 {offsets = [4, 0], sizes = [1, 256], strides = [1, 1]} : vector<10x256xf32> to vector<1x256xf32>
    %37 = vector.extract_strided_slice %31 {offsets = [5, 0], sizes = [1, 256], strides = [1, 1]} : vector<10x256xf32> to vector<1x256xf32>
    %38 = vector.extract_strided_slice %31 {offsets = [6, 0], sizes = [1, 256], strides = [1, 1]} : vector<10x256xf32> to vector<1x256xf32>
    %39 = vector.extract_strided_slice %31 {offsets = [7, 0], sizes = [1, 256], strides = [1, 1]} : vector<10x256xf32> to vector<1x256xf32>
    %40 = vector.extract_strided_slice %31 {offsets = [8, 0], sizes = [1, 256], strides = [1, 1]} : vector<10x256xf32> to vector<1x256xf32>
    %41 = vector.extract_strided_slice %31 {offsets = [9, 0], sizes = [1, 256], strides = [1, 1]} : vector<10x256xf32> to vector<1x256xf32>
    %42 = tpu.concatenate %32, %33, %34, %35, %36, %37, %38, %39, %40, %41 in 1 : vector<1x256xf32>, vector<1x256xf32>, vector<1x256xf32>, vector<1x256xf32>, vector<1x256xf32>, vector<1x256xf32>, vector<1x256xf32>, vector<1x256xf32>, vector<1x256xf32>, vector<1x256xf32> -> vector<1x2560xf32>
    %c0_19 = arith.constant 0 : index
    %c0_20 = arith.constant 0 : index
    %43 = vector.load %arg15[%c0_19, %c0_20] : memref<8x2560xf32, #tpu.memory_space<vmem>>, vector<1x2560xf32>
    tpu.vector_store %arg15[%c0_19, %c0_20], %42 {strides = array<i32>} : memref<8x2560xf32, #tpu.memory_space<vmem>>, vector<1x2560xf32>,
    %c1 = arith.constant 1 : index
    %c0_21 = arith.constant 0 : index
    %c0_22 = arith.constant 0 : index
    %44 = vector.load %arg1[%c1, %c0_21, %c0_22] : memref<8x32x32xf32, #tpu.memory_space<vmem>>, vector<1x32x32xf32>
    %45 = vector.shape_cast %44 : vector<1x32x32xf32> to vector<32x32xf32>
    %46 = vector.extract_strided_slice %45 {offsets = [0, 0], sizes = [28, 32], strides = [1, 1]} : vector<32x32xf32> to vector<28x32xf32>
    %47 = vector.extract_strided_slice %45 {offsets = [1, 0], sizes = [28, 32], strides = [1, 1]} : vector<32x32xf32> to vector<28x32xf32>
    %48 = vector.extract_strided_slice %45 {offsets = [2, 0], sizes = [28, 32], strides = [1, 1]} : vector<32x32xf32> to vector<28x32xf32>
    %49 = vector.extract_strided_slice %45 {offsets = [3, 0], sizes = [28, 32], strides = [1, 1]} : vector<32x32xf32> to vector<28x32xf32>
    %50 = vector.extract_strided_slice %45 {offsets = [4, 0], sizes = [28, 32], strides = [1, 1]} : vector<32x32xf32> to vector<28x32xf32>
    %51 = tpu.concatenate %46, %47, %48, %49, %50 in 1 : vector<28x32xf32>, vector<28x32xf32>, vector<28x32xf32>, vector<28x32xf32>, vector<28x32xf32> -> vector<28x160xf32>
    %cst_23 = arith.constant dense<0.000000e+00> : vector<28x168xf32>
    %52 = tpu.matmul %51, %0, %cst_23 {dimension_numbers = #tpu.dot_dimension_numbers<[1], [0], [0], [1], [0, 0, 1, 1], [], []>} : vector<28x160xf32>, vector<160x168xf32>, vector<28x168xf32> -> vector<28x168xf32>
    %53 = vector.broadcast %1 : vector<1x168xf32> to vector<28x168xf32>
    %54 = arith.addf %52, %53 : vector<28x168xf32>
    %cst_24 = arith.constant 0.000000e+00 : f32
    %55 = vector.broadcast %cst_24 : f32 to vector<28x168xf32>
    %56 = arith.maximumf %54, %55 : vector<28x168xf32>
    %cst_25 = arith.constant dense<0.000000e+00> : vector<28x84xf32>
    %57 = tpu.matmul %56, %2, %cst_25 {dimension_numbers = #tpu.dot_dimension_numbers<[1], [0], [0], [1], [0, 0, 1, 1], [], []>} : vector<28x168xf32>, vector<168x84xf32>, vector<28x84xf32> -> vector<28x84xf32>
    %cst_26 = arith.constant dense<0.000000e+00> : vector<14x84xf32>
    %58 = tpu.matmul %3, %57, %cst_26 {dimension_numbers = #tpu.dot_dimension_numbers<[1], [0], [0], [1], [0, 0, 1, 1], [], []>} : vector<14x28xf32>, vector<28x84xf32>, vector<14x84xf32> -> vector<14x84xf32>
    %59 = vector.extract_strided_slice %58 {offsets = [0, 0], sizes = [10, 84], strides = [1, 1]} : vector<14x84xf32> to vector<10x84xf32>
    %60 = vector.extract_strided_slice %58 {offsets = [1, 0], sizes = [10, 84], strides = [1, 1]} : vector<14x84xf32> to vector<10x84xf32>
    %61 = vector.extract_strided_slice %58 {offsets = [2, 0], sizes = [10, 84], strides = [1, 1]} : vector<14x84xf32> to vector<10x84xf32>
    %62 = vector.extract_strided_slice %58 {offsets = [3, 0], sizes = [10, 84], strides = [1, 1]} : vector<14x84xf32> to vector<10x84xf32>
    %63 = vector.extract_strided_slice %58 {offsets = [4, 0], sizes = [10, 84], strides = [1, 1]} : vector<14x84xf32> to vector<10x84xf32>
    %64 = tpu.concatenate %59, %60, %61, %62, %63 in 1 : vector<10x84xf32>, vector<10x84xf32>, vector<10x84xf32>, vector<10x84xf32>, vector<10x84xf32> -> vector<10x420xf32>
    %cst_27 = arith.constant dense<0.000000e+00> : vector<10x256xf32>
    %65 = tpu.matmul %64, %4, %cst_27 {dimension_numbers = #tpu.dot_dimension_numbers<[1], [0], [0], [1], [0, 0, 1, 1], [], []>} : vector<10x420xf32>, vector<420x256xf32>, vector<10x256xf32> -> vector<10x256xf32>
    %66 = vector.broadcast %5 : vector<1x256xf32> to vector<10x256xf32>
    %67 = arith.addf %65, %66 : vector<10x256xf32>
    %cst_28 = arith.constant 0.000000e+00 : f32
    %68 = vector.broadcast %cst_28 : f32 to vector<10x256xf32>
    %69 = arith.maximumf %67, %68 : vector<10x256xf32>
    %70 = vector.extract_strided_slice %69 {offsets = [0, 0], sizes = [1, 256], strides = [1, 1]} : vector<10x256xf32> to vector<1x256xf32>
    %71 = vector.extract_strided_slice %69 {offsets = [1, 0], sizes = [1, 256], strides = [1, 1]} : vector<10x256xf32> to vector<1x256xf32>
    %72 = vector.extract_strided_slice %69 {offsets = [2, 0], sizes = [1, 256], strides = [1, 1]} : vector<10x256xf32> to vector<1x256xf32>
    %73 = vector.extract_strided_slice %69 {offsets = [3, 0], sizes = [1, 256], strides = [1, 1]} : vector<10x256xf32> to vector<1x256xf32>
    %74 = vector.extract_strided_slice %69 {offsets = [4, 0], sizes = [1, 256], strides = [1, 1]} : vector<10x256xf32> to vector<1x256xf32>
    %75 = vector.extract_strided_slice %69 {offsets = [5, 0], sizes = [1, 256], strides = [1, 1]} : vector<10x256xf32> to vector<1x256xf32>
    %76 = vector.extract_strided_slice %69 {offsets = [6, 0], sizes = [1, 256], strides = [1, 1]} : vector<10x256xf32> to vector<1x256xf32>
    %77 = vector.extract_strided_slice %69 {offsets = [7, 0], sizes = [1, 256], strides = [1, 1]} : vector<10x256xf32> to vector<1x256xf32>
    %78 = vector.extract_strided_slice %69 {offsets = [8, 0], sizes = [1, 256], strides = [1, 1]} : vector<10x256xf32> to vector<1x256xf32>
    %79 = vector.extract_strided_slice %69 {offsets = [9, 0], sizes = [1, 256], strides = [1, 1]} : vector<10x256xf32> to vector<1x256xf32>
    %80 = tpu.concatenate %70, %71, %72, %73, %74, %75, %76, %77, %78, %79 in 1 : vector<1x256xf32>, vector<1x256xf32>, vector<1x256xf32>, vector<1x256xf32>, vector<1x256xf32>, vector<1x256xf32>, vector<1x256xf32>, vector<1x256xf32>, vector<1x256xf32>, vector<1x256xf32> -> vector<1x2560xf32>
    %c1_29 = arith.constant 1 : index
    %c0_30 = arith.constant 0 : index
    %81 = vector.load %arg15[%c1_29, %c0_30] : memref<8x2560xf32, #tpu.memory_space<vmem>>, vector<1x2560xf32>
    tpu.vector_store %arg15[%c1_29, %c0_30], %80 {strides = array<i32>} : memref<8x2560xf32, #tpu.memory_space<vmem>>, vector<1x2560xf32>,
    %c2 = arith.constant 2 : index
    %c0_31 = arith.constant 0 : index
    %c0_32 = arith.constant 0 : index
    %82 = vector.load %arg1[%c2, %c0_31, %c0_32] : memref<8x32x32xf32, #tpu.memory_space<vmem>>, vector<1x32x32xf32>
    %83 = vector.shape_cast %82 : vector<1x32x32xf32> to vector<32x32xf32>
    %84 = vector.extract_strided_slice %83 {offsets = [0, 0], sizes = [28, 32], strides = [1, 1]} : vector<32x32xf32> to vector<28x32xf32>
    %85 = vector.extract_strided_slice %83 {offsets = [1, 0], sizes = [28, 32], strides = [1, 1]} : vector<32x32xf32> to vector<28x32xf32>
    %86 = vector.extract_strided_slice %83 {offsets = [2, 0], sizes = [28, 32], strides = [1, 1]} : vector<32x32xf32> to vector<28x32xf32>
    %87 = vector.extract_strided_slice %83 {offsets = [3, 0], sizes = [28, 32], strides = [1, 1]} : vector<32x32xf32> to vector<28x32xf32>
    %88 = vector.extract_strided_slice %83 {offsets = [4, 0], sizes = [28, 32], strides = [1, 1]} : vector<32x32xf32> to vector<28x32xf32>
    %89 = tpu.concatenate %84, %85, %86, %87, %88 in 1 : vector<28x32xf32>, vector<28x32xf32>, vector<28x32xf32>, vector<28x32xf32>, vector<28x32xf32> -> vector<28x160xf32>
    %cst_33 = arith.constant dense<0.000000e+00> : vector<28x168xf32>
    %90 = tpu.matmul %89, %0, %cst_33 {dimension_numbers = #tpu.dot_dimension_numbers<[1], [0], [0], [1], [0, 0, 1, 1], [], []>} : vector<28x160xf32>, vector<160x168xf32>, vector<28x168xf32> -> vector<28x168xf32>
    %91 = vector.broadcast %1 : vector<1x168xf32> to vector<28x168xf32>
    %92 = arith.addf %90, %91 : vector<28x168xf32>
    %cst_34 = arith.constant 0.000000e+00 : f32
    %93 = vector.broadcast %cst_34 : f32 to vector<28x168xf32>
    %94 = arith.maximumf %92, %93 : vector<28x168xf32>
    %cst_35 = arith.constant dense<0.000000e+00> : vector<28x84xf32>
    %95 = tpu.matmul %94, %2, %cst_35 {dimension_numbers = #tpu.dot_dimension_numbers<[1], [0], [0], [1], [0, 0, 1, 1], [], []>} : vector<28x168xf32>, vector<168x84xf32>, vector<28x84xf32> -> vector<28x84xf32>
    %cst_36 = arith.constant dense<0.000000e+00> : vector<14x84xf32>
    %96 = tpu.matmul %3, %95, %cst_36 {dimension_numbers = #tpu.dot_dimension_numbers<[1], [0], [0], [1], [0, 0, 1, 1], [], []>} : vector<14x28xf32>, vector<28x84xf32>, vector<14x84xf32> -> vector<14x84xf32>
    %97 = vector.extract_strided_slice %96 {offsets = [0, 0], sizes = [10, 84], strides = [1, 1]} : vector<14x84xf32> to vector<10x84xf32>
    %98 = vector.extract_strided_slice %96 {offsets = [1, 0], sizes = [10, 84], strides = [1, 1]} : vector<14x84xf32> to vector<10x84xf32>
    %99 = vector.extract_strided_slice %96 {offsets = [2, 0], sizes = [10, 84], strides = [1, 1]} : vector<14x84xf32> to vector<10x84xf32>
    %100 = vector.extract_strided_slice %96 {offsets = [3, 0], sizes = [10, 84], strides = [1, 1]} : vector<14x84xf32> to vector<10x84xf32>
    %101 = vector.extract_strided_slice %96 {offsets = [4, 0], sizes = [10, 84], strides = [1, 1]} : vector<14x84xf32> to vector<10x84xf32>
    %102 = tpu.concatenate %97, %98, %99, %100, %101 in 1 : vector<10x84xf32>, vector<10x84xf32>, vector<10x84xf32>, vector<10x84xf32>, vector<10x84xf32> -> vector<10x420xf32>
    %cst_37 = arith.constant dense<0.000000e+00> : vector<10x256xf32>
    %103 = tpu.matmul %102, %4, %cst_37 {dimension_numbers = #tpu.dot_dimension_numbers<[1], [0], [0], [1], [0, 0, 1, 1], [], []>} : vector<10x420xf32>, vector<420x256xf32>, vector<10x256xf32> -> vector<10x256xf32>
    %104 = vector.broadcast %5 : vector<1x256xf32> to vector<10x256xf32>
    %105 = arith.addf %103, %104 : vector<10x256xf32>
    %cst_38 = arith.constant 0.000000e+00 : f32
    %106 = vector.broadcast %cst_38 : f32 to vector<10x256xf32>
    %107 = arith.maximumf %105, %106 : vector<10x256xf32>
    %108 = vector.extract_strided_slice %107 {offsets = [0, 0], sizes = [1, 256], strides = [1, 1]} : vector<10x256xf32> to vector<1x256xf32>
    %109 = vector.extract_strided_slice %107 {offsets = [1, 0], sizes = [1, 256], strides = [1, 1]} : vector<10x256xf32> to vector<1x256xf32>
    %110 = vector.extract_strided_slice %107 {offsets = [2, 0], sizes = [1, 256], strides = [1, 1]} : vector<10x256xf32> to vector<1x256xf32>
    %111 = vector.extract_strided_slice %107 {offsets = [3, 0], sizes = [1, 256], strides = [1, 1]} : vector<10x256xf32> to vector<1x256xf32>
    %112 = vector.extract_strided_slice %107 {offsets = [4, 0], sizes = [1, 256], strides = [1, 1]} : vector<10x256xf32> to vector<1x256xf32>
    %113 = vector.extract_strided_slice %107 {offsets = [5, 0], sizes = [1, 256], strides = [1, 1]} : vector<10x256xf32> to vector<1x256xf32>
    %114 = vector.extract_strided_slice %107 {offsets = [6, 0], sizes = [1, 256], strides = [1, 1]} : vector<10x256xf32> to vector<1x256xf32>
    %115 = vector.extract_strided_slice %107 {offsets = [7, 0], sizes = [1, 256], strides = [1, 1]} : vector<10x256xf32> to vector<1x256xf32>
    %116 = vector.extract_strided_slice %107 {offsets = [8, 0], sizes = [1, 256], strides = [1, 1]} : vector<10x256xf32> to vector<1x256xf32>
    %117 = vector.extract_strided_slice %107 {offsets = [9, 0], sizes = [1, 256], strides = [1, 1]} : vector<10x256xf32> to vector<1x256xf32>
    %118 = tpu.concatenate %108, %109, %110, %111, %112, %113, %114, %115, %116, %117 in 1 : vector<1x256xf32>, vector<1x256xf32>, vector<1x256xf32>, vector<1x256xf32>, vector<1x256xf32>, vector<1x256xf32>, vector<1x256xf32>, vector<1x256xf32>, vector<1x256xf32>, vector<1x256xf32> -> vector<1x2560xf32>
    %c2_39 = arith.constant 2 : index
    %c0_40 = arith.constant 0 : index
    %119 = vector.load %arg15[%c2_39, %c0_40] : memref<8x2560xf32, #tpu.memory_space<vmem>>, vector<1x2560xf32>
    tpu.vector_store %arg15[%c2_39, %c0_40], %118 {strides = array<i32>} : memref<8x2560xf32, #tpu.memory_space<vmem>>, vector<1x2560xf32>,
    %c3 = arith.constant 3 : index
    %c0_41 = arith.constant 0 : index
    %c0_42 = arith.constant 0 : index
    %120 = vector.load %arg1[%c3, %c0_41, %c0_42] : memref<8x32x32xf32, #tpu.memory_space<vmem>>, vector<1x32x32xf32>
    %121 = vector.shape_cast %120 : vector<1x32x32xf32> to vector<32x32xf32>
    %122 = vector.extract_strided_slice %121 {offsets = [0, 0], sizes = [28, 32], strides = [1, 1]} : vector<32x32xf32> to vector<28x32xf32>
    %123 = vector.extract_strided_slice %121 {offsets = [1, 0], sizes = [28, 32], strides = [1, 1]} : vector<32x32xf32> to vector<28x32xf32>
    %124 = vector.extract_strided_slice %121 {offsets = [2, 0], sizes = [28, 32], strides = [1, 1]} : vector<32x32xf32> to vector<28x32xf32>
    %125 = vector.extract_strided_slice %121 {offsets = [3, 0], sizes = [28, 32], strides = [1, 1]} : vector<32x32xf32> to vector<28x32xf32>
    %126 = vector.extract_strided_slice %121 {offsets = [4, 0], sizes = [28, 32], strides = [1, 1]} : vector<32x32xf32> to vector<28x32xf32>
    %127 = tpu.concatenate %122, %123, %124, %125, %126 in 1 : vector<28x32xf32>, vector<28x32xf32>, vector<28x32xf32>, vector<28x32xf32>, vector<28x32xf32> -> vector<28x160xf32>
    %cst_43 = arith.constant dense<0.000000e+00> : vector<28x168xf32>
    %128 = tpu.matmul %127, %0, %cst_43 {dimension_numbers = #tpu.dot_dimension_numbers<[1], [0], [0], [1], [0, 0, 1, 1], [], []>} : vector<28x160xf32>, vector<160x168xf32>, vector<28x168xf32> -> vector<28x168xf32>
    %129 = vector.broadcast %1 : vector<1x168xf32> to vector<28x168xf32>
    %130 = arith.addf %128, %129 : vector<28x168xf32>
    %cst_44 = arith.constant 0.000000e+00 : f32
    %131 = vector.broadcast %cst_44 : f32 to vector<28x168xf32>
    %132 = arith.maximumf %130, %131 : vector<28x168xf32>
    %cst_45 = arith.constant dense<0.000000e+00> : vector<28x84xf32>
    %133 = tpu.matmul %132, %2, %cst_45 {dimension_numbers = #tpu.dot_dimension_numbers<[1], [0], [0], [1], [0, 0, 1, 1], [], []>} : vector<28x168xf32>, vector<168x84xf32>, vector<28x84xf32> -> vector<28x84xf32>
    %cst_46 = arith.constant dense<0.000000e+00> : vector<14x84xf32>
    %134 = tpu.matmul %3, %133, %cst_46 {dimension_numbers = #tpu.dot_dimension_numbers<[1], [0], [0], [1], [0, 0, 1, 1], [], []>} : vector<14x28xf32>, vector<28x84xf32>, vector<14x84xf32> -> vector<14x84xf32>
    %135 = vector.extract_strided_slice %134 {offsets = [0, 0], sizes = [10, 84], strides = [1, 1]} : vector<14x84xf32> to vector<10x84xf32>
    %136 = vector.extract_strided_slice %134 {offsets = [1, 0], sizes = [10, 84], strides = [1, 1]} : vector<14x84xf32> to vector<10x84xf32>
    %137 = vector.extract_strided_slice %134 {offsets = [2, 0], sizes = [10, 84], strides = [1, 1]} : vector<14x84xf32> to vector<10x84xf32>
    %138 = vector.extract_strided_slice %134 {offsets = [3, 0], sizes = [10, 84], strides = [1, 1]} : vector<14x84xf32> to vector<10x84xf32>
    %139 = vector.extract_strided_slice %134 {offsets = [4, 0], sizes = [10, 84], strides = [1, 1]} : vector<14x84xf32> to vector<10x84xf32>
    %140 = tpu.concatenate %135, %136, %137, %138, %139 in 1 : vector<10x84xf32>, vector<10x84xf32>, vector<10x84xf32>, vector<10x84xf32>, vector<10x84xf32> -> vector<10x420xf32>
    %cst_47 = arith.constant dense<0.000000e+00> : vector<10x256xf32>
    %141 = tpu.matmul %140, %4, %cst_47 {dimension_numbers = #tpu.dot_dimension_numbers<[1], [0], [0], [1], [0, 0, 1, 1], [], []>} : vector<10x420xf32>, vector<420x256xf32>, vector<10x256xf32> -> vector<10x256xf32>
    %142 = vector.broadcast %5 : vector<1x256xf32> to vector<10x256xf32>
    %143 = arith.addf %141, %142 : vector<10x256xf32>
    %cst_48 = arith.constant 0.000000e+00 : f32
    %144 = vector.broadcast %cst_48 : f32 to vector<10x256xf32>
    %145 = arith.maximumf %143, %144 : vector<10x256xf32>
    %146 = vector.extract_strided_slice %145 {offsets = [0, 0], sizes = [1, 256], strides = [1, 1]} : vector<10x256xf32> to vector<1x256xf32>
    %147 = vector.extract_strided_slice %145 {offsets = [1, 0], sizes = [1, 256], strides = [1, 1]} : vector<10x256xf32> to vector<1x256xf32>
    %148 = vector.extract_strided_slice %145 {offsets = [2, 0], sizes = [1, 256], strides = [1, 1]} : vector<10x256xf32> to vector<1x256xf32>
    %149 = vector.extract_strided_slice %145 {offsets = [3, 0], sizes = [1, 256], strides = [1, 1]} : vector<10x256xf32> to vector<1x256xf32>
    %150 = vector.extract_strided_slice %145 {offsets = [4, 0], sizes = [1, 256], strides = [1, 1]} : vector<10x256xf32> to vector<1x256xf32>
    %151 = vector.extract_strided_slice %145 {offsets = [5, 0], sizes = [1, 256], strides = [1, 1]} : vector<10x256xf32> to vector<1x256xf32>
    %152 = vector.extract_strided_slice %145 {offsets = [6, 0], sizes = [1, 256], strides = [1, 1]} : vector<10x256xf32> to vector<1x256xf32>
    %153 = vector.extract_strided_slice %145 {offsets = [7, 0], sizes = [1, 256], strides = [1, 1]} : vector<10x256xf32> to vector<1x256xf32>
    %154 = vector.extract_strided_slice %145 {offsets = [8, 0], sizes = [1, 256], strides = [1, 1]} : vector<10x256xf32> to vector<1x256xf32>
    %155 = vector.extract_strided_slice %145 {offsets = [9, 0], sizes = [1, 256], strides = [1, 1]} : vector<10x256xf32> to vector<1x256xf32>
    %156 = tpu.concatenate %146, %147, %148, %149, %150, %151, %152, %153, %154, %155 in 1 : vector<1x256xf32>, vector<1x256xf32>, vector<1x256xf32>, vector<1x256xf32>, vector<1x256xf32>, vector<1x256xf32>, vector<1x256xf32>, vector<1x256xf32>, vector<1x256xf32>, vector<1x256xf32> -> vector<1x2560xf32>
    %c3_49 = arith.constant 3 : index
    %c0_50 = arith.constant 0 : index
    %157 = vector.load %arg15[%c3_49, %c0_50] : memref<8x2560xf32, #tpu.memory_space<vmem>>, vector<1x2560xf32>
    tpu.vector_store %arg15[%c3_49, %c0_50], %156 {strides = array<i32>} : memref<8x2560xf32, #tpu.memory_space<vmem>>, vector<1x2560xf32>,
    %c4 = arith.constant 4 : index
    %c0_51 = arith.constant 0 : index
    %c0_52 = arith.constant 0 : index
    %158 = vector.load %arg1[%c4, %c0_51, %c0_52] : memref<8x32x32xf32, #tpu.memory_space<vmem>>, vector<1x32x32xf32>
    %159 = vector.shape_cast %158 : vector<1x32x32xf32> to vector<32x32xf32>
    %160 = vector.extract_strided_slice %159 {offsets = [0, 0], sizes = [28, 32], strides = [1, 1]} : vector<32x32xf32> to vector<28x32xf32>
    %161 = vector.extract_strided_slice %159 {offsets = [1, 0], sizes = [28, 32], strides = [1, 1]} : vector<32x32xf32> to vector<28x32xf32>
    %162 = vector.extract_strided_slice %159 {offsets = [2, 0], sizes = [28, 32], strides = [1, 1]} : vector<32x32xf32> to vector<28x32xf32>
    %163 = vector.extract_strided_slice %159 {offsets = [3, 0], sizes = [28, 32], strides = [1, 1]} : vector<32x32xf32> to vector<28x32xf32>
    %164 = vector.extract_strided_slice %159 {offsets = [4, 0], sizes = [28, 32], strides = [1, 1]} : vector<32x32xf32> to vector<28x32xf32>
    %165 = tpu.concatenate %160, %161, %162, %163, %164 in 1 : vector<28x32xf32>, vector<28x32xf32>, vector<28x32xf32>, vector<28x32xf32>, vector<28x32xf32> -> vector<28x160xf32>
    %cst_53 = arith.constant dense<0.000000e+00> : vector<28x168xf32>
    %166 = tpu.matmul %165, %0, %cst_53 {dimension_numbers = #tpu.dot_dimension_numbers<[1], [0], [0], [1], [0, 0, 1, 1], [], []>} : vector<28x160xf32>, vector<160x168xf32>, vector<28x168xf32> -> vector<28x168xf32>
    %167 = vector.broadcast %1 : vector<1x168xf32> to vector<28x168xf32>
    %168 = arith.addf %166, %167 : vector<28x168xf32>
    %cst_54 = arith.constant 0.000000e+00 : f32
    %169 = vector.broadcast %cst_54 : f32 to vector<28x168xf32>
    %170 = arith.maximumf %168, %169 : vector<28x168xf32>
    %cst_55 = arith.constant dense<0.000000e+00> : vector<28x84xf32>
    %171 = tpu.matmul %170, %2, %cst_55 {dimension_numbers = #tpu.dot_dimension_numbers<[1], [0], [0], [1], [0, 0, 1, 1], [], []>} : vector<28x168xf32>, vector<168x84xf32>, vector<28x84xf32> -> vector<28x84xf32>
    %cst_56 = arith.constant dense<0.000000e+00> : vector<14x84xf32>
    %172 = tpu.matmul %3, %171, %cst_56 {dimension_numbers = #tpu.dot_dimension_numbers<[1], [0], [0], [1], [0, 0, 1, 1], [], []>} : vector<14x28xf32>, vector<28x84xf32>, vector<14x84xf32> -> vector<14x84xf32>
    %173 = vector.extract_strided_slice %172 {offsets = [0, 0], sizes = [10, 84], strides = [1, 1]} : vector<14x84xf32> to vector<10x84xf32>
    %174 = vector.extract_strided_slice %172 {offsets = [1, 0], sizes = [10, 84], strides = [1, 1]} : vector<14x84xf32> to vector<10x84xf32>
    %175 = vector.extract_strided_slice %172 {offsets = [2, 0], sizes = [10, 84], strides = [1, 1]} : vector<14x84xf32> to vector<10x84xf32>
    %176 = vector.extract_strided_slice %172 {offsets = [3, 0], sizes = [10, 84], strides = [1, 1]} : vector<14x84xf32> to vector<10x84xf32>
    %177 = vector.extract_strided_slice %172 {offsets = [4, 0], sizes = [10, 84], strides = [1, 1]} : vector<14x84xf32> to vector<10x84xf32>
    %178 = tpu.concatenate %173, %174, %175, %176, %177 in 1 : vector<10x84xf32>, vector<10x84xf32>, vector<10x84xf32>, vector<10x84xf32>, vector<10x84xf32> -> vector<10x420xf32>
    %cst_57 = arith.constant dense<0.000000e+00> : vector<10x256xf32>
    %179 = tpu.matmul %178, %4, %cst_57 {dimension_numbers = #tpu.dot_dimension_numbers<[1], [0], [0], [1], [0, 0, 1, 1], [], []>} : vector<10x420xf32>, vector<420x256xf32>, vector<10x256xf32> -> vector<10x256xf32>
    %180 = vector.broadcast %5 : vector<1x256xf32> to vector<10x256xf32>
    %181 = arith.addf %179, %180 : vector<10x256xf32>
    %cst_58 = arith.constant 0.000000e+00 : f32
    %182 = vector.broadcast %cst_58 : f32 to vector<10x256xf32>
    %183 = arith.maximumf %181, %182 : vector<10x256xf32>
    %184 = vector.extract_strided_slice %183 {offsets = [0, 0], sizes = [1, 256], strides = [1, 1]} : vector<10x256xf32> to vector<1x256xf32>
    %185 = vector.extract_strided_slice %183 {offsets = [1, 0], sizes = [1, 256], strides = [1, 1]} : vector<10x256xf32> to vector<1x256xf32>
    %186 = vector.extract_strided_slice %183 {offsets = [2, 0], sizes = [1, 256], strides = [1, 1]} : vector<10x256xf32> to vector<1x256xf32>
    %187 = vector.extract_strided_slice %183 {offsets = [3, 0], sizes = [1, 256], strides = [1, 1]} : vector<10x256xf32> to vector<1x256xf32>
    %188 = vector.extract_strided_slice %183 {offsets = [4, 0], sizes = [1, 256], strides = [1, 1]} : vector<10x256xf32> to vector<1x256xf32>
    %189 = vector.extract_strided_slice %183 {offsets = [5, 0], sizes = [1, 256], strides = [1, 1]} : vector<10x256xf32> to vector<1x256xf32>
    %190 = vector.extract_strided_slice %183 {offsets = [6, 0], sizes = [1, 256], strides = [1, 1]} : vector<10x256xf32> to vector<1x256xf32>
    %191 = vector.extract_strided_slice %183 {offsets = [7, 0], sizes = [1, 256], strides = [1, 1]} : vector<10x256xf32> to vector<1x256xf32>
    %192 = vector.extract_strided_slice %183 {offsets = [8, 0], sizes = [1, 256], strides = [1, 1]} : vector<10x256xf32> to vector<1x256xf32>
    %193 = vector.extract_strided_slice %183 {offsets = [9, 0], sizes = [1, 256], strides = [1, 1]} : vector<10x256xf32> to vector<1x256xf32>
    %194 = tpu.concatenate %184, %185, %186, %187, %188, %189, %190, %191, %192, %193 in 1 : vector<1x256xf32>, vector<1x256xf32>, vector<1x256xf32>, vector<1x256xf32>, vector<1x256xf32>, vector<1x256xf32>, vector<1x256xf32>, vector<1x256xf32>, vector<1x256xf32>, vector<1x256xf32> -> vector<1x2560xf32>
    %c4_59 = arith.constant 4 : index
    %c0_60 = arith.constant 0 : index
    %195 = vector.load %arg15[%c4_59, %c0_60] : memref<8x2560xf32, #tpu.memory_space<vmem>>, vector<1x2560xf32>
    tpu.vector_store %arg15[%c4_59, %c0_60], %194 {strides = array<i32>} : memref<8x2560xf32, #tpu.memory_space<vmem>>, vector<1x2560xf32>,
    %c5 = arith.constant 5 : index
    %c0_61 = arith.constant 0 : index
    %c0_62 = arith.constant 0 : index
    %196 = vector.load %arg1[%c5, %c0_61, %c0_62] : memref<8x32x32xf32, #tpu.memory_space<vmem>>, vector<1x32x32xf32>
    %197 = vector.shape_cast %196 : vector<1x32x32xf32> to vector<32x32xf32>
    %198 = vector.extract_strided_slice %197 {offsets = [0, 0], sizes = [28, 32], strides = [1, 1]} : vector<32x32xf32> to vector<28x32xf32>
    %199 = vector.extract_strided_slice %197 {offsets = [1, 0], sizes = [28, 32], strides = [1, 1]} : vector<32x32xf32> to vector<28x32xf32>
    %200 = vector.extract_strided_slice %197 {offsets = [2, 0], sizes = [28, 32], strides = [1, 1]} : vector<32x32xf32> to vector<28x32xf32>
    %201 = vector.extract_strided_slice %197 {offsets = [3, 0], sizes = [28, 32], strides = [1, 1]} : vector<32x32xf32> to vector<28x32xf32>
    %202 = vector.extract_strided_slice %197 {offsets = [4, 0], sizes = [28, 32], strides = [1, 1]} : vector<32x32xf32> to vector<28x32xf32>
    %203 = tpu.concatenate %198, %199, %200, %201, %202 in 1 : vector<28x32xf32>, vector<28x32xf32>, vector<28x32xf32>, vector<28x32xf32>, vector<28x32xf32> -> vector<28x160xf32>
    %cst_63 = arith.constant dense<0.000000e+00> : vector<28x168xf32>
    %204 = tpu.matmul %203, %0, %cst_63 {dimension_numbers = #tpu.dot_dimension_numbers<[1], [0], [0], [1], [0, 0, 1, 1], [], []>} : vector<28x160xf32>, vector<160x168xf32>, vector<28x168xf32> -> vector<28x168xf32>
    %205 = vector.broadcast %1 : vector<1x168xf32> to vector<28x168xf32>
    %206 = arith.addf %204, %205 : vector<28x168xf32>
    %cst_64 = arith.constant 0.000000e+00 : f32
    %207 = vector.broadcast %cst_64 : f32 to vector<28x168xf32>
    %208 = arith.maximumf %206, %207 : vector<28x168xf32>
    %cst_65 = arith.constant dense<0.000000e+00> : vector<28x84xf32>
    %209 = tpu.matmul %208, %2, %cst_65 {dimension_numbers = #tpu.dot_dimension_numbers<[1], [0], [0], [1], [0, 0, 1, 1], [], []>} : vector<28x168xf32>, vector<168x84xf32>, vector<28x84xf32> -> vector<28x84xf32>
    %cst_66 = arith.constant dense<0.000000e+00> : vector<14x84xf32>
    %210 = tpu.matmul %3, %209, %cst_66 {dimension_numbers = #tpu.dot_dimension_numbers<[1], [0], [0], [1], [0, 0, 1, 1], [], []>} : vector<14x28xf32>, vector<28x84xf32>, vector<14x84xf32> -> vector<14x84xf32>
    %211 = vector.extract_strided_slice %210 {offsets = [0, 0], sizes = [10, 84], strides = [1, 1]} : vector<14x84xf32> to vector<10x84xf32>
    %212 = vector.extract_strided_slice %210 {offsets = [1, 0], sizes = [10, 84], strides = [1, 1]} : vector<14x84xf32> to vector<10x84xf32>
    %213 = vector.extract_strided_slice %210 {offsets = [2, 0], sizes = [10, 84], strides = [1, 1]} : vector<14x84xf32> to vector<10x84xf32>
    %214 = vector.extract_strided_slice %210 {offsets = [3, 0], sizes = [10, 84], strides = [1, 1]} : vector<14x84xf32> to vector<10x84xf32>
    %215 = vector.extract_strided_slice %210 {offsets = [4, 0], sizes = [10, 84], strides = [1, 1]} : vector<14x84xf32> to vector<10x84xf32>
    %216 = tpu.concatenate %211, %212, %213, %214, %215 in 1 : vector<10x84xf32>, vector<10x84xf32>, vector<10x84xf32>, vector<10x84xf32>, vector<10x84xf32> -> vector<10x420xf32>
    %cst_67 = arith.constant dense<0.000000e+00> : vector<10x256xf32>
    %217 = tpu.matmul %216, %4, %cst_67 {dimension_numbers = #tpu.dot_dimension_numbers<[1], [0], [0], [1], [0, 0, 1, 1], [], []>} : vector<10x420xf32>, vector<420x256xf32>, vector<10x256xf32> -> vector<10x256xf32>
    %218 = vector.broadcast %5 : vector<1x256xf32> to vector<10x256xf32>
    %219 = arith.addf %217, %218 : vector<10x256xf32>
    %cst_68 = arith.constant 0.000000e+00 : f32
    %220 = vector.broadcast %cst_68 : f32 to vector<10x256xf32>
    %221 = arith.maximumf %219, %220 : vector<10x256xf32>
    %222 = vector.extract_strided_slice %221 {offsets = [0, 0], sizes = [1, 256], strides = [1, 1]} : vector<10x256xf32> to vector<1x256xf32>
    %223 = vector.extract_strided_slice %221 {offsets = [1, 0], sizes = [1, 256], strides = [1, 1]} : vector<10x256xf32> to vector<1x256xf32>
    %224 = vector.extract_strided_slice %221 {offsets = [2, 0], sizes = [1, 256], strides = [1, 1]} : vector<10x256xf32> to vector<1x256xf32>
    %225 = vector.extract_strided_slice %221 {offsets = [3, 0], sizes = [1, 256], strides = [1, 1]} : vector<10x256xf32> to vector<1x256xf32>
    %226 = vector.extract_strided_slice %221 {offsets = [4, 0], sizes = [1, 256], strides = [1, 1]} : vector<10x256xf32> to vector<1x256xf32>
    %227 = vector.extract_strided_slice %221 {offsets = [5, 0], sizes = [1, 256], strides = [1, 1]} : vector<10x256xf32> to vector<1x256xf32>
    %228 = vector.extract_strided_slice %221 {offsets = [6, 0], sizes = [1, 256], strides = [1, 1]} : vector<10x256xf32> to vector<1x256xf32>
    %229 = vector.extract_strided_slice %221 {offsets = [7, 0], sizes = [1, 256], strides = [1, 1]} : vector<10x256xf32> to vector<1x256xf32>
    %230 = vector.extract_strided_slice %221 {offsets = [8, 0], sizes = [1, 256], strides = [1, 1]} : vector<10x256xf32> to vector<1x256xf32>
    %231 = vector.extract_strided_slice %221 {offsets = [9, 0], sizes = [1, 256], strides = [1, 1]} : vector<10x256xf32> to vector<1x256xf32>
    %232 = tpu.concatenate %222, %223, %224, %225, %226, %227, %228, %229, %230, %231 in 1 : vector<1x256xf32>, vector<1x256xf32>, vector<1x256xf32>, vector<1x256xf32>, vector<1x256xf32>, vector<1x256xf32>, vector<1x256xf32>, vector<1x256xf32>, vector<1x256xf32>, vector<1x256xf32> -> vector<1x2560xf32>
    %c5_69 = arith.constant 5 : index
    %c0_70 = arith.constant 0 : index
    %233 = vector.load %arg15[%c5_69, %c0_70] : memref<8x2560xf32, #tpu.memory_space<vmem>>, vector<1x2560xf32>
    tpu.vector_store %arg15[%c5_69, %c0_70], %232 {strides = array<i32>} : memref<8x2560xf32, #tpu.memory_space<vmem>>, vector<1x2560xf32>,
    %c6 = arith.constant 6 : index
    %c0_71 = arith.constant 0 : index
    %c0_72 = arith.constant 0 : index
    %234 = vector.load %arg1[%c6, %c0_71, %c0_72] : memref<8x32x32xf32, #tpu.memory_space<vmem>>, vector<1x32x32xf32>
    %235 = vector.shape_cast %234 : vector<1x32x32xf32> to vector<32x32xf32>
    %236 = vector.extract_strided_slice %235 {offsets = [0, 0], sizes = [28, 32], strides = [1, 1]} : vector<32x32xf32> to vector<28x32xf32>
    %237 = vector.extract_strided_slice %235 {offsets = [1, 0], sizes = [28, 32], strides = [1, 1]} : vector<32x32xf32> to vector<28x32xf32>
    %238 = vector.extract_strided_slice %235 {offsets = [2, 0], sizes = [28, 32], strides = [1, 1]} : vector<32x32xf32> to vector<28x32xf32>
    %239 = vector.extract_strided_slice %235 {offsets = [3, 0], sizes = [28, 32], strides = [1, 1]} : vector<32x32xf32> to vector<28x32xf32>
    %240 = vector.extract_strided_slice %235 {offsets = [4, 0], sizes = [28, 32], strides = [1, 1]} : vector<32x32xf32> to vector<28x32xf32>
    %241 = tpu.concatenate %236, %237, %238, %239, %240 in 1 : vector<28x32xf32>, vector<28x32xf32>, vector<28x32xf32>, vector<28x32xf32>, vector<28x32xf32> -> vector<28x160xf32>
    %cst_73 = arith.constant dense<0.000000e+00> : vector<28x168xf32>
    %242 = tpu.matmul %241, %0, %cst_73 {dimension_numbers = #tpu.dot_dimension_numbers<[1], [0], [0], [1], [0, 0, 1, 1], [], []>} : vector<28x160xf32>, vector<160x168xf32>, vector<28x168xf32> -> vector<28x168xf32>
    %243 = vector.broadcast %1 : vector<1x168xf32> to vector<28x168xf32>
    %244 = arith.addf %242, %243 : vector<28x168xf32>
    %cst_74 = arith.constant 0.000000e+00 : f32
    %245 = vector.broadcast %cst_74 : f32 to vector<28x168xf32>
    %246 = arith.maximumf %244, %245 : vector<28x168xf32>
    %cst_75 = arith.constant dense<0.000000e+00> : vector<28x84xf32>
    %247 = tpu.matmul %246, %2, %cst_75 {dimension_numbers = #tpu.dot_dimension_numbers<[1], [0], [0], [1], [0, 0, 1, 1], [], []>} : vector<28x168xf32>, vector<168x84xf32>, vector<28x84xf32> -> vector<28x84xf32>
    %cst_76 = arith.constant dense<0.000000e+00> : vector<14x84xf32>
    %248 = tpu.matmul %3, %247, %cst_76 {dimension_numbers = #tpu.dot_dimension_numbers<[1], [0], [0], [1], [0, 0, 1, 1], [], []>} : vector<14x28xf32>, vector<28x84xf32>, vector<14x84xf32> -> vector<14x84xf32>
    %249 = vector.extract_strided_slice %248 {offsets = [0, 0], sizes = [10, 84], strides = [1, 1]} : vector<14x84xf32> to vector<10x84xf32>
    %250 = vector.extract_strided_slice %248 {offsets = [1, 0], sizes = [10, 84], strides = [1, 1]} : vector<14x84xf32> to vector<10x84xf32>
    %251 = vector.extract_strided_slice %248 {offsets = [2, 0], sizes = [10, 84], strides = [1, 1]} : vector<14x84xf32> to vector<10x84xf32>
    %252 = vector.extract_strided_slice %248 {offsets = [3, 0], sizes = [10, 84], strides = [1, 1]} : vector<14x84xf32> to vector<10x84xf32>
    %253 = vector.extract_strided_slice %248 {offsets = [4, 0], sizes = [10, 84], strides = [1, 1]} : vector<14x84xf32> to vector<10x84xf32>
    %254 = tpu.concatenate %249, %250, %251, %252, %253 in 1 : vector<10x84xf32>, vector<10x84xf32>, vector<10x84xf32>, vector<10x84xf32>, vector<10x84xf32> -> vector<10x420xf32>
    %cst_77 = arith.constant dense<0.000000e+00> : vector<10x256xf32>
    %255 = tpu.matmul %254, %4, %cst_77 {dimension_numbers = #tpu.dot_dimension_numbers<[1], [0], [0], [1], [0, 0, 1, 1], [], []>} : vector<10x420xf32>, vector<420x256xf32>, vector<10x256xf32> -> vector<10x256xf32>
    %256 = vector.broadcast %5 : vector<1x256xf32> to vector<10x256xf32>
    %257 = arith.addf %255, %256 : vector<10x256xf32>
    %cst_78 = arith.constant 0.000000e+00 : f32
    %258 = vector.broadcast %cst_78 : f32 to vector<10x256xf32>
    %259 = arith.maximumf %257, %258 : vector<10x256xf32>
    %260 = vector.extract_strided_slice %259 {offsets = [0, 0], sizes = [1, 256], strides = [1, 1]} : vector<10x256xf32> to vector<1x256xf32>
    %261 = vector.extract_strided_slice %259 {offsets = [1, 0], sizes = [1, 256], strides = [1, 1]} : vector<10x256xf32> to vector<1x256xf32>
    %262 = vector.extract_strided_slice %259 {offsets = [2, 0], sizes = [1, 256], strides = [1, 1]} : vector<10x256xf32> to vector<1x256xf32>
    %263 = vector.extract_strided_slice %259 {offsets = [3, 0], sizes = [1, 256], strides = [1, 1]} : vector<10x256xf32> to vector<1x256xf32>
    %264 = vector.extract_strided_slice %259 {offsets = [4, 0], sizes = [1, 256], strides = [1, 1]} : vector<10x256xf32> to vector<1x256xf32>
    %265 = vector.extract_strided_slice %259 {offsets = [5, 0], sizes = [1, 256], strides = [1, 1]} : vector<10x256xf32> to vector<1x256xf32>
    %266 = vector.extract_strided_slice %259 {offsets = [6, 0], sizes = [1, 256], strides = [1, 1]} : vector<10x256xf32> to vector<1x256xf32>
    %267 = vector.extract_strided_slice %259 {offsets = [7, 0], sizes = [1, 256], strides = [1, 1]} : vector<10x256xf32> to vector<1x256xf32>
    %268 = vector.extract_strided_slice %259 {offsets = [8, 0], sizes = [1, 256], strides = [1, 1]} : vector<10x256xf32> to vector<1x256xf32>
    %269 = vector.extract_strided_slice %259 {offsets = [9, 0], sizes = [1, 256], strides = [1, 1]} : vector<10x256xf32> to vector<1x256xf32>
    %270 = tpu.concatenate %260, %261, %262, %263, %264, %265, %266, %267, %268, %269 in 1 : vector<1x256xf32>, vector<1x256xf32>, vector<1x256xf32>, vector<1x256xf32>, vector<1x256xf32>, vector<1x256xf32>, vector<1x256xf32>, vector<1x256xf32>, vector<1x256xf32>, vector<1x256xf32> -> vector<1x2560xf32>
    %c6_79 = arith.constant 6 : index
    %c0_80 = arith.constant 0 : index
    %271 = vector.load %arg15[%c6_79, %c0_80] : memref<8x2560xf32, #tpu.memory_space<vmem>>, vector<1x2560xf32>
    tpu.vector_store %arg15[%c6_79, %c0_80], %270 {strides = array<i32>} : memref<8x2560xf32, #tpu.memory_space<vmem>>, vector<1x2560xf32>,
    %c7 = arith.constant 7 : index
    %c0_81 = arith.constant 0 : index
    %c0_82 = arith.constant 0 : index
    %272 = vector.load %arg1[%c7, %c0_81, %c0_82] : memref<8x32x32xf32, #tpu.memory_space<vmem>>, vector<1x32x32xf32>
    %273 = vector.shape_cast %272 : vector<1x32x32xf32> to vector<32x32xf32>
    %274 = vector.extract_strided_slice %273 {offsets = [0, 0], sizes = [28, 32], strides = [1, 1]} : vector<32x32xf32> to vector<28x32xf32>
    %275 = vector.extract_strided_slice %273 {offsets = [1, 0], sizes = [28, 32], strides = [1, 1]} : vector<32x32xf32> to vector<28x32xf32>
    %276 = vector.extract_strided_slice %273 {offsets = [2, 0], sizes = [28, 32], strides = [1, 1]} : vector<32x32xf32> to vector<28x32xf32>
    %277 = vector.extract_strided_slice %273 {offsets = [3, 0], sizes = [28, 32], strides = [1, 1]} : vector<32x32xf32> to vector<28x32xf32>
    %278 = vector.extract_strided_slice %273 {offsets = [4, 0], sizes = [28, 32], strides = [1, 1]} : vector<32x32xf32> to vector<28x32xf32>
    %279 = tpu.concatenate %274, %275, %276, %277, %278 in 1 : vector<28x32xf32>, vector<28x32xf32>, vector<28x32xf32>, vector<28x32xf32>, vector<28x32xf32> -> vector<28x160xf32>
    %cst_83 = arith.constant dense<0.000000e+00> : vector<28x168xf32>
    %280 = tpu.matmul %279, %0, %cst_83 {dimension_numbers = #tpu.dot_dimension_numbers<[1], [0], [0], [1], [0, 0, 1, 1], [], []>} : vector<28x160xf32>, vector<160x168xf32>, vector<28x168xf32> -> vector<28x168xf32>
    %281 = vector.broadcast %1 : vector<1x168xf32> to vector<28x168xf32>
    %282 = arith.addf %280, %281 : vector<28x168xf32>
    %cst_84 = arith.constant 0.000000e+00 : f32
    %283 = vector.broadcast %cst_84 : f32 to vector<28x168xf32>
    %284 = arith.maximumf %282, %283 : vector<28x168xf32>
    %cst_85 = arith.constant dense<0.000000e+00> : vector<28x84xf32>
    %285 = tpu.matmul %284, %2, %cst_85 {dimension_numbers = #tpu.dot_dimension_numbers<[1], [0], [0], [1], [0, 0, 1, 1], [], []>} : vector<28x168xf32>, vector<168x84xf32>, vector<28x84xf32> -> vector<28x84xf32>
    %cst_86 = arith.constant dense<0.000000e+00> : vector<14x84xf32>
    %286 = tpu.matmul %3, %285, %cst_86 {dimension_numbers = #tpu.dot_dimension_numbers<[1], [0], [0], [1], [0, 0, 1, 1], [], []>} : vector<14x28xf32>, vector<28x84xf32>, vector<14x84xf32> -> vector<14x84xf32>
    %287 = vector.extract_strided_slice %286 {offsets = [0, 0], sizes = [10, 84], strides = [1, 1]} : vector<14x84xf32> to vector<10x84xf32>
    %288 = vector.extract_strided_slice %286 {offsets = [1, 0], sizes = [10, 84], strides = [1, 1]} : vector<14x84xf32> to vector<10x84xf32>
    %289 = vector.extract_strided_slice %286 {offsets = [2, 0], sizes = [10, 84], strides = [1, 1]} : vector<14x84xf32> to vector<10x84xf32>
    %290 = vector.extract_strided_slice %286 {offsets = [3, 0], sizes = [10, 84], strides = [1, 1]} : vector<14x84xf32> to vector<10x84xf32>
    %291 = vector.extract_strided_slice %286 {offsets = [4, 0], sizes = [10, 84], strides = [1, 1]} : vector<14x84xf32> to vector<10x84xf32>
    %292 = tpu.concatenate %287, %288, %289, %290, %291 in 1 : vector<10x84xf32>, vector<10x84xf32>, vector<10x84xf32>, vector<10x84xf32>, vector<10x84xf32> -> vector<10x420xf32>
    %cst_87 = arith.constant dense<0.000000e+00> : vector<10x256xf32>
    %293 = tpu.matmul %292, %4, %cst_87 {dimension_numbers = #tpu.dot_dimension_numbers<[1], [0], [0], [1], [0, 0, 1, 1], [], []>} : vector<10x420xf32>, vector<420x256xf32>, vector<10x256xf32> -> vector<10x256xf32>
    %294 = vector.broadcast %5 : vector<1x256xf32> to vector<10x256xf32>
    %295 = arith.addf %293, %294 : vector<10x256xf32>
    %cst_88 = arith.constant 0.000000e+00 : f32
    %296 = vector.broadcast %cst_88 : f32 to vector<10x256xf32>
    %297 = arith.maximumf %295, %296 : vector<10x256xf32>
    %298 = vector.extract_strided_slice %297 {offsets = [0, 0], sizes = [1, 256], strides = [1, 1]} : vector<10x256xf32> to vector<1x256xf32>
    %299 = vector.extract_strided_slice %297 {offsets = [1, 0], sizes = [1, 256], strides = [1, 1]} : vector<10x256xf32> to vector<1x256xf32>
    %300 = vector.extract_strided_slice %297 {offsets = [2, 0], sizes = [1, 256], strides = [1, 1]} : vector<10x256xf32> to vector<1x256xf32>
    %301 = vector.extract_strided_slice %297 {offsets = [3, 0], sizes = [1, 256], strides = [1, 1]} : vector<10x256xf32> to vector<1x256xf32>
    %302 = vector.extract_strided_slice %297 {offsets = [4, 0], sizes = [1, 256], strides = [1, 1]} : vector<10x256xf32> to vector<1x256xf32>
    %303 = vector.extract_strided_slice %297 {offsets = [5, 0], sizes = [1, 256], strides = [1, 1]} : vector<10x256xf32> to vector<1x256xf32>
    %304 = vector.extract_strided_slice %297 {offsets = [6, 0], sizes = [1, 256], strides = [1, 1]} : vector<10x256xf32> to vector<1x256xf32>
    %305 = vector.extract_strided_slice %297 {offsets = [7, 0], sizes = [1, 256], strides = [1, 1]} : vector<10x256xf32> to vector<1x256xf32>
    %306 = vector.extract_strided_slice %297 {offsets = [8, 0], sizes = [1, 256], strides = [1, 1]} : vector<10x256xf32> to vector<1x256xf32>
    %307 = vector.extract_strided_slice %297 {offsets = [9, 0], sizes = [1, 256], strides = [1, 1]} : vector<10x256xf32> to vector<1x256xf32>
    %308 = tpu.concatenate %298, %299, %300, %301, %302, %303, %304, %305, %306, %307 in 1 : vector<1x256xf32>, vector<1x256xf32>, vector<1x256xf32>, vector<1x256xf32>, vector<1x256xf32>, vector<1x256xf32>, vector<1x256xf32>, vector<1x256xf32>, vector<1x256xf32>, vector<1x256xf32> -> vector<1x2560xf32>
    %c7_89 = arith.constant 7 : index
    %c0_90 = arith.constant 0 : index
    %309 = vector.load %arg15[%c7_89, %c0_90] : memref<8x2560xf32, #tpu.memory_space<vmem>>, vector<1x2560xf32>
    tpu.vector_store %arg15[%c7_89, %c0_90], %308 {strides = array<i32>} : memref<8x2560xf32, #tpu.memory_space<vmem>>, vector<1x2560xf32>,
    %c0_91 = arith.constant 0 : index
    %c0_92 = arith.constant 0 : index
    %310 = vector.load %arg15[%c0_91, %c0_92] : memref<8x2560xf32, #tpu.memory_space<vmem>>, vector<8x2560xf32>
    %c0_93 = arith.constant 0 : index
    %c0_94 = arith.constant 0 : index
    %311 = vector.load %arg8[%c0_93, %c0_94] : memref<2560x128xf32, #tpu.memory_space<vmem>>, vector<2560x128xf32>
    %cst_95 = arith.constant dense<0.000000e+00> : vector<8x128xf32>
    %312 = tpu.matmul %310, %311, %cst_95 {dimension_numbers = #tpu.dot_dimension_numbers<[1], [0], [0], [1], [0, 0, 1, 1], [], []>} : vector<8x2560xf32>, vector<2560x128xf32>, vector<8x128xf32> -> vector<8x128xf32>
    %c0_96 = arith.constant 0 : index
    %c0_97 = arith.constant 0 : index
    %313 = vector.load %arg9[%c0_96, %c0_97] : memref<1x128xf32, #tpu.memory_space<vmem>>, vector<1x128xf32>
    %314 = vector.broadcast %313 : vector<1x128xf32> to vector<8x128xf32>
    %315 = arith.addf %312, %314 : vector<8x128xf32>
    %cst_98 = arith.constant 0.000000e+00 : f32
    %316 = vector.broadcast %cst_98 : f32 to vector<8x128xf32>
    %317 = arith.maximumf %315, %316 : vector<8x128xf32>
    %c0_99 = arith.constant 0 : index
    %c0_100 = arith.constant 0 : index
    %318 = vector.load %arg10[%c0_99, %c0_100] : memref<128x128xf32, #tpu.memory_space<vmem>>, vector<128x128xf32>
    %cst_101 = arith.constant dense<0.000000e+00> : vector<8x128xf32>
    %319 = tpu.matmul %317, %318, %cst_101 {dimension_numbers = #tpu.dot_dimension_numbers<[1], [0], [0], [1], [0, 0, 1, 1], [], []>} : vector<8x128xf32>, vector<128x128xf32>, vector<8x128xf32> -> vector<8x128xf32>
    %c0_102 = arith.constant 0 : index
    %c0_103 = arith.constant 0 : index
    %320 = vector.load %arg11[%c0_102, %c0_103] : memref<1x128xf32, #tpu.memory_space<vmem>>, vector<1x128xf32>
    %321 = vector.broadcast %320 : vector<1x128xf32> to vector<8x128xf32>
    %322 = arith.addf %319, %321 : vector<8x128xf32>
    %cst_104 = arith.constant 0.000000e+00 : f32
    %323 = vector.broadcast %cst_104 : f32 to vector<8x128xf32>
    %324 = arith.maximumf %322, %323 : vector<8x128xf32>
    %c0_105 = arith.constant 0 : index
    %c0_106 = arith.constant 0 : index
    %325 = vector.load %arg12[%c0_105, %c0_106] : memref<128x128xf32, #tpu.memory_space<vmem>>, vector<128x128xf32>
    %cst_107 = arith.constant dense<0.000000e+00> : vector<8x128xf32>
    %326 = tpu.matmul %324, %325, %cst_107 {dimension_numbers = #tpu.dot_dimension_numbers<[1], [0], [0], [1], [0, 0, 1, 1], [], []>} : vector<8x128xf32>, vector<128x128xf32>, vector<8x128xf32> -> vector<8x128xf32>
    %c0_108 = arith.constant 0 : index
    %c0_109 = arith.constant 0 : index
    %327 = vector.load %arg13[%c0_108, %c0_109] : memref<1x128xf32, #tpu.memory_space<vmem>>, vector<1x128xf32>
    %328 = vector.broadcast %327 : vector<1x128xf32> to vector<8x128xf32>
    %329 = arith.addf %326, %328 : vector<8x128xf32>
    %c0_110 = arith.constant 0 : index
    %c0_111 = arith.constant 0 : index
    %330 = vector.load %arg14[%c0_110, %c0_111] : memref<8x128xf32, #tpu.memory_space<vmem>>, vector<8x128xf32>
    tpu.vector_store %arg14[%c0_110, %c0_111], %329 {strides = array<i32>} : memref<8x128xf32, #tpu.memory_space<vmem>>, vector<8x128xf32>,
    return
  }
  func.func @transform_0(%arg0: i32) -> (i32, i32, i32) {
    %c0_i32 = arith.constant 0 : i32
    %c0_i32_0 = arith.constant 0 : i32
    %c0_i32_1 = arith.constant 0 : i32
    return %arg0, %c0_i32, %c0_i32_0 : i32, i32, i32
  }
  func.func @transform_1(%arg0: i32) -> (i32, i32) {
    %c0_i32 = arith.constant 0 : i32
    %c0_i32_0 = arith.constant 0 : i32
    %c0_i32_1 = arith.constant 0 : i32
    return %c0_i32, %c0_i32_0 : i32, i32
  }
  func.func @transform_2(%arg0: i32) -> (i32, i32) {
    %c0_i32 = arith.constant 0 : i32
    %c0_i32_0 = arith.constant 0 : i32
    %c0_i32_1 = arith.constant 0 : i32
    return %c0_i32, %c0_i32_0 : i32, i32
  }
  func.func @transform_3(%arg0: i32) -> (i32, i32) {
    %c0_i32 = arith.constant 0 : i32
    %c0_i32_0 = arith.constant 0 : i32
    %c0_i32_1 = arith.constant 0 : i32
    return %c0_i32, %c0_i32_0 : i32, i32
  }
  func.func @transform_4(%arg0: i32) -> (i32, i32) {
    %c0_i32 = arith.constant 0 : i32
    %c0_i32_0 = arith.constant 0 : i32
    %c0_i32_1 = arith.constant 0 : i32
    return %c0_i32, %c0_i32_0 : i32, i32
  }
  func.func @transform_5(%arg0: i32) -> (i32, i32) {
    %c0_i32 = arith.constant 0 : i32
    %c0_i32_0 = arith.constant 0 : i32
    %c0_i32_1 = arith.constant 0 : i32
    return %c0_i32, %c0_i32_0 : i32, i32
  }
  func.func @transform_6(%arg0: i32) -> (i32, i32) {
    %c0_i32 = arith.constant 0 : i32
    %c0_i32_0 = arith.constant 0 : i32
    %c0_i32_1 = arith.constant 0 : i32
    return %c0_i32, %c0_i32_0 : i32, i32
  }
  func.func @transform_7(%arg0: i32) -> (i32, i32) {
    %c0_i32 = arith.constant 0 : i32
    %c0_i32_0 = arith.constant 0 : i32
    %c0_i32_1 = arith.constant 0 : i32
    return %c0_i32, %c0_i32_0 : i32, i32
  }
  func.func @transform_8(%arg0: i32) -> (i32, i32) {
    %c0_i32 = arith.constant 0 : i32
    %c0_i32_0 = arith.constant 0 : i32
    %c0_i32_1 = arith.constant 0 : i32
    return %c0_i32, %c0_i32_0 : i32, i32
  }
  func.func @transform_9(%arg0: i32) -> (i32, i32) {
    %c0_i32 = arith.constant 0 : i32
    %c0_i32_0 = arith.constant 0 : i32
    %c0_i32_1 = arith.constant 0 : i32
    return %c0_i32, %c0_i32_0 : i32, i32
  }
  func.func @transform_10(%arg0: i32) -> (i32, i32) {
    %c0_i32 = arith.constant 0 : i32
    %c0_i32_0 = arith.constant 0 : i32
    %c0_i32_1 = arith.constant 0 : i32
    return %c0_i32, %c0_i32_0 : i32, i32
  }
  func.func @transform_11(%arg0: i32) -> (i32, i32) {
    %c0_i32 = arith.constant 0 : i32
    %c0_i32_0 = arith.constant 0 : i32
    %c0_i32_1 = arith.constant 0 : i32
    return %c0_i32, %c0_i32_0 : i32, i32
  }
  func.func @transform_12(%arg0: i32) -> (i32, i32) {
    %c0_i32 = arith.constant 0 : i32
    %c0_i32_0 = arith.constant 0 : i32
    %c0_i32_1 = arith.constant 0 : i32
    return %c0_i32, %c0_i32_0 : i32, i32
  }
  func.func @transform_13(%arg0: i32) -> (i32, i32) {
    %c0_i32 = arith.constant 0 : i32
    %c0_i32_0 = arith.constant 0 : i32
    return %arg0, %c0_i32 : i32, i32
  }
}

</mosaic_0001>

<llo_original>
// kernel: letnet_forward.1
$region0: #{letnet_forward.1}
  #allocation0 [shape = 'u32[]', space=smem, size = 0x4, offset = 0x4, fixed_abs, tag = 'smem constant byte address 0x4 - core index']
  #allocation1 [shape = 'u32[144,128]{1,0:T(1,128)}', space=vmem, size = 0x12000, scoped, tag = 'internal scratch']
  #allocation2 [shape = 'f32[8,2560]{1,0:T(8,128)}', space=vmem, size = 0x14000, scoped, tag = 'scratch operand']
  %s0 = inlined_call_operand.vmem [shape: f32[16,32,32], index: 0, kind: input, shape index: {}]
  %s1 = inlined_call_operand.hbm [shape: f32[160,168], index: 1, kind: input, shape index: {}]
  %s2 = inlined_call_operand.hbm [shape: f32[1,168], index: 2, kind: input, shape index: {}]
  %s3 = inlined_call_operand.hbm [shape: f32[168,84], index: 3, kind: input, shape index: {}]
  %s4 = inlined_call_operand.hbm [shape: f32[14,28], index: 4, kind: input, shape index: {}]
  %s5 = inlined_call_operand.hbm [shape: f32[420,256], index: 5, kind: input, shape index: {}]
  %s6 = inlined_call_operand.hbm [shape: f32[1,256], index: 6, kind: input, shape index: {}]
  %s7 = inlined_call_operand.hbm [shape: f32[2560,128], index: 7, kind: input, shape index: {}]
  %s8 = inlined_call_operand.hbm [shape: f32[1,128], index: 8, kind: input, shape index: {}]
  %s9 = inlined_call_operand.hbm [shape: f32[128,128], index: 9, kind: input, shape index: {}]
  %s10 = inlined_call_operand.hbm [shape: f32[1,128], index: 10, kind: input, shape index: {}]
  %s11 = inlined_call_operand.hbm [shape: f32[128,128], index: 11, kind: input, shape index: {}]
  %s12 = inlined_call_operand.hbm [shape: f32[1,128], index: 12, kind: input, shape index: {}]
  %s13 = inlined_call_operand.hbm [shape: f32[16,128], index: 13, kind: output, shape index: {}]
  %s14 = sld [smem:[#allocation0]]
  $region133: #{letnet_forward.1} parent=0
    _
  %s16 = ssub.s32 1, %s14
  %s17 = scalar_select 0, %s16, %s14
  $region1: #{letnet_forward.1} parent=0
    #allocation3 [shape = 'u8[163840]{0}', space=vmem, size = 0x28000, scoped, tag = 'input window, operand 1, single buffered']
    #allocation4 [shape = 's32[2]{0}', space=sflag, size = 0x8, scoped, tag = 'scoped memory for letnet_forward.1']
    #allocation5 [shape = 's32[2]{0}', space=sflag, size = 0x8, scoped, tag = 'scoped memory for letnet_forward.1']
    #allocation6 [shape = 'u8[1024]{0}', space=vmem, size = 0x400, scoped, tag = 'input window, operand 2, single buffered']
    #allocation7 [shape = 's32[1]{0}', space=sflag, size = 0x4, scoped, tag = 'scoped memory for letnet_forward.1']
    #allocation8 [shape = 'u8[86016]{0}', space=vmem, size = 0x15000, scoped, tag = 'input window, operand 3, single buffered']
    #allocation9 [shape = 'u8[8192]{0}', space=vmem, size = 0x2000, scoped, tag = 'input window, operand 4, single buffered']
    #allocation10 [shape = 's32[1]{0}', space=sflag, size = 0x4, scoped, tag = 'scoped memory for letnet_forward.1']
    #allocation11 [shape = 'u8[434176]{0}', space=vmem, size = 0x6a000, scoped, tag = 'input window, operand 5, single buffered']
    #allocation12 [shape = 'u8[1024]{0}', space=vmem, size = 0x400, scoped, tag = 'input window, operand 6, single buffered']
    #allocation13 [shape = 's32[1]{0}', space=sflag, size = 0x4, scoped, tag = 'scoped memory for letnet_forward.1']
    #allocation14 [shape = 'u8[1310720]{0}', space=vmem, size = 0x140000, scoped, tag = 'input window, operand 7, single buffered']
    #allocation15 [shape = 'u8[512]{0}', space=vmem, size = 0x400, scoped, tag = 'input window, operand 8, single buffered']
    #allocation16 [shape = 's32[1]{0}', space=sflag, size = 0x4, scoped, tag = 'scoped memory for letnet_forward.1']
    #allocation17 [shape = 'u8[65536]{0}', space=vmem, size = 0x10000, scoped, tag = 'input window, operand 9, single buffered']
    #allocation18 [shape = 'u8[512]{0}', space=vmem, size = 0x400, scoped, tag = 'input window, operand 10, single buffered']
    #allocation19 [shape = 's32[1]{0}', space=sflag, size = 0x4, scoped, tag = 'scoped memory for letnet_forward.1']
    #allocation20 [shape = 'u8[65536]{0}', space=vmem, size = 0x10000, scoped, tag = 'input window, operand 11, single buffered']
    #allocation21 [shape = 'u8[512]{0}', space=vmem, size = 0x400, scoped, tag = 'input window, operand 12, single buffered']
    #allocation22 [shape = 's32[1]{0}', space=sflag, size = 0x4, scoped, tag = 'scoped memory for letnet_forward.1']
    #allocation23 [shape = 'u8[8192]{0}', space=vmem, size = 0x2000, scoped, tag = 'output window, operand 0']
    %18 = vsyncpa [#allocation4], 0
    %19 = vsyncpa [#allocation7], 0
    %20 = vsyncpa [#allocation10], 0
    %21 = vsyncpa [#allocation13], 0
    %22 = vsyncpa [#allocation16], 0
    %23 = vsyncpa [#allocation19], 0
    %24 = vsyncpa [#allocation22], 0
    %25 = vsyncpa [#allocation5], 0
    %s26 = scalar_lea.sflag [#allocation5], 1
    %27 = vsyncpa %s26, 0
    loop: start=0, step=1, limit=4
    $region2: #{letnet_forward.1} parent=1 // loop_pre_header
      _
    $region3: #{letnet_forward.1} parent=1 // loop_header
      %s29 = sphi 0, %s33
      %p30 = scmp.ge.s32.totalorder %s29, 4
      %s39 = sphi 0, %s41
      %s42 = sphi 0, %s39
      %s43 = sphi 0, %s42
      %s59 = sphi 0, %s43
      %s63 = sphi 0, %s63
      %s65 = sphi 0, %s63
      %s66 = sphi 0, %s65
      %s80 = sphi 0, %s66
      %s84 = sphi 0, %s84
      %s86 = sphi 0, %s84
      %s87 = sphi 0, %s86
      %s101 = sphi 0, %s87
      %s105 = sphi 0, %s105
      %s107 = sphi 0, %s105
      %s108 = sphi 0, %s107
      %s122 = sphi 0, %s108
      %s126 = sphi 0, %s126
      %s128 = sphi 0, %s126
      %s129 = sphi 0, %s128
      %s143 = sphi 0, %s129
      %s147 = sphi 0, %s147
      %s149 = sphi 0, %s147
      %s150 = sphi 0, %s149
      %s164 = sphi 0, %s150
      %s168 = sphi 0, %s168
      %s170 = sphi 0, %s168
      %s171 = sphi 0, %s170
      %s185 = sphi 0, %s171
      %s189 = sphi 0, %s189
      %s191 = sphi 0, %s189
      %s192 = sphi 0, %s191
      %s206 = sphi 0, %s192
      %s210 = sphi 0, %s210
      %s212 = sphi 0, %s210
      %s213 = sphi 0, %s212
      %s227 = sphi 0, %s213
      %s231 = sphi 0, %s231
      %s233 = sphi 0, %s231
      %s234 = sphi 0, %s233
      %s248 = sphi 0, %s234
      %s252 = sphi 0, %s252
      %s254 = sphi 0, %s252
      %s255 = sphi 0, %s254
      %s269 = sphi 0, %s255
      %s273 = sphi 0, %s273
      %s275 = sphi 0, %s273
      %s276 = sphi 0, %s275
      %s290 = sphi 0, %s276
      %s294 = sphi 0, %s294
      %s296 = sphi 0, %s294
      %s297 = sphi 0, %s296
      %s311 = sphi 0, %s297
      %s317 = sphi 0, %s319
      %s320 = sphi 0, %s317
      %s321 = sphi 0, %s320
      %s337 = sphi 0, %s321
    $region4: #{letnet_forward.1} parent=1 // loop_header_branch
      %32 = sbr.rel (%p30) target = $region8
    $region5: #{letnet_forward.1} parent=1 // loop_body
      %s34 = ssub.s32 %s29, 1
      %s35 = ssub.s32 %s29, 2
      %s36 = sadd.s32 %s29, 1
      %s37 = ssub.s32 %s29, %s36
      %p38 = scmp.eq.s32.totalorder %s37, 0
      %s40 = sadd.s32 %s39, 1
      %s41 = scalar_select %p38, %s39, %s40
      %p44 = pneg %p38
      %p45 = scmp.eq.s32.totalorder %s29, 1
      %p46 = por %p44, %p45
      %p47 = scmp.ne.s32.totalorder %s39, %s42
      %p48 = scmp.eq.s32.totalorder %s29, 0
      %p49 = por %p47, %p48
      %p50 = scmp.ne.s32.totalorder %s39, %s42
      %p51 = scmp.eq.s32.totalorder %s34, 1
      %p52 = por %p50, %p51
      %p53 = scmp.ne.s32.totalorder %s42, %s43
      %p54 = scmp.eq.s32.totalorder %s34, 0
      %p55 = por %p53, %p54
      %p56 = scmp.ne.s32.totalorder %s42, %s43
      %p57 = scmp.eq.s32.totalorder %s35, 1
      %p58 = por %p56, %p57
      %p60 = scmp.ne.s32.totalorder %s43, %s59
      %p61 = scmp.eq.s32.totalorder %s35, 0
      %p62 = por %p60, %p61
      %s64 = sadd.s32 %s63, 1
      %p67 = scmp.eq.s32.totalorder %s29, 1
      %p68 = scmp.ne.s32.totalorder %s63, %s65
      %p69 = scmp.eq.s32.totalorder %s29, 0
      %p70 = por %p68, %p69
      %p71 = scmp.ne.s32.totalorder %s63, %s65
      %p72 = scmp.eq.s32.totalorder %s34, 1
      %p73 = por %p71, %p72
      %p74 = scmp.ne.s32.totalorder %s65, %s66
      %p75 = scmp.eq.s32.totalorder %s34, 0
      %p76 = por %p74, %p75
      %p77 = scmp.ne.s32.totalorder %s65, %s66
      %p78 = scmp.eq.s32.totalorder %s35, 1
      %p79 = por %p77, %p78
      %p81 = scmp.ne.s32.totalorder %s66, %s80
      %p82 = scmp.eq.s32.totalorder %s35, 0
      %p83 = por %p81, %p82
      %s85 = sadd.s32 %s84, 1
      %p88 = scmp.eq.s32.totalorder %s29, 1
      %p89 = scmp.ne.s32.totalorder %s84, %s86
      %p90 = scmp.eq.s32.totalorder %s29, 0
      %p91 = por %p89, %p90
      %p92 = scmp.ne.s32.totalorder %s84, %s86
      %p93 = scmp.eq.s32.totalorder %s34, 1
      %p94 = por %p92, %p93
      %p95 = scmp.ne.s32.totalorder %s86, %s87
      %p96 = scmp.eq.s32.totalorder %s34, 0
      %p97 = por %p95, %p96
      %p98 = scmp.ne.s32.totalorder %s86, %s87
      %p99 = scmp.eq.s32.totalorder %s35, 1
      %p100 = por %p98, %p99
      %p102 = scmp.ne.s32.totalorder %s87, %s101
      %p103 = scmp.eq.s32.totalorder %s35, 0
      %p104 = por %p102, %p103
      %s106 = sadd.s32 %s105, 1
      %p109 = scmp.eq.s32.totalorder %s29, 1
      %p110 = scmp.ne.s32.totalorder %s105, %s107
      %p111 = scmp.eq.s32.totalorder %s29, 0
      %p112 = por %p110, %p111
      %p113 = scmp.ne.s32.totalorder %s105, %s107
      %p114 = scmp.eq.s32.totalorder %s34, 1
      %p115 = por %p113, %p114
      %p116 = scmp.ne.s32.totalorder %s107, %s108
      %p117 = scmp.eq.s32.totalorder %s34, 0
      %p118 = por %p116, %p117
      %p119 = scmp.ne.s32.totalorder %s107, %s108
      %p120 = scmp.eq.s32.totalorder %s35, 1
      %p121 = por %p119, %p120
      %p123 = scmp.ne.s32.totalorder %s108, %s122
      %p124 = scmp.eq.s32.totalorder %s35, 0
      %p125 = por %p123, %p124
      %s127 = sadd.s32 %s126, 1
      %p130 = scmp.eq.s32.totalorder %s29, 1
      %p131 = scmp.ne.s32.totalorder %s126, %s128
      %p132 = scmp.eq.s32.totalorder %s29, 0
      %p133 = por %p131, %p132
      %p134 = scmp.ne.s32.totalorder %s126, %s128
      %p135 = scmp.eq.s32.totalorder %s34, 1
      %p136 = por %p134, %p135
      %p137 = scmp.ne.s32.totalorder %s128, %s129
      %p138 = scmp.eq.s32.totalorder %s34, 0
      %p139 = por %p137, %p138
      %p140 = scmp.ne.s32.totalorder %s128, %s129
      %p141 = scmp.eq.s32.totalorder %s35, 1
      %p142 = por %p140, %p141
      %p144 = scmp.ne.s32.totalorder %s129, %s143
      %p145 = scmp.eq.s32.totalorder %s35, 0
      %p146 = por %p144, %p145
      %s148 = sadd.s32 %s147, 1
      %p151 = scmp.eq.s32.totalorder %s29, 1
      %p152 = scmp.ne.s32.totalorder %s147, %s149
      %p153 = scmp.eq.s32.totalorder %s29, 0
      %p154 = por %p152, %p153
      %p155 = scmp.ne.s32.totalorder %s147, %s149
      %p156 = scmp.eq.s32.totalorder %s34, 1
      %p157 = por %p155, %p156
      %p158 = scmp.ne.s32.totalorder %s149, %s150
      %p159 = scmp.eq.s32.totalorder %s34, 0
      %p160 = por %p158, %p159
      %p161 = scmp.ne.s32.totalorder %s149, %s150
      %p162 = scmp.eq.s32.totalorder %s35, 1
      %p163 = por %p161, %p162
      %p165 = scmp.ne.s32.totalorder %s150, %s164
      %p166 = scmp.eq.s32.totalorder %s35, 0
      %p167 = por %p165, %p166
      %s169 = sadd.s32 %s168, 1
      %p172 = scmp.eq.s32.totalorder %s29, 1
      %p173 = scmp.ne.s32.totalorder %s168, %s170
      %p174 = scmp.eq.s32.totalorder %s29, 0
      %p175 = por %p173, %p174
      %p176 = scmp.ne.s32.totalorder %s168, %s170
      %p177 = scmp.eq.s32.totalorder %s34, 1
      %p178 = por %p176, %p177
      %p179 = scmp.ne.s32.totalorder %s170, %s171
      %p180 = scmp.eq.s32.totalorder %s34, 0
      %p181 = por %p179, %p180
      %p182 = scmp.ne.s32.totalorder %s170, %s171
      %p183 = scmp.eq.s32.totalorder %s35, 1
      %p184 = por %p182, %p183
      %p186 = scmp.ne.s32.totalorder %s171, %s185
      %p187 = scmp.eq.s32.totalorder %s35, 0
      %p188 = por %p186, %p187
      %s190 = sadd.s32 %s189, 1
      %p193 = scmp.eq.s32.totalorder %s29, 1
      %p194 = scmp.ne.s32.totalorder %s189, %s191
      %p195 = scmp.eq.s32.totalorder %s29, 0
      %p196 = por %p194, %p195
      %p197 = scmp.ne.s32.totalorder %s189, %s191
      %p198 = scmp.eq.s32.totalorder %s34, 1
      %p199 = por %p197, %p198
      %p200 = scmp.ne.s32.totalorder %s191, %s192
      %p201 = scmp.eq.s32.totalorder %s34, 0
      %p202 = por %p200, %p201
      %p203 = scmp.ne.s32.totalorder %s191, %s192
      %p204 = scmp.eq.s32.totalorder %s35, 1
      %p205 = por %p203, %p204
      %p207 = scmp.ne.s32.totalorder %s192, %s206
      %p208 = scmp.eq.s32.totalorder %s35, 0
      %p209 = por %p207, %p208
      %s211 = sadd.s32 %s210, 1
      %p214 = scmp.eq.s32.totalorder %s29, 1
      %p215 = scmp.ne.s32.totalorder %s210, %s212
      %p216 = scmp.eq.s32.totalorder %s29, 0
      %p217 = por %p215, %p216
      %p218 = scmp.ne.s32.totalorder %s210, %s212
      %p219 = scmp.eq.s32.totalorder %s34, 1
      %p220 = por %p218, %p219
      %p221 = scmp.ne.s32.totalorder %s212, %s213
      %p222 = scmp.eq.s32.totalorder %s34, 0
      %p223 = por %p221, %p222
      %p224 = scmp.ne.s32.totalorder %s212, %s213
      %p225 = scmp.eq.s32.totalorder %s35, 1
      %p226 = por %p224, %p225
      %p228 = scmp.ne.s32.totalorder %s213, %s227
      %p229 = scmp.eq.s32.totalorder %s35, 0
      %p230 = por %p228, %p229
      %s232 = sadd.s32 %s231, 1
      %p235 = scmp.eq.s32.totalorder %s29, 1
      %p236 = scmp.ne.s32.totalorder %s231, %s233
      %p237 = scmp.eq.s32.totalorder %s29, 0
      %p238 = por %p236, %p237
      %p239 = scmp.ne.s32.totalorder %s231, %s233
      %p240 = scmp.eq.s32.totalorder %s34, 1
      %p241 = por %p239, %p240
      %p242 = scmp.ne.s32.totalorder %s233, %s234
      %p243 = scmp.eq.s32.totalorder %s34, 0
      %p244 = por %p242, %p243
      %p245 = scmp.ne.s32.totalorder %s233, %s234
      %p246 = scmp.eq.s32.totalorder %s35, 1
      %p247 = por %p245, %p246
      %p249 = scmp.ne.s32.totalorder %s234, %s248
      %p250 = scmp.eq.s32.totalorder %s35, 0
      %p251 = por %p249, %p250
      %s253 = sadd.s32 %s252, 1
      %p256 = scmp.eq.s32.totalorder %s29, 1
      %p257 = scmp.ne.s32.totalorder %s252, %s254
      %p258 = scmp.eq.s32.totalorder %s29, 0
      %p259 = por %p257, %p258
      %p260 = scmp.ne.s32.totalorder %s252, %s254
      %p261 = scmp.eq.s32.totalorder %s34, 1
      %p262 = por %p260, %p261
      %p263 = scmp.ne.s32.totalorder %s254, %s255
      %p264 = scmp.eq.s32.totalorder %s34, 0
      %p265 = por %p263, %p264
      %p266 = scmp.ne.s32.totalorder %s254, %s255
      %p267 = scmp.eq.s32.totalorder %s35, 1
      %p268 = por %p266, %p267
      %p270 = scmp.ne.s32.totalorder %s255, %s269
      %p271 = scmp.eq.s32.totalorder %s35, 0
      %p272 = por %p270, %p271
      %s274 = sadd.s32 %s273, 1
      %p277 = scmp.eq.s32.totalorder %s29, 1
      %p278 = scmp.ne.s32.totalorder %s273, %s275
      %p279 = scmp.eq.s32.totalorder %s29, 0
      %p280 = por %p278, %p279
      %p281 = scmp.ne.s32.totalorder %s273, %s275
      %p282 = scmp.eq.s32.totalorder %s34, 1
      %p283 = por %p281, %p282
      %p284 = scmp.ne.s32.totalorder %s275, %s276
      %p285 = scmp.eq.s32.totalorder %s34, 0
      %p286 = por %p284, %p285
      %p287 = scmp.ne.s32.totalorder %s275, %s276
      %p288 = scmp.eq.s32.totalorder %s35, 1
      %p289 = por %p287, %p288
      %p291 = scmp.ne.s32.totalorder %s276, %s290
      %p292 = scmp.eq.s32.totalorder %s35, 0
      %p293 = por %p291, %p292
      %s295 = sadd.s32 %s294, 1
      %p298 = scmp.eq.s32.totalorder %s29, 1
      %p299 = scmp.ne.s32.totalorder %s294, %s296
      %p300 = scmp.eq.s32.totalorder %s29, 0
      %p301 = por %p299, %p300
      %p302 = scmp.ne.s32.totalorder %s294, %s296
      %p303 = scmp.eq.s32.totalorder %s34, 1
      %p304 = por %p302, %p303
      %p305 = scmp.ne.s32.totalorder %s296, %s297
      %p306 = scmp.eq.s32.totalorder %s34, 0
      %p307 = por %p305, %p306
      %p308 = scmp.ne.s32.totalorder %s296, %s297
      %p309 = scmp.eq.s32.totalorder %s35, 1
      %p310 = por %p308, %p309
      %p312 = scmp.ne.s32.totalorder %s297, %s311
      %p313 = scmp.eq.s32.totalorder %s35, 0
      %p314 = por %p312, %p313
      %s315 = ssub.s32 %s29, %s36
      %p316 = scmp.eq.s32.totalorder %s315, 0
      %s318 = sadd.s32 %s317, 1
      %s319 = scalar_select %p316, %s317, %s318
      %p322 = pneg %p316
      %p323 = scmp.eq.s32.totalorder %s29, 1
      %p324 = por %p322, %p323
      %p325 = scmp.ne.s32.totalorder %s317, %s320
      %p326 = scmp.eq.s32.totalorder %s29, 0
      %p327 = por %p325, %p326
      %p328 = scmp.ne.s32.totalorder %s317, %s320
      %p329 = scmp.eq.s32.totalorder %s34, 1
      %p330 = por %p328, %p329
      %p331 = scmp.ne.s32.totalorder %s320, %s321
      %p332 = scmp.eq.s32.totalorder %s34, 0
      %p333 = por %p331, %p332
      %p334 = scmp.ne.s32.totalorder %s320, %s321
      %p335 = scmp.eq.s32.totalorder %s35, 1
      %p336 = por %p334, %p335
      %p338 = scmp.ne.s32.totalorder %s321, %s337
      %p339 = scmp.eq.s32.totalorder %s35, 0
      %p340 = por %p338, %p339
      %p341 = scmp.le.s32.totalorder 1, %s29
      %p342 = scmp.lt.s32.totalorder %s29, 3
      %p343 = pnand %p341, %p342
      %p344 = pneg %p343
      // Predicated region
      $region9: #{letnet_forward.1} parent=5 // pred_check
        _
      $region10: #{letnet_forward.1} parent=5 // pred_check_branch
        %346 = sbr.rel (%p343) target = $region12
      $region11: #{letnet_forward.1} parent=5 // pred_region
        %s347 = ssub.s32 %s29, 1
        // Predicated region
        $region13: #{letnet_forward.1} parent=11 // pred_check
          %p348 = pneg %p76
        $region14: #{letnet_forward.1} parent=11 // pred_check_branch
          %350 = sbr.rel (%p348) target = $region16
        $region15: #{letnet_forward.1} parent=11 // pred_region
          %s352 = ssub.s32 5120, 5120
          %353 = vsyncadd [#allocation4], %s352
          %s354 = sshll.u32 [#allocation3], 4
          %s355 = int_to_ptr.vmem [resolvable:$true] %s354
          %360 = dma.hbm_to_vmem [thread:$0]  %s1, 5120, %s355, [#allocation4], 256, 256, 16
        $region16: #{letnet_forward.1} parent=11 // pred_fallthru
          _
        // Predicated region
        $region17: #{letnet_forward.1} parent=11 // pred_check
          %p361 = pneg %p97
        $region18: #{letnet_forward.1} parent=11 // pred_check_branch
          %363 = sbr.rel (%p361) target = $region20
        $region19: #{letnet_forward.1} parent=11 // pred_region
          %s365 = ssub.s32 32, 32
          %366 = vsyncadd [#allocation7], %s365
          %s368 = sshll.u32 [#allocation6], 4
          %s369 = int_to_ptr.vmem [resolvable:$true] %s368
          %371 = dma.hbm_to_vmem [thread:$0]  %s2, 32, %s369, [#allocation7]
        $region20: #{letnet_forward.1} parent=11 // pred_fallthru
          _
        // Predicated region
        $region21: #{letnet_forward.1} parent=11 // pred_check
          %p372 = pneg %p118
        $region22: #{letnet_forward.1} parent=11 // pred_check_branch
          %374 = sbr.rel (%p372) target = $region24
        $region23: #{letnet_forward.1} parent=11 // pred_region
          %s376 = ssub.s32 2688, 2688
          %377 = vsyncadd [#allocation7], %s376
          %s378 = sshll.u32 [#allocation8], 4
          %s379 = int_to_ptr.vmem [resolvable:$true] %s378
          %384 = dma.hbm_to_vmem [thread:$0]  %s3, 2688, %s379, [#allocation7], 128, 128, 8
        $region24: #{letnet_forward.1} parent=11 // pred_fallthru
          _
        // Predicated region
        $region25: #{letnet_forward.1} parent=11 // pred_check
          %p385 = pneg %p139
        $region26: #{letnet_forward.1} parent=11 // pred_check_branch
          %387 = sbr.rel (%p385) target = $region28
        $region27: #{letnet_forward.1} parent=11 // pred_region
          %s389 = ssub.s32 256, 256
          %390 = vsyncadd [#allocation10], %s389
          %s391 = sshll.u32 [#allocation9], 4
          %s392 = int_to_ptr.vmem [resolvable:$true] %s391
          %397 = dma.hbm_to_vmem [thread:$0]  %s4, 256, %s392, [#allocation10], 128, 128, 8
        $region28: #{letnet_forward.1} parent=11 // pred_fallthru
          _
        // Predicated region
        $region29: #{letnet_forward.1} parent=11 // pred_check
          %p398 = pneg %p160
        $region30: #{letnet_forward.1} parent=11 // pred_check_branch
          %400 = sbr.rel (%p398) target = $region32
        $region31: #{letnet_forward.1} parent=11 // pred_region
          %s402 = ssub.s32 13568, 13568
          %403 = vsyncadd [#allocation10], %s402
          %s404 = sshll.u32 [#allocation11], 4
          %s405 = int_to_ptr.vmem [resolvable:$true] %s404
          %410 = dma.hbm_to_vmem [thread:$0]  %s5, 13568, %s405, [#allocation10], 256, 256, 16
        $region32: #{letnet_forward.1} parent=11 // pred_fallthru
          _
        // Predicated region
        $region33: #{letnet_forward.1} parent=11 // pred_check
          %p411 = pneg %p181
        $region34: #{letnet_forward.1} parent=11 // pred_check_branch
          %413 = sbr.rel (%p411) target = $region36
        $region35: #{letnet_forward.1} parent=11 // pred_region
          %s415 = ssub.s32 32, 32
          %416 = vsyncadd [#allocation13], %s415
          %s418 = sshll.u32 [#allocation12], 4
          %s419 = int_to_ptr.vmem [resolvable:$true] %s418
          %421 = dma.hbm_to_vmem [thread:$0]  %s6, 32, %s419, [#allocation13]
        $region36: #{letnet_forward.1} parent=11 // pred_fallthru
          _
        // Predicated region
        $region37: #{letnet_forward.1} parent=11 // pred_check
          %p422 = pneg %p202
        $region38: #{letnet_forward.1} parent=11 // pred_check_branch
          %424 = sbr.rel (%p422) target = $region40
        $region39: #{letnet_forward.1} parent=11 // pred_region
          %s426 = ssub.s32 40960, 40960
          %427 = vsyncadd [#allocation13], %s426
          %s428 = sshll.u32 [#allocation14], 4
          %s429 = int_to_ptr.vmem [resolvable:$true] %s428
          %434 = dma.hbm_to_vmem [thread:$0]  %s7, 40960, %s429, [#allocation13], 128, 128, 8
        $region40: #{letnet_forward.1} parent=11 // pred_fallthru
          _
        // Predicated region
        $region41: #{letnet_forward.1} parent=11 // pred_check
          %p435 = pneg %p223
        $region42: #{letnet_forward.1} parent=11 // pred_check_branch
          %437 = sbr.rel (%p435) target = $region44
        $region43: #{letnet_forward.1} parent=11 // pred_region
          %s439 = ssub.s32 16, 16
          %440 = vsyncadd [#allocation16], %s439
          %s442 = sshll.u32 [#allocation15], 4
          %s443 = int_to_ptr.vmem [resolvable:$true] %s442
          %445 = dma.hbm_to_vmem [thread:$0]  %s8, 16, %s443, [#allocation16]
        $region44: #{letnet_forward.1} parent=11 // pred_fallthru
          _
        // Predicated region
        $region45: #{letnet_forward.1} parent=11 // pred_check
          %p446 = pneg %p244
        $region46: #{letnet_forward.1} parent=11 // pred_check_branch
          %448 = sbr.rel (%p446) target = $region48
        $region47: #{letnet_forward.1} parent=11 // pred_region
          %s450 = ssub.s32 2048, 2048
          %451 = vsyncadd [#allocation16], %s450
          %s452 = sshll.u32 [#allocation17], 4
          %s453 = int_to_ptr.vmem [resolvable:$true] %s452
          %458 = dma.hbm_to_vmem [thread:$0]  %s9, 2048, %s453, [#allocation16], 128, 128, 8
        $region48: #{letnet_forward.1} parent=11 // pred_fallthru
          _
        // Predicated region
        $region49: #{letnet_forward.1} parent=11 // pred_check
          %p459 = pneg %p265
        $region50: #{letnet_forward.1} parent=11 // pred_check_branch
          %461 = sbr.rel (%p459) target = $region52
        $region51: #{letnet_forward.1} parent=11 // pred_region
          %s463 = ssub.s32 16, 16
          %464 = vsyncadd [#allocation19], %s463
          %s466 = sshll.u32 [#allocation18], 4
          %s467 = int_to_ptr.vmem [resolvable:$true] %s466
          %469 = dma.hbm_to_vmem [thread:$0]  %s10, 16, %s467, [#allocation19]
        $region52: #{letnet_forward.1} parent=11 // pred_fallthru
          _
        // Predicated region
        $region53: #{letnet_forward.1} parent=11 // pred_check
          %p470 = pneg %p286
        $region54: #{letnet_forward.1} parent=11 // pred_check_branch
          %472 = sbr.rel (%p470) target = $region56
        $region55: #{letnet_forward.1} parent=11 // pred_region
          %s474 = ssub.s32 2048, 2048
          %475 = vsyncadd [#allocation19], %s474
          %s476 = sshll.u32 [#allocation20], 4
          %s477 = int_to_ptr.vmem [resolvable:$true] %s476
          %482 = dma.hbm_to_vmem [thread:$0]  %s11, 2048, %s477, [#allocation19], 128, 128, 8
        $region56: #{letnet_forward.1} parent=11 // pred_fallthru
          _
        // Predicated region
        $region57: #{letnet_forward.1} parent=11 // pred_check
          %p483 = pneg %p307
        $region58: #{letnet_forward.1} parent=11 // pred_check_branch
          %485 = sbr.rel (%p483) target = $region60
        $region59: #{letnet_forward.1} parent=11 // pred_region
          %s487 = ssub.s32 16, 16
          %488 = vsyncadd [#allocation22], %s487
          %s490 = sshll.u32 [#allocation21], 4
          %s491 = int_to_ptr.vmem [resolvable:$true] %s490
          %493 = dma.hbm_to_vmem [thread:$0]  %s12, 16, %s491, [#allocation22]
        $region60: #{letnet_forward.1} parent=11 // pred_fallthru
          _
      $region12: #{letnet_forward.1} parent=5 // pred_fallthru
        _
      %p494 = scmp.lt.s32.totalorder %s29, 2
      // Predicated region
      $region61: #{letnet_forward.1} parent=5 // pred_check
        %p495 = pneg %p494
      $region62: #{letnet_forward.1} parent=5 // pred_check_branch
        %497 = sbr.rel (%p495) target = $region64
      $region63: #{letnet_forward.1} parent=5 // pred_region
        // Predicated region
        $region65: #{letnet_forward.1} parent=63 // pred_check
          %p498 = pneg %p49
        $region66: #{letnet_forward.1} parent=63 // pred_check_branch
          %500 = sbr.rel (%p498) target = $region68
        $region67: #{letnet_forward.1} parent=63 // pred_region
          %s501 = smul.u32 8, %s29
          %p502 = scmp.lt.s32.totalorder %s501, 15
          %s503 = scalar_select %p502, %s501, 15
          %s504 = smul.addr %s503, 4
          %s505 = smul.addr %s504, 8
          %s506 = scalar_lea.vmem %s0, %s505
          %s507 = smul.u32 8, %s29
        $region68: #{letnet_forward.1} parent=63 // pred_fallthru
          _
      $region64: #{letnet_forward.1} parent=5 // pred_fallthru
        _
      %p508 = scmp.le.s32.totalorder 1, %s29
      %p509 = scmp.lt.s32.totalorder %s29, 3
      %p510 = pnand %p508, %p509
      %p511 = pneg %p510
      // Predicated region
      $region69: #{letnet_forward.1} parent=5 // pred_check
        _
      $region70: #{letnet_forward.1} parent=5 // pred_check_branch
        %513 = sbr.rel (%p510) target = $region72
      $region71: #{letnet_forward.1} parent=5 // pred_region
        %s514 = ssub.s32 %s29, 1
        // Predicated region
        $region73: #{letnet_forward.1} parent=71 // pred_check
          %p515 = pneg %p76
        $region74: #{letnet_forward.1} parent=71 // pred_check_branch
          %517 = sbr.rel (%p515) target = $region76
        $region75: #{letnet_forward.1} parent=71 // pred_region
          %518 = dma.done [#allocation4], 5120
        $region76: #{letnet_forward.1} parent=71 // pred_fallthru
          _
        // Predicated region
        $region77: #{letnet_forward.1} parent=71 // pred_check
          %p519 = pneg %p97
        $region78: #{letnet_forward.1} parent=71 // pred_check_branch
          %521 = sbr.rel (%p519) target = $region80
        $region79: #{letnet_forward.1} parent=71 // pred_region
          %522 = dma.done [#allocation7], 32
        $region80: #{letnet_forward.1} parent=71 // pred_fallthru
          _
        // Predicated region
        $region81: #{letnet_forward.1} parent=71 // pred_check
          %p523 = pneg %p118
        $region82: #{letnet_forward.1} parent=71 // pred_check_branch
          %525 = sbr.rel (%p523) target = $region84
        $region83: #{letnet_forward.1} parent=71 // pred_region
          %526 = dma.done [#allocation7], 2688
        $region84: #{letnet_forward.1} parent=71 // pred_fallthru
          _
        // Predicated region
        $region85: #{letnet_forward.1} parent=71 // pred_check
          %p527 = pneg %p139
        $region86: #{letnet_forward.1} parent=71 // pred_check_branch
          %529 = sbr.rel (%p527) target = $region88
        $region87: #{letnet_forward.1} parent=71 // pred_region
          %530 = dma.done [#allocation10], 256
        $region88: #{letnet_forward.1} parent=71 // pred_fallthru
          _
        // Predicated region
        $region89: #{letnet_forward.1} parent=71 // pred_check
          %p531 = pneg %p160
        $region90: #{letnet_forward.1} parent=71 // pred_check_branch
          %533 = sbr.rel (%p531) target = $region92
        $region91: #{letnet_forward.1} parent=71 // pred_region
          %534 = dma.done [#allocation10], 13568
        $region92: #{letnet_forward.1} parent=71 // pred_fallthru
          _
        // Predicated region
        $region93: #{letnet_forward.1} parent=71 // pred_check
          %p535 = pneg %p181
        $region94: #{letnet_forward.1} parent=71 // pred_check_branch
          %537 = sbr.rel (%p535) target = $region96
        $region95: #{letnet_forward.1} parent=71 // pred_region
          %538 = dma.done [#allocation13], 32
        $region96: #{letnet_forward.1} parent=71 // pred_fallthru
          _
        // Predicated region
        $region97: #{letnet_forward.1} parent=71 // pred_check
          %p539 = pneg %p202
        $region98: #{letnet_forward.1} parent=71 // pred_check_branch
          %541 = sbr.rel (%p539) target = $region100
        $region99: #{letnet_forward.1} parent=71 // pred_region
          %542 = dma.done [#allocation13], 40960
        $region100: #{letnet_forward.1} parent=71 // pred_fallthru
          _
        // Predicated region
        $region101: #{letnet_forward.1} parent=71 // pred_check
          %p543 = pneg %p223
        $region102: #{letnet_forward.1} parent=71 // pred_check_branch
          %545 = sbr.rel (%p543) target = $region104
        $region103: #{letnet_forward.1} parent=71 // pred_region
          %546 = dma.done [#allocation16], 16
        $region104: #{letnet_forward.1} parent=71 // pred_fallthru
          _
        // Predicated region
        $region105: #{letnet_forward.1} parent=71 // pred_check
          %p547 = pneg %p244
        $region106: #{letnet_forward.1} parent=71 // pred_check_branch
          %549 = sbr.rel (%p547) target = $region108
        $region107: #{letnet_forward.1} parent=71 // pred_region
          %550 = dma.done [#allocation16], 2048
        $region108: #{letnet_forward.1} parent=71 // pred_fallthru
          _
        // Predicated region
        $region109: #{letnet_forward.1} parent=71 // pred_check
          %p551 = pneg %p265
        $region110: #{letnet_forward.1} parent=71 // pred_check_branch
          %553 = sbr.rel (%p551) target = $region112
        $region111: #{letnet_forward.1} parent=71 // pred_region
          %554 = dma.done [#allocation19], 16
        $region112: #{letnet_forward.1} parent=71 // pred_fallthru
          _
        // Predicated region
        $region113: #{letnet_forward.1} parent=71 // pred_check
          %p555 = pneg %p286
        $region114: #{letnet_forward.1} parent=71 // pred_check_branch
          %557 = sbr.rel (%p555) target = $region116
        $region115: #{letnet_forward.1} parent=71 // pred_region
          %558 = dma.done [#allocation19], 2048
        $region116: #{letnet_forward.1} parent=71 // pred_fallthru
          _
        // Predicated region
        $region117: #{letnet_forward.1} parent=71 // pred_check
          %p559 = pneg %p307
        $region118: #{letnet_forward.1} parent=71 // pred_check_branch
          %561 = sbr.rel (%p559) target = $region120
        $region119: #{letnet_forward.1} parent=71 // pred_region
          %562 = dma.done [#allocation22], 16
        $region120: #{letnet_forward.1} parent=71 // pred_fallthru
          _
        %s563 = smul.u32 8, %s34
        %p564 = scmp.lt.s32.totalorder %s563, 15
        %s565 = scalar_select %p564, %s563, 15
        %s566 = smul.addr %s565, 4
        %s567 = smul.addr %s566, 8
        %s568 = scalar_lea.vmem %s0, %s567
        %p569 = pneg %p55
        %p570 = pneg %p52
        %p571 = pneg %p76
        %p572 = pneg %p73
        %p573 = pneg %p97
        %p574 = pneg %p94
        %p575 = pneg %p118
        %p576 = pneg %p115
        %p577 = pneg %p139
        %p578 = pneg %p136
        %p579 = pneg %p160
        %p580 = pneg %p157
        %p581 = pneg %p181
        %p582 = pneg %p178
        %p583 = pneg %p202
        %p584 = pneg %p199
        %p585 = pneg %p223
        %p586 = pneg %p220
        %p587 = pneg %p244
        %p588 = pneg %p241
        %p589 = pneg %p265
        %p590 = pneg %p262
        %p591 = pneg %p286
        %p592 = pneg %p283
        %p593 = pneg %p307
        %p594 = pneg %p304
        %p595 = pneg %p333
        %p596 = pneg %p330
        %s597 = sand.u32 %s320, 1
        %s598 = scalar_lea.sflag [#allocation5], %s597
        %s599 = sand.u32 %s320, 1
        %s600 = smul.addr %s599, 8
        %s601 = scalar_lea.vmem [#allocation23], %s600
        %s602 = smul.u32 8, %s34
        %p603 = scmp.lt.s32.totalorder %s602, 15
        %s604 = scalar_select %p603, %s602, 15
        %s605 = smul.addr %s604, 4
        %s606 = smul.addr %s605, 8
        %s607 = scalar_lea.vmem %s0, %s606
        %s608 = smul.u32 8, %s34
        %v609 = vld [vmem:[#allocation3] sm:$0xff]
        %v610 = vld [vmem:[#allocation3 + $0x8] sm:$0xff]
        %v611 = vld [vmem:[#allocation3 + $0x10] sm:$0xff]
        %v612 = vld [vmem:[#allocation3 + $0x18] sm:$0xff]
        %v613 = vld [vmem:[#allocation3 + $0x20] sm:$0xff]
        %v614 = vld [vmem:[#allocation3 + $0x28] sm:$0xff]
        %v615 = vld [vmem:[#allocation3 + $0x30] sm:$0xff]
        %v616 = vld [vmem:[#allocation3 + $0x38] sm:$0xff]
        %v617 = vld [vmem:[#allocation3 + $0x40] sm:$0xff]
        %v618 = vld [vmem:[#allocation3 + $0x48] sm:$0xff]
        %v619 = vld [vmem:[#allocation3 + $0x50] sm:$0xff]
        %v620 = vld [vmem:[#allocation3 + $0x58] sm:$0xff]
        %v621 = vld [vmem:[#allocation3 + $0x60] sm:$0xff]
        %v622 = vld [vmem:[#allocation3 + $0x68] sm:$0xff]
        %v623 = vld [vmem:[#allocation3 + $0x70] sm:$0xff]
        %v624 = vld [vmem:[#allocation3 + $0x78] sm:$0xff]
        %v625 = vld [vmem:[#allocation3 + $0x80] sm:$0xff]
        %v626 = vld [vmem:[#allocation3 + $0x88] sm:$0xff]
        %v627 = vld [vmem:[#allocation3 + $0x90] sm:$0xff]
        %v628 = vld [vmem:[#allocation3 + $0x98] sm:$0xff]
        %v629 = vld [vmem:[#allocation3 + $0xa0] sm:$0xff]
        %v630 = vld [vmem:[#allocation3 + $0xa8] sm:$0xff]
        %v631 = vld [vmem:[#allocation3 + $0xb0] sm:$0xff]
        %v632 = vld [vmem:[#allocation3 + $0xb8] sm:$0xff]
        %v633 = vld [vmem:[#allocation3 + $0xc0] sm:$0xff]
        %v634 = vld [vmem:[#allocation3 + $0xc8] sm:$0xff]
        %v635 = vld [vmem:[#allocation3 + $0xd0] sm:$0xff]
        %v636 = vld [vmem:[#allocation3 + $0xd8] sm:$0xff]
        %v637 = vld [vmem:[#allocation3 + $0xe0] sm:$0xff]
        %v638 = vld [vmem:[#allocation3 + $0xe8] sm:$0xff]
        %v639 = vld [vmem:[#allocation3 + $0xf0] sm:$0xff]
        %v640 = vld [vmem:[#allocation3 + $0xf8] sm:$0xff]
        %v641 = vld [vmem:[#allocation3 + $0x100] sm:$0xff]
        %v642 = vld [vmem:[#allocation3 + $0x108] sm:$0xff]
        %v643 = vld [vmem:[#allocation3 + $0x110] sm:$0xff]
        %v644 = vld [vmem:[#allocation3 + $0x118] sm:$0xff]
        %v645 = vld [vmem:[#allocation3 + $0x120] sm:$0xff]
        %v646 = vld [vmem:[#allocation3 + $0x128] sm:$0xff]
        %v647 = vld [vmem:[#allocation3 + $0x130] sm:$0xff]
        %v648 = vld [vmem:[#allocation3 + $0x138] sm:$0xff]
        %v649 = vld [vmem:[#allocation6] sm:$0x3]
        %v650 = vld [vmem:[#allocation8] sm:$0xff]
        %v651 = vld [vmem:[#allocation8 + $0x8] sm:$0xff]
        %v652 = vld [vmem:[#allocation8 + $0x10] sm:$0xff]
        %v653 = vld [vmem:[#allocation8 + $0x18] sm:$0xff]
        %v654 = vld [vmem:[#allocation8 + $0x20] sm:$0xff]
        %v655 = vld [vmem:[#allocation8 + $0x28] sm:$0xff]
        %v656 = vld [vmem:[#allocation8 + $0x30] sm:$0xff]
        %v657 = vld [vmem:[#allocation8 + $0x38] sm:$0xff]
        %v658 = vld [vmem:[#allocation8 + $0x40] sm:$0xff]
        %v659 = vld [vmem:[#allocation8 + $0x48] sm:$0xff]
        %v660 = vld [vmem:[#allocation8 + $0x50] sm:$0xff]
        %v661 = vld [vmem:[#allocation8 + $0x58] sm:$0xff]
        %v662 = vld [vmem:[#allocation8 + $0x60] sm:$0xff]
        %v663 = vld [vmem:[#allocation8 + $0x68] sm:$0xff]
        %v664 = vld [vmem:[#allocation8 + $0x70] sm:$0xff]
        %v665 = vld [vmem:[#allocation8 + $0x78] sm:$0xff]
        %v666 = vld [vmem:[#allocation8 + $0x80] sm:$0xff]
        %v667 = vld [vmem:[#allocation8 + $0x88] sm:$0xff]
        %v668 = vld [vmem:[#allocation8 + $0x90] sm:$0xff]
        %v669 = vld [vmem:[#allocation8 + $0x98] sm:$0xff]
        %v670 = vld [vmem:[#allocation8 + $0xa0] sm:$0xff]
        %v671 = vld [vmem:[#allocation9] sm:$0xff]
        %v672 = vld [vmem:[#allocation9 + $0x8] sm:$0x3f]
        %v673 = vld [vmem:[#allocation11] sm:$0xff]
        %v674 = vld [vmem:[#allocation11 + $0x8] sm:$0xff]
        %v675 = vld [vmem:[#allocation11 + $0x10] sm:$0xff]
        %v676 = vld [vmem:[#allocation11 + $0x18] sm:$0xff]
        %v677 = vld [vmem:[#allocation11 + $0x20] sm:$0xff]
        %v678 = vld [vmem:[#allocation11 + $0x28] sm:$0xff]
        %v679 = vld [vmem:[#allocation11 + $0x30] sm:$0xff]
        %v680 = vld [vmem:[#allocation11 + $0x38] sm:$0xff]
        %v681 = vld [vmem:[#allocation11 + $0x40] sm:$0xff]
        %v682 = vld [vmem:[#allocation11 + $0x48] sm:$0xff]
        %v683 = vld [vmem:[#allocation11 + $0x50] sm:$0xff]
        %v684 = vld [vmem:[#allocation11 + $0x58] sm:$0xff]
        %v685 = vld [vmem:[#allocation11 + $0x60] sm:$0xff]
        %v686 = vld [vmem:[#allocation11 + $0x68] sm:$0xff]
        %v687 = vld [vmem:[#allocation11 + $0x70] sm:$0xff]
        %v688 = vld [vmem:[#allocation11 + $0x78] sm:$0xff]
        %v689 = vld [vmem:[#allocation11 + $0x80] sm:$0xff]
        %v690 = vld [vmem:[#allocation11 + $0x88] sm:$0xff]
        %v691 = vld [vmem:[#allocation11 + $0x90] sm:$0xff]
        %v692 = vld [vmem:[#allocation11 + $0x98] sm:$0xff]
        %v693 = vld [vmem:[#allocation11 + $0xa0] sm:$0xff]
        %v694 = vld [vmem:[#allocation11 + $0xa8] sm:$0xff]
        %v695 = vld [vmem:[#allocation11 + $0xb0] sm:$0xff]
        %v696 = vld [vmem:[#allocation11 + $0xb8] sm:$0xff]
        %v697 = vld [vmem:[#allocation11 + $0xc0] sm:$0xff]
        %v698 = vld [vmem:[#allocation11 + $0xc8] sm:$0xff]
        %v699 = vld [vmem:[#allocation11 + $0xd0] sm:$0xff]
        %v700 = vld [vmem:[#allocation11 + $0xd8] sm:$0xff]
        %v701 = vld [vmem:[#allocation11 + $0xe0] sm:$0xff]
        %v702 = vld [vmem:[#allocation11 + $0xe8] sm:$0xff]
        %v703 = vld [vmem:[#allocation11 + $0xf0] sm:$0xff]
        %v704 = vld [vmem:[#allocation11 + $0xf8] sm:$0xff]
        %v705 = vld [vmem:[#allocation11 + $0x100] sm:$0xff]
        %v706 = vld [vmem:[#allocation11 + $0x108] sm:$0xff]
        %v707 = vld [vmem:[#allocation11 + $0x110] sm:$0xff]
        %v708 = vld [vmem:[#allocation11 + $0x118] sm:$0xff]
        %v709 = vld [vmem:[#allocation11 + $0x120] sm:$0xff]
        %v710 = vld [vmem:[#allocation11 + $0x128] sm:$0xff]
        %v711 = vld [vmem:[#allocation11 + $0x130] sm:$0xff]
        %v712 = vld [vmem:[#allocation11 + $0x138] sm:$0xff]
        %v713 = vld [vmem:[#allocation11 + $0x140] sm:$0xff]
        %v714 = vld [vmem:[#allocation11 + $0x148] sm:$0xff]
        %v715 = vld [vmem:[#allocation11 + $0x150] sm:$0xff]
        %v716 = vld [vmem:[#allocation11 + $0x158] sm:$0xff]
        %v717 = vld [vmem:[#allocation11 + $0x160] sm:$0xff]
        %v718 = vld [vmem:[#allocation11 + $0x168] sm:$0xff]
        %v719 = vld [vmem:[#allocation11 + $0x170] sm:$0xff]
        %v720 = vld [vmem:[#allocation11 + $0x178] sm:$0xff]
        %v721 = vld [vmem:[#allocation11 + $0x180] sm:$0xff]
        %v722 = vld [vmem:[#allocation11 + $0x188] sm:$0xff]
        %v723 = vld [vmem:[#allocation11 + $0x190] sm:$0xff]
        %v724 = vld [vmem:[#allocation11 + $0x198] sm:$0xff]
        %v725 = vld [vmem:[#allocation11 + $0x1a0] sm:$0xff]
        %v726 = vld [vmem:[#allocation11 + $0x1a8] sm:$0xff]
        %v727 = vld [vmem:[#allocation11 + $0x1b0] sm:$0xff]
        %v728 = vld [vmem:[#allocation11 + $0x1b8] sm:$0xff]
        %v729 = vld [vmem:[#allocation11 + $0x1c0] sm:$0xff]
        %v730 = vld [vmem:[#allocation11 + $0x1c8] sm:$0xff]
        %v731 = vld [vmem:[#allocation11 + $0x1d0] sm:$0xff]
        %v732 = vld [vmem:[#allocation11 + $0x1d8] sm:$0xff]
        %v733 = vld [vmem:[#allocation11 + $0x1e0] sm:$0xff]
        %v734 = vld [vmem:[#allocation11 + $0x1e8] sm:$0xff]
        %v735 = vld [vmem:[#allocation11 + $0x1f0] sm:$0xff]
        %v736 = vld [vmem:[#allocation11 + $0x1f8] sm:$0xff]
        %v737 = vld [vmem:[#allocation11 + $0x200] sm:$0xff]
        %v738 = vld [vmem:[#allocation11 + $0x208] sm:$0xff]
        %v739 = vld [vmem:[#allocation11 + $0x210] sm:$0xff]
        %v740 = vld [vmem:[#allocation11 + $0x218] sm:$0xff]
        %v741 = vld [vmem:[#allocation11 + $0x220] sm:$0xff]
        %v742 = vld [vmem:[#allocation11 + $0x228] sm:$0xff]
        %v743 = vld [vmem:[#allocation11 + $0x230] sm:$0xff]
        %v744 = vld [vmem:[#allocation11 + $0x238] sm:$0xff]
        %v745 = vld [vmem:[#allocation11 + $0x240] sm:$0xff]
        %v746 = vld [vmem:[#allocation11 + $0x248] sm:$0xff]
        %v747 = vld [vmem:[#allocation11 + $0x250] sm:$0xff]
        %v748 = vld [vmem:[#allocation11 + $0x258] sm:$0xff]
        %v749 = vld [vmem:[#allocation11 + $0x260] sm:$0xff]
        %v750 = vld [vmem:[#allocation11 + $0x268] sm:$0xff]
        %v751 = vld [vmem:[#allocation11 + $0x270] sm:$0xff]
        %v752 = vld [vmem:[#allocation11 + $0x278] sm:$0xff]
        %v753 = vld [vmem:[#allocation11 + $0x280] sm:$0xff]
        %v754 = vld [vmem:[#allocation11 + $0x288] sm:$0xff]
        %v755 = vld [vmem:[#allocation11 + $0x290] sm:$0xff]
        %v756 = vld [vmem:[#allocation11 + $0x298] sm:$0xff]
        %v757 = vld [vmem:[#allocation11 + $0x2a0] sm:$0xff]
        %v758 = vld [vmem:[#allocation11 + $0x2a8] sm:$0xff]
        %v759 = vld [vmem:[#allocation11 + $0x2b0] sm:$0xff]
        %v760 = vld [vmem:[#allocation11 + $0x2b8] sm:$0xff]
        %v761 = vld [vmem:[#allocation11 + $0x2c0] sm:$0xff]
        %v762 = vld [vmem:[#allocation11 + $0x2c8] sm:$0xff]
        %v763 = vld [vmem:[#allocation11 + $0x2d0] sm:$0xff]
        %v764 = vld [vmem:[#allocation11 + $0x2d8] sm:$0xff]
        %v765 = vld [vmem:[#allocation11 + $0x2e0] sm:$0xff]
        %v766 = vld [vmem:[#allocation11 + $0x2e8] sm:$0xff]
        %v767 = vld [vmem:[#allocation11 + $0x2f0] sm:$0xff]
        %v768 = vld [vmem:[#allocation11 + $0x2f8] sm:$0xff]
        %v769 = vld [vmem:[#allocation11 + $0x300] sm:$0xff]
        %v770 = vld [vmem:[#allocation11 + $0x308] sm:$0xff]
        %v771 = vld [vmem:[#allocation11 + $0x310] sm:$0xff]
        %v772 = vld [vmem:[#allocation11 + $0x318] sm:$0xff]
        %v773 = vld [vmem:[#allocation11 + $0x320] sm:$0xff]
        %v774 = vld [vmem:[#allocation11 + $0x328] sm:$0xff]
        %v775 = vld [vmem:[#allocation11 + $0x330] sm:$0xff]
        %v776 = vld [vmem:[#allocation11 + $0x338] sm:$0xff]
        %v777 = vld [vmem:[#allocation11 + $0x340] sm:$0xf]
        %v778 = vld [vmem:[#allocation11 + $0x348] sm:$0xf]
        %v779 = vld [vmem:[#allocation12] sm:$0x3]
        %v780 = vld [vmem:[%s607] sm:$0xff]
        %v781 = vld [vmem:[%s607 + $0x8] sm:$0xff]
        %v782 = vld [vmem:[%s607 + $0x10] sm:$0xff]
        %v783 = vld [vmem:[%s607 + $0x18] sm:$0xff]
        %vm788 = vcmask 1046528
        %v789 = vrot.slane %v780, 1
        %v790 = vrot.slane %v781, 1
        %v791 = vsel %vm788, %v789, %v790
        %v792 = vrot.slane %v782, 1
        %v793 = vsel %vm788, %v790, %v792
        %v794 = vrot.slane %v783, 1
        %v795 = vsel %vm788, %v792, %v794
        %796 = vrot.lane.b32.xlu0 %v791, 32
        %v797 = vpop.permute.xlu0 %796
        %798 = vrot.lane.b32.xlu0 %v793, 32
        %v799 = vpop.permute.xlu0 %798
        %800 = vrot.lane.b32.xlu0 %v795, 32
        %v801 = vpop.permute.xlu0 %800
        %802 = vrot.lane.b32.xlu0 %v794, 32
        %v803 = vpop.permute.xlu0 %802
        %vm808 = vcmask 1045504
        %v809 = vrot.slane %v780, 2
        %v810 = vrot.slane %v781, 2
        %v811 = vsel %vm808, %v809, %v810
        %v812 = vrot.slane %v782, 2
        %v813 = vsel %vm808, %v810, %v812
        %v814 = vrot.slane %v783, 2
        %v815 = vsel %vm808, %v812, %v814
        %816 = vrot.lane.b32.xlu0 %v811, 64
        %v817 = vpop.permute.xlu0 %816
        %818 = vrot.lane.b32.xlu0 %v813, 64
        %v819 = vpop.permute.xlu0 %818
        %820 = vrot.lane.b32.xlu0 %v815, 64
        %v821 = vpop.permute.xlu0 %820
        %822 = vrot.lane.b32.xlu0 %v814, 64
        %v823 = vpop.permute.xlu0 %822
        %vm828 = vcmask 1044480
        %v829 = vrot.slane %v780, 3
        %v830 = vrot.slane %v781, 3
        %v831 = vsel %vm828, %v829, %v830
        %v832 = vrot.slane %v782, 3
        %v833 = vsel %vm828, %v830, %v832
        %v834 = vrot.slane %v783, 3
        %v835 = vsel %vm828, %v832, %v834
        %836 = vrot.lane.b32.xlu0 %v831, 96
        %v837 = vpop.permute.xlu0 %836
        %838 = vrot.lane.b32.xlu0 %v833, 96
        %v839 = vpop.permute.xlu0 %838
        %840 = vrot.lane.b32.xlu0 %v835, 96
        %v841 = vpop.permute.xlu0 %840
        %842 = vrot.lane.b32.xlu0 %v834, 96
        %v843 = vpop.permute.xlu0 %842
        %vm848 = vcmask 1043456
        %v849 = vrot.slane %v780, 4
        %v850 = vrot.slane %v781, 4
        %v851 = vsel %vm848, %v849, %v850
        %v852 = vrot.slane %v782, 4
        %v853 = vsel %vm848, %v850, %v852
        %v854 = vrot.slane %v783, 4
        %v855 = vsel %vm848, %v852, %v854
        %vm856 = vcmask 261120
        %v857 = vsel %vm856, %v780, %v797
        %v858 = vsel %vm856, %v781, %v799
        %v859 = vsel %vm856, %v782, %v801
        %v860 = vsel %vm856, %v783, %v803
        %vm861 = vcmask 523264
        %v862 = vsel %vm861, %v857, %v817
        %v863 = vsel %vm861, %v858, %v819
        %v864 = vsel %vm861, %v859, %v821
        %v865 = vsel %vm861, %v860, %v823
        %vm866 = vcmask 785408
        %v867 = vsel %vm866, %v862, %v837
        %v868 = vsel %vm866, %v863, %v839
        %v869 = vsel %vm866, %v864, %v841
        %v870 = vsel %vm866, %v865, %v843
        %v872 = vlaneseq
        %v873 = vshrl.u32 %v872, 7
        %v874 = vsub.s32 0, %v873
        %v875 = vrot.slane %v649, %v874
        %v876 = vlaneseq
        %v877 = vshrl.u32 %v876, 7
        %v878 = vsub.s32 1, %v877
        %v879 = vrot.slane %v649, %v878
        %v882 = vsel %vm856, %v851, 0
        %v884 = vsel %vm856, %v853, 0
        %v886 = vsel %vm856, %v855, 0
        %v888 = vsel %vm856, %v854, 0
        %890 = vmatprep.subr.mxu0 %v640
        %891 = vmatpush1.msra.mxu0 %v639
        %892 = vmatprep.subr.mxu0 %v638
        %893 = vmatpush1.msra.mxu0 %v637
        %894 = vmatprep.subr.mxu0 %v636
        %895 = vmatpush1.msra.mxu0 %v635
        %896 = vmatprep.subr.mxu0 %v634
        %897 = vmatpush1.msra.mxu0 %v633
        %898 = vmatprep.subr.mxu0 %v632
        %899 = vmatpush1.msra.mxu0 %v631
        %900 = vmatprep.subr.mxu0 %v630
        %901 = vmatpush1.msra.mxu0 %v629
        %902 = vmatprep.subr.mxu0 %v628
        %903 = vmatpush1.msra.mxu0 %v627
        %904 = vmatprep.subr.mxu0 %v626
        %905 = vmatpush1.msra.mxu0 %v625
        %906 = vmatprep.subr.mxu0 %v624
        %907 = vmatpush1.msra.mxu0 %v623
        %908 = vmatprep.subr.mxu0 %v622
        %909 = vmatpush1.msra.mxu0 %v621
        %910 = vmatprep.subr.mxu0 %v620
        %911 = vmatpush1.msra.mxu0 %v619
        %912 = vmatprep.subr.mxu0 %v618
        %913 = vmatpush1.msra.mxu0 %v617
        %914 = vmatprep.subr.mxu0 %v616
        %915 = vmatpush1.msra.mxu0 %v615
        %916 = vmatprep.subr.mxu0 %v614
        %917 = vmatpush1.msra.mxu0 %v613
        %918 = vmatprep.subr.mxu0 %v612
        %919 = vmatpush1.msra.mxu0 %v611
        %920 = vmatprep.subr.mxu0 %v610
        %921 = vmatpush1.msra.mxu0 %v609
        %922 = vmatprep.subr.mxu0 0.0
        %923 = vmatpush2.msra.mxu0 0.0
        %924 = vmatprep.subr.mxu0 0.0
        %925 = vmatpush2.msra.mxu0 0.0
        %926 = vmatprep.subr.mxu0 0.0
        %927 = vmatpush2.msra.mxu0 0.0
        %928 = vmatprep.subr.mxu0 0.0
        %929 = vmatpush2.msra.mxu0 0.0
        %930 = vmatprep.subr.mxu0 0.0
        %931 = vmatpush2.msra.mxu0 0.0
        %932 = vmatprep.subr.mxu0 0.0
        %933 = vmatpush2.msra.mxu0 0.0
        %934 = vmatprep.subr.mxu0 0.0
        %935 = vmatpush2.msra.mxu0 0.0
        %936 = vmatprep.subr.mxu0 0.0
        %937 = vmatpush2.msra.mxu0 0.0
        %938 = vmatprep.subr.mxu0 0.0
        %939 = vmatpush2.msra.mxu0 0.0
        %940 = vmatprep.subr.mxu0 0.0
        %941 = vmatpush2.msra.mxu0 0.0
        %942 = vmatprep.subr.mxu0 0.0
        %943 = vmatpush2.msra.mxu0 0.0
        %944 = vmatprep.subr.mxu0 0.0
        %945 = vmatpush2.msra.mxu0 0.0
        %946 = vmatprep.subr.mxu0 %v648
        %947 = vmatpush2.msra.mxu0 %v647
        %948 = vmatprep.subr.mxu0 %v646
        %949 = vmatpush2.msra.mxu0 %v645
        %950 = vmatprep.subr.mxu0 %v644
        %951 = vmatpush2.msra.mxu0 %v643
        %952 = vmatprep.subr.mxu0 %v642
        %953 = vmatpush2.msra.mxu0 %v641
        %954 = vmatprep.mubr.f32.mxu0 %v882
        %955 = vmatmul.mubr.f32.gmra.mxu0 %v867
        %v956 = vpop.f32.mrf.mxu0
        %v957 = vadd.f32 %v875, %v956
        %v958 = vpop.f32.mrf.mxu0
        %v959 = vadd.f32 %v879, %v958
        %960 = vmatprep.mubr.f32.mxu0 %v884
        %961 = vmatmul.mubr.f32.gmra.mxu0 %v868
        %v962 = vpop.f32.mrf.mxu0
        %v963 = vadd.f32 %v875, %v962
        %v964 = vpop.f32.mrf.mxu0
        %v965 = vadd.f32 %v879, %v964
        %966 = vmatprep.mubr.f32.mxu0 %v886
        %967 = vmatmul.mubr.f32.gmra.mxu0 %v869
        %v968 = vpop.f32.mrf.mxu0
        %v969 = vadd.f32 %v875, %v968
        %v970 = vpop.f32.mrf.mxu0
        %v971 = vadd.f32 %v879, %v970
        %972 = vmatprep.mubr.f32.mxu0 %v888
        %973 = vmatmul.mubr.f32.gmra.mxu0 %v870
        %v974 = vpop.f32.mrf.mxu0
        %v975 = vadd.f32 %v875, %v974
        %v976 = vpop.f32.mrf.mxu0
        %v977 = vadd.f32 %v879, %v976
        %978 = vdwg.mxu0
        %v979 = vmax.f32 %v957, 0.0
        %v980 = vmax.f32 %v959, 0.0
        %v981 = vmax.f32 %v963, 0.0
        %v982 = vmax.f32 %v965, 0.0
        %v983 = vmax.f32 %v969, 0.0
        %v984 = vmax.f32 %v971, 0.0
        %v985 = vmax.f32 %v975, 0.0
        %v986 = vmax.f32 %v977, 0.0
        %vm987 = vcmask 326656
        %v989 = vsel %vm987, %v980, 0
        %v992 = vsel %vm987, %v982, 0
        %v995 = vsel %vm987, %v984, 0
        %v998 = vsel %vm987, %v986, 0
        %1000 = vmatprep.subr.mxu0 0.0
        %1001 = vmatpush1.msra.mxu0 %v665
        %1002 = vmatprep.subr.mxu0 0.0
        %1003 = vmatpush1.msra.mxu0 %v664
        %1004 = vmatprep.subr.mxu0 0.0
        %1005 = vmatpush1.msra.mxu0 %v663
        %1006 = vmatprep.subr.mxu0 0.0
        %1007 = vmatpush1.msra.mxu0 %v662
        %1008 = vmatprep.subr.mxu0 0.0
        %1009 = vmatpush1.msra.mxu0 %v661
        %1010 = vmatprep.subr.mxu0 0.0
        %1011 = vmatpush1.msra.mxu0 %v660
        %1012 = vmatprep.subr.mxu0 0.0
        %1013 = vmatpush1.msra.mxu0 %v659
        %1014 = vmatprep.subr.mxu0 0.0
        %1015 = vmatpush1.msra.mxu0 %v658
        %1016 = vmatprep.subr.mxu0 0.0
        %1017 = vmatpush1.msra.mxu0 %v657
        %1018 = vmatprep.subr.mxu0 0.0
        %1019 = vmatpush1.msra.mxu0 %v656
        %1020 = vmatprep.subr.mxu0 0.0
        %1021 = vmatpush1.msra.mxu0 %v655
        %1022 = vmatprep.subr.mxu0 0.0
        %1023 = vmatpush1.msra.mxu0 %v654
        %1024 = vmatprep.subr.mxu0 0.0
        %1025 = vmatpush1.msra.mxu0 %v653
        %1026 = vmatprep.subr.mxu0 0.0
        %1027 = vmatpush1.msra.mxu0 %v652
        %1028 = vmatprep.subr.mxu0 0.0
        %1029 = vmatpush1.msra.mxu0 %v651
        %1030 = vmatprep.subr.mxu0 0.0
        %1031 = vmatpush1.msra.mxu0 %v650
        %1032 = vmatprep.subr.mxu0 0.0
        %1033 = vmatpush2.msra.mxu0 0.0
        %1034 = vmatprep.subr.mxu0 0.0
        %1035 = vmatpush2.msra.mxu0 0.0
        %1036 = vmatprep.subr.mxu0 0.0
        %1037 = vmatpush2.msra.mxu0 0.0
        %1038 = vmatprep.subr.mxu0 0.0
        %1039 = vmatpush2.msra.mxu0 0.0
        %1040 = vmatprep.subr.mxu0 0.0
        %1041 = vmatpush2.msra.mxu0 0.0
        %1042 = vmatprep.subr.mxu0 0.0
        %1043 = vmatpush2.msra.mxu0 0.0
        %1044 = vmatprep.subr.mxu0 0.0
        %1045 = vmatpush2.msra.mxu0 0.0
        %1046 = vmatprep.subr.mxu0 0.0
        %1047 = vmatpush2.msra.mxu0 0.0
        %1048 = vmatprep.subr.mxu0 0.0
        %1049 = vmatpush2.msra.mxu0 0.0
        %1050 = vmatprep.subr.mxu0 0.0
        %1051 = vmatpush2.msra.mxu0 0.0
        %1052 = vmatprep.subr.mxu0 0.0
        %1053 = vmatpush2.msra.mxu0 0.0
        %1054 = vmatprep.subr.mxu0 0.0
        %1055 = vmatpush2.msra.mxu0 %v670
        %1056 = vmatprep.subr.mxu0 0.0
        %1057 = vmatpush2.msra.mxu0 %v669
        %1058 = vmatprep.subr.mxu0 0.0
        %1059 = vmatpush2.msra.mxu0 %v668
        %1060 = vmatprep.subr.mxu0 0.0
        %1061 = vmatpush2.msra.mxu0 %v667
        %1062 = vmatprep.subr.mxu0 0.0
        %1063 = vmatpush2.msra.mxu0 %v666
        %1064 = vmatprep.mubr.f32.mxu0 %v989
        %1065 = vmatmul.mubr.f32.gmra.mxu0 %v979
        %v1066 = vpop.f32.mrf.mxu0
        %v1067 = vadd.f32 0.0, %v1066
        %v1068 = vpop.f32.mrf.mxu0
        %1069 = vmatprep.mubr.f32.mxu0 %v992
        %1070 = vmatmul.mubr.f32.gmra.mxu0 %v981
        %v1071 = vpop.f32.mrf.mxu0
        %v1072 = vadd.f32 0.0, %v1071
        %v1073 = vpop.f32.mrf.mxu0
        %1074 = vmatprep.mubr.f32.mxu0 %v995
        %1075 = vmatmul.mubr.f32.gmra.mxu0 %v983
        %v1076 = vpop.f32.mrf.mxu0
        %v1077 = vadd.f32 0.0, %v1076
        %v1078 = vpop.f32.mrf.mxu0
        %1079 = vmatprep.mubr.f32.mxu0 %v998
        %1080 = vmatmul.mubr.f32.gmra.mxu0 %v985
        %v1081 = vpop.f32.mrf.mxu0
        %v1082 = vadd.f32 0.0, %v1081
        %v1083 = vpop.f32.mrf.mxu0
        %1084 = vdwg.mxu0
        %vm1085 = vcmask 228352
        %v1087 = vsel %vm1085, %v671, 0
        %v1090 = vsel %vm1085, %v672, 0
        %v1093 = vsel %vm848, %v1082, 0
        %1095 = vmatprep.subr.mxu0 0.0
        %1096 = vmatpush1.msra.mxu0 0.0
        %1097 = vmatprep.subr.mxu0 0.0
        %1098 = vmatpush1.msra.mxu0 0.0
        %1099 = vmatprep.subr.mxu0 0.0
        %1100 = vmatpush1.msra.mxu0 0.0
        %1101 = vmatprep.subr.mxu0 0.0
        %1102 = vmatpush1.msra.mxu0 0.0
        %1103 = vmatprep.subr.mxu0 0.0
        %1104 = vmatpush1.msra.mxu0 0.0
        %1105 = vmatprep.subr.mxu0 0.0
        %1106 = vmatpush1.msra.mxu0 0.0
        %1107 = vmatprep.subr.mxu0 0.0
        %1108 = vmatpush1.msra.mxu0 0.0
        %1109 = vmatprep.subr.mxu0 0.0
        %1110 = vmatpush1.msra.mxu0 0.0
        %1111 = vmatprep.subr.mxu0 0.0
        %1112 = vmatpush1.msra.mxu0 0.0
        %1113 = vmatprep.subr.mxu0 0.0
        %1114 = vmatpush1.msra.mxu0 0.0
        %1115 = vmatprep.subr.mxu0 0.0
        %1116 = vmatpush1.msra.mxu0 0.0
        %1117 = vmatprep.subr.mxu0 0.0
        %1118 = vmatpush1.msra.mxu0 0.0
        %1119 = vmatprep.subr.mxu0 0.0
        %1120 = vmatpush1.msra.mxu0 %v1093
        %1121 = vmatprep.subr.mxu0 0.0
        %1122 = vmatpush1.msra.mxu0 %v1077
        %1123 = vmatprep.subr.mxu0 0.0
        %1124 = vmatpush1.msra.mxu0 %v1072
        %1125 = vmatprep.subr.mxu0 0.0
        %1126 = vmatpush1.msra.mxu0 %v1067
        %1127 = vmatprep.subr.mxu0 0.0
        %1128 = vmatpush2.msra.mxu0 0.0
        %1129 = vmatprep.subr.mxu0 0.0
        %1130 = vmatpush2.msra.mxu0 0.0
        %1131 = vmatprep.subr.mxu0 0.0
        %1132 = vmatpush2.msra.mxu0 0.0
        %1133 = vmatprep.subr.mxu0 0.0
        %1134 = vmatpush2.msra.mxu0 0.0
        %1135 = vmatprep.subr.mxu0 0.0
        %1136 = vmatpush2.msra.mxu0 0.0
        %1137 = vmatprep.subr.mxu0 0.0
        %1138 = vmatpush2.msra.mxu0 0.0
        %1139 = vmatprep.subr.mxu0 0.0
        %1140 = vmatpush2.msra.mxu0 0.0
        %1141 = vmatprep.subr.mxu0 0.0
        %1142 = vmatpush2.msra.mxu0 0.0
        %1143 = vmatprep.subr.mxu0 0.0
        %1144 = vmatpush2.msra.mxu0 0.0
        %1145 = vmatprep.subr.mxu0 0.0
        %1146 = vmatpush2.msra.mxu0 0.0
        %1147 = vmatprep.subr.mxu0 0.0
        %1148 = vmatpush2.msra.mxu0 0.0
        %1149 = vmatprep.subr.mxu0 0.0
        %1150 = vmatpush2.msra.mxu0 0.0
        %1151 = vmatprep.subr.mxu0 0.0
        %1152 = vmatpush2.msra.mxu0 0.0
        %1153 = vmatprep.subr.mxu0 0.0
        %1154 = vmatpush2.msra.mxu0 0.0
        %1155 = vmatprep.subr.mxu0 0.0
        %1156 = vmatpush2.msra.mxu0 0.0
        %1157 = vmatprep.subr.mxu0 0.0
        %1158 = vmatpush2.msra.mxu0 0.0
        %1159 = vmatprep.mubr.f32.mxu0 0.0
        %1160 = vmatmul.mubr.f32.gmra.mxu0 %v1087
        %v1161 = vpop.f32.mrf.mxu0
        %v1162 = vadd.f32 0.0, %v1161
        %v1163 = vpop.f32.mrf.mxu0
        %1164 = vmatprep.mubr.f32.mxu0 0.0
        %1165 = vmatmul.mubr.f32.gmra.mxu0 %v1090
        %v1166 = vpop.f32.mrf.mxu0
        %v1167 = vadd.f32 0.0, %v1166
        %v1168 = vpop.f32.mrf.mxu0
        %1169 = vdwg.mxu0
        %v1172 = vrot.slane %v1162, 1
        %v1173 = vrot.slane %v1167, 1
        %v1174 = vsel %vm788, %v1172, %v1173
        %1175 = vrot.lane.b32.xlu0 %v1174, 84
        %v1176 = vpop.permute.xlu0 %1175
        %1177 = vrot.lane.b32.xlu0 %v1173, 84
        %v1178 = vpop.permute.xlu0 %1177
        %v1181 = vrot.slane %v1162, 2
        %v1182 = vrot.slane %v1167, 2
        %v1183 = vsel %vm808, %v1181, %v1182
        %1184 = vrot.lane.b32.xlu0 %v1183, 40
        %v1185 = vpop.permute.xlu0 %1184
        %1186 = vrot.lane.b32.xlu0 %v1182, 40
        %v1187 = vpop.permute.xlu0 %1186
        %v1190 = vrot.slane %v1162, 3
        %v1191 = vrot.slane %v1167, 3
        %v1192 = vsel %vm828, %v1190, %v1191
        %1193 = vrot.lane.b32.xlu0 %v1192, 124
        %v1194 = vpop.permute.xlu0 %1193
        %1195 = vrot.lane.b32.xlu0 %v1191, 124
        %v1196 = vpop.permute.xlu0 %1195
        %v1199 = vrot.slane %v1162, 4
        %v1200 = vrot.slane %v1167, 4
        %v1201 = vsel %vm848, %v1199, %v1200
        %1202 = vrot.lane.b32.xlu0 %v1201, 80
        %v1203 = vpop.permute.xlu0 %1202
        %1204 = vrot.lane.b32.xlu0 %v1200, 80
        %v1205 = vpop.permute.xlu0 %1204
        %vm1208 = vcmask 687104
        %v1209 = vsel %vm1208, %v1162, %v1176
        %v1210 = vsel %vm1208, %v1167, %v1178
        %v1211 = vsel %vm987, %v1176, %v1185
        %v1212 = vsel %vm987, %v1178, %v1187
        %vm1213 = vcmask 1014784
        %v1214 = vsel %vm1213, %v1211, %v1194
        %v1215 = vsel %vm1213, %v1212, %v1196
        %vm1216 = vcmask 654336
        %v1217 = vsel %vm1216, %v1194, %v1203
        %v1218 = vsel %vm1216, %v1196, %v1205
        %v1220 = vlaneseq
        %v1221 = vshrl.u32 %v1220, 7
        %v1222 = vsub.s32 0, %v1221
        %v1223 = vrot.slane %v779, %v1222
        %v1224 = vlaneseq
        %v1225 = vshrl.u32 %v1224, 7
        %v1226 = vsub.s32 1, %v1225
        %v1227 = vrot.slane %v779, %v1226
        %vm1230 = vcmask 293888
        %v1231 = vsel %vm1230, %v1203, 0
        %v1233 = vsel %vm1230, %v1205, 0
        %v1236 = vsel %vm848, %v777, 0
        %v1239 = vsel %vm848, %v778, 0
        %1241 = vmatprep.subr.mxu0 %v704
        %1242 = vmatpush1.msra.mxu0 %v703
        %1243 = vmatprep.subr.mxu0 %v702
        %1244 = vmatpush1.msra.mxu0 %v701
        %1245 = vmatprep.subr.mxu0 %v700
        %1246 = vmatpush1.msra.mxu0 %v699
        %1247 = vmatprep.subr.mxu0 %v698
        %1248 = vmatpush1.msra.mxu0 %v697
        %1249 = vmatprep.subr.mxu0 %v696
        %1250 = vmatpush1.msra.mxu0 %v695
        %1251 = vmatprep.subr.mxu0 %v694
        %1252 = vmatpush1.msra.mxu0 %v693
        %1253 = vmatprep.subr.mxu0 %v692
        %1254 = vmatpush1.msra.mxu0 %v691
        %1255 = vmatprep.subr.mxu0 %v690
        %1256 = vmatpush1.msra.mxu0 %v689
        %1257 = vmatprep.subr.mxu0 %v688
        %1258 = vmatpush1.msra.mxu0 %v687
        %1259 = vmatprep.subr.mxu0 %v686
        %1260 = vmatpush1.msra.mxu0 %v685
        %1261 = vmatprep.subr.mxu0 %v684
        %1262 = vmatpush1.msra.mxu0 %v683
        %1263 = vmatprep.subr.mxu0 %v682
        %1264 = vmatpush1.msra.mxu0 %v681
        %1265 = vmatprep.subr.mxu0 %v680
        %1266 = vmatpush1.msra.mxu0 %v679
        %1267 = vmatprep.subr.mxu0 %v678
        %1268 = vmatpush1.msra.mxu0 %v677
        %1269 = vmatprep.subr.mxu0 %v676
        %1270 = vmatpush1.msra.mxu0 %v675
        %1271 = vmatprep.subr.mxu0 %v674
        %1272 = vmatpush1.msra.mxu0 %v673
        %1273 = vmatprep.subr.mxu0 %v736
        %1274 = vmatpush2.msra.mxu0 %v735
        %1275 = vmatprep.subr.mxu0 %v734
        %1276 = vmatpush2.msra.mxu0 %v733
        %1277 = vmatprep.subr.mxu0 %v732
        %1278 = vmatpush2.msra.mxu0 %v731
        %1279 = vmatprep.subr.mxu0 %v730
        %1280 = vmatpush2.msra.mxu0 %v729
        %1281 = vmatprep.subr.mxu0 %v728
        %1282 = vmatpush2.msra.mxu0 %v727
        %1283 = vmatprep.subr.mxu0 %v726
        %1284 = vmatpush2.msra.mxu0 %v725
        %1285 = vmatprep.subr.mxu0 %v724
        %1286 = vmatpush2.msra.mxu0 %v723
        %1287 = vmatprep.subr.mxu0 %v722
        %1288 = vmatpush2.msra.mxu0 %v721
        %1289 = vmatprep.subr.mxu0 %v720
        %1290 = vmatpush2.msra.mxu0 %v719
        %1291 = vmatprep.subr.mxu0 %v718
        %1292 = vmatpush2.msra.mxu0 %v717
        %1293 = vmatprep.subr.mxu0 %v716
        %1294 = vmatpush2.msra.mxu0 %v715
        %1295 = vmatprep.subr.mxu0 %v714
        %1296 = vmatpush2.msra.mxu0 %v713
        %1297 = vmatprep.subr.mxu0 %v712
        %1298 = vmatpush2.msra.mxu0 %v711
        %1299 = vmatprep.subr.mxu0 %v710
        %1300 = vmatpush2.msra.mxu0 %v709
        %1301 = vmatprep.subr.mxu0 %v708
        %1302 = vmatpush2.msra.mxu0 %v707
        %1303 = vmatprep.subr.mxu0 %v706
        %1304 = vmatpush2.msra.mxu0 %v705
        %1305 = vmatprep.mubr.f32.mxu0 %v1214
        %1306 = vmatmul.mubr.f32.gmra.mxu0 %v1209
        %v1307 = vpop.f32.mrf.mxu0
        %v1308 = vadd.f32 %v1223, %v1307
        %v1309 = vpop.f32.mrf.mxu0
        %v1310 = vadd.f32 %v1227, %v1309
        %1311 = vmatprep.mubr.f32.mxu0 %v1215
        %1312 = vmatmul.mubr.f32.gmra.mxu0 %v1210
        %v1313 = vpop.f32.mrf.mxu0
        %v1314 = vadd.f32 %v1223, %v1313
        %v1315 = vpop.f32.mrf.mxu0
        %v1316 = vadd.f32 %v1227, %v1315
        %1317 = vdwg.mxu0
        %1318 = vmatprep.subr.mxu0 %v768
        %1319 = vmatpush1.msra.mxu0 %v767
        %1320 = vmatprep.subr.mxu0 %v766
        %1321 = vmatpush1.msra.mxu0 %v765
        %1322 = vmatprep.subr.mxu0 %v764
        %1323 = vmatpush1.msra.mxu0 %v763
        %1324 = vmatprep.subr.mxu0 %v762
        %1325 = vmatpush1.msra.mxu0 %v761
        %1326 = vmatprep.subr.mxu0 %v760
        %1327 = vmatpush1.msra.mxu0 %v759
        %1328 = vmatprep.subr.mxu0 %v758
        %1329 = vmatpush1.msra.mxu0 %v757
        %1330 = vmatprep.subr.mxu0 %v756
        %1331 = vmatpush1.msra.mxu0 %v755
        %1332 = vmatprep.subr.mxu0 %v754
        %1333 = vmatpush1.msra.mxu0 %v753
        %1334 = vmatprep.subr.mxu0 %v752
        %1335 = vmatpush1.msra.mxu0 %v751
        %1336 = vmatprep.subr.mxu0 %v750
        %1337 = vmatpush1.msra.mxu0 %v749
        %1338 = vmatprep.subr.mxu0 %v748
        %1339 = vmatpush1.msra.mxu0 %v747
        %1340 = vmatprep.subr.mxu0 %v746
        %1341 = vmatpush1.msra.mxu0 %v745
        %1342 = vmatprep.subr.mxu0 %v744
        %1343 = vmatpush1.msra.mxu0 %v743
        %1344 = vmatprep.subr.mxu0 %v742
        %1345 = vmatpush1.msra.mxu0 %v741
        %1346 = vmatprep.subr.mxu0 %v740
        %1347 = vmatpush1.msra.mxu0 %v739
        %1348 = vmatprep.subr.mxu0 %v738
        %1349 = vmatpush1.msra.mxu0 %v737
        %1350 = vmatprep.subr.mxu0 0.0
        %1351 = vmatpush2.msra.mxu0 0.0
        %1352 = vmatprep.subr.mxu0 0.0
        %1353 = vmatpush2.msra.mxu0 0.0
        %1354 = vmatprep.subr.mxu0 0.0
        %1355 = vmatpush2.msra.mxu0 0.0
        %1356 = vmatprep.subr.mxu0 0.0
        %1357 = vmatpush2.msra.mxu0 0.0
        %1358 = vmatprep.subr.mxu0 0.0
        %1359 = vmatpush2.msra.mxu0 0.0
        %1360 = vmatprep.subr.mxu0 0.0
        %1361 = vmatpush2.msra.mxu0 0.0
        %1362 = vmatprep.subr.mxu0 0.0
        %1363 = vmatpush2.msra.mxu0 0.0
        %1364 = vmatprep.subr.mxu0 0.0
        %1365 = vmatpush2.msra.mxu0 0.0
        %1366 = vmatprep.subr.mxu0 0.0
        %1367 = vmatpush2.msra.mxu0 0.0
        %1368 = vmatprep.subr.mxu0 0.0
        %1369 = vmatpush2.msra.mxu0 0.0
        %1370 = vmatprep.subr.mxu0 0.0
        %1371 = vmatpush2.msra.mxu0 0.0
        %1372 = vmatprep.subr.mxu0 %v1239
        %1373 = vmatpush2.msra.mxu0 %v1236
        %1374 = vmatprep.subr.mxu0 %v776
        %1375 = vmatpush2.msra.mxu0 %v775
        %1376 = vmatprep.subr.mxu0 %v774
        %1377 = vmatpush2.msra.mxu0 %v773
        %1378 = vmatprep.subr.mxu0 %v772
        %1379 = vmatpush2.msra.mxu0 %v771
        %1380 = vmatprep.subr.mxu0 %v770
        %1381 = vmatpush2.msra.mxu0 %v769
        %1382 = vmatprep.mubr.f32.mxu0 %v1231
        %1383 = vmatmul.mubr.f32.gmra.mxu0 %v1217
        %v1384 = vpop.f32.mrf.mxu0
        %v1385 = vadd.f32 %v1308, %v1384
        %v1386 = vpop.f32.mrf.mxu0
        %v1387 = vadd.f32 %v1310, %v1386
        %1388 = vmatprep.mubr.f32.mxu0 %v1233
        %1389 = vmatmul.mubr.f32.gmra.mxu0 %v1218
        %v1390 = vpop.f32.mrf.mxu0
        %v1391 = vadd.f32 %v1314, %v1390
        %v1392 = vpop.f32.mrf.mxu0
        %v1393 = vadd.f32 %v1316, %v1392
        %1394 = vdwg.mxu0
        %v1395 = vmax.f32 %v1385, 0.0
        %v1396 = vmax.f32 %v1387, 0.0
        %v1397 = vmax.f32 %v1391, 0.0
        %v1398 = vmax.f32 %v1393, 0.0
        %v1401 = vrot.slane %v1395, 1
        %v1402 = vrot.slane %v1396, 1
        %v1403 = vrot.slane %v1395, 2
        %v1404 = vrot.slane %v1396, 2
        %v1405 = vrot.slane %v1395, 3
        %v1406 = vrot.slane %v1396, 3
        %v1407 = vrot.slane %v1395, 4
        %v1408 = vrot.slane %v1396, 4
        %v1409 = vrot.slane %v1395, 5
        %v1410 = vrot.slane %v1396, 5
        %v1411 = vrot.slane %v1395, 6
        %v1412 = vrot.slane %v1396, 6
        %v1413 = vrot.slane %v1395, 7
        %v1414 = vrot.slane %v1396, 7
        %v1417 = vrot.slane %v1397, 1
        %v1418 = vrot.slane %v1398, 1
        %v1419 = vcombine.low %v1395, %v1396
        %v1420 = vcombine.low %v1401, %v1402
        %v1421 = vcombine.low %v1403, %v1404
        %v1422 = vcombine.low %v1405, %v1406
        %v1424 = vunpack.c.l.s4 1966171168
        %v1425 = vunpack.c.0.s8 %v1424
        %v1426 = vlaneseq
        %v1427 = vshrl.u32 %v1426, 7
        %v1428 = vsub.s32 %v1425, %v1427
        %v1429 = vrot.slane %v1419, %v1428
        %v1431 = vunpack.c.l.s4 1966171168
        %v1432 = vunpack.c.0.s8 %v1431
        %v1433 = vlaneseq
        %v1434 = vshrl.u32 %v1433, 7
        %v1435 = vsub.s32 %v1432, %v1434
        %v1436 = vrot.slane %v1420, %v1435
        %v1438 = vunpack.c.l.s4 1966171168
        %v1439 = vunpack.c.0.s8 %v1438
        %v1440 = vlaneseq
        %v1441 = vshrl.u32 %v1440, 7
        %v1442 = vsub.s32 %v1439, %v1441
        %v1443 = vrot.slane %v1421, %v1442
        %v1445 = vunpack.c.l.s4 1966171168
        %v1446 = vunpack.c.0.s8 %v1445
        %v1447 = vlaneseq
        %v1448 = vshrl.u32 %v1447, 7
        %v1449 = vsub.s32 %v1446, %v1448
        %v1450 = vrot.slane %v1422, %v1449
        %v1451 = vcombine.low %v1429, %v1436
        %v1452 = vcombine.low %v1443, %v1450
        %v1454 = vunpack.c.l.s4 1966171168
        %v1455 = vunpack.c.0.s8 %v1454
        %v1456 = vlaneseq
        %v1457 = vshrl.u32 %v1456, 7
        %v1458 = vsub.s32 %v1455, %v1457
        %v1459 = vrot.slane %v1451, %v1458
        %v1461 = vunpack.c.l.s4 1966171168
        %v1462 = vunpack.c.0.s8 %v1461
        %v1463 = vlaneseq
        %v1464 = vshrl.u32 %v1463, 7
        %v1465 = vsub.s32 %v1462, %v1464
        %v1466 = vrot.slane %v1452, %v1465
        %v1467 = vcombine.low %v1459, %v1466
        %v1468 = vcombine.low %v1407, %v1408
        %v1469 = vcombine.low %v1409, %v1410
        %v1470 = vcombine.low %v1411, %v1412
        %v1471 = vcombine.low %v1413, %v1414
        %v1473 = vunpack.c.l.s4 1966171168
        %v1474 = vunpack.c.0.s8 %v1473
        %v1475 = vlaneseq
        %v1476 = vshrl.u32 %v1475, 7
        %v1477 = vsub.s32 %v1474, %v1476
        %v1478 = vrot.slane %v1468, %v1477
        %v1480 = vunpack.c.l.s4 1966171168
        %v1481 = vunpack.c.0.s8 %v1480
        %v1482 = vlaneseq
        %v1483 = vshrl.u32 %v1482, 7
        %v1484 = vsub.s32 %v1481, %v1483
        %v1485 = vrot.slane %v1469, %v1484
        %v1487 = vunpack.c.l.s4 1966171168
        %v1488 = vunpack.c.0.s8 %v1487
        %v1489 = vlaneseq
        %v1490 = vshrl.u32 %v1489, 7
        %v1491 = vsub.s32 %v1488, %v1490
        %v1492 = vrot.slane %v1470, %v1491
        %v1494 = vunpack.c.l.s4 1966171168
        %v1495 = vunpack.c.0.s8 %v1494
        %v1496 = vlaneseq
        %v1497 = vshrl.u32 %v1496, 7
        %v1498 = vsub.s32 %v1495, %v1497
        %v1499 = vrot.slane %v1471, %v1498
        %v1500 = vcombine.low %v1478, %v1485
        %v1501 = vcombine.low %v1492, %v1499
        %v1503 = vunpack.c.l.s4 1966171168
        %v1504 = vunpack.c.0.s8 %v1503
        %v1505 = vlaneseq
        %v1506 = vshrl.u32 %v1505, 7
        %v1507 = vsub.s32 %v1504, %v1506
        %v1508 = vrot.slane %v1500, %v1507
        %v1510 = vunpack.c.l.s4 1966171168
        %v1511 = vunpack.c.0.s8 %v1510
        %v1512 = vlaneseq
        %v1513 = vshrl.u32 %v1512, 7
        %v1514 = vsub.s32 %v1511, %v1513
        %v1515 = vrot.slane %v1501, %v1514
        %v1516 = vcombine.low %v1508, %v1515
        %v1517 = vcombine.low %v1397, %v1398
        %v1518 = vcombine.low %v1417, %v1418
        %v1520 = vunpack.c.l.s4 1966171168
        %v1521 = vunpack.c.0.s8 %v1520
        %v1522 = vlaneseq
        %v1523 = vshrl.u32 %v1522, 7
        %v1524 = vsub.s32 %v1521, %v1523
        %v1525 = vrot.slane %v1517, %v1524
        %v1527 = vunpack.c.l.s4 1966171168
        %v1528 = vunpack.c.0.s8 %v1527
        %v1529 = vlaneseq
        %v1530 = vshrl.u32 %v1529, 7
        %v1531 = vsub.s32 %v1528, %v1530
        %v1532 = vrot.slane %v1518, %v1531
        %v1533 = vcombine.low %v1525, %v1532
        %v1535 = vunpack.c.l.s4 1966171168
        %v1536 = vunpack.c.0.s8 %v1535
        %v1537 = vlaneseq
        %v1538 = vshrl.u32 %v1537, 7
        %v1539 = vsub.s32 %v1536, %v1538
        %v1540 = vrot.slane %v1533, %v1539
        %1544 = vst [vmem:[#allocation2] ss:$8 sm:$0xf] %v1467
        %1545 = vst [vmem:[#allocation2] ss:$8 sm:$0xf0] %v1467
        %s1546 = scalar_lea.vmem [#allocation2], 64
        %1547 = vst [vmem:[%s1546] ss:$8 sm:$0xf] %v1516
        %1548 = vst [vmem:[%s1546] ss:$8 sm:$0xf0] %v1516
        %v1549 = vlaneseq
        %vm1550 = vcmp.ge.s32.totalorder %v1549, 0
        %vm1551 = vcmp.lt.s32.totalorder %v1549, 512
        %vm1552 = vmand %vm1550, %vm1551
        %s1553 = scalar_lea.vmem [#allocation2], 128
        %1554 = vst.msk [vmem:[%s1553] ss:$8 sm:$0xf] %vm1552, %v1540
        %1555 = vst.msk [vmem:[%s1553] ss:$8 sm:$0x0] %vm1552, %v1540
        %s1556 = scalar_lea.vmem %s607, 32
        %v1557 = vld [vmem:[%s1556] sm:$0xff]
        %v1558 = vld [vmem:[%s1556 + $0x8] sm:$0xff]
        %v1559 = vld [vmem:[%s1556 + $0x10] sm:$0xff]
        %v1560 = vld [vmem:[%s1556 + $0x18] sm:$0xff]
        %v1565 = vrot.slane %v1557, 1
        %v1566 = vrot.slane %v1558, 1
        %v1567 = vsel %vm788, %v1565, %v1566
        %v1568 = vrot.slane %v1559, 1
        %v1569 = vsel %vm788, %v1566, %v1568
        %v1570 = vrot.slane %v1560, 1
        %v1571 = vsel %vm788, %v1568, %v1570
        %1572 = vrot.lane.b32.xlu0 %v1567, 32
        %v1573 = vpop.permute.xlu0 %1572
        %1574 = vrot.lane.b32.xlu0 %v1569, 32
        %v1575 = vpop.permute.xlu0 %1574
        %1576 = vrot.lane.b32.xlu0 %v1571, 32
        %v1577 = vpop.permute.xlu0 %1576
        %1578 = vrot.lane.b32.xlu0 %v1570, 32
        %v1579 = vpop.permute.xlu0 %1578
        %v1584 = vrot.slane %v1557, 2
        %v1585 = vrot.slane %v1558, 2
        %v1586 = vsel %vm808, %v1584, %v1585
        %v1587 = vrot.slane %v1559, 2
        %v1588 = vsel %vm808, %v1585, %v1587
        %v1589 = vrot.slane %v1560, 2
        %v1590 = vsel %vm808, %v1587, %v1589
        %1591 = vrot.lane.b32.xlu0 %v1586, 64
        %v1592 = vpop.permute.xlu0 %1591
        %1593 = vrot.lane.b32.xlu0 %v1588, 64
        %v1594 = vpop.permute.xlu0 %1593
        %1595 = vrot.lane.b32.xlu0 %v1590, 64
        %v1596 = vpop.permute.xlu0 %1595
        %1597 = vrot.lane.b32.xlu0 %v1589, 64
        %v1598 = vpop.permute.xlu0 %1597
        %v1603 = vrot.slane %v1557, 3
        %v1604 = vrot.slane %v1558, 3
        %v1605 = vsel %vm828, %v1603, %v1604
        %v1606 = vrot.slane %v1559, 3
        %v1607 = vsel %vm828, %v1604, %v1606
        %v1608 = vrot.slane %v1560, 3
        %v1609 = vsel %vm828, %v1606, %v1608
        %1610 = vrot.lane.b32.xlu0 %v1605, 96
        %v1611 = vpop.permute.xlu0 %1610
        %1612 = vrot.lane.b32.xlu0 %v1607, 96
        %v1613 = vpop.permute.xlu0 %1612
        %1614 = vrot.lane.b32.xlu0 %v1609, 96
        %v1615 = vpop.permute.xlu0 %1614
        %1616 = vrot.lane.b32.xlu0 %v1608, 96
        %v1617 = vpop.permute.xlu0 %1616
        %v1622 = vrot.slane %v1557, 4
        %v1623 = vrot.slane %v1558, 4
        %v1624 = vsel %vm848, %v1622, %v1623
        %v1625 = vrot.slane %v1559, 4
        %v1626 = vsel %vm848, %v1623, %v1625
        %v1627 = vrot.slane %v1560, 4
        %v1628 = vsel %vm848, %v1625, %v1627
        %v1629 = vsel %vm856, %v1557, %v1573
        %v1630 = vsel %vm856, %v1558, %v1575
        %v1631 = vsel %vm856, %v1559, %v1577
        %v1632 = vsel %vm856, %v1560, %v1579
        %v1633 = vsel %vm861, %v1629, %v1592
        %v1634 = vsel %vm861, %v1630, %v1594
        %v1635 = vsel %vm861, %v1631, %v1596
        %v1636 = vsel %vm861, %v1632, %v1598
        %v1637 = vsel %vm866, %v1633, %v1611
        %v1638 = vsel %vm866, %v1634, %v1613
        %v1639 = vsel %vm866, %v1635, %v1615
        %v1640 = vsel %vm866, %v1636, %v1617
        %v1641 = vsel %vm856, %v1624, 0
        %v1643 = vsel %vm856, %v1626, 0
        %v1645 = vsel %vm856, %v1628, 0
        %v1647 = vsel %vm856, %v1627, 0
        %1649 = vmatprep.subr.mxu0 %v640
        %1650 = vmatpush1.msra.mxu0 %v639
        %1651 = vmatprep.subr.mxu0 %v638
        %1652 = vmatpush1.msra.mxu0 %v637
        %1653 = vmatprep.subr.mxu0 %v636
        %1654 = vmatpush1.msra.mxu0 %v635
        %1655 = vmatprep.subr.mxu0 %v634
        %1656 = vmatpush1.msra.mxu0 %v633
        %1657 = vmatprep.subr.mxu0 %v632
        %1658 = vmatpush1.msra.mxu0 %v631
        %1659 = vmatprep.subr.mxu0 %v630
        %1660 = vmatpush1.msra.mxu0 %v629
        %1661 = vmatprep.subr.mxu0 %v628
        %1662 = vmatpush1.msra.mxu0 %v627
        %1663 = vmatprep.subr.mxu0 %v626
        %1664 = vmatpush1.msra.mxu0 %v625
        %1665 = vmatprep.subr.mxu0 %v624
        %1666 = vmatpush1.msra.mxu0 %v623
        %1667 = vmatprep.subr.mxu0 %v622
        %1668 = vmatpush1.msra.mxu0 %v621
        %1669 = vmatprep.subr.mxu0 %v620
        %1670 = vmatpush1.msra.mxu0 %v619
        %1671 = vmatprep.subr.mxu0 %v618
        %1672 = vmatpush1.msra.mxu0 %v617
        %1673 = vmatprep.subr.mxu0 %v616
        %1674 = vmatpush1.msra.mxu0 %v615
        %1675 = vmatprep.subr.mxu0 %v614
        %1676 = vmatpush1.msra.mxu0 %v613
        %1677 = vmatprep.subr.mxu0 %v612
        %1678 = vmatpush1.msra.mxu0 %v611
        %1679 = vmatprep.subr.mxu0 %v610
        %1680 = vmatpush1.msra.mxu0 %v609
        %1681 = vmatprep.subr.mxu0 0.0
        %1682 = vmatpush2.msra.mxu0 0.0
        %1683 = vmatprep.subr.mxu0 0.0
        %1684 = vmatpush2.msra.mxu0 0.0
        %1685 = vmatprep.subr.mxu0 0.0
        %1686 = vmatpush2.msra.mxu0 0.0
        %1687 = vmatprep.subr.mxu0 0.0
        %1688 = vmatpush2.msra.mxu0 0.0
        %1689 = vmatprep.subr.mxu0 0.0
        %1690 = vmatpush2.msra.mxu0 0.0
        %1691 = vmatprep.subr.mxu0 0.0
        %1692 = vmatpush2.msra.mxu0 0.0
        %1693 = vmatprep.subr.mxu0 0.0
        %1694 = vmatpush2.msra.mxu0 0.0
        %1695 = vmatprep.subr.mxu0 0.0
        %1696 = vmatpush2.msra.mxu0 0.0
        %1697 = vmatprep.subr.mxu0 0.0
        %1698 = vmatpush2.msra.mxu0 0.0
        %1699 = vmatprep.subr.mxu0 0.0
        %1700 = vmatpush2.msra.mxu0 0.0
        %1701 = vmatprep.subr.mxu0 0.0
        %1702 = vmatpush2.msra.mxu0 0.0
        %1703 = vmatprep.subr.mxu0 0.0
        %1704 = vmatpush2.msra.mxu0 0.0
        %1705 = vmatprep.subr.mxu0 %v648
        %1706 = vmatpush2.msra.mxu0 %v647
        %1707 = vmatprep.subr.mxu0 %v646
        %1708 = vmatpush2.msra.mxu0 %v645
        %1709 = vmatprep.subr.mxu0 %v644
        %1710 = vmatpush2.msra.mxu0 %v643
        %1711 = vmatprep.subr.mxu0 %v642
        %1712 = vmatpush2.msra.mxu0 %v641
        %1713 = vmatprep.mubr.f32.mxu0 %v1641
        %1714 = vmatmul.mubr.f32.gmra.mxu0 %v1637
        %v1715 = vpop.f32.mrf.mxu0
        %v1716 = vadd.f32 %v875, %v1715
        %v1717 = vpop.f32.mrf.mxu0
        %v1718 = vadd.f32 %v879, %v1717
        %1719 = vmatprep.mubr.f32.mxu0 %v1643
        %1720 = vmatmul.mubr.f32.gmra.mxu0 %v1638
        %v1721 = vpop.f32.mrf.mxu0
        %v1722 = vadd.f32 %v875, %v1721
        %v1723 = vpop.f32.mrf.mxu0
        %v1724 = vadd.f32 %v879, %v1723
        %1725 = vmatprep.mubr.f32.mxu0 %v1645
        %1726 = vmatmul.mubr.f32.gmra.mxu0 %v1639
        %v1727 = vpop.f32.mrf.mxu0
        %v1728 = vadd.f32 %v875, %v1727
        %v1729 = vpop.f32.mrf.mxu0
        %v1730 = vadd.f32 %v879, %v1729
        %1731 = vmatprep.mubr.f32.mxu0 %v1647
        %1732 = vmatmul.mubr.f32.gmra.mxu0 %v1640
        %v1733 = vpop.f32.mrf.mxu0
        %v1734 = vadd.f32 %v875, %v1733
        %v1735 = vpop.f32.mrf.mxu0
        %v1736 = vadd.f32 %v879, %v1735
        %1737 = vdwg.mxu0
        %v1738 = vmax.f32 %v1716, 0.0
        %v1739 = vmax.f32 %v1718, 0.0
        %v1740 = vmax.f32 %v1722, 0.0
        %v1741 = vmax.f32 %v1724, 0.0
        %v1742 = vmax.f32 %v1728, 0.0
        %v1743 = vmax.f32 %v1730, 0.0
        %v1744 = vmax.f32 %v1734, 0.0
        %v1745 = vmax.f32 %v1736, 0.0
        %v1747 = vsel %vm987, %v1739, 0
        %v1750 = vsel %vm987, %v1741, 0
        %v1753 = vsel %vm987, %v1743, 0
        %v1756 = vsel %vm987, %v1745, 0
        %1758 = vmatprep.subr.mxu0 0.0
        %1759 = vmatpush1.msra.mxu0 %v665
        %1760 = vmatprep.subr.mxu0 0.0
        %1761 = vmatpush1.msra.mxu0 %v664
        %1762 = vmatprep.subr.mxu0 0.0
        %1763 = vmatpush1.msra.mxu0 %v663
        %1764 = vmatprep.subr.mxu0 0.0
        %1765 = vmatpush1.msra.mxu0 %v662
        %1766 = vmatprep.subr.mxu0 0.0
        %1767 = vmatpush1.msra.mxu0 %v661
        %1768 = vmatprep.subr.mxu0 0.0
        %1769 = vmatpush1.msra.mxu0 %v660
        %1770 = vmatprep.subr.mxu0 0.0
        %1771 = vmatpush1.msra.mxu0 %v659
        %1772 = vmatprep.subr.mxu0 0.0
        %1773 = vmatpush1.msra.mxu0 %v658
        %1774 = vmatprep.subr.mxu0 0.0
        %1775 = vmatpush1.msra.mxu0 %v657
        %1776 = vmatprep.subr.mxu0 0.0
        %1777 = vmatpush1.msra.mxu0 %v656
        %1778 = vmatprep.subr.mxu0 0.0
        %1779 = vmatpush1.msra.mxu0 %v655
        %1780 = vmatprep.subr.mxu0 0.0
        %1781 = vmatpush1.msra.mxu0 %v654
        %1782 = vmatprep.subr.mxu0 0.0
        %1783 = vmatpush1.msra.mxu0 %v653
        %1784 = vmatprep.subr.mxu0 0.0
        %1785 = vmatpush1.msra.mxu0 %v652
        %1786 = vmatprep.subr.mxu0 0.0
        %1787 = vmatpush1.msra.mxu0 %v651
        %1788 = vmatprep.subr.mxu0 0.0
        %1789 = vmatpush1.msra.mxu0 %v650
        %1790 = vmatprep.subr.mxu0 0.0
        %1791 = vmatpush2.msra.mxu0 0.0
        %1792 = vmatprep.subr.mxu0 0.0
        %1793 = vmatpush2.msra.mxu0 0.0
        %1794 = vmatprep.subr.mxu0 0.0
        %1795 = vmatpush2.msra.mxu0 0.0
        %1796 = vmatprep.subr.mxu0 0.0
        %1797 = vmatpush2.msra.mxu0 0.0
        %1798 = vmatprep.subr.mxu0 0.0
        %1799 = vmatpush2.msra.mxu0 0.0
        %1800 = vmatprep.subr.mxu0 0.0
        %1801 = vmatpush2.msra.mxu0 0.0
        %1802 = vmatprep.subr.mxu0 0.0
        %1803 = vmatpush2.msra.mxu0 0.0
        %1804 = vmatprep.subr.mxu0 0.0
        %1805 = vmatpush2.msra.mxu0 0.0
        %1806 = vmatprep.subr.mxu0 0.0
        %1807 = vmatpush2.msra.mxu0 0.0
        %1808 = vmatprep.subr.mxu0 0.0
        %1809 = vmatpush2.msra.mxu0 0.0
        %1810 = vmatprep.subr.mxu0 0.0
        %1811 = vmatpush2.msra.mxu0 0.0
        %1812 = vmatprep.subr.mxu0 0.0
        %1813 = vmatpush2.msra.mxu0 %v670
        %1814 = vmatprep.subr.mxu0 0.0
        %1815 = vmatpush2.msra.mxu0 %v669
        %1816 = vmatprep.subr.mxu0 0.0
        %1817 = vmatpush2.msra.mxu0 %v668
        %1818 = vmatprep.subr.mxu0 0.0
        %1819 = vmatpush2.msra.mxu0 %v667
        %1820 = vmatprep.subr.mxu0 0.0
        %1821 = vmatpush2.msra.mxu0 %v666
        %1822 = vmatprep.mubr.f32.mxu0 %v1747
        %1823 = vmatmul.mubr.f32.gmra.mxu0 %v1738
        %v1824 = vpop.f32.mrf.mxu0
        %v1825 = vadd.f32 0.0, %v1824
        %v1826 = vpop.f32.mrf.mxu0
        %1827 = vmatprep.mubr.f32.mxu0 %v1750
        %1828 = vmatmul.mubr.f32.gmra.mxu0 %v1740
        %v1829 = vpop.f32.mrf.mxu0
        %v1830 = vadd.f32 0.0, %v1829
        %v1831 = vpop.f32.mrf.mxu0
        %1832 = vmatprep.mubr.f32.mxu0 %v1753
        %1833 = vmatmul.mubr.f32.gmra.mxu0 %v1742
        %v1834 = vpop.f32.mrf.mxu0
        %v1835 = vadd.f32 0.0, %v1834
        %v1836 = vpop.f32.mrf.mxu0
        %1837 = vmatprep.mubr.f32.mxu0 %v1756
        %1838 = vmatmul.mubr.f32.gmra.mxu0 %v1744
        %v1839 = vpop.f32.mrf.mxu0
        %v1840 = vadd.f32 0.0, %v1839
        %v1841 = vpop.f32.mrf.mxu0
        %1842 = vdwg.mxu0
        %v1844 = vsel %vm848, %v1840, 0
        %1846 = vmatprep.subr.mxu0 0.0
        %1847 = vmatpush1.msra.mxu0 0.0
        %1848 = vmatprep.subr.mxu0 0.0
        %1849 = vmatpush1.msra.mxu0 0.0
        %1850 = vmatprep.subr.mxu0 0.0
        %1851 = vmatpush1.msra.mxu0 0.0
        %1852 = vmatprep.subr.mxu0 0.0
        %1853 = vmatpush1.msra.mxu0 0.0
        %1854 = vmatprep.subr.mxu0 0.0
        %1855 = vmatpush1.msra.mxu0 0.0
        %1856 = vmatprep.subr.mxu0 0.0
        %1857 = vmatpush1.msra.mxu0 0.0
        %1858 = vmatprep.subr.mxu0 0.0
        %1859 = vmatpush1.msra.mxu0 0.0
        %1860 = vmatprep.subr.mxu0 0.0
        %1861 = vmatpush1.msra.mxu0 0.0
        %1862 = vmatprep.subr.mxu0 0.0
        %1863 = vmatpush1.msra.mxu0 0.0
        %1864 = vmatprep.subr.mxu0 0.0
        %1865 = vmatpush1.msra.mxu0 0.0
        %1866 = vmatprep.subr.mxu0 0.0
        %1867 = vmatpush1.msra.mxu0 0.0
        %1868 = vmatprep.subr.mxu0 0.0
        %1869 = vmatpush1.msra.mxu0 0.0
        %1870 = vmatprep.subr.mxu0 0.0
        %1871 = vmatpush1.msra.mxu0 %v1844
        %1872 = vmatprep.subr.mxu0 0.0
        %1873 = vmatpush1.msra.mxu0 %v1835
        %1874 = vmatprep.subr.mxu0 0.0
        %1875 = vmatpush1.msra.mxu0 %v1830
        %1876 = vmatprep.subr.mxu0 0.0
        %1877 = vmatpush1.msra.mxu0 %v1825
        %1878 = vmatprep.subr.mxu0 0.0
        %1879 = vmatpush2.msra.mxu0 0.0
        %1880 = vmatprep.subr.mxu0 0.0
        %1881 = vmatpush2.msra.mxu0 0.0
        %1882 = vmatprep.subr.mxu0 0.0
        %1883 = vmatpush2.msra.mxu0 0.0
        %1884 = vmatprep.subr.mxu0 0.0
        %1885 = vmatpush2.msra.mxu0 0.0
        %1886 = vmatprep.subr.mxu0 0.0
        %1887 = vmatpush2.msra.mxu0 0.0
        %1888 = vmatprep.subr.mxu0 0.0
        %1889 = vmatpush2.msra.mxu0 0.0
        %1890 = vmatprep.subr.mxu0 0.0
        %1891 = vmatpush2.msra.mxu0 0.0
        %1892 = vmatprep.subr.mxu0 0.0
        %1893 = vmatpush2.msra.mxu0 0.0
        %1894 = vmatprep.subr.mxu0 0.0
        %1895 = vmatpush2.msra.mxu0 0.0
        %1896 = vmatprep.subr.mxu0 0.0
        %1897 = vmatpush2.msra.mxu0 0.0
        %1898 = vmatprep.subr.mxu0 0.0
        %1899 = vmatpush2.msra.mxu0 0.0
        %1900 = vmatprep.subr.mxu0 0.0
        %1901 = vmatpush2.msra.mxu0 0.0
        %1902 = vmatprep.subr.mxu0 0.0
        %1903 = vmatpush2.msra.mxu0 0.0
        %1904 = vmatprep.subr.mxu0 0.0
        %1905 = vmatpush2.msra.mxu0 0.0
        %1906 = vmatprep.subr.mxu0 0.0
        %1907 = vmatpush2.msra.mxu0 0.0
        %1908 = vmatprep.subr.mxu0 0.0
        %1909 = vmatpush2.msra.mxu0 0.0
        %1910 = vmatprep.mubr.f32.mxu0 0.0
        %1911 = vmatmul.mubr.f32.gmra.mxu0 %v1087
        %v1912 = vpop.f32.mrf.mxu0
        %v1913 = vadd.f32 0.0, %v1912
        %v1914 = vpop.f32.mrf.mxu0
        %1915 = vmatprep.mubr.f32.mxu0 0.0
        %1916 = vmatmul.mubr.f32.gmra.mxu0 %v1090
        %v1917 = vpop.f32.mrf.mxu0
        %v1918 = vadd.f32 0.0, %v1917
        %v1919 = vpop.f32.mrf.mxu0
        %1920 = vdwg.mxu0
        %v1923 = vrot.slane %v1913, 1
        %v1924 = vrot.slane %v1918, 1
        %v1925 = vsel %vm788, %v1923, %v1924
        %1926 = vrot.lane.b32.xlu0 %v1925, 84
        %v1927 = vpop.permute.xlu0 %1926
        %1928 = vrot.lane.b32.xlu0 %v1924, 84
        %v1929 = vpop.permute.xlu0 %1928
        %v1932 = vrot.slane %v1913, 2
        %v1933 = vrot.slane %v1918, 2
        %v1934 = vsel %vm808, %v1932, %v1933
        %1935 = vrot.lane.b32.xlu0 %v1934, 40
        %v1936 = vpop.permute.xlu0 %1935
        %1937 = vrot.lane.b32.xlu0 %v1933, 40
        %v1938 = vpop.permute.xlu0 %1937
        %v1941 = vrot.slane %v1913, 3
        %v1942 = vrot.slane %v1918, 3
        %v1943 = vsel %vm828, %v1941, %v1942
        %1944 = vrot.lane.b32.xlu0 %v1943, 124
        %v1945 = vpop.permute.xlu0 %1944
        %1946 = vrot.lane.b32.xlu0 %v1942, 124
        %v1947 = vpop.permute.xlu0 %1946
        %v1950 = vrot.slane %v1913, 4
        %v1951 = vrot.slane %v1918, 4
        %v1952 = vsel %vm848, %v1950, %v1951
        %1953 = vrot.lane.b32.xlu0 %v1952, 80
        %v1954 = vpop.permute.xlu0 %1953
        %1955 = vrot.lane.b32.xlu0 %v1951, 80
        %v1956 = vpop.permute.xlu0 %1955
        %v1959 = vsel %vm1208, %v1913, %v1927
        %v1960 = vsel %vm1208, %v1918, %v1929
        %v1961 = vsel %vm987, %v1927, %v1936
        %v1962 = vsel %vm987, %v1929, %v1938
        %v1963 = vsel %vm1213, %v1961, %v1945
        %v1964 = vsel %vm1213, %v1962, %v1947
        %v1965 = vsel %vm1216, %v1945, %v1954
        %v1966 = vsel %vm1216, %v1947, %v1956
        %v1967 = vsel %vm1230, %v1954, 0
        %v1969 = vsel %vm1230, %v1956, 0
        %1971 = vmatprep.subr.mxu0 %v704
        %1972 = vmatpush1.msra.mxu0 %v703
        %1973 = vmatprep.subr.mxu0 %v702
        %1974 = vmatpush1.msra.mxu0 %v701
        %1975 = vmatprep.subr.mxu0 %v700
        %1976 = vmatpush1.msra.mxu0 %v699
        %1977 = vmatprep.subr.mxu0 %v698
        %1978 = vmatpush1.msra.mxu0 %v697
        %1979 = vmatprep.subr.mxu0 %v696
        %1980 = vmatpush1.msra.mxu0 %v695
        %1981 = vmatprep.subr.mxu0 %v694
        %1982 = vmatpush1.msra.mxu0 %v693
        %1983 = vmatprep.subr.mxu0 %v692
        %1984 = vmatpush1.msra.mxu0 %v691
        %1985 = vmatprep.subr.mxu0 %v690
        %1986 = vmatpush1.msra.mxu0 %v689
        %1987 = vmatprep.subr.mxu0 %v688
        %1988 = vmatpush1.msra.mxu0 %v687
        %1989 = vmatprep.subr.mxu0 %v686
        %1990 = vmatpush1.msra.mxu0 %v685
        %1991 = vmatprep.subr.mxu0 %v684
        %1992 = vmatpush1.msra.mxu0 %v683
        %1993 = vmatprep.subr.mxu0 %v682
        %1994 = vmatpush1.msra.mxu0 %v681
        %1995 = vmatprep.subr.mxu0 %v680
        %1996 = vmatpush1.msra.mxu0 %v679
        %1997 = vmatprep.subr.mxu0 %v678
        %1998 = vmatpush1.msra.mxu0 %v677
        %1999 = vmatprep.subr.mxu0 %v676
        %2000 = vmatpush1.msra.mxu0 %v675
        %2001 = vmatprep.subr.mxu0 %v674
        %2002 = vmatpush1.msra.mxu0 %v673
        %2003 = vmatprep.subr.mxu0 %v736
        %2004 = vmatpush2.msra.mxu0 %v735
        %2005 = vmatprep.subr.mxu0 %v734
        %2006 = vmatpush2.msra.mxu0 %v733
        %2007 = vmatprep.subr.mxu0 %v732
        %2008 = vmatpush2.msra.mxu0 %v731
        %2009 = vmatprep.subr.mxu0 %v730
        %2010 = vmatpush2.msra.mxu0 %v729
        %2011 = vmatprep.subr.mxu0 %v728
        %2012 = vmatpush2.msra.mxu0 %v727
        %2013 = vmatprep.subr.mxu0 %v726
        %2014 = vmatpush2.msra.mxu0 %v725
        %2015 = vmatprep.subr.mxu0 %v724
        %2016 = vmatpush2.msra.mxu0 %v723
        %2017 = vmatprep.subr.mxu0 %v722
        %2018 = vmatpush2.msra.mxu0 %v721
        %2019 = vmatprep.subr.mxu0 %v720
        %2020 = vmatpush2.msra.mxu0 %v719
        %2021 = vmatprep.subr.mxu0 %v718
        %2022 = vmatpush2.msra.mxu0 %v717
        %2023 = vmatprep.subr.mxu0 %v716
        %2024 = vmatpush2.msra.mxu0 %v715
        %2025 = vmatprep.subr.mxu0 %v714
        %2026 = vmatpush2.msra.mxu0 %v713
        %2027 = vmatprep.subr.mxu0 %v712
        %2028 = vmatpush2.msra.mxu0 %v711
        %2029 = vmatprep.subr.mxu0 %v710
        %2030 = vmatpush2.msra.mxu0 %v709
        %2031 = vmatprep.subr.mxu0 %v708
        %2032 = vmatpush2.msra.mxu0 %v707
        %2033 = vmatprep.subr.mxu0 %v706
        %2034 = vmatpush2.msra.mxu0 %v705
        %2035 = vmatprep.mubr.f32.mxu0 %v1963
        %2036 = vmatmul.mubr.f32.gmra.mxu0 %v1959
        %v2037 = vpop.f32.mrf.mxu0
        %v2038 = vadd.f32 %v1223, %v2037
        %v2039 = vpop.f32.mrf.mxu0
        %v2040 = vadd.f32 %v1227, %v2039
        %2041 = vmatprep.mubr.f32.mxu0 %v1964
        %2042 = vmatmul.mubr.f32.gmra.mxu0 %v1960
        %v2043 = vpop.f32.mrf.mxu0
        %v2044 = vadd.f32 %v1223, %v2043
        %v2045 = vpop.f32.mrf.mxu0
        %v2046 = vadd.f32 %v1227, %v2045
        %2047 = vdwg.mxu0
        %2048 = vmatprep.subr.mxu0 %v768
        %2049 = vmatpush1.msra.mxu0 %v767
        %2050 = vmatprep.subr.mxu0 %v766
        %2051 = vmatpush1.msra.mxu0 %v765
        %2052 = vmatprep.subr.mxu0 %v764
        %2053 = vmatpush1.msra.mxu0 %v763
        %2054 = vmatprep.subr.mxu0 %v762
        %2055 = vmatpush1.msra.mxu0 %v761
        %2056 = vmatprep.subr.mxu0 %v760
        %2057 = vmatpush1.msra.mxu0 %v759
        %2058 = vmatprep.subr.mxu0 %v758
        %2059 = vmatpush1.msra.mxu0 %v757
        %2060 = vmatprep.subr.mxu0 %v756
        %2061 = vmatpush1.msra.mxu0 %v755
        %2062 = vmatprep.subr.mxu0 %v754
        %2063 = vmatpush1.msra.mxu0 %v753
        %2064 = vmatprep.subr.mxu0 %v752
        %2065 = vmatpush1.msra.mxu0 %v751
        %2066 = vmatprep.subr.mxu0 %v750
        %2067 = vmatpush1.msra.mxu0 %v749
        %2068 = vmatprep.subr.mxu0 %v748
        %2069 = vmatpush1.msra.mxu0 %v747
        %2070 = vmatprep.subr.mxu0 %v746
        %2071 = vmatpush1.msra.mxu0 %v745
        %2072 = vmatprep.subr.mxu0 %v744
        %2073 = vmatpush1.msra.mxu0 %v743
        %2074 = vmatprep.subr.mxu0 %v742
        %2075 = vmatpush1.msra.mxu0 %v741
        %2076 = vmatprep.subr.mxu0 %v740
        %2077 = vmatpush1.msra.mxu0 %v739
        %2078 = vmatprep.subr.mxu0 %v738
        %2079 = vmatpush1.msra.mxu0 %v737
        %2080 = vmatprep.subr.mxu0 0.0
        %2081 = vmatpush2.msra.mxu0 0.0
        %2082 = vmatprep.subr.mxu0 0.0
        %2083 = vmatpush2.msra.mxu0 0.0
        %2084 = vmatprep.subr.mxu0 0.0
        %2085 = vmatpush2.msra.mxu0 0.0
        %2086 = vmatprep.subr.mxu0 0.0
        %2087 = vmatpush2.msra.mxu0 0.0
        %2088 = vmatprep.subr.mxu0 0.0
        %2089 = vmatpush2.msra.mxu0 0.0
        %2090 = vmatprep.subr.mxu0 0.0
        %2091 = vmatpush2.msra.mxu0 0.0
        %2092 = vmatprep.subr.mxu0 0.0
        %2093 = vmatpush2.msra.mxu0 0.0
        %2094 = vmatprep.subr.mxu0 0.0
        %2095 = vmatpush2.msra.mxu0 0.0
        %2096 = vmatprep.subr.mxu0 0.0
        %2097 = vmatpush2.msra.mxu0 0.0
        %2098 = vmatprep.subr.mxu0 0.0
        %2099 = vmatpush2.msra.mxu0 0.0
        %2100 = vmatprep.subr.mxu0 0.0
        %2101 = vmatpush2.msra.mxu0 0.0
        %2102 = vmatprep.subr.mxu0 %v1239
        %2103 = vmatpush2.msra.mxu0 %v1236
        %2104 = vmatprep.subr.mxu0 %v776
        %2105 = vmatpush2.msra.mxu0 %v775
        %2106 = vmatprep.subr.mxu0 %v774
        %2107 = vmatpush2.msra.mxu0 %v773
        %2108 = vmatprep.subr.mxu0 %v772
        %2109 = vmatpush2.msra.mxu0 %v771
        %2110 = vmatprep.subr.mxu0 %v770
        %2111 = vmatpush2.msra.mxu0 %v769
        %2112 = vmatprep.mubr.f32.mxu0 %v1967
        %2113 = vmatmul.mubr.f32.gmra.mxu0 %v1965
        %v2114 = vpop.f32.mrf.mxu0
        %v2115 = vadd.f32 %v2038, %v2114
        %v2116 = vpop.f32.mrf.mxu0
        %v2117 = vadd.f32 %v2040, %v2116
        %2118 = vmatprep.mubr.f32.mxu0 %v1969
        %2119 = vmatmul.mubr.f32.gmra.mxu0 %v1966
        %v2120 = vpop.f32.mrf.mxu0
        %v2121 = vadd.f32 %v2044, %v2120
        %v2122 = vpop.f32.mrf.mxu0
        %v2123 = vadd.f32 %v2046, %v2122
        %2124 = vdwg.mxu0
        %v2125 = vmax.f32 %v2115, 0.0
        %v2126 = vmax.f32 %v2117, 0.0
        %v2127 = vmax.f32 %v2121, 0.0
        %v2128 = vmax.f32 %v2123, 0.0
        %v2131 = vrot.slane %v2125, 1
        %v2132 = vrot.slane %v2126, 1
        %v2133 = vrot.slane %v2125, 2
        %v2134 = vrot.slane %v2126, 2
        %v2135 = vrot.slane %v2125, 3
        %v2136 = vrot.slane %v2126, 3
        %v2137 = vrot.slane %v2125, 4
        %v2138 = vrot.slane %v2126, 4
        %v2139 = vrot.slane %v2125, 5
        %v2140 = vrot.slane %v2126, 5
        %v2141 = vrot.slane %v2125, 6
        %v2142 = vrot.slane %v2126, 6
        %v2143 = vrot.slane %v2125, 7
        %v2144 = vrot.slane %v2126, 7
        %v2147 = vrot.slane %v2127, 1
        %v2148 = vrot.slane %v2128, 1
        %v2149 = vcombine.low %v2125, %v2126
        %v2150 = vcombine.low %v2131, %v2132
        %v2151 = vcombine.low %v2133, %v2134
        %v2152 = vcombine.low %v2135, %v2136
        %v2154 = vunpack.c.l.s4 1966171168
        %v2155 = vunpack.c.0.s8 %v2154
        %v2156 = vlaneseq
        %v2157 = vshrl.u32 %v2156, 7
        %v2158 = vsub.s32 %v2155, %v2157
        %v2159 = vrot.slane %v2149, %v2158
        %v2161 = vunpack.c.l.s4 1966171168
        %v2162 = vunpack.c.0.s8 %v2161
        %v2163 = vlaneseq
        %v2164 = vshrl.u32 %v2163, 7
        %v2165 = vsub.s32 %v2162, %v2164
        %v2166 = vrot.slane %v2150, %v2165
        %v2168 = vunpack.c.l.s4 1966171168
        %v2169 = vunpack.c.0.s8 %v2168
        %v2170 = vlaneseq
        %v2171 = vshrl.u32 %v2170, 7
        %v2172 = vsub.s32 %v2169, %v2171
        %v2173 = vrot.slane %v2151, %v2172
        %v2175 = vunpack.c.l.s4 1966171168
        %v2176 = vunpack.c.0.s8 %v2175
        %v2177 = vlaneseq
        %v2178 = vshrl.u32 %v2177, 7
        %v2179 = vsub.s32 %v2176, %v2178
        %v2180 = vrot.slane %v2152, %v2179
        %v2181 = vcombine.low %v2159, %v2166
        %v2182 = vcombine.low %v2173, %v2180
        %v2184 = vunpack.c.l.s4 1966171168
        %v2185 = vunpack.c.0.s8 %v2184
        %v2186 = vlaneseq
        %v2187 = vshrl.u32 %v2186, 7
        %v2188 = vsub.s32 %v2185, %v2187
        %v2189 = vrot.slane %v2181, %v2188
        %v2191 = vunpack.c.l.s4 1966171168
        %v2192 = vunpack.c.0.s8 %v2191
        %v2193 = vlaneseq
        %v2194 = vshrl.u32 %v2193, 7
        %v2195 = vsub.s32 %v2192, %v2194
        %v2196 = vrot.slane %v2182, %v2195
        %v2197 = vcombine.low %v2189, %v2196
        %v2198 = vcombine.low %v2137, %v2138
        %v2199 = vcombine.low %v2139, %v2140
        %v2200 = vcombine.low %v2141, %v2142
        %v2201 = vcombine.low %v2143, %v2144
        %v2203 = vunpack.c.l.s4 1966171168
        %v2204 = vunpack.c.0.s8 %v2203
        %v2205 = vlaneseq
        %v2206 = vshrl.u32 %v2205, 7
        %v2207 = vsub.s32 %v2204, %v2206
        %v2208 = vrot.slane %v2198, %v2207
        %v2210 = vunpack.c.l.s4 1966171168
        %v2211 = vunpack.c.0.s8 %v2210
        %v2212 = vlaneseq
        %v2213 = vshrl.u32 %v2212, 7
        %v2214 = vsub.s32 %v2211, %v2213
        %v2215 = vrot.slane %v2199, %v2214
        %v2217 = vunpack.c.l.s4 1966171168
        %v2218 = vunpack.c.0.s8 %v2217
        %v2219 = vlaneseq
        %v2220 = vshrl.u32 %v2219, 7
        %v2221 = vsub.s32 %v2218, %v2220
        %v2222 = vrot.slane %v2200, %v2221
        %v2224 = vunpack.c.l.s4 1966171168
        %v2225 = vunpack.c.0.s8 %v2224
        %v2226 = vlaneseq
        %v2227 = vshrl.u32 %v2226, 7
        %v2228 = vsub.s32 %v2225, %v2227
        %v2229 = vrot.slane %v2201, %v2228
        %v2230 = vcombine.low %v2208, %v2215
        %v2231 = vcombine.low %v2222, %v2229
        %v2233 = vunpack.c.l.s4 1966171168
        %v2234 = vunpack.c.0.s8 %v2233
        %v2235 = vlaneseq
        %v2236 = vshrl.u32 %v2235, 7
        %v2237 = vsub.s32 %v2234, %v2236
        %v2238 = vrot.slane %v2230, %v2237
        %v2240 = vunpack.c.l.s4 1966171168
        %v2241 = vunpack.c.0.s8 %v2240
        %v2242 = vlaneseq
        %v2243 = vshrl.u32 %v2242, 7
        %v2244 = vsub.s32 %v2241, %v2243
        %v2245 = vrot.slane %v2231, %v2244
        %v2246 = vcombine.low %v2238, %v2245
        %v2247 = vcombine.low %v2127, %v2128
        %v2248 = vcombine.low %v2147, %v2148
        %v2250 = vunpack.c.l.s4 1966171168
        %v2251 = vunpack.c.0.s8 %v2250
        %v2252 = vlaneseq
        %v2253 = vshrl.u32 %v2252, 7
        %v2254 = vsub.s32 %v2251, %v2253
        %v2255 = vrot.slane %v2247, %v2254
        %v2257 = vunpack.c.l.s4 1966171168
        %v2258 = vunpack.c.0.s8 %v2257
        %v2259 = vlaneseq
        %v2260 = vshrl.u32 %v2259, 7
        %v2261 = vsub.s32 %v2258, %v2260
        %v2262 = vrot.slane %v2248, %v2261
        %v2263 = vcombine.low %v2255, %v2262
        %v2265 = vunpack.c.l.s4 1966171168
        %v2266 = vunpack.c.0.s8 %v2265
        %v2267 = vlaneseq
        %v2268 = vshrl.u32 %v2267, 7
        %v2269 = vsub.s32 %v2266, %v2268
        %v2270 = vrot.slane %v2263, %v2269
        %s2274 = scalar_lea.vmem [#allocation2], 1
        %2275 = vst [vmem:[%s2274] ss:$8 sm:$0xf] %v2197
        %2276 = vst [vmem:[%s2274] ss:$8 sm:$0xf0] %v2197
        %s2277 = scalar_lea.vmem [#allocation2], 65
        %2278 = vst [vmem:[%s2277] ss:$8 sm:$0xf] %v2246
        %2279 = vst [vmem:[%s2277] ss:$8 sm:$0xf0] %v2246
        %s2280 = scalar_lea.vmem [#allocation2], 129
        %2281 = vst.msk [vmem:[%s2280] ss:$8 sm:$0xf] %vm1552, %v2270
        %2282 = vst.msk [vmem:[%s2280] ss:$8 sm:$0x0] %vm1552, %v2270
        %s2283 = scalar_lea.vmem %s607, 64
        %v2284 = vld [vmem:[%s2283] sm:$0xff]
        %v2285 = vld [vmem:[%s2283 + $0x8] sm:$0xff]
        %v2286 = vld [vmem:[%s2283 + $0x10] sm:$0xff]
        %v2287 = vld [vmem:[%s2283 + $0x18] sm:$0xff]
        %v2292 = vrot.slane %v2284, 1
        %v2293 = vrot.slane %v2285, 1
        %v2294 = vsel %vm788, %v2292, %v2293
        %v2295 = vrot.slane %v2286, 1
        %v2296 = vsel %vm788, %v2293, %v2295
        %v2297 = vrot.slane %v2287, 1
        %v2298 = vsel %vm788, %v2295, %v2297
        %2299 = vrot.lane.b32.xlu0 %v2294, 32
        %v2300 = vpop.permute.xlu0 %2299
        %2301 = vrot.lane.b32.xlu0 %v2296, 32
        %v2302 = vpop.permute.xlu0 %2301
        %2303 = vrot.lane.b32.xlu0 %v2298, 32
        %v2304 = vpop.permute.xlu0 %2303
        %2305 = vrot.lane.b32.xlu0 %v2297, 32
        %v2306 = vpop.permute.xlu0 %2305
        %v2311 = vrot.slane %v2284, 2
        %v2312 = vrot.slane %v2285, 2
        %v2313 = vsel %vm808, %v2311, %v2312
        %v2314 = vrot.slane %v2286, 2
        %v2315 = vsel %vm808, %v2312, %v2314
        %v2316 = vrot.slane %v2287, 2
        %v2317 = vsel %vm808, %v2314, %v2316
        %2318 = vrot.lane.b32.xlu0 %v2313, 64
        %v2319 = vpop.permute.xlu0 %2318
        %2320 = vrot.lane.b32.xlu0 %v2315, 64
        %v2321 = vpop.permute.xlu0 %2320
        %2322 = vrot.lane.b32.xlu0 %v2317, 64
        %v2323 = vpop.permute.xlu0 %2322
        %2324 = vrot.lane.b32.xlu0 %v2316, 64
        %v2325 = vpop.permute.xlu0 %2324
        %v2330 = vrot.slane %v2284, 3
        %v2331 = vrot.slane %v2285, 3
        %v2332 = vsel %vm828, %v2330, %v2331
        %v2333 = vrot.slane %v2286, 3
        %v2334 = vsel %vm828, %v2331, %v2333
        %v2335 = vrot.slane %v2287, 3
        %v2336 = vsel %vm828, %v2333, %v2335
        %2337 = vrot.lane.b32.xlu0 %v2332, 96
        %v2338 = vpop.permute.xlu0 %2337
        %2339 = vrot.lane.b32.xlu0 %v2334, 96
        %v2340 = vpop.permute.xlu0 %2339
        %2341 = vrot.lane.b32.xlu0 %v2336, 96
        %v2342 = vpop.permute.xlu0 %2341
        %2343 = vrot.lane.b32.xlu0 %v2335, 96
        %v2344 = vpop.permute.xlu0 %2343
        %v2349 = vrot.slane %v2284, 4
        %v2350 = vrot.slane %v2285, 4
        %v2351 = vsel %vm848, %v2349, %v2350
        %v2352 = vrot.slane %v2286, 4
        %v2353 = vsel %vm848, %v2350, %v2352
        %v2354 = vrot.slane %v2287, 4
        %v2355 = vsel %vm848, %v2352, %v2354
        %v2356 = vsel %vm856, %v2284, %v2300
        %v2357 = vsel %vm856, %v2285, %v2302
        %v2358 = vsel %vm856, %v2286, %v2304
        %v2359 = vsel %vm856, %v2287, %v2306
        %v2360 = vsel %vm861, %v2356, %v2319
        %v2361 = vsel %vm861, %v2357, %v2321
        %v2362 = vsel %vm861, %v2358, %v2323
        %v2363 = vsel %vm861, %v2359, %v2325
        %v2364 = vsel %vm866, %v2360, %v2338
        %v2365 = vsel %vm866, %v2361, %v2340
        %v2366 = vsel %vm866, %v2362, %v2342
        %v2367 = vsel %vm866, %v2363, %v2344
        %v2368 = vsel %vm856, %v2351, 0
        %v2370 = vsel %vm856, %v2353, 0
        %v2372 = vsel %vm856, %v2355, 0
        %v2374 = vsel %vm856, %v2354, 0
        %2376 = vmatprep.subr.mxu0 %v640
        %2377 = vmatpush1.msra.mxu0 %v639
        %2378 = vmatprep.subr.mxu0 %v638
        %2379 = vmatpush1.msra.mxu0 %v637
        %2380 = vmatprep.subr.mxu0 %v636
        %2381 = vmatpush1.msra.mxu0 %v635
        %2382 = vmatprep.subr.mxu0 %v634
        %2383 = vmatpush1.msra.mxu0 %v633
        %2384 = vmatprep.subr.mxu0 %v632
        %2385 = vmatpush1.msra.mxu0 %v631
        %2386 = vmatprep.subr.mxu0 %v630
        %2387 = vmatpush1.msra.mxu0 %v629
        %2388 = vmatprep.subr.mxu0 %v628
        %2389 = vmatpush1.msra.mxu0 %v627
        %2390 = vmatprep.subr.mxu0 %v626
        %2391 = vmatpush1.msra.mxu0 %v625
        %2392 = vmatprep.subr.mxu0 %v624
        %2393 = vmatpush1.msra.mxu0 %v623
        %2394 = vmatprep.subr.mxu0 %v622
        %2395 = vmatpush1.msra.mxu0 %v621
        %2396 = vmatprep.subr.mxu0 %v620
        %2397 = vmatpush1.msra.mxu0 %v619
        %2398 = vmatprep.subr.mxu0 %v618
        %2399 = vmatpush1.msra.mxu0 %v617
        %2400 = vmatprep.subr.mxu0 %v616
        %2401 = vmatpush1.msra.mxu0 %v615
        %2402 = vmatprep.subr.mxu0 %v614
        %2403 = vmatpush1.msra.mxu0 %v613
        %2404 = vmatprep.subr.mxu0 %v612
        %2405 = vmatpush1.msra.mxu0 %v611
        %2406 = vmatprep.subr.mxu0 %v610
        %2407 = vmatpush1.msra.mxu0 %v609
        %2408 = vmatprep.subr.mxu0 0.0
        %2409 = vmatpush2.msra.mxu0 0.0
        %2410 = vmatprep.subr.mxu0 0.0
        %2411 = vmatpush2.msra.mxu0 0.0
        %2412 = vmatprep.subr.mxu0 0.0
        %2413 = vmatpush2.msra.mxu0 0.0
        %2414 = vmatprep.subr.mxu0 0.0
        %2415 = vmatpush2.msra.mxu0 0.0
        %2416 = vmatprep.subr.mxu0 0.0
        %2417 = vmatpush2.msra.mxu0 0.0
        %2418 = vmatprep.subr.mxu0 0.0
        %2419 = vmatpush2.msra.mxu0 0.0
        %2420 = vmatprep.subr.mxu0 0.0
        %2421 = vmatpush2.msra.mxu0 0.0
        %2422 = vmatprep.subr.mxu0 0.0
        %2423 = vmatpush2.msra.mxu0 0.0
        %2424 = vmatprep.subr.mxu0 0.0
        %2425 = vmatpush2.msra.mxu0 0.0
        %2426 = vmatprep.subr.mxu0 0.0
        %2427 = vmatpush2.msra.mxu0 0.0
        %2428 = vmatprep.subr.mxu0 0.0
        %2429 = vmatpush2.msra.mxu0 0.0
        %2430 = vmatprep.subr.mxu0 0.0
        %2431 = vmatpush2.msra.mxu0 0.0
        %2432 = vmatprep.subr.mxu0 %v648
        %2433 = vmatpush2.msra.mxu0 %v647
        %2434 = vmatprep.subr.mxu0 %v646
        %2435 = vmatpush2.msra.mxu0 %v645
        %2436 = vmatprep.subr.mxu0 %v644
        %2437 = vmatpush2.msra.mxu0 %v643
        %2438 = vmatprep.subr.mxu0 %v642
        %2439 = vmatpush2.msra.mxu0 %v641
        %2440 = vmatprep.mubr.f32.mxu0 %v2368
        %2441 = vmatmul.mubr.f32.gmra.mxu0 %v2364
        %v2442 = vpop.f32.mrf.mxu0
        %v2443 = vadd.f32 %v875, %v2442
        %v2444 = vpop.f32.mrf.mxu0
        %v2445 = vadd.f32 %v879, %v2444
        %2446 = vmatprep.mubr.f32.mxu0 %v2370
        %2447 = vmatmul.mubr.f32.gmra.mxu0 %v2365
        %v2448 = vpop.f32.mrf.mxu0
        %v2449 = vadd.f32 %v875, %v2448
        %v2450 = vpop.f32.mrf.mxu0
        %v2451 = vadd.f32 %v879, %v2450
        %2452 = vmatprep.mubr.f32.mxu0 %v2372
        %2453 = vmatmul.mubr.f32.gmra.mxu0 %v2366
        %v2454 = vpop.f32.mrf.mxu0
        %v2455 = vadd.f32 %v875, %v2454
        %v2456 = vpop.f32.mrf.mxu0
        %v2457 = vadd.f32 %v879, %v2456
        %2458 = vmatprep.mubr.f32.mxu0 %v2374
        %2459 = vmatmul.mubr.f32.gmra.mxu0 %v2367
        %v2460 = vpop.f32.mrf.mxu0
        %v2461 = vadd.f32 %v875, %v2460
        %v2462 = vpop.f32.mrf.mxu0
        %v2463 = vadd.f32 %v879, %v2462
        %2464 = vdwg.mxu0
        %v2465 = vmax.f32 %v2443, 0.0
        %v2466 = vmax.f32 %v2445, 0.0
        %v2467 = vmax.f32 %v2449, 0.0
        %v2468 = vmax.f32 %v2451, 0.0
        %v2469 = vmax.f32 %v2455, 0.0
        %v2470 = vmax.f32 %v2457, 0.0
        %v2471 = vmax.f32 %v2461, 0.0
        %v2472 = vmax.f32 %v2463, 0.0
        %v2474 = vsel %vm987, %v2466, 0
        %v2477 = vsel %vm987, %v2468, 0
        %v2480 = vsel %vm987, %v2470, 0
        %v2483 = vsel %vm987, %v2472, 0
        %2485 = vmatprep.subr.mxu0 0.0
        %2486 = vmatpush1.msra.mxu0 %v665
        %2487 = vmatprep.subr.mxu0 0.0
        %2488 = vmatpush1.msra.mxu0 %v664
        %2489 = vmatprep.subr.mxu0 0.0
        %2490 = vmatpush1.msra.mxu0 %v663
        %2491 = vmatprep.subr.mxu0 0.0
        %2492 = vmatpush1.msra.mxu0 %v662
        %2493 = vmatprep.subr.mxu0 0.0
        %2494 = vmatpush1.msra.mxu0 %v661
        %2495 = vmatprep.subr.mxu0 0.0
        %2496 = vmatpush1.msra.mxu0 %v660
        %2497 = vmatprep.subr.mxu0 0.0
        %2498 = vmatpush1.msra.mxu0 %v659
        %2499 = vmatprep.subr.mxu0 0.0
        %2500 = vmatpush1.msra.mxu0 %v658
        %2501 = vmatprep.subr.mxu0 0.0
        %2502 = vmatpush1.msra.mxu0 %v657
        %2503 = vmatprep.subr.mxu0 0.0
        %2504 = vmatpush1.msra.mxu0 %v656
        %2505 = vmatprep.subr.mxu0 0.0
        %2506 = vmatpush1.msra.mxu0 %v655
        %2507 = vmatprep.subr.mxu0 0.0
        %2508 = vmatpush1.msra.mxu0 %v654
        %2509 = vmatprep.subr.mxu0 0.0
        %2510 = vmatpush1.msra.mxu0 %v653
        %2511 = vmatprep.subr.mxu0 0.0
        %2512 = vmatpush1.msra.mxu0 %v652
        %2513 = vmatprep.subr.mxu0 0.0
        %2514 = vmatpush1.msra.mxu0 %v651
        %2515 = vmatprep.subr.mxu0 0.0
        %2516 = vmatpush1.msra.mxu0 %v650
        %2517 = vmatprep.subr.mxu0 0.0
        %2518 = vmatpush2.msra.mxu0 0.0
        %2519 = vmatprep.subr.mxu0 0.0
        %2520 = vmatpush2.msra.mxu0 0.0
        %2521 = vmatprep.subr.mxu0 0.0
        %2522 = vmatpush2.msra.mxu0 0.0
        %2523 = vmatprep.subr.mxu0 0.0
        %2524 = vmatpush2.msra.mxu0 0.0
        %2525 = vmatprep.subr.mxu0 0.0
        %2526 = vmatpush2.msra.mxu0 0.0
        %2527 = vmatprep.subr.mxu0 0.0
        %2528 = vmatpush2.msra.mxu0 0.0
        %2529 = vmatprep.subr.mxu0 0.0
        %2530 = vmatpush2.msra.mxu0 0.0
        %2531 = vmatprep.subr.mxu0 0.0
        %2532 = vmatpush2.msra.mxu0 0.0
        %2533 = vmatprep.subr.mxu0 0.0
        %2534 = vmatpush2.msra.mxu0 0.0
        %2535 = vmatprep.subr.mxu0 0.0
        %2536 = vmatpush2.msra.mxu0 0.0
        %2537 = vmatprep.subr.mxu0 0.0
        %2538 = vmatpush2.msra.mxu0 0.0
        %2539 = vmatprep.subr.mxu0 0.0
        %2540 = vmatpush2.msra.mxu0 %v670
        %2541 = vmatprep.subr.mxu0 0.0
        %2542 = vmatpush2.msra.mxu0 %v669
        %2543 = vmatprep.subr.mxu0 0.0
        %2544 = vmatpush2.msra.mxu0 %v668
        %2545 = vmatprep.subr.mxu0 0.0
        %2546 = vmatpush2.msra.mxu0 %v667
        %2547 = vmatprep.subr.mxu0 0.0
        %2548 = vmatpush2.msra.mxu0 %v666
        %2549 = vmatprep.mubr.f32.mxu0 %v2474
        %2550 = vmatmul.mubr.f32.gmra.mxu0 %v2465
        %v2551 = vpop.f32.mrf.mxu0
        %v2552 = vadd.f32 0.0, %v2551
        %v2553 = vpop.f32.mrf.mxu0
        %2554 = vmatprep.mubr.f32.mxu0 %v2477
        %2555 = vmatmul.mubr.f32.gmra.mxu0 %v2467
        %v2556 = vpop.f32.mrf.mxu0
        %v2557 = vadd.f32 0.0, %v2556
        %v2558 = vpop.f32.mrf.mxu0
        %2559 = vmatprep.mubr.f32.mxu0 %v2480
        %2560 = vmatmul.mubr.f32.gmra.mxu0 %v2469
        %v2561 = vpop.f32.mrf.mxu0
        %v2562 = vadd.f32 0.0, %v2561
        %v2563 = vpop.f32.mrf.mxu0
        %2564 = vmatprep.mubr.f32.mxu0 %v2483
        %2565 = vmatmul.mubr.f32.gmra.mxu0 %v2471
        %v2566 = vpop.f32.mrf.mxu0
        %v2567 = vadd.f32 0.0, %v2566
        %v2568 = vpop.f32.mrf.mxu0
        %2569 = vdwg.mxu0
        %v2571 = vsel %vm848, %v2567, 0
        %2573 = vmatprep.subr.mxu0 0.0
        %2574 = vmatpush1.msra.mxu0 0.0
        %2575 = vmatprep.subr.mxu0 0.0
        %2576 = vmatpush1.msra.mxu0 0.0
        %2577 = vmatprep.subr.mxu0 0.0
        %2578 = vmatpush1.msra.mxu0 0.0
        %2579 = vmatprep.subr.mxu0 0.0
        %2580 = vmatpush1.msra.mxu0 0.0
        %2581 = vmatprep.subr.mxu0 0.0
        %2582 = vmatpush1.msra.mxu0 0.0
        %2583 = vmatprep.subr.mxu0 0.0
        %2584 = vmatpush1.msra.mxu0 0.0
        %2585 = vmatprep.subr.mxu0 0.0
        %2586 = vmatpush1.msra.mxu0 0.0
        %2587 = vmatprep.subr.mxu0 0.0
        %2588 = vmatpush1.msra.mxu0 0.0
        %2589 = vmatprep.subr.mxu0 0.0
        %2590 = vmatpush1.msra.mxu0 0.0
        %2591 = vmatprep.subr.mxu0 0.0
        %2592 = vmatpush1.msra.mxu0 0.0
        %2593 = vmatprep.subr.mxu0 0.0
        %2594 = vmatpush1.msra.mxu0 0.0
        %2595 = vmatprep.subr.mxu0 0.0
        %2596 = vmatpush1.msra.mxu0 0.0
        %2597 = vmatprep.subr.mxu0 0.0
        %2598 = vmatpush1.msra.mxu0 %v2571
        %2599 = vmatprep.subr.mxu0 0.0
        %2600 = vmatpush1.msra.mxu0 %v2562
        %2601 = vmatprep.subr.mxu0 0.0
        %2602 = vmatpush1.msra.mxu0 %v2557
        %2603 = vmatprep.subr.mxu0 0.0
        %2604 = vmatpush1.msra.mxu0 %v2552
        %2605 = vmatprep.subr.mxu0 0.0
        %2606 = vmatpush2.msra.mxu0 0.0
        %2607 = vmatprep.subr.mxu0 0.0
        %2608 = vmatpush2.msra.mxu0 0.0
        %2609 = vmatprep.subr.mxu0 0.0
        %2610 = vmatpush2.msra.mxu0 0.0
        %2611 = vmatprep.subr.mxu0 0.0
        %2612 = vmatpush2.msra.mxu0 0.0
        %2613 = vmatprep.subr.mxu0 0.0
        %2614 = vmatpush2.msra.mxu0 0.0
        %2615 = vmatprep.subr.mxu0 0.0
        %2616 = vmatpush2.msra.mxu0 0.0
        %2617 = vmatprep.subr.mxu0 0.0
        %2618 = vmatpush2.msra.mxu0 0.0
        %2619 = vmatprep.subr.mxu0 0.0
        %2620 = vmatpush2.msra.mxu0 0.0
        %2621 = vmatprep.subr.mxu0 0.0
        %2622 = vmatpush2.msra.mxu0 0.0
        %2623 = vmatprep.subr.mxu0 0.0
        %2624 = vmatpush2.msra.mxu0 0.0
        %2625 = vmatprep.subr.mxu0 0.0
        %2626 = vmatpush2.msra.mxu0 0.0
        %2627 = vmatprep.subr.mxu0 0.0
        %2628 = vmatpush2.msra.mxu0 0.0
        %2629 = vmatprep.subr.mxu0 0.0
        %2630 = vmatpush2.msra.mxu0 0.0
        %2631 = vmatprep.subr.mxu0 0.0
        %2632 = vmatpush2.msra.mxu0 0.0
        %2633 = vmatprep.subr.mxu0 0.0
        %2634 = vmatpush2.msra.mxu0 0.0
        %2635 = vmatprep.subr.mxu0 0.0
        %2636 = vmatpush2.msra.mxu0 0.0
        %2637 = vmatprep.mubr.f32.mxu0 0.0
        %2638 = vmatmul.mubr.f32.gmra.mxu0 %v1087
        %v2639 = vpop.f32.mrf.mxu0
        %v2640 = vadd.f32 0.0, %v2639
        %v2641 = vpop.f32.mrf.mxu0
        %2642 = vmatprep.mubr.f32.mxu0 0.0
        %2643 = vmatmul.mubr.f32.gmra.mxu0 %v1090
        %v2644 = vpop.f32.mrf.mxu0
        %v2645 = vadd.f32 0.0, %v2644
        %v2646 = vpop.f32.mrf.mxu0
        %2647 = vdwg.mxu0
        %v2650 = vrot.slane %v2640, 1
        %v2651 = vrot.slane %v2645, 1
        %v2652 = vsel %vm788, %v2650, %v2651
        %2653 = vrot.lane.b32.xlu0 %v2652, 84
        %v2654 = vpop.permute.xlu0 %2653
        %2655 = vrot.lane.b32.xlu0 %v2651, 84
        %v2656 = vpop.permute.xlu0 %2655
        %v2659 = vrot.slane %v2640, 2
        %v2660 = vrot.slane %v2645, 2
        %v2661 = vsel %vm808, %v2659, %v2660
        %2662 = vrot.lane.b32.xlu0 %v2661, 40
        %v2663 = vpop.permute.xlu0 %2662
        %2664 = vrot.lane.b32.xlu0 %v2660, 40
        %v2665 = vpop.permute.xlu0 %2664
        %v2668 = vrot.slane %v2640, 3
        %v2669 = vrot.slane %v2645, 3
        %v2670 = vsel %vm828, %v2668, %v2669
        %2671 = vrot.lane.b32.xlu0 %v2670, 124
        %v2672 = vpop.permute.xlu0 %2671
        %2673 = vrot.lane.b32.xlu0 %v2669, 124
        %v2674 = vpop.permute.xlu0 %2673
        %v2677 = vrot.slane %v2640, 4
        %v2678 = vrot.slane %v2645, 4
        %v2679 = vsel %vm848, %v2677, %v2678
        %2680 = vrot.lane.b32.xlu0 %v2679, 80
        %v2681 = vpop.permute.xlu0 %2680
        %2682 = vrot.lane.b32.xlu0 %v2678, 80
        %v2683 = vpop.permute.xlu0 %2682
        %v2686 = vsel %vm1208, %v2640, %v2654
        %v2687 = vsel %vm1208, %v2645, %v2656
        %v2688 = vsel %vm987, %v2654, %v2663
        %v2689 = vsel %vm987, %v2656, %v2665
        %v2690 = vsel %vm1213, %v2688, %v2672
        %v2691 = vsel %vm1213, %v2689, %v2674
        %v2692 = vsel %vm1216, %v2672, %v2681
        %v2693 = vsel %vm1216, %v2674, %v2683
        %v2694 = vsel %vm1230, %v2681, 0
        %v2696 = vsel %vm1230, %v2683, 0
        %2698 = vmatprep.subr.mxu0 %v704
        %2699 = vmatpush1.msra.mxu0 %v703
        %2700 = vmatprep.subr.mxu0 %v702
        %2701 = vmatpush1.msra.mxu0 %v701
        %2702 = vmatprep.subr.mxu0 %v700
        %2703 = vmatpush1.msra.mxu0 %v699
        %2704 = vmatprep.subr.mxu0 %v698
        %2705 = vmatpush1.msra.mxu0 %v697
        %2706 = vmatprep.subr.mxu0 %v696
        %2707 = vmatpush1.msra.mxu0 %v695
        %2708 = vmatprep.subr.mxu0 %v694
        %2709 = vmatpush1.msra.mxu0 %v693
        %2710 = vmatprep.subr.mxu0 %v692
        %2711 = vmatpush1.msra.mxu0 %v691
        %2712 = vmatprep.subr.mxu0 %v690
        %2713 = vmatpush1.msra.mxu0 %v689
        %2714 = vmatprep.subr.mxu0 %v688
        %2715 = vmatpush1.msra.mxu0 %v687
        %2716 = vmatprep.subr.mxu0 %v686
        %2717 = vmatpush1.msra.mxu0 %v685
        %2718 = vmatprep.subr.mxu0 %v684
        %2719 = vmatpush1.msra.mxu0 %v683
        %2720 = vmatprep.subr.mxu0 %v682
        %2721 = vmatpush1.msra.mxu0 %v681
        %2722 = vmatprep.subr.mxu0 %v680
        %2723 = vmatpush1.msra.mxu0 %v679
        %2724 = vmatprep.subr.mxu0 %v678
        %2725 = vmatpush1.msra.mxu0 %v677
        %2726 = vmatprep.subr.mxu0 %v676
        %2727 = vmatpush1.msra.mxu0 %v675
        %2728 = vmatprep.subr.mxu0 %v674
        %2729 = vmatpush1.msra.mxu0 %v673
        %2730 = vmatprep.subr.mxu0 %v736
        %2731 = vmatpush2.msra.mxu0 %v735
        %2732 = vmatprep.subr.mxu0 %v734
        %2733 = vmatpush2.msra.mxu0 %v733
        %2734 = vmatprep.subr.mxu0 %v732
        %2735 = vmatpush2.msra.mxu0 %v731
        %2736 = vmatprep.subr.mxu0 %v730
        %2737 = vmatpush2.msra.mxu0 %v729
        %2738 = vmatprep.subr.mxu0 %v728
        %2739 = vmatpush2.msra.mxu0 %v727
        %2740 = vmatprep.subr.mxu0 %v726
        %2741 = vmatpush2.msra.mxu0 %v725
        %2742 = vmatprep.subr.mxu0 %v724
        %2743 = vmatpush2.msra.mxu0 %v723
        %2744 = vmatprep.subr.mxu0 %v722
        %2745 = vmatpush2.msra.mxu0 %v721
        %2746 = vmatprep.subr.mxu0 %v720
        %2747 = vmatpush2.msra.mxu0 %v719
        %2748 = vmatprep.subr.mxu0 %v718
        %2749 = vmatpush2.msra.mxu0 %v717
        %2750 = vmatprep.subr.mxu0 %v716
        %2751 = vmatpush2.msra.mxu0 %v715
        %2752 = vmatprep.subr.mxu0 %v714
        %2753 = vmatpush2.msra.mxu0 %v713
        %2754 = vmatprep.subr.mxu0 %v712
        %2755 = vmatpush2.msra.mxu0 %v711
        %2756 = vmatprep.subr.mxu0 %v710
        %2757 = vmatpush2.msra.mxu0 %v709
        %2758 = vmatprep.subr.mxu0 %v708
        %2759 = vmatpush2.msra.mxu0 %v707
        %2760 = vmatprep.subr.mxu0 %v706
        %2761 = vmatpush2.msra.mxu0 %v705
        %2762 = vmatprep.mubr.f32.mxu0 %v2690
        %2763 = vmatmul.mubr.f32.gmra.mxu0 %v2686
        %v2764 = vpop.f32.mrf.mxu0
        %v2765 = vadd.f32 %v1223, %v2764
        %v2766 = vpop.f32.mrf.mxu0
        %v2767 = vadd.f32 %v1227, %v2766
        %2768 = vmatprep.mubr.f32.mxu0 %v2691
        %2769 = vmatmul.mubr.f32.gmra.mxu0 %v2687
        %v2770 = vpop.f32.mrf.mxu0
        %v2771 = vadd.f32 %v1223, %v2770
        %v2772 = vpop.f32.mrf.mxu0
        %v2773 = vadd.f32 %v1227, %v2772
        %2774 = vdwg.mxu0
        %2775 = vmatprep.subr.mxu0 %v768
        %2776 = vmatpush1.msra.mxu0 %v767
        %2777 = vmatprep.subr.mxu0 %v766
        %2778 = vmatpush1.msra.mxu0 %v765
        %2779 = vmatprep.subr.mxu0 %v764
        %2780 = vmatpush1.msra.mxu0 %v763
        %2781 = vmatprep.subr.mxu0 %v762
        %2782 = vmatpush1.msra.mxu0 %v761
        %2783 = vmatprep.subr.mxu0 %v760
        %2784 = vmatpush1.msra.mxu0 %v759
        %2785 = vmatprep.subr.mxu0 %v758
        %2786 = vmatpush1.msra.mxu0 %v757
        %2787 = vmatprep.subr.mxu0 %v756
        %2788 = vmatpush1.msra.mxu0 %v755
        %2789 = vmatprep.subr.mxu0 %v754
        %2790 = vmatpush1.msra.mxu0 %v753
        %2791 = vmatprep.subr.mxu0 %v752
        %2792 = vmatpush1.msra.mxu0 %v751
        %2793 = vmatprep.subr.mxu0 %v750
        %2794 = vmatpush1.msra.mxu0 %v749
        %2795 = vmatprep.subr.mxu0 %v748
        %2796 = vmatpush1.msra.mxu0 %v747
        %2797 = vmatprep.subr.mxu0 %v746
        %2798 = vmatpush1.msra.mxu0 %v745
        %2799 = vmatprep.subr.mxu0 %v744
        %2800 = vmatpush1.msra.mxu0 %v743
        %2801 = vmatprep.subr.mxu0 %v742
        %2802 = vmatpush1.msra.mxu0 %v741
        %2803 = vmatprep.subr.mxu0 %v740
        %2804 = vmatpush1.msra.mxu0 %v739
        %2805 = vmatprep.subr.mxu0 %v738
        %2806 = vmatpush1.msra.mxu0 %v737
        %2807 = vmatprep.subr.mxu0 0.0
        %2808 = vmatpush2.msra.mxu0 0.0
        %2809 = vmatprep.subr.mxu0 0.0
        %2810 = vmatpush2.msra.mxu0 0.0
        %2811 = vmatprep.subr.mxu0 0.0
        %2812 = vmatpush2.msra.mxu0 0.0
        %2813 = vmatprep.subr.mxu0 0.0
        %2814 = vmatpush2.msra.mxu0 0.0
        %2815 = vmatprep.subr.mxu0 0.0
        %2816 = vmatpush2.msra.mxu0 0.0
        %2817 = vmatprep.subr.mxu0 0.0
        %2818 = vmatpush2.msra.mxu0 0.0
        %2819 = vmatprep.subr.mxu0 0.0
        %2820 = vmatpush2.msra.mxu0 0.0
        %2821 = vmatprep.subr.mxu0 0.0
        %2822 = vmatpush2.msra.mxu0 0.0
        %2823 = vmatprep.subr.mxu0 0.0
        %2824 = vmatpush2.msra.mxu0 0.0
        %2825 = vmatprep.subr.mxu0 0.0
        %2826 = vmatpush2.msra.mxu0 0.0
        %2827 = vmatprep.subr.mxu0 0.0
        %2828 = vmatpush2.msra.mxu0 0.0
        %2829 = vmatprep.subr.mxu0 %v1239
        %2830 = vmatpush2.msra.mxu0 %v1236
        %2831 = vmatprep.subr.mxu0 %v776
        %2832 = vmatpush2.msra.mxu0 %v775
        %2833 = vmatprep.subr.mxu0 %v774
        %2834 = vmatpush2.msra.mxu0 %v773
        %2835 = vmatprep.subr.mxu0 %v772
        %2836 = vmatpush2.msra.mxu0 %v771
        %2837 = vmatprep.subr.mxu0 %v770
        %2838 = vmatpush2.msra.mxu0 %v769
        %2839 = vmatprep.mubr.f32.mxu0 %v2694
        %2840 = vmatmul.mubr.f32.gmra.mxu0 %v2692
        %v2841 = vpop.f32.mrf.mxu0
        %v2842 = vadd.f32 %v2765, %v2841
        %v2843 = vpop.f32.mrf.mxu0
        %v2844 = vadd.f32 %v2767, %v2843
        %2845 = vmatprep.mubr.f32.mxu0 %v2696
        %2846 = vmatmul.mubr.f32.gmra.mxu0 %v2693
        %v2847 = vpop.f32.mrf.mxu0
        %v2848 = vadd.f32 %v2771, %v2847
        %v2849 = vpop.f32.mrf.mxu0
        %v2850 = vadd.f32 %v2773, %v2849
        %2851 = vdwg.mxu0
        %v2852 = vmax.f32 %v2842, 0.0
        %v2853 = vmax.f32 %v2844, 0.0
        %v2854 = vmax.f32 %v2848, 0.0
        %v2855 = vmax.f32 %v2850, 0.0
        %v2858 = vrot.slane %v2852, 1
        %v2859 = vrot.slane %v2853, 1
        %v2860 = vrot.slane %v2852, 2
        %v2861 = vrot.slane %v2853, 2
        %v2862 = vrot.slane %v2852, 3
        %v2863 = vrot.slane %v2853, 3
        %v2864 = vrot.slane %v2852, 4
        %v2865 = vrot.slane %v2853, 4
        %v2866 = vrot.slane %v2852, 5
        %v2867 = vrot.slane %v2853, 5
        %v2868 = vrot.slane %v2852, 6
        %v2869 = vrot.slane %v2853, 6
        %v2870 = vrot.slane %v2852, 7
        %v2871 = vrot.slane %v2853, 7
        %v2874 = vrot.slane %v2854, 1
        %v2875 = vrot.slane %v2855, 1
        %v2876 = vcombine.low %v2852, %v2853
        %v2877 = vcombine.low %v2858, %v2859
        %v2878 = vcombine.low %v2860, %v2861
        %v2879 = vcombine.low %v2862, %v2863
        %v2881 = vunpack.c.l.s4 1966171168
        %v2882 = vunpack.c.0.s8 %v2881
        %v2883 = vlaneseq
        %v2884 = vshrl.u32 %v2883, 7
        %v2885 = vsub.s32 %v2882, %v2884
        %v2886 = vrot.slane %v2876, %v2885
        %v2888 = vunpack.c.l.s4 1966171168
        %v2889 = vunpack.c.0.s8 %v2888
        %v2890 = vlaneseq
        %v2891 = vshrl.u32 %v2890, 7
        %v2892 = vsub.s32 %v2889, %v2891
        %v2893 = vrot.slane %v2877, %v2892
        %v2895 = vunpack.c.l.s4 1966171168
        %v2896 = vunpack.c.0.s8 %v2895
        %v2897 = vlaneseq
        %v2898 = vshrl.u32 %v2897, 7
        %v2899 = vsub.s32 %v2896, %v2898
        %v2900 = vrot.slane %v2878, %v2899
        %v2902 = vunpack.c.l.s4 1966171168
        %v2903 = vunpack.c.0.s8 %v2902
        %v2904 = vlaneseq
        %v2905 = vshrl.u32 %v2904, 7
        %v2906 = vsub.s32 %v2903, %v2905
        %v2907 = vrot.slane %v2879, %v2906
        %v2908 = vcombine.low %v2886, %v2893
        %v2909 = vcombine.low %v2900, %v2907
        %v2911 = vunpack.c.l.s4 1966171168
        %v2912 = vunpack.c.0.s8 %v2911
        %v2913 = vlaneseq
        %v2914 = vshrl.u32 %v2913, 7
        %v2915 = vsub.s32 %v2912, %v2914
        %v2916 = vrot.slane %v2908, %v2915
        %v2918 = vunpack.c.l.s4 1966171168
        %v2919 = vunpack.c.0.s8 %v2918
        %v2920 = vlaneseq
        %v2921 = vshrl.u32 %v2920, 7
        %v2922 = vsub.s32 %v2919, %v2921
        %v2923 = vrot.slane %v2909, %v2922
        %v2924 = vcombine.low %v2916, %v2923
        %v2925 = vcombine.low %v2864, %v2865
        %v2926 = vcombine.low %v2866, %v2867
        %v2927 = vcombine.low %v2868, %v2869
        %v2928 = vcombine.low %v2870, %v2871
        %v2930 = vunpack.c.l.s4 1966171168
        %v2931 = vunpack.c.0.s8 %v2930
        %v2932 = vlaneseq
        %v2933 = vshrl.u32 %v2932, 7
        %v2934 = vsub.s32 %v2931, %v2933
        %v2935 = vrot.slane %v2925, %v2934
        %v2937 = vunpack.c.l.s4 1966171168
        %v2938 = vunpack.c.0.s8 %v2937
        %v2939 = vlaneseq
        %v2940 = vshrl.u32 %v2939, 7
        %v2941 = vsub.s32 %v2938, %v2940
        %v2942 = vrot.slane %v2926, %v2941
        %v2944 = vunpack.c.l.s4 1966171168
        %v2945 = vunpack.c.0.s8 %v2944
        %v2946 = vlaneseq
        %v2947 = vshrl.u32 %v2946, 7
        %v2948 = vsub.s32 %v2945, %v2947
        %v2949 = vrot.slane %v2927, %v2948
        %v2951 = vunpack.c.l.s4 1966171168
        %v2952 = vunpack.c.0.s8 %v2951
        %v2953 = vlaneseq
        %v2954 = vshrl.u32 %v2953, 7
        %v2955 = vsub.s32 %v2952, %v2954
        %v2956 = vrot.slane %v2928, %v2955
        %v2957 = vcombine.low %v2935, %v2942
        %v2958 = vcombine.low %v2949, %v2956
        %v2960 = vunpack.c.l.s4 1966171168
        %v2961 = vunpack.c.0.s8 %v2960
        %v2962 = vlaneseq
        %v2963 = vshrl.u32 %v2962, 7
        %v2964 = vsub.s32 %v2961, %v2963
        %v2965 = vrot.slane %v2957, %v2964
        %v2967 = vunpack.c.l.s4 1966171168
        %v2968 = vunpack.c.0.s8 %v2967
        %v2969 = vlaneseq
        %v2970 = vshrl.u32 %v2969, 7
        %v2971 = vsub.s32 %v2968, %v2970
        %v2972 = vrot.slane %v2958, %v2971
        %v2973 = vcombine.low %v2965, %v2972
        %v2974 = vcombine.low %v2854, %v2855
        %v2975 = vcombine.low %v2874, %v2875
        %v2977 = vunpack.c.l.s4 1966171168
        %v2978 = vunpack.c.0.s8 %v2977
        %v2979 = vlaneseq
        %v2980 = vshrl.u32 %v2979, 7
        %v2981 = vsub.s32 %v2978, %v2980
        %v2982 = vrot.slane %v2974, %v2981
        %v2984 = vunpack.c.l.s4 1966171168
        %v2985 = vunpack.c.0.s8 %v2984
        %v2986 = vlaneseq
        %v2987 = vshrl.u32 %v2986, 7
        %v2988 = vsub.s32 %v2985, %v2987
        %v2989 = vrot.slane %v2975, %v2988
        %v2990 = vcombine.low %v2982, %v2989
        %v2992 = vunpack.c.l.s4 1966171168
        %v2993 = vunpack.c.0.s8 %v2992
        %v2994 = vlaneseq
        %v2995 = vshrl.u32 %v2994, 7
        %v2996 = vsub.s32 %v2993, %v2995
        %v2997 = vrot.slane %v2990, %v2996
        %s3001 = scalar_lea.vmem [#allocation2], 2
        %3002 = vst [vmem:[%s3001] ss:$8 sm:$0xf] %v2924
        %3003 = vst [vmem:[%s3001] ss:$8 sm:$0xf0] %v2924
        %s3004 = scalar_lea.vmem [#allocation2], 66
        %3005 = vst [vmem:[%s3004] ss:$8 sm:$0xf] %v2973
        %3006 = vst [vmem:[%s3004] ss:$8 sm:$0xf0] %v2973
        %s3007 = scalar_lea.vmem [#allocation2], 130
        %3008 = vst.msk [vmem:[%s3007] ss:$8 sm:$0xf] %vm1552, %v2997
        %3009 = vst.msk [vmem:[%s3007] ss:$8 sm:$0x0] %vm1552, %v2997
        %s3010 = scalar_lea.vmem %s607, 96
        %v3011 = vld [vmem:[%s3010] sm:$0xff]
        %v3012 = vld [vmem:[%s3010 + $0x8] sm:$0xff]
        %v3013 = vld [vmem:[%s3010 + $0x10] sm:$0xff]
        %v3014 = vld [vmem:[%s3010 + $0x18] sm:$0xff]
        %v3019 = vrot.slane %v3011, 1
        %v3020 = vrot.slane %v3012, 1
        %v3021 = vsel %vm788, %v3019, %v3020
        %v3022 = vrot.slane %v3013, 1
        %v3023 = vsel %vm788, %v3020, %v3022
        %v3024 = vrot.slane %v3014, 1
        %v3025 = vsel %vm788, %v3022, %v3024
        %3026 = vrot.lane.b32.xlu0 %v3021, 32
        %v3027 = vpop.permute.xlu0 %3026
        %3028 = vrot.lane.b32.xlu0 %v3023, 32
        %v3029 = vpop.permute.xlu0 %3028
        %3030 = vrot.lane.b32.xlu0 %v3025, 32
        %v3031 = vpop.permute.xlu0 %3030
        %3032 = vrot.lane.b32.xlu0 %v3024, 32
        %v3033 = vpop.permute.xlu0 %3032
        %v3038 = vrot.slane %v3011, 2
        %v3039 = vrot.slane %v3012, 2
        %v3040 = vsel %vm808, %v3038, %v3039
        %v3041 = vrot.slane %v3013, 2
        %v3042 = vsel %vm808, %v3039, %v3041
        %v3043 = vrot.slane %v3014, 2
        %v3044 = vsel %vm808, %v3041, %v3043
        %3045 = vrot.lane.b32.xlu0 %v3040, 64
        %v3046 = vpop.permute.xlu0 %3045
        %3047 = vrot.lane.b32.xlu0 %v3042, 64
        %v3048 = vpop.permute.xlu0 %3047
        %3049 = vrot.lane.b32.xlu0 %v3044, 64
        %v3050 = vpop.permute.xlu0 %3049
        %3051 = vrot.lane.b32.xlu0 %v3043, 64
        %v3052 = vpop.permute.xlu0 %3051
        %v3057 = vrot.slane %v3011, 3
        %v3058 = vrot.slane %v3012, 3
        %v3059 = vsel %vm828, %v3057, %v3058
        %v3060 = vrot.slane %v3013, 3
        %v3061 = vsel %vm828, %v3058, %v3060
        %v3062 = vrot.slane %v3014, 3
        %v3063 = vsel %vm828, %v3060, %v3062
        %3064 = vrot.lane.b32.xlu0 %v3059, 96
        %v3065 = vpop.permute.xlu0 %3064
        %3066 = vrot.lane.b32.xlu0 %v3061, 96
        %v3067 = vpop.permute.xlu0 %3066
        %3068 = vrot.lane.b32.xlu0 %v3063, 96
        %v3069 = vpop.permute.xlu0 %3068
        %3070 = vrot.lane.b32.xlu0 %v3062, 96
        %v3071 = vpop.permute.xlu0 %3070
        %v3076 = vrot.slane %v3011, 4
        %v3077 = vrot.slane %v3012, 4
        %v3078 = vsel %vm848, %v3076, %v3077
        %v3079 = vrot.slane %v3013, 4
        %v3080 = vsel %vm848, %v3077, %v3079
        %v3081 = vrot.slane %v3014, 4
        %v3082 = vsel %vm848, %v3079, %v3081
        %v3083 = vsel %vm856, %v3011, %v3027
        %v3084 = vsel %vm856, %v3012, %v3029
        %v3085 = vsel %vm856, %v3013, %v3031
        %v3086 = vsel %vm856, %v3014, %v3033
        %v3087 = vsel %vm861, %v3083, %v3046
        %v3088 = vsel %vm861, %v3084, %v3048
        %v3089 = vsel %vm861, %v3085, %v3050
        %v3090 = vsel %vm861, %v3086, %v3052
        %v3091 = vsel %vm866, %v3087, %v3065
        %v3092 = vsel %vm866, %v3088, %v3067
        %v3093 = vsel %vm866, %v3089, %v3069
        %v3094 = vsel %vm866, %v3090, %v3071
        %v3095 = vsel %vm856, %v3078, 0
        %v3097 = vsel %vm856, %v3080, 0
        %v3099 = vsel %vm856, %v3082, 0
        %v3101 = vsel %vm856, %v3081, 0
        %3103 = vmatprep.subr.mxu0 %v640
        %3104 = vmatpush1.msra.mxu0 %v639
        %3105 = vmatprep.subr.mxu0 %v638
        %3106 = vmatpush1.msra.mxu0 %v637
        %3107 = vmatprep.subr.mxu0 %v636
        %3108 = vmatpush1.msra.mxu0 %v635
        %3109 = vmatprep.subr.mxu0 %v634
        %3110 = vmatpush1.msra.mxu0 %v633
        %3111 = vmatprep.subr.mxu0 %v632
        %3112 = vmatpush1.msra.mxu0 %v631
        %3113 = vmatprep.subr.mxu0 %v630
        %3114 = vmatpush1.msra.mxu0 %v629
        %3115 = vmatprep.subr.mxu0 %v628
        %3116 = vmatpush1.msra.mxu0 %v627
        %3117 = vmatprep.subr.mxu0 %v626
        %3118 = vmatpush1.msra.mxu0 %v625
        %3119 = vmatprep.subr.mxu0 %v624
        %3120 = vmatpush1.msra.mxu0 %v623
        %3121 = vmatprep.subr.mxu0 %v622
        %3122 = vmatpush1.msra.mxu0 %v621
        %3123 = vmatprep.subr.mxu0 %v620
        %3124 = vmatpush1.msra.mxu0 %v619
        %3125 = vmatprep.subr.mxu0 %v618
        %3126 = vmatpush1.msra.mxu0 %v617
        %3127 = vmatprep.subr.mxu0 %v616
        %3128 = vmatpush1.msra.mxu0 %v615
        %3129 = vmatprep.subr.mxu0 %v614
        %3130 = vmatpush1.msra.mxu0 %v613
        %3131 = vmatprep.subr.mxu0 %v612
        %3132 = vmatpush1.msra.mxu0 %v611
        %3133 = vmatprep.subr.mxu0 %v610
        %3134 = vmatpush1.msra.mxu0 %v609
        %3135 = vmatprep.subr.mxu0 0.0
        %3136 = vmatpush2.msra.mxu0 0.0
        %3137 = vmatprep.subr.mxu0 0.0
        %3138 = vmatpush2.msra.mxu0 0.0
        %3139 = vmatprep.subr.mxu0 0.0
        %3140 = vmatpush2.msra.mxu0 0.0
        %3141 = vmatprep.subr.mxu0 0.0
        %3142 = vmatpush2.msra.mxu0 0.0
        %3143 = vmatprep.subr.mxu0 0.0
        %3144 = vmatpush2.msra.mxu0 0.0
        %3145 = vmatprep.subr.mxu0 0.0
        %3146 = vmatpush2.msra.mxu0 0.0
        %3147 = vmatprep.subr.mxu0 0.0
        %3148 = vmatpush2.msra.mxu0 0.0
        %3149 = vmatprep.subr.mxu0 0.0
        %3150 = vmatpush2.msra.mxu0 0.0
        %3151 = vmatprep.subr.mxu0 0.0
        %3152 = vmatpush2.msra.mxu0 0.0
        %3153 = vmatprep.subr.mxu0 0.0
        %3154 = vmatpush2.msra.mxu0 0.0
        %3155 = vmatprep.subr.mxu0 0.0
        %3156 = vmatpush2.msra.mxu0 0.0
        %3157 = vmatprep.subr.mxu0 0.0
        %3158 = vmatpush2.msra.mxu0 0.0
        %3159 = vmatprep.subr.mxu0 %v648
        %3160 = vmatpush2.msra.mxu0 %v647
        %3161 = vmatprep.subr.mxu0 %v646
        %3162 = vmatpush2.msra.mxu0 %v645
        %3163 = vmatprep.subr.mxu0 %v644
        %3164 = vmatpush2.msra.mxu0 %v643
        %3165 = vmatprep.subr.mxu0 %v642
        %3166 = vmatpush2.msra.mxu0 %v641
        %3167 = vmatprep.mubr.f32.mxu0 %v3095
        %3168 = vmatmul.mubr.f32.gmra.mxu0 %v3091
        %v3169 = vpop.f32.mrf.mxu0
        %v3170 = vadd.f32 %v875, %v3169
        %v3171 = vpop.f32.mrf.mxu0
        %v3172 = vadd.f32 %v879, %v3171
        %3173 = vmatprep.mubr.f32.mxu0 %v3097
        %3174 = vmatmul.mubr.f32.gmra.mxu0 %v3092
        %v3175 = vpop.f32.mrf.mxu0
        %v3176 = vadd.f32 %v875, %v3175
        %v3177 = vpop.f32.mrf.mxu0
        %v3178 = vadd.f32 %v879, %v3177
        %3179 = vmatprep.mubr.f32.mxu0 %v3099
        %3180 = vmatmul.mubr.f32.gmra.mxu0 %v3093
        %v3181 = vpop.f32.mrf.mxu0
        %v3182 = vadd.f32 %v875, %v3181
        %v3183 = vpop.f32.mrf.mxu0
        %v3184 = vadd.f32 %v879, %v3183
        %3185 = vmatprep.mubr.f32.mxu0 %v3101
        %3186 = vmatmul.mubr.f32.gmra.mxu0 %v3094
        %v3187 = vpop.f32.mrf.mxu0
        %v3188 = vadd.f32 %v875, %v3187
        %v3189 = vpop.f32.mrf.mxu0
        %v3190 = vadd.f32 %v879, %v3189
        %3191 = vdwg.mxu0
        %v3192 = vmax.f32 %v3170, 0.0
        %v3193 = vmax.f32 %v3172, 0.0
        %v3194 = vmax.f32 %v3176, 0.0
        %v3195 = vmax.f32 %v3178, 0.0
        %v3196 = vmax.f32 %v3182, 0.0
        %v3197 = vmax.f32 %v3184, 0.0
        %v3198 = vmax.f32 %v3188, 0.0
        %v3199 = vmax.f32 %v3190, 0.0
        %v3201 = vsel %vm987, %v3193, 0
        %v3204 = vsel %vm987, %v3195, 0
        %v3207 = vsel %vm987, %v3197, 0
        %v3210 = vsel %vm987, %v3199, 0
        %3212 = vmatprep.subr.mxu0 0.0
        %3213 = vmatpush1.msra.mxu0 %v665
        %3214 = vmatprep.subr.mxu0 0.0
        %3215 = vmatpush1.msra.mxu0 %v664
        %3216 = vmatprep.subr.mxu0 0.0
        %3217 = vmatpush1.msra.mxu0 %v663
        %3218 = vmatprep.subr.mxu0 0.0
        %3219 = vmatpush1.msra.mxu0 %v662
        %3220 = vmatprep.subr.mxu0 0.0
        %3221 = vmatpush1.msra.mxu0 %v661
        %3222 = vmatprep.subr.mxu0 0.0
        %3223 = vmatpush1.msra.mxu0 %v660
        %3224 = vmatprep.subr.mxu0 0.0
        %3225 = vmatpush1.msra.mxu0 %v659
        %3226 = vmatprep.subr.mxu0 0.0
        %3227 = vmatpush1.msra.mxu0 %v658
        %3228 = vmatprep.subr.mxu0 0.0
        %3229 = vmatpush1.msra.mxu0 %v657
        %3230 = vmatprep.subr.mxu0 0.0
        %3231 = vmatpush1.msra.mxu0 %v656
        %3232 = vmatprep.subr.mxu0 0.0
        %3233 = vmatpush1.msra.mxu0 %v655
        %3234 = vmatprep.subr.mxu0 0.0
        %3235 = vmatpush1.msra.mxu0 %v654
        %3236 = vmatprep.subr.mxu0 0.0
        %3237 = vmatpush1.msra.mxu0 %v653
        %3238 = vmatprep.subr.mxu0 0.0
        %3239 = vmatpush1.msra.mxu0 %v652
        %3240 = vmatprep.subr.mxu0 0.0
        %3241 = vmatpush1.msra.mxu0 %v651
        %3242 = vmatprep.subr.mxu0 0.0
        %3243 = vmatpush1.msra.mxu0 %v650
        %3244 = vmatprep.subr.mxu0 0.0
        %3245 = vmatpush2.msra.mxu0 0.0
        %3246 = vmatprep.subr.mxu0 0.0
        %3247 = vmatpush2.msra.mxu0 0.0
        %3248 = vmatprep.subr.mxu0 0.0
        %3249 = vmatpush2.msra.mxu0 0.0
        %3250 = vmatprep.subr.mxu0 0.0
        %3251 = vmatpush2.msra.mxu0 0.0
        %3252 = vmatprep.subr.mxu0 0.0
        %3253 = vmatpush2.msra.mxu0 0.0
        %3254 = vmatprep.subr.mxu0 0.0
        %3255 = vmatpush2.msra.mxu0 0.0
        %3256 = vmatprep.subr.mxu0 0.0
        %3257 = vmatpush2.msra.mxu0 0.0
        %3258 = vmatprep.subr.mxu0 0.0
        %3259 = vmatpush2.msra.mxu0 0.0
        %3260 = vmatprep.subr.mxu0 0.0
        %3261 = vmatpush2.msra.mxu0 0.0
        %3262 = vmatprep.subr.mxu0 0.0
        %3263 = vmatpush2.msra.mxu0 0.0
        %3264 = vmatprep.subr.mxu0 0.0
        %3265 = vmatpush2.msra.mxu0 0.0
        %3266 = vmatprep.subr.mxu0 0.0
        %3267 = vmatpush2.msra.mxu0 %v670
        %3268 = vmatprep.subr.mxu0 0.0
        %3269 = vmatpush2.msra.mxu0 %v669
        %3270 = vmatprep.subr.mxu0 0.0
        %3271 = vmatpush2.msra.mxu0 %v668
        %3272 = vmatprep.subr.mxu0 0.0
        %3273 = vmatpush2.msra.mxu0 %v667
        %3274 = vmatprep.subr.mxu0 0.0
        %3275 = vmatpush2.msra.mxu0 %v666
        %3276 = vmatprep.mubr.f32.mxu0 %v3201
        %3277 = vmatmul.mubr.f32.gmra.mxu0 %v3192
        %v3278 = vpop.f32.mrf.mxu0
        %v3279 = vadd.f32 0.0, %v3278
        %v3280 = vpop.f32.mrf.mxu0
        %3281 = vmatprep.mubr.f32.mxu0 %v3204
        %3282 = vmatmul.mubr.f32.gmra.mxu0 %v3194
        %v3283 = vpop.f32.mrf.mxu0
        %v3284 = vadd.f32 0.0, %v3283
        %v3285 = vpop.f32.mrf.mxu0
        %3286 = vmatprep.mubr.f32.mxu0 %v3207
        %3287 = vmatmul.mubr.f32.gmra.mxu0 %v3196
        %v3288 = vpop.f32.mrf.mxu0
        %v3289 = vadd.f32 0.0, %v3288
        %v3290 = vpop.f32.mrf.mxu0
        %3291 = vmatprep.mubr.f32.mxu0 %v3210
        %3292 = vmatmul.mubr.f32.gmra.mxu0 %v3198
        %v3293 = vpop.f32.mrf.mxu0
        %v3294 = vadd.f32 0.0, %v3293
        %v3295 = vpop.f32.mrf.mxu0
        %3296 = vdwg.mxu0
        %v3298 = vsel %vm848, %v3294, 0
        %3300 = vmatprep.subr.mxu0 0.0
        %3301 = vmatpush1.msra.mxu0 0.0
        %3302 = vmatprep.subr.mxu0 0.0
        %3303 = vmatpush1.msra.mxu0 0.0
        %3304 = vmatprep.subr.mxu0 0.0
        %3305 = vmatpush1.msra.mxu0 0.0
        %3306 = vmatprep.subr.mxu0 0.0
        %3307 = vmatpush1.msra.mxu0 0.0
        %3308 = vmatprep.subr.mxu0 0.0
        %3309 = vmatpush1.msra.mxu0 0.0
        %3310 = vmatprep.subr.mxu0 0.0
        %3311 = vmatpush1.msra.mxu0 0.0
        %3312 = vmatprep.subr.mxu0 0.0
        %3313 = vmatpush1.msra.mxu0 0.0
        %3314 = vmatprep.subr.mxu0 0.0
        %3315 = vmatpush1.msra.mxu0 0.0
        %3316 = vmatprep.subr.mxu0 0.0
        %3317 = vmatpush1.msra.mxu0 0.0
        %3318 = vmatprep.subr.mxu0 0.0
        %3319 = vmatpush1.msra.mxu0 0.0
        %3320 = vmatprep.subr.mxu0 0.0
        %3321 = vmatpush1.msra.mxu0 0.0
        %3322 = vmatprep.subr.mxu0 0.0
        %3323 = vmatpush1.msra.mxu0 0.0
        %3324 = vmatprep.subr.mxu0 0.0
        %3325 = vmatpush1.msra.mxu0 %v3298
        %3326 = vmatprep.subr.mxu0 0.0
        %3327 = vmatpush1.msra.mxu0 %v3289
        %3328 = vmatprep.subr.mxu0 0.0
        %3329 = vmatpush1.msra.mxu0 %v3284
        %3330 = vmatprep.subr.mxu0 0.0
        %3331 = vmatpush1.msra.mxu0 %v3279
        %3332 = vmatprep.subr.mxu0 0.0
        %3333 = vmatpush2.msra.mxu0 0.0
        %3334 = vmatprep.subr.mxu0 0.0
        %3335 = vmatpush2.msra.mxu0 0.0
        %3336 = vmatprep.subr.mxu0 0.0
        %3337 = vmatpush2.msra.mxu0 0.0
        %3338 = vmatprep.subr.mxu0 0.0
        %3339 = vmatpush2.msra.mxu0 0.0
        %3340 = vmatprep.subr.mxu0 0.0
        %3341 = vmatpush2.msra.mxu0 0.0
        %3342 = vmatprep.subr.mxu0 0.0
        %3343 = vmatpush2.msra.mxu0 0.0
        %3344 = vmatprep.subr.mxu0 0.0
        %3345 = vmatpush2.msra.mxu0 0.0
        %3346 = vmatprep.subr.mxu0 0.0
        %3347 = vmatpush2.msra.mxu0 0.0
        %3348 = vmatprep.subr.mxu0 0.0
        %3349 = vmatpush2.msra.mxu0 0.0
        %3350 = vmatprep.subr.mxu0 0.0
        %3351 = vmatpush2.msra.mxu0 0.0
        %3352 = vmatprep.subr.mxu0 0.0
        %3353 = vmatpush2.msra.mxu0 0.0
        %3354 = vmatprep.subr.mxu0 0.0
        %3355 = vmatpush2.msra.mxu0 0.0
        %3356 = vmatprep.subr.mxu0 0.0
        %3357 = vmatpush2.msra.mxu0 0.0
        %3358 = vmatprep.subr.mxu0 0.0
        %3359 = vmatpush2.msra.mxu0 0.0
        %3360 = vmatprep.subr.mxu0 0.0
        %3361 = vmatpush2.msra.mxu0 0.0
        %3362 = vmatprep.subr.mxu0 0.0
        %3363 = vmatpush2.msra.mxu0 0.0
        %3364 = vmatprep.mubr.f32.mxu0 0.0
        %3365 = vmatmul.mubr.f32.gmra.mxu0 %v1087
        %v3366 = vpop.f32.mrf.mxu0
        %v3367 = vadd.f32 0.0, %v3366
        %v3368 = vpop.f32.mrf.mxu0
        %3369 = vmatprep.mubr.f32.mxu0 0.0
        %3370 = vmatmul.mubr.f32.gmra.mxu0 %v1090
        %v3371 = vpop.f32.mrf.mxu0
        %v3372 = vadd.f32 0.0, %v3371
        %v3373 = vpop.f32.mrf.mxu0
        %3374 = vdwg.mxu0
        %v3377 = vrot.slane %v3367, 1
        %v3378 = vrot.slane %v3372, 1
        %v3379 = vsel %vm788, %v3377, %v3378
        %3380 = vrot.lane.b32.xlu0 %v3379, 84
        %v3381 = vpop.permute.xlu0 %3380
        %3382 = vrot.lane.b32.xlu0 %v3378, 84
        %v3383 = vpop.permute.xlu0 %3382
        %v3386 = vrot.slane %v3367, 2
        %v3387 = vrot.slane %v3372, 2
        %v3388 = vsel %vm808, %v3386, %v3387
        %3389 = vrot.lane.b32.xlu0 %v3388, 40
        %v3390 = vpop.permute.xlu0 %3389
        %3391 = vrot.lane.b32.xlu0 %v3387, 40
        %v3392 = vpop.permute.xlu0 %3391
        %v3395 = vrot.slane %v3367, 3
        %v3396 = vrot.slane %v3372, 3
        %v3397 = vsel %vm828, %v3395, %v3396
        %3398 = vrot.lane.b32.xlu0 %v3397, 124
        %v3399 = vpop.permute.xlu0 %3398
        %3400 = vrot.lane.b32.xlu0 %v3396, 124
        %v3401 = vpop.permute.xlu0 %3400
        %v3404 = vrot.slane %v3367, 4
        %v3405 = vrot.slane %v3372, 4
        %v3406 = vsel %vm848, %v3404, %v3405
        %3407 = vrot.lane.b32.xlu0 %v3406, 80
        %v3408 = vpop.permute.xlu0 %3407
        %3409 = vrot.lane.b32.xlu0 %v3405, 80
        %v3410 = vpop.permute.xlu0 %3409
        %v3413 = vsel %vm1208, %v3367, %v3381
        %v3414 = vsel %vm1208, %v3372, %v3383
        %v3415 = vsel %vm987, %v3381, %v3390
        %v3416 = vsel %vm987, %v3383, %v3392
        %v3417 = vsel %vm1213, %v3415, %v3399
        %v3418 = vsel %vm1213, %v3416, %v3401
        %v3419 = vsel %vm1216, %v3399, %v3408
        %v3420 = vsel %vm1216, %v3401, %v3410
        %v3421 = vsel %vm1230, %v3408, 0
        %v3423 = vsel %vm1230, %v3410, 0
        %3425 = vmatprep.subr.mxu0 %v704
        %3426 = vmatpush1.msra.mxu0 %v703
        %3427 = vmatprep.subr.mxu0 %v702
        %3428 = vmatpush1.msra.mxu0 %v701
        %3429 = vmatprep.subr.mxu0 %v700
        %3430 = vmatpush1.msra.mxu0 %v699
        %3431 = vmatprep.subr.mxu0 %v698
        %3432 = vmatpush1.msra.mxu0 %v697
        %3433 = vmatprep.subr.mxu0 %v696
        %3434 = vmatpush1.msra.mxu0 %v695
        %3435 = vmatprep.subr.mxu0 %v694
        %3436 = vmatpush1.msra.mxu0 %v693
        %3437 = vmatprep.subr.mxu0 %v692
        %3438 = vmatpush1.msra.mxu0 %v691
        %3439 = vmatprep.subr.mxu0 %v690
        %3440 = vmatpush1.msra.mxu0 %v689
        %3441 = vmatprep.subr.mxu0 %v688
        %3442 = vmatpush1.msra.mxu0 %v687
        %3443 = vmatprep.subr.mxu0 %v686
        %3444 = vmatpush1.msra.mxu0 %v685
        %3445 = vmatprep.subr.mxu0 %v684
        %3446 = vmatpush1.msra.mxu0 %v683
        %3447 = vmatprep.subr.mxu0 %v682
        %3448 = vmatpush1.msra.mxu0 %v681
        %3449 = vmatprep.subr.mxu0 %v680
        %3450 = vmatpush1.msra.mxu0 %v679
        %3451 = vmatprep.subr.mxu0 %v678
        %3452 = vmatpush1.msra.mxu0 %v677
        %3453 = vmatprep.subr.mxu0 %v676
        %3454 = vmatpush1.msra.mxu0 %v675
        %3455 = vmatprep.subr.mxu0 %v674
        %3456 = vmatpush1.msra.mxu0 %v673
        %3457 = vmatprep.subr.mxu0 %v736
        %3458 = vmatpush2.msra.mxu0 %v735
        %3459 = vmatprep.subr.mxu0 %v734
        %3460 = vmatpush2.msra.mxu0 %v733
        %3461 = vmatprep.subr.mxu0 %v732
        %3462 = vmatpush2.msra.mxu0 %v731
        %3463 = vmatprep.subr.mxu0 %v730
        %3464 = vmatpush2.msra.mxu0 %v729
        %3465 = vmatprep.subr.mxu0 %v728
        %3466 = vmatpush2.msra.mxu0 %v727
        %3467 = vmatprep.subr.mxu0 %v726
        %3468 = vmatpush2.msra.mxu0 %v725
        %3469 = vmatprep.subr.mxu0 %v724
        %3470 = vmatpush2.msra.mxu0 %v723
        %3471 = vmatprep.subr.mxu0 %v722
        %3472 = vmatpush2.msra.mxu0 %v721
        %3473 = vmatprep.subr.mxu0 %v720
        %3474 = vmatpush2.msra.mxu0 %v719
        %3475 = vmatprep.subr.mxu0 %v718
        %3476 = vmatpush2.msra.mxu0 %v717
        %3477 = vmatprep.subr.mxu0 %v716
        %3478 = vmatpush2.msra.mxu0 %v715
        %3479 = vmatprep.subr.mxu0 %v714
        %3480 = vmatpush2.msra.mxu0 %v713
        %3481 = vmatprep.subr.mxu0 %v712
        %3482 = vmatpush2.msra.mxu0 %v711
        %3483 = vmatprep.subr.mxu0 %v710
        %3484 = vmatpush2.msra.mxu0 %v709
        %3485 = vmatprep.subr.mxu0 %v708
        %3486 = vmatpush2.msra.mxu0 %v707
        %3487 = vmatprep.subr.mxu0 %v706
        %3488 = vmatpush2.msra.mxu0 %v705
        %3489 = vmatprep.mubr.f32.mxu0 %v3417
        %3490 = vmatmul.mubr.f32.gmra.mxu0 %v3413
        %v3491 = vpop.f32.mrf.mxu0
        %v3492 = vadd.f32 %v1223, %v3491
        %v3493 = vpop.f32.mrf.mxu0
        %v3494 = vadd.f32 %v1227, %v3493
        %3495 = vmatprep.mubr.f32.mxu0 %v3418
        %3496 = vmatmul.mubr.f32.gmra.mxu0 %v3414
        %v3497 = vpop.f32.mrf.mxu0
        %v3498 = vadd.f32 %v1223, %v3497
        %v3499 = vpop.f32.mrf.mxu0
        %v3500 = vadd.f32 %v1227, %v3499
        %3501 = vdwg.mxu0
        %3502 = vmatprep.subr.mxu0 %v768
        %3503 = vmatpush1.msra.mxu0 %v767
        %3504 = vmatprep.subr.mxu0 %v766
        %3505 = vmatpush1.msra.mxu0 %v765
        %3506 = vmatprep.subr.mxu0 %v764
        %3507 = vmatpush1.msra.mxu0 %v763
        %3508 = vmatprep.subr.mxu0 %v762
        %3509 = vmatpush1.msra.mxu0 %v761
        %3510 = vmatprep.subr.mxu0 %v760
        %3511 = vmatpush1.msra.mxu0 %v759
        %3512 = vmatprep.subr.mxu0 %v758
        %3513 = vmatpush1.msra.mxu0 %v757
        %3514 = vmatprep.subr.mxu0 %v756
        %3515 = vmatpush1.msra.mxu0 %v755
        %3516 = vmatprep.subr.mxu0 %v754
        %3517 = vmatpush1.msra.mxu0 %v753
        %3518 = vmatprep.subr.mxu0 %v752
        %3519 = vmatpush1.msra.mxu0 %v751
        %3520 = vmatprep.subr.mxu0 %v750
        %3521 = vmatpush1.msra.mxu0 %v749
        %3522 = vmatprep.subr.mxu0 %v748
        %3523 = vmatpush1.msra.mxu0 %v747
        %3524 = vmatprep.subr.mxu0 %v746
        %3525 = vmatpush1.msra.mxu0 %v745
        %3526 = vmatprep.subr.mxu0 %v744
        %3527 = vmatpush1.msra.mxu0 %v743
        %3528 = vmatprep.subr.mxu0 %v742
        %3529 = vmatpush1.msra.mxu0 %v741
        %3530 = vmatprep.subr.mxu0 %v740
        %3531 = vmatpush1.msra.mxu0 %v739
        %3532 = vmatprep.subr.mxu0 %v738
        %3533 = vmatpush1.msra.mxu0 %v737
        %3534 = vmatprep.subr.mxu0 0.0
        %3535 = vmatpush2.msra.mxu0 0.0
        %3536 = vmatprep.subr.mxu0 0.0
        %3537 = vmatpush2.msra.mxu0 0.0
        %3538 = vmatprep.subr.mxu0 0.0
        %3539 = vmatpush2.msra.mxu0 0.0
        %3540 = vmatprep.subr.mxu0 0.0
        %3541 = vmatpush2.msra.mxu0 0.0
        %3542 = vmatprep.subr.mxu0 0.0
        %3543 = vmatpush2.msra.mxu0 0.0
        %3544 = vmatprep.subr.mxu0 0.0
        %3545 = vmatpush2.msra.mxu0 0.0
        %3546 = vmatprep.subr.mxu0 0.0
        %3547 = vmatpush2.msra.mxu0 0.0
        %3548 = vmatprep.subr.mxu0 0.0
        %3549 = vmatpush2.msra.mxu0 0.0
        %3550 = vmatprep.subr.mxu0 0.0
        %3551 = vmatpush2.msra.mxu0 0.0
        %3552 = vmatprep.subr.mxu0 0.0
        %3553 = vmatpush2.msra.mxu0 0.0
        %3554 = vmatprep.subr.mxu0 0.0
        %3555 = vmatpush2.msra.mxu0 0.0
        %3556 = vmatprep.subr.mxu0 %v1239
        %3557 = vmatpush2.msra.mxu0 %v1236
        %3558 = vmatprep.subr.mxu0 %v776
        %3559 = vmatpush2.msra.mxu0 %v775
        %3560 = vmatprep.subr.mxu0 %v774
        %3561 = vmatpush2.msra.mxu0 %v773
        %3562 = vmatprep.subr.mxu0 %v772
        %3563 = vmatpush2.msra.mxu0 %v771
        %3564 = vmatprep.subr.mxu0 %v770
        %3565 = vmatpush2.msra.mxu0 %v769
        %3566 = vmatprep.mubr.f32.mxu0 %v3421
        %3567 = vmatmul.mubr.f32.gmra.mxu0 %v3419
        %v3568 = vpop.f32.mrf.mxu0
        %v3569 = vadd.f32 %v3492, %v3568
        %v3570 = vpop.f32.mrf.mxu0
        %v3571 = vadd.f32 %v3494, %v3570
        %3572 = vmatprep.mubr.f32.mxu0 %v3423
        %3573 = vmatmul.mubr.f32.gmra.mxu0 %v3420
        %v3574 = vpop.f32.mrf.mxu0
        %v3575 = vadd.f32 %v3498, %v3574
        %v3576 = vpop.f32.mrf.mxu0
        %v3577 = vadd.f32 %v3500, %v3576
        %3578 = vdwg.mxu0
        %v3579 = vmax.f32 %v3569, 0.0
        %v3580 = vmax.f32 %v3571, 0.0
        %v3581 = vmax.f32 %v3575, 0.0
        %v3582 = vmax.f32 %v3577, 0.0
        %v3585 = vrot.slane %v3579, 1
        %v3586 = vrot.slane %v3580, 1
        %v3587 = vrot.slane %v3579, 2
        %v3588 = vrot.slane %v3580, 2
        %v3589 = vrot.slane %v3579, 3
        %v3590 = vrot.slane %v3580, 3
        %v3591 = vrot.slane %v3579, 4
        %v3592 = vrot.slane %v3580, 4
        %v3593 = vrot.slane %v3579, 5
        %v3594 = vrot.slane %v3580, 5
        %v3595 = vrot.slane %v3579, 6
        %v3596 = vrot.slane %v3580, 6
        %v3597 = vrot.slane %v3579, 7
        %v3598 = vrot.slane %v3580, 7
        %v3601 = vrot.slane %v3581, 1
        %v3602 = vrot.slane %v3582, 1
        %v3603 = vcombine.low %v3579, %v3580
        %v3604 = vcombine.low %v3585, %v3586
        %v3605 = vcombine.low %v3587, %v3588
        %v3606 = vcombine.low %v3589, %v3590
        %v3608 = vunpack.c.l.s4 1966171168
        %v3609 = vunpack.c.0.s8 %v3608
        %v3610 = vlaneseq
        %v3611 = vshrl.u32 %v3610, 7
        %v3612 = vsub.s32 %v3609, %v3611
        %v3613 = vrot.slane %v3603, %v3612
        %v3615 = vunpack.c.l.s4 1966171168
        %v3616 = vunpack.c.0.s8 %v3615
        %v3617 = vlaneseq
        %v3618 = vshrl.u32 %v3617, 7
        %v3619 = vsub.s32 %v3616, %v3618
        %v3620 = vrot.slane %v3604, %v3619
        %v3622 = vunpack.c.l.s4 1966171168
        %v3623 = vunpack.c.0.s8 %v3622
        %v3624 = vlaneseq
        %v3625 = vshrl.u32 %v3624, 7
        %v3626 = vsub.s32 %v3623, %v3625
        %v3627 = vrot.slane %v3605, %v3626
        %v3629 = vunpack.c.l.s4 1966171168
        %v3630 = vunpack.c.0.s8 %v3629
        %v3631 = vlaneseq
        %v3632 = vshrl.u32 %v3631, 7
        %v3633 = vsub.s32 %v3630, %v3632
        %v3634 = vrot.slane %v3606, %v3633
        %v3635 = vcombine.low %v3613, %v3620
        %v3636 = vcombine.low %v3627, %v3634
        %v3638 = vunpack.c.l.s4 1966171168
        %v3639 = vunpack.c.0.s8 %v3638
        %v3640 = vlaneseq
        %v3641 = vshrl.u32 %v3640, 7
        %v3642 = vsub.s32 %v3639, %v3641
        %v3643 = vrot.slane %v3635, %v3642
        %v3645 = vunpack.c.l.s4 1966171168
        %v3646 = vunpack.c.0.s8 %v3645
        %v3647 = vlaneseq
        %v3648 = vshrl.u32 %v3647, 7
        %v3649 = vsub.s32 %v3646, %v3648
        %v3650 = vrot.slane %v3636, %v3649
        %v3651 = vcombine.low %v3643, %v3650
        %v3652 = vcombine.low %v3591, %v3592
        %v3653 = vcombine.low %v3593, %v3594
        %v3654 = vcombine.low %v3595, %v3596
        %v3655 = vcombine.low %v3597, %v3598
        %v3657 = vunpack.c.l.s4 1966171168
        %v3658 = vunpack.c.0.s8 %v3657
        %v3659 = vlaneseq
        %v3660 = vshrl.u32 %v3659, 7
        %v3661 = vsub.s32 %v3658, %v3660
        %v3662 = vrot.slane %v3652, %v3661
        %v3664 = vunpack.c.l.s4 1966171168
        %v3665 = vunpack.c.0.s8 %v3664
        %v3666 = vlaneseq
        %v3667 = vshrl.u32 %v3666, 7
        %v3668 = vsub.s32 %v3665, %v3667
        %v3669 = vrot.slane %v3653, %v3668
        %v3671 = vunpack.c.l.s4 1966171168
        %v3672 = vunpack.c.0.s8 %v3671
        %v3673 = vlaneseq
        %v3674 = vshrl.u32 %v3673, 7
        %v3675 = vsub.s32 %v3672, %v3674
        %v3676 = vrot.slane %v3654, %v3675
        %v3678 = vunpack.c.l.s4 1966171168
        %v3679 = vunpack.c.0.s8 %v3678
        %v3680 = vlaneseq
        %v3681 = vshrl.u32 %v3680, 7
        %v3682 = vsub.s32 %v3679, %v3681
        %v3683 = vrot.slane %v3655, %v3682
        %v3684 = vcombine.low %v3662, %v3669
        %v3685 = vcombine.low %v3676, %v3683
        %v3687 = vunpack.c.l.s4 1966171168
        %v3688 = vunpack.c.0.s8 %v3687
        %v3689 = vlaneseq
        %v3690 = vshrl.u32 %v3689, 7
        %v3691 = vsub.s32 %v3688, %v3690
        %v3692 = vrot.slane %v3684, %v3691
        %v3694 = vunpack.c.l.s4 1966171168
        %v3695 = vunpack.c.0.s8 %v3694
        %v3696 = vlaneseq
        %v3697 = vshrl.u32 %v3696, 7
        %v3698 = vsub.s32 %v3695, %v3697
        %v3699 = vrot.slane %v3685, %v3698
        %v3700 = vcombine.low %v3692, %v3699
        %v3701 = vcombine.low %v3581, %v3582
        %v3702 = vcombine.low %v3601, %v3602
        %v3704 = vunpack.c.l.s4 1966171168
        %v3705 = vunpack.c.0.s8 %v3704
        %v3706 = vlaneseq
        %v3707 = vshrl.u32 %v3706, 7
        %v3708 = vsub.s32 %v3705, %v3707
        %v3709 = vrot.slane %v3701, %v3708
        %v3711 = vunpack.c.l.s4 1966171168
        %v3712 = vunpack.c.0.s8 %v3711
        %v3713 = vlaneseq
        %v3714 = vshrl.u32 %v3713, 7
        %v3715 = vsub.s32 %v3712, %v3714
        %v3716 = vrot.slane %v3702, %v3715
        %v3717 = vcombine.low %v3709, %v3716
        %v3719 = vunpack.c.l.s4 1966171168
        %v3720 = vunpack.c.0.s8 %v3719
        %v3721 = vlaneseq
        %v3722 = vshrl.u32 %v3721, 7
        %v3723 = vsub.s32 %v3720, %v3722
        %v3724 = vrot.slane %v3717, %v3723
        %s3728 = scalar_lea.vmem [#allocation2], 3
        %3729 = vst [vmem:[%s3728] ss:$8 sm:$0xf] %v3651
        %3730 = vst [vmem:[%s3728] ss:$8 sm:$0xf0] %v3651
        %s3731 = scalar_lea.vmem [#allocation2], 67
        %3732 = vst [vmem:[%s3731] ss:$8 sm:$0xf] %v3700
        %3733 = vst [vmem:[%s3731] ss:$8 sm:$0xf0] %v3700
        %s3734 = scalar_lea.vmem [#allocation2], 131
        %3735 = vst.msk [vmem:[%s3734] ss:$8 sm:$0xf] %vm1552, %v3724
        %3736 = vst.msk [vmem:[%s3734] ss:$8 sm:$0x0] %vm1552, %v3724
        %s3737 = scalar_lea.vmem %s607, 128
        %v3738 = vld [vmem:[%s3737] sm:$0xff]
        %v3739 = vld [vmem:[%s3737 + $0x8] sm:$0xff]
        %v3740 = vld [vmem:[%s3737 + $0x10] sm:$0xff]
        %v3741 = vld [vmem:[%s3737 + $0x18] sm:$0xff]
        %v3746 = vrot.slane %v3738, 1
        %v3747 = vrot.slane %v3739, 1
        %v3748 = vsel %vm788, %v3746, %v3747
        %v3749 = vrot.slane %v3740, 1
        %v3750 = vsel %vm788, %v3747, %v3749
        %v3751 = vrot.slane %v3741, 1
        %v3752 = vsel %vm788, %v3749, %v3751
        %3753 = vrot.lane.b32.xlu0 %v3748, 32
        %v3754 = vpop.permute.xlu0 %3753
        %3755 = vrot.lane.b32.xlu0 %v3750, 32
        %v3756 = vpop.permute.xlu0 %3755
        %3757 = vrot.lane.b32.xlu0 %v3752, 32
        %v3758 = vpop.permute.xlu0 %3757
        %3759 = vrot.lane.b32.xlu0 %v3751, 32
        %v3760 = vpop.permute.xlu0 %3759
        %v3765 = vrot.slane %v3738, 2
        %v3766 = vrot.slane %v3739, 2
        %v3767 = vsel %vm808, %v3765, %v3766
        %v3768 = vrot.slane %v3740, 2
        %v3769 = vsel %vm808, %v3766, %v3768
        %v3770 = vrot.slane %v3741, 2
        %v3771 = vsel %vm808, %v3768, %v3770
        %3772 = vrot.lane.b32.xlu0 %v3767, 64
        %v3773 = vpop.permute.xlu0 %3772
        %3774 = vrot.lane.b32.xlu0 %v3769, 64
        %v3775 = vpop.permute.xlu0 %3774
        %3776 = vrot.lane.b32.xlu0 %v3771, 64
        %v3777 = vpop.permute.xlu0 %3776
        %3778 = vrot.lane.b32.xlu0 %v3770, 64
        %v3779 = vpop.permute.xlu0 %3778
        %v3784 = vrot.slane %v3738, 3
        %v3785 = vrot.slane %v3739, 3
        %v3786 = vsel %vm828, %v3784, %v3785
        %v3787 = vrot.slane %v3740, 3
        %v3788 = vsel %vm828, %v3785, %v3787
        %v3789 = vrot.slane %v3741, 3
        %v3790 = vsel %vm828, %v3787, %v3789
        %3791 = vrot.lane.b32.xlu0 %v3786, 96
        %v3792 = vpop.permute.xlu0 %3791
        %3793 = vrot.lane.b32.xlu0 %v3788, 96
        %v3794 = vpop.permute.xlu0 %3793
        %3795 = vrot.lane.b32.xlu0 %v3790, 96
        %v3796 = vpop.permute.xlu0 %3795
        %3797 = vrot.lane.b32.xlu0 %v3789, 96
        %v3798 = vpop.permute.xlu0 %3797
        %v3803 = vrot.slane %v3738, 4
        %v3804 = vrot.slane %v3739, 4
        %v3805 = vsel %vm848, %v3803, %v3804
        %v3806 = vrot.slane %v3740, 4
        %v3807 = vsel %vm848, %v3804, %v3806
        %v3808 = vrot.slane %v3741, 4
        %v3809 = vsel %vm848, %v3806, %v3808
        %v3810 = vsel %vm856, %v3738, %v3754
        %v3811 = vsel %vm856, %v3739, %v3756
        %v3812 = vsel %vm856, %v3740, %v3758
        %v3813 = vsel %vm856, %v3741, %v3760
        %v3814 = vsel %vm861, %v3810, %v3773
        %v3815 = vsel %vm861, %v3811, %v3775
        %v3816 = vsel %vm861, %v3812, %v3777
        %v3817 = vsel %vm861, %v3813, %v3779
        %v3818 = vsel %vm866, %v3814, %v3792
        %v3819 = vsel %vm866, %v3815, %v3794
        %v3820 = vsel %vm866, %v3816, %v3796
        %v3821 = vsel %vm866, %v3817, %v3798
        %v3822 = vsel %vm856, %v3805, 0
        %v3824 = vsel %vm856, %v3807, 0
        %v3826 = vsel %vm856, %v3809, 0
        %v3828 = vsel %vm856, %v3808, 0
        %3830 = vmatprep.subr.mxu0 %v640
        %3831 = vmatpush1.msra.mxu0 %v639
        %3832 = vmatprep.subr.mxu0 %v638
        %3833 = vmatpush1.msra.mxu0 %v637
        %3834 = vmatprep.subr.mxu0 %v636
        %3835 = vmatpush1.msra.mxu0 %v635
        %3836 = vmatprep.subr.mxu0 %v634
        %3837 = vmatpush1.msra.mxu0 %v633
        %3838 = vmatprep.subr.mxu0 %v632
        %3839 = vmatpush1.msra.mxu0 %v631
        %3840 = vmatprep.subr.mxu0 %v630
        %3841 = vmatpush1.msra.mxu0 %v629
        %3842 = vmatprep.subr.mxu0 %v628
        %3843 = vmatpush1.msra.mxu0 %v627
        %3844 = vmatprep.subr.mxu0 %v626
        %3845 = vmatpush1.msra.mxu0 %v625
        %3846 = vmatprep.subr.mxu0 %v624
        %3847 = vmatpush1.msra.mxu0 %v623
        %3848 = vmatprep.subr.mxu0 %v622
        %3849 = vmatpush1.msra.mxu0 %v621
        %3850 = vmatprep.subr.mxu0 %v620
        %3851 = vmatpush1.msra.mxu0 %v619
        %3852 = vmatprep.subr.mxu0 %v618
        %3853 = vmatpush1.msra.mxu0 %v617
        %3854 = vmatprep.subr.mxu0 %v616
        %3855 = vmatpush1.msra.mxu0 %v615
        %3856 = vmatprep.subr.mxu0 %v614
        %3857 = vmatpush1.msra.mxu0 %v613
        %3858 = vmatprep.subr.mxu0 %v612
        %3859 = vmatpush1.msra.mxu0 %v611
        %3860 = vmatprep.subr.mxu0 %v610
        %3861 = vmatpush1.msra.mxu0 %v609
        %3862 = vmatprep.subr.mxu0 0.0
        %3863 = vmatpush2.msra.mxu0 0.0
        %3864 = vmatprep.subr.mxu0 0.0
        %3865 = vmatpush2.msra.mxu0 0.0
        %3866 = vmatprep.subr.mxu0 0.0
        %3867 = vmatpush2.msra.mxu0 0.0
        %3868 = vmatprep.subr.mxu0 0.0
        %3869 = vmatpush2.msra.mxu0 0.0
        %3870 = vmatprep.subr.mxu0 0.0
        %3871 = vmatpush2.msra.mxu0 0.0
        %3872 = vmatprep.subr.mxu0 0.0
        %3873 = vmatpush2.msra.mxu0 0.0
        %3874 = vmatprep.subr.mxu0 0.0
        %3875 = vmatpush2.msra.mxu0 0.0
        %3876 = vmatprep.subr.mxu0 0.0
        %3877 = vmatpush2.msra.mxu0 0.0
        %3878 = vmatprep.subr.mxu0 0.0
        %3879 = vmatpush2.msra.mxu0 0.0
        %3880 = vmatprep.subr.mxu0 0.0
        %3881 = vmatpush2.msra.mxu0 0.0
        %3882 = vmatprep.subr.mxu0 0.0
        %3883 = vmatpush2.msra.mxu0 0.0
        %3884 = vmatprep.subr.mxu0 0.0
        %3885 = vmatpush2.msra.mxu0 0.0
        %3886 = vmatprep.subr.mxu0 %v648
        %3887 = vmatpush2.msra.mxu0 %v647
        %3888 = vmatprep.subr.mxu0 %v646
        %3889 = vmatpush2.msra.mxu0 %v645
        %3890 = vmatprep.subr.mxu0 %v644
        %3891 = vmatpush2.msra.mxu0 %v643
        %3892 = vmatprep.subr.mxu0 %v642
        %3893 = vmatpush2.msra.mxu0 %v641
        %3894 = vmatprep.mubr.f32.mxu0 %v3822
        %3895 = vmatmul.mubr.f32.gmra.mxu0 %v3818
        %v3896 = vpop.f32.mrf.mxu0
        %v3897 = vadd.f32 %v875, %v3896
        %v3898 = vpop.f32.mrf.mxu0
        %v3899 = vadd.f32 %v879, %v3898
        %3900 = vmatprep.mubr.f32.mxu0 %v3824
        %3901 = vmatmul.mubr.f32.gmra.mxu0 %v3819
        %v3902 = vpop.f32.mrf.mxu0
        %v3903 = vadd.f32 %v875, %v3902
        %v3904 = vpop.f32.mrf.mxu0
        %v3905 = vadd.f32 %v879, %v3904
        %3906 = vmatprep.mubr.f32.mxu0 %v3826
        %3907 = vmatmul.mubr.f32.gmra.mxu0 %v3820
        %v3908 = vpop.f32.mrf.mxu0
        %v3909 = vadd.f32 %v875, %v3908
        %v3910 = vpop.f32.mrf.mxu0
        %v3911 = vadd.f32 %v879, %v3910
        %3912 = vmatprep.mubr.f32.mxu0 %v3828
        %3913 = vmatmul.mubr.f32.gmra.mxu0 %v3821
        %v3914 = vpop.f32.mrf.mxu0
        %v3915 = vadd.f32 %v875, %v3914
        %v3916 = vpop.f32.mrf.mxu0
        %v3917 = vadd.f32 %v879, %v3916
        %3918 = vdwg.mxu0
        %v3919 = vmax.f32 %v3897, 0.0
        %v3920 = vmax.f32 %v3899, 0.0
        %v3921 = vmax.f32 %v3903, 0.0
        %v3922 = vmax.f32 %v3905, 0.0
        %v3923 = vmax.f32 %v3909, 0.0
        %v3924 = vmax.f32 %v3911, 0.0
        %v3925 = vmax.f32 %v3915, 0.0
        %v3926 = vmax.f32 %v3917, 0.0
        %v3928 = vsel %vm987, %v3920, 0
        %v3931 = vsel %vm987, %v3922, 0
        %v3934 = vsel %vm987, %v3924, 0
        %v3937 = vsel %vm987, %v3926, 0
        %3939 = vmatprep.subr.mxu0 0.0
        %3940 = vmatpush1.msra.mxu0 %v665
        %3941 = vmatprep.subr.mxu0 0.0
        %3942 = vmatpush1.msra.mxu0 %v664
        %3943 = vmatprep.subr.mxu0 0.0
        %3944 = vmatpush1.msra.mxu0 %v663
        %3945 = vmatprep.subr.mxu0 0.0
        %3946 = vmatpush1.msra.mxu0 %v662
        %3947 = vmatprep.subr.mxu0 0.0
        %3948 = vmatpush1.msra.mxu0 %v661
        %3949 = vmatprep.subr.mxu0 0.0
        %3950 = vmatpush1.msra.mxu0 %v660
        %3951 = vmatprep.subr.mxu0 0.0
        %3952 = vmatpush1.msra.mxu0 %v659
        %3953 = vmatprep.subr.mxu0 0.0
        %3954 = vmatpush1.msra.mxu0 %v658
        %3955 = vmatprep.subr.mxu0 0.0
        %3956 = vmatpush1.msra.mxu0 %v657
        %3957 = vmatprep.subr.mxu0 0.0
        %3958 = vmatpush1.msra.mxu0 %v656
        %3959 = vmatprep.subr.mxu0 0.0
        %3960 = vmatpush1.msra.mxu0 %v655
        %3961 = vmatprep.subr.mxu0 0.0
        %3962 = vmatpush1.msra.mxu0 %v654
        %3963 = vmatprep.subr.mxu0 0.0
        %3964 = vmatpush1.msra.mxu0 %v653
        %3965 = vmatprep.subr.mxu0 0.0
        %3966 = vmatpush1.msra.mxu0 %v652
        %3967 = vmatprep.subr.mxu0 0.0
        %3968 = vmatpush1.msra.mxu0 %v651
        %3969 = vmatprep.subr.mxu0 0.0
        %3970 = vmatpush1.msra.mxu0 %v650
        %3971 = vmatprep.subr.mxu0 0.0
        %3972 = vmatpush2.msra.mxu0 0.0
        %3973 = vmatprep.subr.mxu0 0.0
        %3974 = vmatpush2.msra.mxu0 0.0
        %3975 = vmatprep.subr.mxu0 0.0
        %3976 = vmatpush2.msra.mxu0 0.0
        %3977 = vmatprep.subr.mxu0 0.0
        %3978 = vmatpush2.msra.mxu0 0.0
        %3979 = vmatprep.subr.mxu0 0.0
        %3980 = vmatpush2.msra.mxu0 0.0
        %3981 = vmatprep.subr.mxu0 0.0
        %3982 = vmatpush2.msra.mxu0 0.0
        %3983 = vmatprep.subr.mxu0 0.0
        %3984 = vmatpush2.msra.mxu0 0.0
        %3985 = vmatprep.subr.mxu0 0.0
        %3986 = vmatpush2.msra.mxu0 0.0
        %3987 = vmatprep.subr.mxu0 0.0
        %3988 = vmatpush2.msra.mxu0 0.0
        %3989 = vmatprep.subr.mxu0 0.0
        %3990 = vmatpush2.msra.mxu0 0.0
        %3991 = vmatprep.subr.mxu0 0.0
        %3992 = vmatpush2.msra.mxu0 0.0
        %3993 = vmatprep.subr.mxu0 0.0
        %3994 = vmatpush2.msra.mxu0 %v670
        %3995 = vmatprep.subr.mxu0 0.0
        %3996 = vmatpush2.msra.mxu0 %v669
        %3997 = vmatprep.subr.mxu0 0.0
        %3998 = vmatpush2.msra.mxu0 %v668
        %3999 = vmatprep.subr.mxu0 0.0
        %4000 = vmatpush2.msra.mxu0 %v667
        %4001 = vmatprep.subr.mxu0 0.0
        %4002 = vmatpush2.msra.mxu0 %v666
        %4003 = vmatprep.mubr.f32.mxu0 %v3928
        %4004 = vmatmul.mubr.f32.gmra.mxu0 %v3919
        %v4005 = vpop.f32.mrf.mxu0
        %v4006 = vadd.f32 0.0, %v4005
        %v4007 = vpop.f32.mrf.mxu0
        %4008 = vmatprep.mubr.f32.mxu0 %v3931
        %4009 = vmatmul.mubr.f32.gmra.mxu0 %v3921
        %v4010 = vpop.f32.mrf.mxu0
        %v4011 = vadd.f32 0.0, %v4010
        %v4012 = vpop.f32.mrf.mxu0
        %4013 = vmatprep.mubr.f32.mxu0 %v3934
        %4014 = vmatmul.mubr.f32.gmra.mxu0 %v3923
        %v4015 = vpop.f32.mrf.mxu0
        %v4016 = vadd.f32 0.0, %v4015
        %v4017 = vpop.f32.mrf.mxu0
        %4018 = vmatprep.mubr.f32.mxu0 %v3937
        %4019 = vmatmul.mubr.f32.gmra.mxu0 %v3925
        %v4020 = vpop.f32.mrf.mxu0
        %v4021 = vadd.f32 0.0, %v4020
        %v4022 = vpop.f32.mrf.mxu0
        %4023 = vdwg.mxu0
        %v4025 = vsel %vm848, %v4021, 0
        %4027 = vmatprep.subr.mxu0 0.0
        %4028 = vmatpush1.msra.mxu0 0.0
        %4029 = vmatprep.subr.mxu0 0.0
        %4030 = vmatpush1.msra.mxu0 0.0
        %4031 = vmatprep.subr.mxu0 0.0
        %4032 = vmatpush1.msra.mxu0 0.0
        %4033 = vmatprep.subr.mxu0 0.0
        %4034 = vmatpush1.msra.mxu0 0.0
        %4035 = vmatprep.subr.mxu0 0.0
        %4036 = vmatpush1.msra.mxu0 0.0
        %4037 = vmatprep.subr.mxu0 0.0
        %4038 = vmatpush1.msra.mxu0 0.0
        %4039 = vmatprep.subr.mxu0 0.0
        %4040 = vmatpush1.msra.mxu0 0.0
        %4041 = vmatprep.subr.mxu0 0.0
        %4042 = vmatpush1.msra.mxu0 0.0
        %4043 = vmatprep.subr.mxu0 0.0
        %4044 = vmatpush1.msra.mxu0 0.0
        %4045 = vmatprep.subr.mxu0 0.0
        %4046 = vmatpush1.msra.mxu0 0.0
        %4047 = vmatprep.subr.mxu0 0.0
        %4048 = vmatpush1.msra.mxu0 0.0
        %4049 = vmatprep.subr.mxu0 0.0
        %4050 = vmatpush1.msra.mxu0 0.0
        %4051 = vmatprep.subr.mxu0 0.0
        %4052 = vmatpush1.msra.mxu0 %v4025
        %4053 = vmatprep.subr.mxu0 0.0
        %4054 = vmatpush1.msra.mxu0 %v4016
        %4055 = vmatprep.subr.mxu0 0.0
        %4056 = vmatpush1.msra.mxu0 %v4011
        %4057 = vmatprep.subr.mxu0 0.0
        %4058 = vmatpush1.msra.mxu0 %v4006
        %4059 = vmatprep.subr.mxu0 0.0
        %4060 = vmatpush2.msra.mxu0 0.0
        %4061 = vmatprep.subr.mxu0 0.0
        %4062 = vmatpush2.msra.mxu0 0.0
        %4063 = vmatprep.subr.mxu0 0.0
        %4064 = vmatpush2.msra.mxu0 0.0
        %4065 = vmatprep.subr.mxu0 0.0
        %4066 = vmatpush2.msra.mxu0 0.0
        %4067 = vmatprep.subr.mxu0 0.0
        %4068 = vmatpush2.msra.mxu0 0.0
        %4069 = vmatprep.subr.mxu0 0.0
        %4070 = vmatpush2.msra.mxu0 0.0
        %4071 = vmatprep.subr.mxu0 0.0
        %4072 = vmatpush2.msra.mxu0 0.0
        %4073 = vmatprep.subr.mxu0 0.0
        %4074 = vmatpush2.msra.mxu0 0.0
        %4075 = vmatprep.subr.mxu0 0.0
        %4076 = vmatpush2.msra.mxu0 0.0
        %4077 = vmatprep.subr.mxu0 0.0
        %4078 = vmatpush2.msra.mxu0 0.0
        %4079 = vmatprep.subr.mxu0 0.0
        %4080 = vmatpush2.msra.mxu0 0.0
        %4081 = vmatprep.subr.mxu0 0.0
        %4082 = vmatpush2.msra.mxu0 0.0
        %4083 = vmatprep.subr.mxu0 0.0
        %4084 = vmatpush2.msra.mxu0 0.0
        %4085 = vmatprep.subr.mxu0 0.0
        %4086 = vmatpush2.msra.mxu0 0.0
        %4087 = vmatprep.subr.mxu0 0.0
        %4088 = vmatpush2.msra.mxu0 0.0
        %4089 = vmatprep.subr.mxu0 0.0
        %4090 = vmatpush2.msra.mxu0 0.0
        %4091 = vmatprep.mubr.f32.mxu0 0.0
        %4092 = vmatmul.mubr.f32.gmra.mxu0 %v1087
        %v4093 = vpop.f32.mrf.mxu0
        %v4094 = vadd.f32 0.0, %v4093
        %v4095 = vpop.f32.mrf.mxu0
        %4096 = vmatprep.mubr.f32.mxu0 0.0
        %4097 = vmatmul.mubr.f32.gmra.mxu0 %v1090
        %v4098 = vpop.f32.mrf.mxu0
        %v4099 = vadd.f32 0.0, %v4098
        %v4100 = vpop.f32.mrf.mxu0
        %4101 = vdwg.mxu0
        %v4104 = vrot.slane %v4094, 1
        %v4105 = vrot.slane %v4099, 1
        %v4106 = vsel %vm788, %v4104, %v4105
        %4107 = vrot.lane.b32.xlu0 %v4106, 84
        %v4108 = vpop.permute.xlu0 %4107
        %4109 = vrot.lane.b32.xlu0 %v4105, 84
        %v4110 = vpop.permute.xlu0 %4109
        %v4113 = vrot.slane %v4094, 2
        %v4114 = vrot.slane %v4099, 2
        %v4115 = vsel %vm808, %v4113, %v4114
        %4116 = vrot.lane.b32.xlu0 %v4115, 40
        %v4117 = vpop.permute.xlu0 %4116
        %4118 = vrot.lane.b32.xlu0 %v4114, 40
        %v4119 = vpop.permute.xlu0 %4118
        %v4122 = vrot.slane %v4094, 3
        %v4123 = vrot.slane %v4099, 3
        %v4124 = vsel %vm828, %v4122, %v4123
        %4125 = vrot.lane.b32.xlu0 %v4124, 124
        %v4126 = vpop.permute.xlu0 %4125
        %4127 = vrot.lane.b32.xlu0 %v4123, 124
        %v4128 = vpop.permute.xlu0 %4127
        %v4131 = vrot.slane %v4094, 4
        %v4132 = vrot.slane %v4099, 4
        %v4133 = vsel %vm848, %v4131, %v4132
        %4134 = vrot.lane.b32.xlu0 %v4133, 80
        %v4135 = vpop.permute.xlu0 %4134
        %4136 = vrot.lane.b32.xlu0 %v4132, 80
        %v4137 = vpop.permute.xlu0 %4136
        %v4140 = vsel %vm1208, %v4094, %v4108
        %v4141 = vsel %vm1208, %v4099, %v4110
        %v4142 = vsel %vm987, %v4108, %v4117
        %v4143 = vsel %vm987, %v4110, %v4119
        %v4144 = vsel %vm1213, %v4142, %v4126
        %v4145 = vsel %vm1213, %v4143, %v4128
        %v4146 = vsel %vm1216, %v4126, %v4135
        %v4147 = vsel %vm1216, %v4128, %v4137
        %v4148 = vsel %vm1230, %v4135, 0
        %v4150 = vsel %vm1230, %v4137, 0
        %4152 = vmatprep.subr.mxu0 %v704
        %4153 = vmatpush1.msra.mxu0 %v703
        %4154 = vmatprep.subr.mxu0 %v702
        %4155 = vmatpush1.msra.mxu0 %v701
        %4156 = vmatprep.subr.mxu0 %v700
        %4157 = vmatpush1.msra.mxu0 %v699
        %4158 = vmatprep.subr.mxu0 %v698
        %4159 = vmatpush1.msra.mxu0 %v697
        %4160 = vmatprep.subr.mxu0 %v696
        %4161 = vmatpush1.msra.mxu0 %v695
        %4162 = vmatprep.subr.mxu0 %v694
        %4163 = vmatpush1.msra.mxu0 %v693
        %4164 = vmatprep.subr.mxu0 %v692
        %4165 = vmatpush1.msra.mxu0 %v691
        %4166 = vmatprep.subr.mxu0 %v690
        %4167 = vmatpush1.msra.mxu0 %v689
        %4168 = vmatprep.subr.mxu0 %v688
        %4169 = vmatpush1.msra.mxu0 %v687
        %4170 = vmatprep.subr.mxu0 %v686
        %4171 = vmatpush1.msra.mxu0 %v685
        %4172 = vmatprep.subr.mxu0 %v684
        %4173 = vmatpush1.msra.mxu0 %v683
        %4174 = vmatprep.subr.mxu0 %v682
        %4175 = vmatpush1.msra.mxu0 %v681
        %4176 = vmatprep.subr.mxu0 %v680
        %4177 = vmatpush1.msra.mxu0 %v679
        %4178 = vmatprep.subr.mxu0 %v678
        %4179 = vmatpush1.msra.mxu0 %v677
        %4180 = vmatprep.subr.mxu0 %v676
        %4181 = vmatpush1.msra.mxu0 %v675
        %4182 = vmatprep.subr.mxu0 %v674
        %4183 = vmatpush1.msra.mxu0 %v673
        %4184 = vmatprep.subr.mxu0 %v736
        %4185 = vmatpush2.msra.mxu0 %v735
        %4186 = vmatprep.subr.mxu0 %v734
        %4187 = vmatpush2.msra.mxu0 %v733
        %4188 = vmatprep.subr.mxu0 %v732
        %4189 = vmatpush2.msra.mxu0 %v731
        %4190 = vmatprep.subr.mxu0 %v730
        %4191 = vmatpush2.msra.mxu0 %v729
        %4192 = vmatprep.subr.mxu0 %v728
        %4193 = vmatpush2.msra.mxu0 %v727
        %4194 = vmatprep.subr.mxu0 %v726
        %4195 = vmatpush2.msra.mxu0 %v725
        %4196 = vmatprep.subr.mxu0 %v724
        %4197 = vmatpush2.msra.mxu0 %v723
        %4198 = vmatprep.subr.mxu0 %v722
        %4199 = vmatpush2.msra.mxu0 %v721
        %4200 = vmatprep.subr.mxu0 %v720
        %4201 = vmatpush2.msra.mxu0 %v719
        %4202 = vmatprep.subr.mxu0 %v718
        %4203 = vmatpush2.msra.mxu0 %v717
        %4204 = vmatprep.subr.mxu0 %v716
        %4205 = vmatpush2.msra.mxu0 %v715
        %4206 = vmatprep.subr.mxu0 %v714
        %4207 = vmatpush2.msra.mxu0 %v713
        %4208 = vmatprep.subr.mxu0 %v712
        %4209 = vmatpush2.msra.mxu0 %v711
        %4210 = vmatprep.subr.mxu0 %v710
        %4211 = vmatpush2.msra.mxu0 %v709
        %4212 = vmatprep.subr.mxu0 %v708
        %4213 = vmatpush2.msra.mxu0 %v707
        %4214 = vmatprep.subr.mxu0 %v706
        %4215 = vmatpush2.msra.mxu0 %v705
        %4216 = vmatprep.mubr.f32.mxu0 %v4144
        %4217 = vmatmul.mubr.f32.gmra.mxu0 %v4140
        %v4218 = vpop.f32.mrf.mxu0
        %v4219 = vadd.f32 %v1223, %v4218
        %v4220 = vpop.f32.mrf.mxu0
        %v4221 = vadd.f32 %v1227, %v4220
        %4222 = vmatprep.mubr.f32.mxu0 %v4145
        %4223 = vmatmul.mubr.f32.gmra.mxu0 %v4141
        %v4224 = vpop.f32.mrf.mxu0
        %v4225 = vadd.f32 %v1223, %v4224
        %v4226 = vpop.f32.mrf.mxu0
        %v4227 = vadd.f32 %v1227, %v4226
        %4228 = vdwg.mxu0
        %4229 = vmatprep.subr.mxu0 %v768
        %4230 = vmatpush1.msra.mxu0 %v767
        %4231 = vmatprep.subr.mxu0 %v766
        %4232 = vmatpush1.msra.mxu0 %v765
        %4233 = vmatprep.subr.mxu0 %v764
        %4234 = vmatpush1.msra.mxu0 %v763
        %4235 = vmatprep.subr.mxu0 %v762
        %4236 = vmatpush1.msra.mxu0 %v761
        %4237 = vmatprep.subr.mxu0 %v760
        %4238 = vmatpush1.msra.mxu0 %v759
        %4239 = vmatprep.subr.mxu0 %v758
        %4240 = vmatpush1.msra.mxu0 %v757
        %4241 = vmatprep.subr.mxu0 %v756
        %4242 = vmatpush1.msra.mxu0 %v755
        %4243 = vmatprep.subr.mxu0 %v754
        %4244 = vmatpush1.msra.mxu0 %v753
        %4245 = vmatprep.subr.mxu0 %v752
        %4246 = vmatpush1.msra.mxu0 %v751
        %4247 = vmatprep.subr.mxu0 %v750
        %4248 = vmatpush1.msra.mxu0 %v749
        %4249 = vmatprep.subr.mxu0 %v748
        %4250 = vmatpush1.msra.mxu0 %v747
        %4251 = vmatprep.subr.mxu0 %v746
        %4252 = vmatpush1.msra.mxu0 %v745
        %4253 = vmatprep.subr.mxu0 %v744
        %4254 = vmatpush1.msra.mxu0 %v743
        %4255 = vmatprep.subr.mxu0 %v742
        %4256 = vmatpush1.msra.mxu0 %v741
        %4257 = vmatprep.subr.mxu0 %v740
        %4258 = vmatpush1.msra.mxu0 %v739
        %4259 = vmatprep.subr.mxu0 %v738
        %4260 = vmatpush1.msra.mxu0 %v737
        %4261 = vmatprep.subr.mxu0 0.0
        %4262 = vmatpush2.msra.mxu0 0.0
        %4263 = vmatprep.subr.mxu0 0.0
        %4264 = vmatpush2.msra.mxu0 0.0
        %4265 = vmatprep.subr.mxu0 0.0
        %4266 = vmatpush2.msra.mxu0 0.0
        %4267 = vmatprep.subr.mxu0 0.0
        %4268 = vmatpush2.msra.mxu0 0.0
        %4269 = vmatprep.subr.mxu0 0.0
        %4270 = vmatpush2.msra.mxu0 0.0
        %4271 = vmatprep.subr.mxu0 0.0
        %4272 = vmatpush2.msra.mxu0 0.0
        %4273 = vmatprep.subr.mxu0 0.0
        %4274 = vmatpush2.msra.mxu0 0.0
        %4275 = vmatprep.subr.mxu0 0.0
        %4276 = vmatpush2.msra.mxu0 0.0
        %4277 = vmatprep.subr.mxu0 0.0
        %4278 = vmatpush2.msra.mxu0 0.0
        %4279 = vmatprep.subr.mxu0 0.0
        %4280 = vmatpush2.msra.mxu0 0.0
        %4281 = vmatprep.subr.mxu0 0.0
        %4282 = vmatpush2.msra.mxu0 0.0
        %4283 = vmatprep.subr.mxu0 %v1239
        %4284 = vmatpush2.msra.mxu0 %v1236
        %4285 = vmatprep.subr.mxu0 %v776
        %4286 = vmatpush2.msra.mxu0 %v775
        %4287 = vmatprep.subr.mxu0 %v774
        %4288 = vmatpush2.msra.mxu0 %v773
        %4289 = vmatprep.subr.mxu0 %v772
        %4290 = vmatpush2.msra.mxu0 %v771
        %4291 = vmatprep.subr.mxu0 %v770
        %4292 = vmatpush2.msra.mxu0 %v769
        %4293 = vmatprep.mubr.f32.mxu0 %v4148
        %4294 = vmatmul.mubr.f32.gmra.mxu0 %v4146
        %v4295 = vpop.f32.mrf.mxu0
        %v4296 = vadd.f32 %v4219, %v4295
        %v4297 = vpop.f32.mrf.mxu0
        %v4298 = vadd.f32 %v4221, %v4297
        %4299 = vmatprep.mubr.f32.mxu0 %v4150
        %4300 = vmatmul.mubr.f32.gmra.mxu0 %v4147
        %v4301 = vpop.f32.mrf.mxu0
        %v4302 = vadd.f32 %v4225, %v4301
        %v4303 = vpop.f32.mrf.mxu0
        %v4304 = vadd.f32 %v4227, %v4303
        %4305 = vdwg.mxu0
        %v4306 = vmax.f32 %v4296, 0.0
        %v4307 = vmax.f32 %v4298, 0.0
        %v4308 = vmax.f32 %v4302, 0.0
        %v4309 = vmax.f32 %v4304, 0.0
        %v4312 = vrot.slane %v4306, 1
        %v4313 = vrot.slane %v4307, 1
        %v4314 = vrot.slane %v4306, 2
        %v4315 = vrot.slane %v4307, 2
        %v4316 = vrot.slane %v4306, 3
        %v4317 = vrot.slane %v4307, 3
        %v4318 = vrot.slane %v4306, 4
        %v4319 = vrot.slane %v4307, 4
        %v4320 = vrot.slane %v4306, 5
        %v4321 = vrot.slane %v4307, 5
        %v4322 = vrot.slane %v4306, 6
        %v4323 = vrot.slane %v4307, 6
        %v4324 = vrot.slane %v4306, 7
        %v4325 = vrot.slane %v4307, 7
        %v4328 = vrot.slane %v4308, 1
        %v4329 = vrot.slane %v4309, 1
        %v4330 = vcombine.low %v4306, %v4307
        %v4331 = vcombine.low %v4312, %v4313
        %v4332 = vcombine.low %v4314, %v4315
        %v4333 = vcombine.low %v4316, %v4317
        %v4335 = vunpack.c.l.s4 1966171168
        %v4336 = vunpack.c.0.s8 %v4335
        %v4337 = vlaneseq
        %v4338 = vshrl.u32 %v4337, 7
        %v4339 = vsub.s32 %v4336, %v4338
        %v4340 = vrot.slane %v4330, %v4339
        %v4342 = vunpack.c.l.s4 1966171168
        %v4343 = vunpack.c.0.s8 %v4342
        %v4344 = vlaneseq
        %v4345 = vshrl.u32 %v4344, 7
        %v4346 = vsub.s32 %v4343, %v4345
        %v4347 = vrot.slane %v4331, %v4346
        %v4349 = vunpack.c.l.s4 1966171168
        %v4350 = vunpack.c.0.s8 %v4349
        %v4351 = vlaneseq
        %v4352 = vshrl.u32 %v4351, 7
        %v4353 = vsub.s32 %v4350, %v4352
        %v4354 = vrot.slane %v4332, %v4353
        %v4356 = vunpack.c.l.s4 1966171168
        %v4357 = vunpack.c.0.s8 %v4356
        %v4358 = vlaneseq
        %v4359 = vshrl.u32 %v4358, 7
        %v4360 = vsub.s32 %v4357, %v4359
        %v4361 = vrot.slane %v4333, %v4360
        %v4362 = vcombine.low %v4340, %v4347
        %v4363 = vcombine.low %v4354, %v4361
        %v4365 = vunpack.c.l.s4 1966171168
        %v4366 = vunpack.c.0.s8 %v4365
        %v4367 = vlaneseq
        %v4368 = vshrl.u32 %v4367, 7
        %v4369 = vsub.s32 %v4366, %v4368
        %v4370 = vrot.slane %v4362, %v4369
        %v4372 = vunpack.c.l.s4 1966171168
        %v4373 = vunpack.c.0.s8 %v4372
        %v4374 = vlaneseq
        %v4375 = vshrl.u32 %v4374, 7
        %v4376 = vsub.s32 %v4373, %v4375
        %v4377 = vrot.slane %v4363, %v4376
        %v4378 = vcombine.low %v4370, %v4377
        %v4379 = vcombine.low %v4318, %v4319
        %v4380 = vcombine.low %v4320, %v4321
        %v4381 = vcombine.low %v4322, %v4323
        %v4382 = vcombine.low %v4324, %v4325
        %v4384 = vunpack.c.l.s4 1966171168
        %v4385 = vunpack.c.0.s8 %v4384
        %v4386 = vlaneseq
        %v4387 = vshrl.u32 %v4386, 7
        %v4388 = vsub.s32 %v4385, %v4387
        %v4389 = vrot.slane %v4379, %v4388
        %v4391 = vunpack.c.l.s4 1966171168
        %v4392 = vunpack.c.0.s8 %v4391
        %v4393 = vlaneseq
        %v4394 = vshrl.u32 %v4393, 7
        %v4395 = vsub.s32 %v4392, %v4394
        %v4396 = vrot.slane %v4380, %v4395
        %v4398 = vunpack.c.l.s4 1966171168
        %v4399 = vunpack.c.0.s8 %v4398
        %v4400 = vlaneseq
        %v4401 = vshrl.u32 %v4400, 7
        %v4402 = vsub.s32 %v4399, %v4401
        %v4403 = vrot.slane %v4381, %v4402
        %v4405 = vunpack.c.l.s4 1966171168
        %v4406 = vunpack.c.0.s8 %v4405
        %v4407 = vlaneseq
        %v4408 = vshrl.u32 %v4407, 7
        %v4409 = vsub.s32 %v4406, %v4408
        %v4410 = vrot.slane %v4382, %v4409
        %v4411 = vcombine.low %v4389, %v4396
        %v4412 = vcombine.low %v4403, %v4410
        %v4414 = vunpack.c.l.s4 1966171168
        %v4415 = vunpack.c.0.s8 %v4414
        %v4416 = vlaneseq
        %v4417 = vshrl.u32 %v4416, 7
        %v4418 = vsub.s32 %v4415, %v4417
        %v4419 = vrot.slane %v4411, %v4418
        %v4421 = vunpack.c.l.s4 1966171168
        %v4422 = vunpack.c.0.s8 %v4421
        %v4423 = vlaneseq
        %v4424 = vshrl.u32 %v4423, 7
        %v4425 = vsub.s32 %v4422, %v4424
        %v4426 = vrot.slane %v4412, %v4425
        %v4427 = vcombine.low %v4419, %v4426
        %v4428 = vcombine.low %v4308, %v4309
        %v4429 = vcombine.low %v4328, %v4329
        %v4431 = vunpack.c.l.s4 1966171168
        %v4432 = vunpack.c.0.s8 %v4431
        %v4433 = vlaneseq
        %v4434 = vshrl.u32 %v4433, 7
        %v4435 = vsub.s32 %v4432, %v4434
        %v4436 = vrot.slane %v4428, %v4435
        %v4438 = vunpack.c.l.s4 1966171168
        %v4439 = vunpack.c.0.s8 %v4438
        %v4440 = vlaneseq
        %v4441 = vshrl.u32 %v4440, 7
        %v4442 = vsub.s32 %v4439, %v4441
        %v4443 = vrot.slane %v4429, %v4442
        %v4444 = vcombine.low %v4436, %v4443
        %v4446 = vunpack.c.l.s4 1966171168
        %v4447 = vunpack.c.0.s8 %v4446
        %v4448 = vlaneseq
        %v4449 = vshrl.u32 %v4448, 7
        %v4450 = vsub.s32 %v4447, %v4449
        %v4451 = vrot.slane %v4444, %v4450
        %s4455 = scalar_lea.vmem [#allocation2], 4
        %4456 = vst [vmem:[%s4455] ss:$8 sm:$0xf] %v4378
        %4457 = vst [vmem:[%s4455] ss:$8 sm:$0xf0] %v4378
        %s4458 = scalar_lea.vmem [#allocation2], 68
        %4459 = vst [vmem:[%s4458] ss:$8 sm:$0xf] %v4427
        %4460 = vst [vmem:[%s4458] ss:$8 sm:$0xf0] %v4427
        %s4461 = scalar_lea.vmem [#allocation2], 132
        %4462 = vst.msk [vmem:[%s4461] ss:$8 sm:$0xf] %vm1552, %v4451
        %4463 = vst.msk [vmem:[%s4461] ss:$8 sm:$0x0] %vm1552, %v4451
        %s4464 = scalar_lea.vmem %s607, 160
        %v4465 = vld [vmem:[%s4464] sm:$0xff]
        %v4466 = vld [vmem:[%s4464 + $0x8] sm:$0xff]
        %v4467 = vld [vmem:[%s4464 + $0x10] sm:$0xff]
        %v4468 = vld [vmem:[%s4464 + $0x18] sm:$0xff]
        %v4473 = vrot.slane %v4465, 1
        %v4474 = vrot.slane %v4466, 1
        %v4475 = vsel %vm788, %v4473, %v4474
        %v4476 = vrot.slane %v4467, 1
        %v4477 = vsel %vm788, %v4474, %v4476
        %v4478 = vrot.slane %v4468, 1
        %v4479 = vsel %vm788, %v4476, %v4478
        %4480 = vrot.lane.b32.xlu0 %v4475, 32
        %v4481 = vpop.permute.xlu0 %4480
        %4482 = vrot.lane.b32.xlu0 %v4477, 32
        %v4483 = vpop.permute.xlu0 %4482
        %4484 = vrot.lane.b32.xlu0 %v4479, 32
        %v4485 = vpop.permute.xlu0 %4484
        %4486 = vrot.lane.b32.xlu0 %v4478, 32
        %v4487 = vpop.permute.xlu0 %4486
        %v4492 = vrot.slane %v4465, 2
        %v4493 = vrot.slane %v4466, 2
        %v4494 = vsel %vm808, %v4492, %v4493
        %v4495 = vrot.slane %v4467, 2
        %v4496 = vsel %vm808, %v4493, %v4495
        %v4497 = vrot.slane %v4468, 2
        %v4498 = vsel %vm808, %v4495, %v4497
        %4499 = vrot.lane.b32.xlu0 %v4494, 64
        %v4500 = vpop.permute.xlu0 %4499
        %4501 = vrot.lane.b32.xlu0 %v4496, 64
        %v4502 = vpop.permute.xlu0 %4501
        %4503 = vrot.lane.b32.xlu0 %v4498, 64
        %v4504 = vpop.permute.xlu0 %4503
        %4505 = vrot.lane.b32.xlu0 %v4497, 64
        %v4506 = vpop.permute.xlu0 %4505
        %v4511 = vrot.slane %v4465, 3
        %v4512 = vrot.slane %v4466, 3
        %v4513 = vsel %vm828, %v4511, %v4512
        %v4514 = vrot.slane %v4467, 3
        %v4515 = vsel %vm828, %v4512, %v4514
        %v4516 = vrot.slane %v4468, 3
        %v4517 = vsel %vm828, %v4514, %v4516
        %4518 = vrot.lane.b32.xlu0 %v4513, 96
        %v4519 = vpop.permute.xlu0 %4518
        %4520 = vrot.lane.b32.xlu0 %v4515, 96
        %v4521 = vpop.permute.xlu0 %4520
        %4522 = vrot.lane.b32.xlu0 %v4517, 96
        %v4523 = vpop.permute.xlu0 %4522
        %4524 = vrot.lane.b32.xlu0 %v4516, 96
        %v4525 = vpop.permute.xlu0 %4524
        %v4530 = vrot.slane %v4465, 4
        %v4531 = vrot.slane %v4466, 4
        %v4532 = vsel %vm848, %v4530, %v4531
        %v4533 = vrot.slane %v4467, 4
        %v4534 = vsel %vm848, %v4531, %v4533
        %v4535 = vrot.slane %v4468, 4
        %v4536 = vsel %vm848, %v4533, %v4535
        %v4537 = vsel %vm856, %v4465, %v4481
        %v4538 = vsel %vm856, %v4466, %v4483
        %v4539 = vsel %vm856, %v4467, %v4485
        %v4540 = vsel %vm856, %v4468, %v4487
        %v4541 = vsel %vm861, %v4537, %v4500
        %v4542 = vsel %vm861, %v4538, %v4502
        %v4543 = vsel %vm861, %v4539, %v4504
        %v4544 = vsel %vm861, %v4540, %v4506
        %v4545 = vsel %vm866, %v4541, %v4519
        %v4546 = vsel %vm866, %v4542, %v4521
        %v4547 = vsel %vm866, %v4543, %v4523
        %v4548 = vsel %vm866, %v4544, %v4525
        %v4549 = vsel %vm856, %v4532, 0
        %v4551 = vsel %vm856, %v4534, 0
        %v4553 = vsel %vm856, %v4536, 0
        %v4555 = vsel %vm856, %v4535, 0
        %4557 = vmatprep.subr.mxu0 %v640
        %4558 = vmatpush1.msra.mxu0 %v639
        %4559 = vmatprep.subr.mxu0 %v638
        %4560 = vmatpush1.msra.mxu0 %v637
        %4561 = vmatprep.subr.mxu0 %v636
        %4562 = vmatpush1.msra.mxu0 %v635
        %4563 = vmatprep.subr.mxu0 %v634
        %4564 = vmatpush1.msra.mxu0 %v633
        %4565 = vmatprep.subr.mxu0 %v632
        %4566 = vmatpush1.msra.mxu0 %v631
        %4567 = vmatprep.subr.mxu0 %v630
        %4568 = vmatpush1.msra.mxu0 %v629
        %4569 = vmatprep.subr.mxu0 %v628
        %4570 = vmatpush1.msra.mxu0 %v627
        %4571 = vmatprep.subr.mxu0 %v626
        %4572 = vmatpush1.msra.mxu0 %v625
        %4573 = vmatprep.subr.mxu0 %v624
        %4574 = vmatpush1.msra.mxu0 %v623
        %4575 = vmatprep.subr.mxu0 %v622
        %4576 = vmatpush1.msra.mxu0 %v621
        %4577 = vmatprep.subr.mxu0 %v620
        %4578 = vmatpush1.msra.mxu0 %v619
        %4579 = vmatprep.subr.mxu0 %v618
        %4580 = vmatpush1.msra.mxu0 %v617
        %4581 = vmatprep.subr.mxu0 %v616
        %4582 = vmatpush1.msra.mxu0 %v615
        %4583 = vmatprep.subr.mxu0 %v614
        %4584 = vmatpush1.msra.mxu0 %v613
        %4585 = vmatprep.subr.mxu0 %v612
        %4586 = vmatpush1.msra.mxu0 %v611
        %4587 = vmatprep.subr.mxu0 %v610
        %4588 = vmatpush1.msra.mxu0 %v609
        %4589 = vmatprep.subr.mxu0 0.0
        %4590 = vmatpush2.msra.mxu0 0.0
        %4591 = vmatprep.subr.mxu0 0.0
        %4592 = vmatpush2.msra.mxu0 0.0
        %4593 = vmatprep.subr.mxu0 0.0
        %4594 = vmatpush2.msra.mxu0 0.0
        %4595 = vmatprep.subr.mxu0 0.0
        %4596 = vmatpush2.msra.mxu0 0.0
        %4597 = vmatprep.subr.mxu0 0.0
        %4598 = vmatpush2.msra.mxu0 0.0
        %4599 = vmatprep.subr.mxu0 0.0
        %4600 = vmatpush2.msra.mxu0 0.0
        %4601 = vmatprep.subr.mxu0 0.0
        %4602 = vmatpush2.msra.mxu0 0.0
        %4603 = vmatprep.subr.mxu0 0.0
        %4604 = vmatpush2.msra.mxu0 0.0
        %4605 = vmatprep.subr.mxu0 0.0
        %4606 = vmatpush2.msra.mxu0 0.0
        %4607 = vmatprep.subr.mxu0 0.0
        %4608 = vmatpush2.msra.mxu0 0.0
        %4609 = vmatprep.subr.mxu0 0.0
        %4610 = vmatpush2.msra.mxu0 0.0
        %4611 = vmatprep.subr.mxu0 0.0
        %4612 = vmatpush2.msra.mxu0 0.0
        %4613 = vmatprep.subr.mxu0 %v648
        %4614 = vmatpush2.msra.mxu0 %v647
        %4615 = vmatprep.subr.mxu0 %v646
        %4616 = vmatpush2.msra.mxu0 %v645
        %4617 = vmatprep.subr.mxu0 %v644
        %4618 = vmatpush2.msra.mxu0 %v643
        %4619 = vmatprep.subr.mxu0 %v642
        %4620 = vmatpush2.msra.mxu0 %v641
        %4621 = vmatprep.mubr.f32.mxu0 %v4549
        %4622 = vmatmul.mubr.f32.gmra.mxu0 %v4545
        %v4623 = vpop.f32.mrf.mxu0
        %v4624 = vadd.f32 %v875, %v4623
        %v4625 = vpop.f32.mrf.mxu0
        %v4626 = vadd.f32 %v879, %v4625
        %4627 = vmatprep.mubr.f32.mxu0 %v4551
        %4628 = vmatmul.mubr.f32.gmra.mxu0 %v4546
        %v4629 = vpop.f32.mrf.mxu0
        %v4630 = vadd.f32 %v875, %v4629
        %v4631 = vpop.f32.mrf.mxu0
        %v4632 = vadd.f32 %v879, %v4631
        %4633 = vmatprep.mubr.f32.mxu0 %v4553
        %4634 = vmatmul.mubr.f32.gmra.mxu0 %v4547
        %v4635 = vpop.f32.mrf.mxu0
        %v4636 = vadd.f32 %v875, %v4635
        %v4637 = vpop.f32.mrf.mxu0
        %v4638 = vadd.f32 %v879, %v4637
        %4639 = vmatprep.mubr.f32.mxu0 %v4555
        %4640 = vmatmul.mubr.f32.gmra.mxu0 %v4548
        %v4641 = vpop.f32.mrf.mxu0
        %v4642 = vadd.f32 %v875, %v4641
        %v4643 = vpop.f32.mrf.mxu0
        %v4644 = vadd.f32 %v879, %v4643
        %4645 = vdwg.mxu0
        %v4646 = vmax.f32 %v4624, 0.0
        %v4647 = vmax.f32 %v4626, 0.0
        %v4648 = vmax.f32 %v4630, 0.0
        %v4649 = vmax.f32 %v4632, 0.0
        %v4650 = vmax.f32 %v4636, 0.0
        %v4651 = vmax.f32 %v4638, 0.0
        %v4652 = vmax.f32 %v4642, 0.0
        %v4653 = vmax.f32 %v4644, 0.0
        %v4655 = vsel %vm987, %v4647, 0
        %v4658 = vsel %vm987, %v4649, 0
        %v4661 = vsel %vm987, %v4651, 0
        %v4664 = vsel %vm987, %v4653, 0
        %4666 = vmatprep.subr.mxu0 0.0
        %4667 = vmatpush1.msra.mxu0 %v665
        %4668 = vmatprep.subr.mxu0 0.0
        %4669 = vmatpush1.msra.mxu0 %v664
        %4670 = vmatprep.subr.mxu0 0.0
        %4671 = vmatpush1.msra.mxu0 %v663
        %4672 = vmatprep.subr.mxu0 0.0
        %4673 = vmatpush1.msra.mxu0 %v662
        %4674 = vmatprep.subr.mxu0 0.0
        %4675 = vmatpush1.msra.mxu0 %v661
        %4676 = vmatprep.subr.mxu0 0.0
        %4677 = vmatpush1.msra.mxu0 %v660
        %4678 = vmatprep.subr.mxu0 0.0
        %4679 = vmatpush1.msra.mxu0 %v659
        %4680 = vmatprep.subr.mxu0 0.0
        %4681 = vmatpush1.msra.mxu0 %v658
        %4682 = vmatprep.subr.mxu0 0.0
        %4683 = vmatpush1.msra.mxu0 %v657
        %4684 = vmatprep.subr.mxu0 0.0
        %4685 = vmatpush1.msra.mxu0 %v656
        %4686 = vmatprep.subr.mxu0 0.0
        %4687 = vmatpush1.msra.mxu0 %v655
        %4688 = vmatprep.subr.mxu0 0.0
        %4689 = vmatpush1.msra.mxu0 %v654
        %4690 = vmatprep.subr.mxu0 0.0
        %4691 = vmatpush1.msra.mxu0 %v653
        %4692 = vmatprep.subr.mxu0 0.0
        %4693 = vmatpush1.msra.mxu0 %v652
        %4694 = vmatprep.subr.mxu0 0.0
        %4695 = vmatpush1.msra.mxu0 %v651
        %4696 = vmatprep.subr.mxu0 0.0
        %4697 = vmatpush1.msra.mxu0 %v650
        %4698 = vmatprep.subr.mxu0 0.0
        %4699 = vmatpush2.msra.mxu0 0.0
        %4700 = vmatprep.subr.mxu0 0.0
        %4701 = vmatpush2.msra.mxu0 0.0
        %4702 = vmatprep.subr.mxu0 0.0
        %4703 = vmatpush2.msra.mxu0 0.0
        %4704 = vmatprep.subr.mxu0 0.0
        %4705 = vmatpush2.msra.mxu0 0.0
        %4706 = vmatprep.subr.mxu0 0.0
        %4707 = vmatpush2.msra.mxu0 0.0
        %4708 = vmatprep.subr.mxu0 0.0
        %4709 = vmatpush2.msra.mxu0 0.0
        %4710 = vmatprep.subr.mxu0 0.0
        %4711 = vmatpush2.msra.mxu0 0.0
        %4712 = vmatprep.subr.mxu0 0.0
        %4713 = vmatpush2.msra.mxu0 0.0
        %4714 = vmatprep.subr.mxu0 0.0
        %4715 = vmatpush2.msra.mxu0 0.0
        %4716 = vmatprep.subr.mxu0 0.0
        %4717 = vmatpush2.msra.mxu0 0.0
        %4718 = vmatprep.subr.mxu0 0.0
        %4719 = vmatpush2.msra.mxu0 0.0
        %4720 = vmatprep.subr.mxu0 0.0
        %4721 = vmatpush2.msra.mxu0 %v670
        %4722 = vmatprep.subr.mxu0 0.0
        %4723 = vmatpush2.msra.mxu0 %v669
        %4724 = vmatprep.subr.mxu0 0.0
        %4725 = vmatpush2.msra.mxu0 %v668
        %4726 = vmatprep.subr.mxu0 0.0
        %4727 = vmatpush2.msra.mxu0 %v667
        %4728 = vmatprep.subr.mxu0 0.0
        %4729 = vmatpush2.msra.mxu0 %v666
        %4730 = vmatprep.mubr.f32.mxu0 %v4655
        %4731 = vmatmul.mubr.f32.gmra.mxu0 %v4646
        %v4732 = vpop.f32.mrf.mxu0
        %v4733 = vadd.f32 0.0, %v4732
        %v4734 = vpop.f32.mrf.mxu0
        %4735 = vmatprep.mubr.f32.mxu0 %v4658
        %4736 = vmatmul.mubr.f32.gmra.mxu0 %v4648
        %v4737 = vpop.f32.mrf.mxu0
        %v4738 = vadd.f32 0.0, %v4737
        %v4739 = vpop.f32.mrf.mxu0
        %4740 = vmatprep.mubr.f32.mxu0 %v4661
        %4741 = vmatmul.mubr.f32.gmra.mxu0 %v4650
        %v4742 = vpop.f32.mrf.mxu0
        %v4743 = vadd.f32 0.0, %v4742
        %v4744 = vpop.f32.mrf.mxu0
        %4745 = vmatprep.mubr.f32.mxu0 %v4664
        %4746 = vmatmul.mubr.f32.gmra.mxu0 %v4652
        %v4747 = vpop.f32.mrf.mxu0
        %v4748 = vadd.f32 0.0, %v4747
        %v4749 = vpop.f32.mrf.mxu0
        %4750 = vdwg.mxu0
        %v4752 = vsel %vm848, %v4748, 0
        %4754 = vmatprep.subr.mxu0 0.0
        %4755 = vmatpush1.msra.mxu0 0.0
        %4756 = vmatprep.subr.mxu0 0.0
        %4757 = vmatpush1.msra.mxu0 0.0
        %4758 = vmatprep.subr.mxu0 0.0
        %4759 = vmatpush1.msra.mxu0 0.0
        %4760 = vmatprep.subr.mxu0 0.0
        %4761 = vmatpush1.msra.mxu0 0.0
        %4762 = vmatprep.subr.mxu0 0.0
        %4763 = vmatpush1.msra.mxu0 0.0
        %4764 = vmatprep.subr.mxu0 0.0
        %4765 = vmatpush1.msra.mxu0 0.0
        %4766 = vmatprep.subr.mxu0 0.0
        %4767 = vmatpush1.msra.mxu0 0.0
        %4768 = vmatprep.subr.mxu0 0.0
        %4769 = vmatpush1.msra.mxu0 0.0
        %4770 = vmatprep.subr.mxu0 0.0
        %4771 = vmatpush1.msra.mxu0 0.0
        %4772 = vmatprep.subr.mxu0 0.0
        %4773 = vmatpush1.msra.mxu0 0.0
        %4774 = vmatprep.subr.mxu0 0.0
        %4775 = vmatpush1.msra.mxu0 0.0
        %4776 = vmatprep.subr.mxu0 0.0
        %4777 = vmatpush1.msra.mxu0 0.0
        %4778 = vmatprep.subr.mxu0 0.0
        %4779 = vmatpush1.msra.mxu0 %v4752
        %4780 = vmatprep.subr.mxu0 0.0
        %4781 = vmatpush1.msra.mxu0 %v4743
        %4782 = vmatprep.subr.mxu0 0.0
        %4783 = vmatpush1.msra.mxu0 %v4738
        %4784 = vmatprep.subr.mxu0 0.0
        %4785 = vmatpush1.msra.mxu0 %v4733
        %4786 = vmatprep.subr.mxu0 0.0
        %4787 = vmatpush2.msra.mxu0 0.0
        %4788 = vmatprep.subr.mxu0 0.0
        %4789 = vmatpush2.msra.mxu0 0.0
        %4790 = vmatprep.subr.mxu0 0.0
        %4791 = vmatpush2.msra.mxu0 0.0
        %4792 = vmatprep.subr.mxu0 0.0
        %4793 = vmatpush2.msra.mxu0 0.0
        %4794 = vmatprep.subr.mxu0 0.0
        %4795 = vmatpush2.msra.mxu0 0.0
        %4796 = vmatprep.subr.mxu0 0.0
        %4797 = vmatpush2.msra.mxu0 0.0
        %4798 = vmatprep.subr.mxu0 0.0
        %4799 = vmatpush2.msra.mxu0 0.0
        %4800 = vmatprep.subr.mxu0 0.0
        %4801 = vmatpush2.msra.mxu0 0.0
        %4802 = vmatprep.subr.mxu0 0.0
        %4803 = vmatpush2.msra.mxu0 0.0
        %4804 = vmatprep.subr.mxu0 0.0
        %4805 = vmatpush2.msra.mxu0 0.0
        %4806 = vmatprep.subr.mxu0 0.0
        %4807 = vmatpush2.msra.mxu0 0.0
        %4808 = vmatprep.subr.mxu0 0.0
        %4809 = vmatpush2.msra.mxu0 0.0
        %4810 = vmatprep.subr.mxu0 0.0
        %4811 = vmatpush2.msra.mxu0 0.0
        %4812 = vmatprep.subr.mxu0 0.0
        %4813 = vmatpush2.msra.mxu0 0.0
        %4814 = vmatprep.subr.mxu0 0.0
        %4815 = vmatpush2.msra.mxu0 0.0
        %4816 = vmatprep.subr.mxu0 0.0
        %4817 = vmatpush2.msra.mxu0 0.0
        %4818 = vmatprep.mubr.f32.mxu0 0.0
        %4819 = vmatmul.mubr.f32.gmra.mxu0 %v1087
        %v4820 = vpop.f32.mrf.mxu0
        %v4821 = vadd.f32 0.0, %v4820
        %v4822 = vpop.f32.mrf.mxu0
        %4823 = vmatprep.mubr.f32.mxu0 0.0
        %4824 = vmatmul.mubr.f32.gmra.mxu0 %v1090
        %v4825 = vpop.f32.mrf.mxu0
        %v4826 = vadd.f32 0.0, %v4825
        %v4827 = vpop.f32.mrf.mxu0
        %4828 = vdwg.mxu0
        %v4831 = vrot.slane %v4821, 1
        %v4832 = vrot.slane %v4826, 1
        %v4833 = vsel %vm788, %v4831, %v4832
        %4834 = vrot.lane.b32.xlu0 %v4833, 84
        %v4835 = vpop.permute.xlu0 %4834
        %4836 = vrot.lane.b32.xlu0 %v4832, 84
        %v4837 = vpop.permute.xlu0 %4836
        %v4840 = vrot.slane %v4821, 2
        %v4841 = vrot.slane %v4826, 2
        %v4842 = vsel %vm808, %v4840, %v4841
        %4843 = vrot.lane.b32.xlu0 %v4842, 40
        %v4844 = vpop.permute.xlu0 %4843
        %4845 = vrot.lane.b32.xlu0 %v4841, 40
        %v4846 = vpop.permute.xlu0 %4845
        %v4849 = vrot.slane %v4821, 3
        %v4850 = vrot.slane %v4826, 3
        %v4851 = vsel %vm828, %v4849, %v4850
        %4852 = vrot.lane.b32.xlu0 %v4851, 124
        %v4853 = vpop.permute.xlu0 %4852
        %4854 = vrot.lane.b32.xlu0 %v4850, 124
        %v4855 = vpop.permute.xlu0 %4854
        %v4858 = vrot.slane %v4821, 4
        %v4859 = vrot.slane %v4826, 4
        %v4860 = vsel %vm848, %v4858, %v4859
        %4861 = vrot.lane.b32.xlu0 %v4860, 80
        %v4862 = vpop.permute.xlu0 %4861
        %4863 = vrot.lane.b32.xlu0 %v4859, 80
        %v4864 = vpop.permute.xlu0 %4863
        %v4867 = vsel %vm1208, %v4821, %v4835
        %v4868 = vsel %vm1208, %v4826, %v4837
        %v4869 = vsel %vm987, %v4835, %v4844
        %v4870 = vsel %vm987, %v4837, %v4846
        %v4871 = vsel %vm1213, %v4869, %v4853
        %v4872 = vsel %vm1213, %v4870, %v4855
        %v4873 = vsel %vm1216, %v4853, %v4862
        %v4874 = vsel %vm1216, %v4855, %v4864
        %v4875 = vsel %vm1230, %v4862, 0
        %v4877 = vsel %vm1230, %v4864, 0
        %4879 = vmatprep.subr.mxu0 %v704
        %4880 = vmatpush1.msra.mxu0 %v703
        %4881 = vmatprep.subr.mxu0 %v702
        %4882 = vmatpush1.msra.mxu0 %v701
        %4883 = vmatprep.subr.mxu0 %v700
        %4884 = vmatpush1.msra.mxu0 %v699
        %4885 = vmatprep.subr.mxu0 %v698
        %4886 = vmatpush1.msra.mxu0 %v697
        %4887 = vmatprep.subr.mxu0 %v696
        %4888 = vmatpush1.msra.mxu0 %v695
        %4889 = vmatprep.subr.mxu0 %v694
        %4890 = vmatpush1.msra.mxu0 %v693
        %4891 = vmatprep.subr.mxu0 %v692
        %4892 = vmatpush1.msra.mxu0 %v691
        %4893 = vmatprep.subr.mxu0 %v690
        %4894 = vmatpush1.msra.mxu0 %v689
        %4895 = vmatprep.subr.mxu0 %v688
        %4896 = vmatpush1.msra.mxu0 %v687
        %4897 = vmatprep.subr.mxu0 %v686
        %4898 = vmatpush1.msra.mxu0 %v685
        %4899 = vmatprep.subr.mxu0 %v684
        %4900 = vmatpush1.msra.mxu0 %v683
        %4901 = vmatprep.subr.mxu0 %v682
        %4902 = vmatpush1.msra.mxu0 %v681
        %4903 = vmatprep.subr.mxu0 %v680
        %4904 = vmatpush1.msra.mxu0 %v679
        %4905 = vmatprep.subr.mxu0 %v678
        %4906 = vmatpush1.msra.mxu0 %v677
        %4907 = vmatprep.subr.mxu0 %v676
        %4908 = vmatpush1.msra.mxu0 %v675
        %4909 = vmatprep.subr.mxu0 %v674
        %4910 = vmatpush1.msra.mxu0 %v673
        %4911 = vmatprep.subr.mxu0 %v736
        %4912 = vmatpush2.msra.mxu0 %v735
        %4913 = vmatprep.subr.mxu0 %v734
        %4914 = vmatpush2.msra.mxu0 %v733
        %4915 = vmatprep.subr.mxu0 %v732
        %4916 = vmatpush2.msra.mxu0 %v731
        %4917 = vmatprep.subr.mxu0 %v730
        %4918 = vmatpush2.msra.mxu0 %v729
        %4919 = vmatprep.subr.mxu0 %v728
        %4920 = vmatpush2.msra.mxu0 %v727
        %4921 = vmatprep.subr.mxu0 %v726
        %4922 = vmatpush2.msra.mxu0 %v725
        %4923 = vmatprep.subr.mxu0 %v724
        %4924 = vmatpush2.msra.mxu0 %v723
        %4925 = vmatprep.subr.mxu0 %v722
        %4926 = vmatpush2.msra.mxu0 %v721
        %4927 = vmatprep.subr.mxu0 %v720
        %4928 = vmatpush2.msra.mxu0 %v719
        %4929 = vmatprep.subr.mxu0 %v718
        %4930 = vmatpush2.msra.mxu0 %v717
        %4931 = vmatprep.subr.mxu0 %v716
        %4932 = vmatpush2.msra.mxu0 %v715
        %4933 = vmatprep.subr.mxu0 %v714
        %4934 = vmatpush2.msra.mxu0 %v713
        %4935 = vmatprep.subr.mxu0 %v712
        %4936 = vmatpush2.msra.mxu0 %v711
        %4937 = vmatprep.subr.mxu0 %v710
        %4938 = vmatpush2.msra.mxu0 %v709
        %4939 = vmatprep.subr.mxu0 %v708
        %4940 = vmatpush2.msra.mxu0 %v707
        %4941 = vmatprep.subr.mxu0 %v706
        %4942 = vmatpush2.msra.mxu0 %v705
        %4943 = vmatprep.mubr.f32.mxu0 %v4871
        %4944 = vmatmul.mubr.f32.gmra.mxu0 %v4867
        %v4945 = vpop.f32.mrf.mxu0
        %v4946 = vadd.f32 %v1223, %v4945
        %v4947 = vpop.f32.mrf.mxu0
        %v4948 = vadd.f32 %v1227, %v4947
        %4949 = vmatprep.mubr.f32.mxu0 %v4872
        %4950 = vmatmul.mubr.f32.gmra.mxu0 %v4868
        %v4951 = vpop.f32.mrf.mxu0
        %v4952 = vadd.f32 %v1223, %v4951
        %v4953 = vpop.f32.mrf.mxu0
        %v4954 = vadd.f32 %v1227, %v4953
        %4955 = vdwg.mxu0
        %4956 = vmatprep.subr.mxu0 %v768
        %4957 = vmatpush1.msra.mxu0 %v767
        %4958 = vmatprep.subr.mxu0 %v766
        %4959 = vmatpush1.msra.mxu0 %v765
        %4960 = vmatprep.subr.mxu0 %v764
        %4961 = vmatpush1.msra.mxu0 %v763
        %4962 = vmatprep.subr.mxu0 %v762
        %4963 = vmatpush1.msra.mxu0 %v761
        %4964 = vmatprep.subr.mxu0 %v760
        %4965 = vmatpush1.msra.mxu0 %v759
        %4966 = vmatprep.subr.mxu0 %v758
        %4967 = vmatpush1.msra.mxu0 %v757
        %4968 = vmatprep.subr.mxu0 %v756
        %4969 = vmatpush1.msra.mxu0 %v755
        %4970 = vmatprep.subr.mxu0 %v754
        %4971 = vmatpush1.msra.mxu0 %v753
        %4972 = vmatprep.subr.mxu0 %v752
        %4973 = vmatpush1.msra.mxu0 %v751
        %4974 = vmatprep.subr.mxu0 %v750
        %4975 = vmatpush1.msra.mxu0 %v749
        %4976 = vmatprep.subr.mxu0 %v748
        %4977 = vmatpush1.msra.mxu0 %v747
        %4978 = vmatprep.subr.mxu0 %v746
        %4979 = vmatpush1.msra.mxu0 %v745
        %4980 = vmatprep.subr.mxu0 %v744
        %4981 = vmatpush1.msra.mxu0 %v743
        %4982 = vmatprep.subr.mxu0 %v742
        %4983 = vmatpush1.msra.mxu0 %v741
        %4984 = vmatprep.subr.mxu0 %v740
        %4985 = vmatpush1.msra.mxu0 %v739
        %4986 = vmatprep.subr.mxu0 %v738
        %4987 = vmatpush1.msra.mxu0 %v737
        %4988 = vmatprep.subr.mxu0 0.0
        %4989 = vmatpush2.msra.mxu0 0.0
        %4990 = vmatprep.subr.mxu0 0.0
        %4991 = vmatpush2.msra.mxu0 0.0
        %4992 = vmatprep.subr.mxu0 0.0
        %4993 = vmatpush2.msra.mxu0 0.0
        %4994 = vmatprep.subr.mxu0 0.0
        %4995 = vmatpush2.msra.mxu0 0.0
        %4996 = vmatprep.subr.mxu0 0.0
        %4997 = vmatpush2.msra.mxu0 0.0
        %4998 = vmatprep.subr.mxu0 0.0
        %4999 = vmatpush2.msra.mxu0 0.0
        %5000 = vmatprep.subr.mxu0 0.0
        %5001 = vmatpush2.msra.mxu0 0.0
        %5002 = vmatprep.subr.mxu0 0.0
        %5003 = vmatpush2.msra.mxu0 0.0
        %5004 = vmatprep.subr.mxu0 0.0
        %5005 = vmatpush2.msra.mxu0 0.0
        %5006 = vmatprep.subr.mxu0 0.0
        %5007 = vmatpush2.msra.mxu0 0.0
        %5008 = vmatprep.subr.mxu0 0.0
        %5009 = vmatpush2.msra.mxu0 0.0
        %5010 = vmatprep.subr.mxu0 %v1239
        %5011 = vmatpush2.msra.mxu0 %v1236
        %5012 = vmatprep.subr.mxu0 %v776
        %5013 = vmatpush2.msra.mxu0 %v775
        %5014 = vmatprep.subr.mxu0 %v774
        %5015 = vmatpush2.msra.mxu0 %v773
        %5016 = vmatprep.subr.mxu0 %v772
        %5017 = vmatpush2.msra.mxu0 %v771
        %5018 = vmatprep.subr.mxu0 %v770
        %5019 = vmatpush2.msra.mxu0 %v769
        %5020 = vmatprep.mubr.f32.mxu0 %v4875
        %5021 = vmatmul.mubr.f32.gmra.mxu0 %v4873
        %v5022 = vpop.f32.mrf.mxu0
        %v5023 = vadd.f32 %v4946, %v5022
        %v5024 = vpop.f32.mrf.mxu0
        %v5025 = vadd.f32 %v4948, %v5024
        %5026 = vmatprep.mubr.f32.mxu0 %v4877
        %5027 = vmatmul.mubr.f32.gmra.mxu0 %v4874
        %v5028 = vpop.f32.mrf.mxu0
        %v5029 = vadd.f32 %v4952, %v5028
        %v5030 = vpop.f32.mrf.mxu0
        %v5031 = vadd.f32 %v4954, %v5030
        %5032 = vdwg.mxu0
        %v5033 = vmax.f32 %v5023, 0.0
        %v5034 = vmax.f32 %v5025, 0.0
        %v5035 = vmax.f32 %v5029, 0.0
        %v5036 = vmax.f32 %v5031, 0.0
        %v5039 = vrot.slane %v5033, 1
        %v5040 = vrot.slane %v5034, 1
        %v5041 = vrot.slane %v5033, 2
        %v5042 = vrot.slane %v5034, 2
        %v5043 = vrot.slane %v5033, 3
        %v5044 = vrot.slane %v5034, 3
        %v5045 = vrot.slane %v5033, 4
        %v5046 = vrot.slane %v5034, 4
        %v5047 = vrot.slane %v5033, 5
        %v5048 = vrot.slane %v5034, 5
        %v5049 = vrot.slane %v5033, 6
        %v5050 = vrot.slane %v5034, 6
        %v5051 = vrot.slane %v5033, 7
        %v5052 = vrot.slane %v5034, 7
        %v5055 = vrot.slane %v5035, 1
        %v5056 = vrot.slane %v5036, 1
        %v5057 = vcombine.low %v5033, %v5034
        %v5058 = vcombine.low %v5039, %v5040
        %v5059 = vcombine.low %v5041, %v5042
        %v5060 = vcombine.low %v5043, %v5044
        %v5062 = vunpack.c.l.s4 1966171168
        %v5063 = vunpack.c.0.s8 %v5062
        %v5064 = vlaneseq
        %v5065 = vshrl.u32 %v5064, 7
        %v5066 = vsub.s32 %v5063, %v5065
        %v5067 = vrot.slane %v5057, %v5066
        %v5069 = vunpack.c.l.s4 1966171168
        %v5070 = vunpack.c.0.s8 %v5069
        %v5071 = vlaneseq
        %v5072 = vshrl.u32 %v5071, 7
        %v5073 = vsub.s32 %v5070, %v5072
        %v5074 = vrot.slane %v5058, %v5073
        %v5076 = vunpack.c.l.s4 1966171168
        %v5077 = vunpack.c.0.s8 %v5076
        %v5078 = vlaneseq
        %v5079 = vshrl.u32 %v5078, 7
        %v5080 = vsub.s32 %v5077, %v5079
        %v5081 = vrot.slane %v5059, %v5080
        %v5083 = vunpack.c.l.s4 1966171168
        %v5084 = vunpack.c.0.s8 %v5083
        %v5085 = vlaneseq
        %v5086 = vshrl.u32 %v5085, 7
        %v5087 = vsub.s32 %v5084, %v5086
        %v5088 = vrot.slane %v5060, %v5087
        %v5089 = vcombine.low %v5067, %v5074
        %v5090 = vcombine.low %v5081, %v5088
        %v5092 = vunpack.c.l.s4 1966171168
        %v5093 = vunpack.c.0.s8 %v5092
        %v5094 = vlaneseq
        %v5095 = vshrl.u32 %v5094, 7
        %v5096 = vsub.s32 %v5093, %v5095
        %v5097 = vrot.slane %v5089, %v5096
        %v5099 = vunpack.c.l.s4 1966171168
        %v5100 = vunpack.c.0.s8 %v5099
        %v5101 = vlaneseq
        %v5102 = vshrl.u32 %v5101, 7
        %v5103 = vsub.s32 %v5100, %v5102
        %v5104 = vrot.slane %v5090, %v5103
        %v5105 = vcombine.low %v5097, %v5104
        %v5106 = vcombine.low %v5045, %v5046
        %v5107 = vcombine.low %v5047, %v5048
        %v5108 = vcombine.low %v5049, %v5050
        %v5109 = vcombine.low %v5051, %v5052
        %v5111 = vunpack.c.l.s4 1966171168
        %v5112 = vunpack.c.0.s8 %v5111
        %v5113 = vlaneseq
        %v5114 = vshrl.u32 %v5113, 7
        %v5115 = vsub.s32 %v5112, %v5114
        %v5116 = vrot.slane %v5106, %v5115
        %v5118 = vunpack.c.l.s4 1966171168
        %v5119 = vunpack.c.0.s8 %v5118
        %v5120 = vlaneseq
        %v5121 = vshrl.u32 %v5120, 7
        %v5122 = vsub.s32 %v5119, %v5121
        %v5123 = vrot.slane %v5107, %v5122
        %v5125 = vunpack.c.l.s4 1966171168
        %v5126 = vunpack.c.0.s8 %v5125
        %v5127 = vlaneseq
        %v5128 = vshrl.u32 %v5127, 7
        %v5129 = vsub.s32 %v5126, %v5128
        %v5130 = vrot.slane %v5108, %v5129
        %v5132 = vunpack.c.l.s4 1966171168
        %v5133 = vunpack.c.0.s8 %v5132
        %v5134 = vlaneseq
        %v5135 = vshrl.u32 %v5134, 7
        %v5136 = vsub.s32 %v5133, %v5135
        %v5137 = vrot.slane %v5109, %v5136
        %v5138 = vcombine.low %v5116, %v5123
        %v5139 = vcombine.low %v5130, %v5137
        %v5141 = vunpack.c.l.s4 1966171168
        %v5142 = vunpack.c.0.s8 %v5141
        %v5143 = vlaneseq
        %v5144 = vshrl.u32 %v5143, 7
        %v5145 = vsub.s32 %v5142, %v5144
        %v5146 = vrot.slane %v5138, %v5145
        %v5148 = vunpack.c.l.s4 1966171168
        %v5149 = vunpack.c.0.s8 %v5148
        %v5150 = vlaneseq
        %v5151 = vshrl.u32 %v5150, 7
        %v5152 = vsub.s32 %v5149, %v5151
        %v5153 = vrot.slane %v5139, %v5152
        %v5154 = vcombine.low %v5146, %v5153
        %v5155 = vcombine.low %v5035, %v5036
        %v5156 = vcombine.low %v5055, %v5056
        %v5158 = vunpack.c.l.s4 1966171168
        %v5159 = vunpack.c.0.s8 %v5158
        %v5160 = vlaneseq
        %v5161 = vshrl.u32 %v5160, 7
        %v5162 = vsub.s32 %v5159, %v5161
        %v5163 = vrot.slane %v5155, %v5162
        %v5165 = vunpack.c.l.s4 1966171168
        %v5166 = vunpack.c.0.s8 %v5165
        %v5167 = vlaneseq
        %v5168 = vshrl.u32 %v5167, 7
        %v5169 = vsub.s32 %v5166, %v5168
        %v5170 = vrot.slane %v5156, %v5169
        %v5171 = vcombine.low %v5163, %v5170
        %v5173 = vunpack.c.l.s4 1966171168
        %v5174 = vunpack.c.0.s8 %v5173
        %v5175 = vlaneseq
        %v5176 = vshrl.u32 %v5175, 7
        %v5177 = vsub.s32 %v5174, %v5176
        %v5178 = vrot.slane %v5171, %v5177
        %s5182 = scalar_lea.vmem [#allocation2], 5
        %5183 = vst [vmem:[%s5182] ss:$8 sm:$0xf] %v5105
        %5184 = vst [vmem:[%s5182] ss:$8 sm:$0xf0] %v5105
        %s5185 = scalar_lea.vmem [#allocation2], 69
        %5186 = vst [vmem:[%s5185] ss:$8 sm:$0xf] %v5154
        %5187 = vst [vmem:[%s5185] ss:$8 sm:$0xf0] %v5154
        %s5188 = scalar_lea.vmem [#allocation2], 133
        %5189 = vst.msk [vmem:[%s5188] ss:$8 sm:$0xf] %vm1552, %v5178
        %5190 = vst.msk [vmem:[%s5188] ss:$8 sm:$0x0] %vm1552, %v5178
        %s5191 = scalar_lea.vmem %s607, 192
        %v5192 = vld [vmem:[%s5191] sm:$0xff]
        %v5193 = vld [vmem:[%s5191 + $0x8] sm:$0xff]
        %v5194 = vld [vmem:[%s5191 + $0x10] sm:$0xff]
        %v5195 = vld [vmem:[%s5191 + $0x18] sm:$0xff]
        %v5200 = vrot.slane %v5192, 1
        %v5201 = vrot.slane %v5193, 1
        %v5202 = vsel %vm788, %v5200, %v5201
        %v5203 = vrot.slane %v5194, 1
        %v5204 = vsel %vm788, %v5201, %v5203
        %v5205 = vrot.slane %v5195, 1
        %v5206 = vsel %vm788, %v5203, %v5205
        %5207 = vrot.lane.b32.xlu0 %v5202, 32
        %v5208 = vpop.permute.xlu0 %5207
        %5209 = vrot.lane.b32.xlu0 %v5204, 32
        %v5210 = vpop.permute.xlu0 %5209
        %5211 = vrot.lane.b32.xlu0 %v5206, 32
        %v5212 = vpop.permute.xlu0 %5211
        %5213 = vrot.lane.b32.xlu0 %v5205, 32
        %v5214 = vpop.permute.xlu0 %5213
        %v5219 = vrot.slane %v5192, 2
        %v5220 = vrot.slane %v5193, 2
        %v5221 = vsel %vm808, %v5219, %v5220
        %v5222 = vrot.slane %v5194, 2
        %v5223 = vsel %vm808, %v5220, %v5222
        %v5224 = vrot.slane %v5195, 2
        %v5225 = vsel %vm808, %v5222, %v5224
        %5226 = vrot.lane.b32.xlu0 %v5221, 64
        %v5227 = vpop.permute.xlu0 %5226
        %5228 = vrot.lane.b32.xlu0 %v5223, 64
        %v5229 = vpop.permute.xlu0 %5228
        %5230 = vrot.lane.b32.xlu0 %v5225, 64
        %v5231 = vpop.permute.xlu0 %5230
        %5232 = vrot.lane.b32.xlu0 %v5224, 64
        %v5233 = vpop.permute.xlu0 %5232
        %v5238 = vrot.slane %v5192, 3
        %v5239 = vrot.slane %v5193, 3
        %v5240 = vsel %vm828, %v5238, %v5239
        %v5241 = vrot.slane %v5194, 3
        %v5242 = vsel %vm828, %v5239, %v5241
        %v5243 = vrot.slane %v5195, 3
        %v5244 = vsel %vm828, %v5241, %v5243
        %5245 = vrot.lane.b32.xlu0 %v5240, 96
        %v5246 = vpop.permute.xlu0 %5245
        %5247 = vrot.lane.b32.xlu0 %v5242, 96
        %v5248 = vpop.permute.xlu0 %5247
        %5249 = vrot.lane.b32.xlu0 %v5244, 96
        %v5250 = vpop.permute.xlu0 %5249
        %5251 = vrot.lane.b32.xlu0 %v5243, 96
        %v5252 = vpop.permute.xlu0 %5251
        %v5257 = vrot.slane %v5192, 4
        %v5258 = vrot.slane %v5193, 4
        %v5259 = vsel %vm848, %v5257, %v5258
        %v5260 = vrot.slane %v5194, 4
        %v5261 = vsel %vm848, %v5258, %v5260
        %v5262 = vrot.slane %v5195, 4
        %v5263 = vsel %vm848, %v5260, %v5262
        %v5264 = vsel %vm856, %v5192, %v5208
        %v5265 = vsel %vm856, %v5193, %v5210
        %v5266 = vsel %vm856, %v5194, %v5212
        %v5267 = vsel %vm856, %v5195, %v5214
        %v5268 = vsel %vm861, %v5264, %v5227
        %v5269 = vsel %vm861, %v5265, %v5229
        %v5270 = vsel %vm861, %v5266, %v5231
        %v5271 = vsel %vm861, %v5267, %v5233
        %v5272 = vsel %vm866, %v5268, %v5246
        %v5273 = vsel %vm866, %v5269, %v5248
        %v5274 = vsel %vm866, %v5270, %v5250
        %v5275 = vsel %vm866, %v5271, %v5252
        %v5276 = vsel %vm856, %v5259, 0
        %v5278 = vsel %vm856, %v5261, 0
        %v5280 = vsel %vm856, %v5263, 0
        %v5282 = vsel %vm856, %v5262, 0
        %5284 = vmatprep.subr.mxu0 %v640
        %5285 = vmatpush1.msra.mxu0 %v639
        %5286 = vmatprep.subr.mxu0 %v638
        %5287 = vmatpush1.msra.mxu0 %v637
        %5288 = vmatprep.subr.mxu0 %v636
        %5289 = vmatpush1.msra.mxu0 %v635
        %5290 = vmatprep.subr.mxu0 %v634
        %5291 = vmatpush1.msra.mxu0 %v633
        %5292 = vmatprep.subr.mxu0 %v632
        %5293 = vmatpush1.msra.mxu0 %v631
        %5294 = vmatprep.subr.mxu0 %v630
        %5295 = vmatpush1.msra.mxu0 %v629
        %5296 = vmatprep.subr.mxu0 %v628
        %5297 = vmatpush1.msra.mxu0 %v627
        %5298 = vmatprep.subr.mxu0 %v626
        %5299 = vmatpush1.msra.mxu0 %v625
        %5300 = vmatprep.subr.mxu0 %v624
        %5301 = vmatpush1.msra.mxu0 %v623
        %5302 = vmatprep.subr.mxu0 %v622
        %5303 = vmatpush1.msra.mxu0 %v621
        %5304 = vmatprep.subr.mxu0 %v620
        %5305 = vmatpush1.msra.mxu0 %v619
        %5306 = vmatprep.subr.mxu0 %v618
        %5307 = vmatpush1.msra.mxu0 %v617
        %5308 = vmatprep.subr.mxu0 %v616
        %5309 = vmatpush1.msra.mxu0 %v615
        %5310 = vmatprep.subr.mxu0 %v614
        %5311 = vmatpush1.msra.mxu0 %v613
        %5312 = vmatprep.subr.mxu0 %v612
        %5313 = vmatpush1.msra.mxu0 %v611
        %5314 = vmatprep.subr.mxu0 %v610
        %5315 = vmatpush1.msra.mxu0 %v609
        %5316 = vmatprep.subr.mxu0 0.0
        %5317 = vmatpush2.msra.mxu0 0.0
        %5318 = vmatprep.subr.mxu0 0.0
        %5319 = vmatpush2.msra.mxu0 0.0
        %5320 = vmatprep.subr.mxu0 0.0
        %5321 = vmatpush2.msra.mxu0 0.0
        %5322 = vmatprep.subr.mxu0 0.0
        %5323 = vmatpush2.msra.mxu0 0.0
        %5324 = vmatprep.subr.mxu0 0.0
        %5325 = vmatpush2.msra.mxu0 0.0
        %5326 = vmatprep.subr.mxu0 0.0
        %5327 = vmatpush2.msra.mxu0 0.0
        %5328 = vmatprep.subr.mxu0 0.0
        %5329 = vmatpush2.msra.mxu0 0.0
        %5330 = vmatprep.subr.mxu0 0.0
        %5331 = vmatpush2.msra.mxu0 0.0
        %5332 = vmatprep.subr.mxu0 0.0
        %5333 = vmatpush2.msra.mxu0 0.0
        %5334 = vmatprep.subr.mxu0 0.0
        %5335 = vmatpush2.msra.mxu0 0.0
        %5336 = vmatprep.subr.mxu0 0.0
        %5337 = vmatpush2.msra.mxu0 0.0
        %5338 = vmatprep.subr.mxu0 0.0
        %5339 = vmatpush2.msra.mxu0 0.0
        %5340 = vmatprep.subr.mxu0 %v648
        %5341 = vmatpush2.msra.mxu0 %v647
        %5342 = vmatprep.subr.mxu0 %v646
        %5343 = vmatpush2.msra.mxu0 %v645
        %5344 = vmatprep.subr.mxu0 %v644
        %5345 = vmatpush2.msra.mxu0 %v643
        %5346 = vmatprep.subr.mxu0 %v642
        %5347 = vmatpush2.msra.mxu0 %v641
        %5348 = vmatprep.mubr.f32.mxu0 %v5276
        %5349 = vmatmul.mubr.f32.gmra.mxu0 %v5272
        %v5350 = vpop.f32.mrf.mxu0
        %v5351 = vadd.f32 %v875, %v5350
        %v5352 = vpop.f32.mrf.mxu0
        %v5353 = vadd.f32 %v879, %v5352
        %5354 = vmatprep.mubr.f32.mxu0 %v5278
        %5355 = vmatmul.mubr.f32.gmra.mxu0 %v5273
        %v5356 = vpop.f32.mrf.mxu0
        %v5357 = vadd.f32 %v875, %v5356
        %v5358 = vpop.f32.mrf.mxu0
        %v5359 = vadd.f32 %v879, %v5358
        %5360 = vmatprep.mubr.f32.mxu0 %v5280
        %5361 = vmatmul.mubr.f32.gmra.mxu0 %v5274
        %v5362 = vpop.f32.mrf.mxu0
        %v5363 = vadd.f32 %v875, %v5362
        %v5364 = vpop.f32.mrf.mxu0
        %v5365 = vadd.f32 %v879, %v5364
        %5366 = vmatprep.mubr.f32.mxu0 %v5282
        %5367 = vmatmul.mubr.f32.gmra.mxu0 %v5275
        %v5368 = vpop.f32.mrf.mxu0
        %v5369 = vadd.f32 %v875, %v5368
        %v5370 = vpop.f32.mrf.mxu0
        %v5371 = vadd.f32 %v879, %v5370
        %5372 = vdwg.mxu0
        %v5373 = vmax.f32 %v5351, 0.0
        %v5374 = vmax.f32 %v5353, 0.0
        %v5375 = vmax.f32 %v5357, 0.0
        %v5376 = vmax.f32 %v5359, 0.0
        %v5377 = vmax.f32 %v5363, 0.0
        %v5378 = vmax.f32 %v5365, 0.0
        %v5379 = vmax.f32 %v5369, 0.0
        %v5380 = vmax.f32 %v5371, 0.0
        %v5382 = vsel %vm987, %v5374, 0
        %v5385 = vsel %vm987, %v5376, 0
        %v5388 = vsel %vm987, %v5378, 0
        %v5391 = vsel %vm987, %v5380, 0
        %5393 = vmatprep.subr.mxu0 0.0
        %5394 = vmatpush1.msra.mxu0 %v665
        %5395 = vmatprep.subr.mxu0 0.0
        %5396 = vmatpush1.msra.mxu0 %v664
        %5397 = vmatprep.subr.mxu0 0.0
        %5398 = vmatpush1.msra.mxu0 %v663
        %5399 = vmatprep.subr.mxu0 0.0
        %5400 = vmatpush1.msra.mxu0 %v662
        %5401 = vmatprep.subr.mxu0 0.0
        %5402 = vmatpush1.msra.mxu0 %v661
        %5403 = vmatprep.subr.mxu0 0.0
        %5404 = vmatpush1.msra.mxu0 %v660
        %5405 = vmatprep.subr.mxu0 0.0
        %5406 = vmatpush1.msra.mxu0 %v659
        %5407 = vmatprep.subr.mxu0 0.0
        %5408 = vmatpush1.msra.mxu0 %v658
        %5409 = vmatprep.subr.mxu0 0.0
        %5410 = vmatpush1.msra.mxu0 %v657
        %5411 = vmatprep.subr.mxu0 0.0
        %5412 = vmatpush1.msra.mxu0 %v656
        %5413 = vmatprep.subr.mxu0 0.0
        %5414 = vmatpush1.msra.mxu0 %v655
        %5415 = vmatprep.subr.mxu0 0.0
        %5416 = vmatpush1.msra.mxu0 %v654
        %5417 = vmatprep.subr.mxu0 0.0
        %5418 = vmatpush1.msra.mxu0 %v653
        %5419 = vmatprep.subr.mxu0 0.0
        %5420 = vmatpush1.msra.mxu0 %v652
        %5421 = vmatprep.subr.mxu0 0.0
        %5422 = vmatpush1.msra.mxu0 %v651
        %5423 = vmatprep.subr.mxu0 0.0
        %5424 = vmatpush1.msra.mxu0 %v650
        %5425 = vmatprep.subr.mxu0 0.0
        %5426 = vmatpush2.msra.mxu0 0.0
        %5427 = vmatprep.subr.mxu0 0.0
        %5428 = vmatpush2.msra.mxu0 0.0
        %5429 = vmatprep.subr.mxu0 0.0
        %5430 = vmatpush2.msra.mxu0 0.0
        %5431 = vmatprep.subr.mxu0 0.0
        %5432 = vmatpush2.msra.mxu0 0.0
        %5433 = vmatprep.subr.mxu0 0.0
        %5434 = vmatpush2.msra.mxu0 0.0
        %5435 = vmatprep.subr.mxu0 0.0
        %5436 = vmatpush2.msra.mxu0 0.0
        %5437 = vmatprep.subr.mxu0 0.0
        %5438 = vmatpush2.msra.mxu0 0.0
        %5439 = vmatprep.subr.mxu0 0.0
        %5440 = vmatpush2.msra.mxu0 0.0
        %5441 = vmatprep.subr.mxu0 0.0
        %5442 = vmatpush2.msra.mxu0 0.0
        %5443 = vmatprep.subr.mxu0 0.0
        %5444 = vmatpush2.msra.mxu0 0.0
        %5445 = vmatprep.subr.mxu0 0.0
        %5446 = vmatpush2.msra.mxu0 0.0
        %5447 = vmatprep.subr.mxu0 0.0
        %5448 = vmatpush2.msra.mxu0 %v670
        %5449 = vmatprep.subr.mxu0 0.0
        %5450 = vmatpush2.msra.mxu0 %v669
        %5451 = vmatprep.subr.mxu0 0.0
        %5452 = vmatpush2.msra.mxu0 %v668
        %5453 = vmatprep.subr.mxu0 0.0
        %5454 = vmatpush2.msra.mxu0 %v667
        %5455 = vmatprep.subr.mxu0 0.0
        %5456 = vmatpush2.msra.mxu0 %v666
        %5457 = vmatprep.mubr.f32.mxu0 %v5382
        %5458 = vmatmul.mubr.f32.gmra.mxu0 %v5373
        %v5459 = vpop.f32.mrf.mxu0
        %v5460 = vadd.f32 0.0, %v5459
        %v5461 = vpop.f32.mrf.mxu0
        %5462 = vmatprep.mubr.f32.mxu0 %v5385
        %5463 = vmatmul.mubr.f32.gmra.mxu0 %v5375
        %v5464 = vpop.f32.mrf.mxu0
        %v5465 = vadd.f32 0.0, %v5464
        %v5466 = vpop.f32.mrf.mxu0
        %5467 = vmatprep.mubr.f32.mxu0 %v5388
        %5468 = vmatmul.mubr.f32.gmra.mxu0 %v5377
        %v5469 = vpop.f32.mrf.mxu0
        %v5470 = vadd.f32 0.0, %v5469
        %v5471 = vpop.f32.mrf.mxu0
        %5472 = vmatprep.mubr.f32.mxu0 %v5391
        %5473 = vmatmul.mubr.f32.gmra.mxu0 %v5379
        %v5474 = vpop.f32.mrf.mxu0
        %v5475 = vadd.f32 0.0, %v5474
        %v5476 = vpop.f32.mrf.mxu0
        %5477 = vdwg.mxu0
        %v5479 = vsel %vm848, %v5475, 0
        %5481 = vmatprep.subr.mxu0 0.0
        %5482 = vmatpush1.msra.mxu0 0.0
        %5483 = vmatprep.subr.mxu0 0.0
        %5484 = vmatpush1.msra.mxu0 0.0
        %5485 = vmatprep.subr.mxu0 0.0
        %5486 = vmatpush1.msra.mxu0 0.0
        %5487 = vmatprep.subr.mxu0 0.0
        %5488 = vmatpush1.msra.mxu0 0.0
        %5489 = vmatprep.subr.mxu0 0.0
        %5490 = vmatpush1.msra.mxu0 0.0
        %5491 = vmatprep.subr.mxu0 0.0
        %5492 = vmatpush1.msra.mxu0 0.0
        %5493 = vmatprep.subr.mxu0 0.0
        %5494 = vmatpush1.msra.mxu0 0.0
        %5495 = vmatprep.subr.mxu0 0.0
        %5496 = vmatpush1.msra.mxu0 0.0
        %5497 = vmatprep.subr.mxu0 0.0
        %5498 = vmatpush1.msra.mxu0 0.0
        %5499 = vmatprep.subr.mxu0 0.0
        %5500 = vmatpush1.msra.mxu0 0.0
        %5501 = vmatprep.subr.mxu0 0.0
        %5502 = vmatpush1.msra.mxu0 0.0
        %5503 = vmatprep.subr.mxu0 0.0
        %5504 = vmatpush1.msra.mxu0 0.0
        %5505 = vmatprep.subr.mxu0 0.0
        %5506 = vmatpush1.msra.mxu0 %v5479
        %5507 = vmatprep.subr.mxu0 0.0
        %5508 = vmatpush1.msra.mxu0 %v5470
        %5509 = vmatprep.subr.mxu0 0.0
        %5510 = vmatpush1.msra.mxu0 %v5465
        %5511 = vmatprep.subr.mxu0 0.0
        %5512 = vmatpush1.msra.mxu0 %v5460
        %5513 = vmatprep.subr.mxu0 0.0
        %5514 = vmatpush2.msra.mxu0 0.0
        %5515 = vmatprep.subr.mxu0 0.0
        %5516 = vmatpush2.msra.mxu0 0.0
        %5517 = vmatprep.subr.mxu0 0.0
        %5518 = vmatpush2.msra.mxu0 0.0
        %5519 = vmatprep.subr.mxu0 0.0
        %5520 = vmatpush2.msra.mxu0 0.0
        %5521 = vmatprep.subr.mxu0 0.0
        %5522 = vmatpush2.msra.mxu0 0.0
        %5523 = vmatprep.subr.mxu0 0.0
        %5524 = vmatpush2.msra.mxu0 0.0
        %5525 = vmatprep.subr.mxu0 0.0
        %5526 = vmatpush2.msra.mxu0 0.0
        %5527 = vmatprep.subr.mxu0 0.0
        %5528 = vmatpush2.msra.mxu0 0.0
        %5529 = vmatprep.subr.mxu0 0.0
        %5530 = vmatpush2.msra.mxu0 0.0
        %5531 = vmatprep.subr.mxu0 0.0
        %5532 = vmatpush2.msra.mxu0 0.0
        %5533 = vmatprep.subr.mxu0 0.0
        %5534 = vmatpush2.msra.mxu0 0.0
        %5535 = vmatprep.subr.mxu0 0.0
        %5536 = vmatpush2.msra.mxu0 0.0
        %5537 = vmatprep.subr.mxu0 0.0
        %5538 = vmatpush2.msra.mxu0 0.0
        %5539 = vmatprep.subr.mxu0 0.0
        %5540 = vmatpush2.msra.mxu0 0.0
        %5541 = vmatprep.subr.mxu0 0.0
        %5542 = vmatpush2.msra.mxu0 0.0
        %5543 = vmatprep.subr.mxu0 0.0
        %5544 = vmatpush2.msra.mxu0 0.0
        %5545 = vmatprep.mubr.f32.mxu0 0.0
        %5546 = vmatmul.mubr.f32.gmra.mxu0 %v1087
        %v5547 = vpop.f32.mrf.mxu0
        %v5548 = vadd.f32 0.0, %v5547
        %v5549 = vpop.f32.mrf.mxu0
        %5550 = vmatprep.mubr.f32.mxu0 0.0
        %5551 = vmatmul.mubr.f32.gmra.mxu0 %v1090
        %v5552 = vpop.f32.mrf.mxu0
        %v5553 = vadd.f32 0.0, %v5552
        %v5554 = vpop.f32.mrf.mxu0
        %5555 = vdwg.mxu0
        %v5558 = vrot.slane %v5548, 1
        %v5559 = vrot.slane %v5553, 1
        %v5560 = vsel %vm788, %v5558, %v5559
        %5561 = vrot.lane.b32.xlu0 %v5560, 84
        %v5562 = vpop.permute.xlu0 %5561
        %5563 = vrot.lane.b32.xlu0 %v5559, 84
        %v5564 = vpop.permute.xlu0 %5563
        %v5567 = vrot.slane %v5548, 2
        %v5568 = vrot.slane %v5553, 2
        %v5569 = vsel %vm808, %v5567, %v5568
        %5570 = vrot.lane.b32.xlu0 %v5569, 40
        %v5571 = vpop.permute.xlu0 %5570
        %5572 = vrot.lane.b32.xlu0 %v5568, 40
        %v5573 = vpop.permute.xlu0 %5572
        %v5576 = vrot.slane %v5548, 3
        %v5577 = vrot.slane %v5553, 3
        %v5578 = vsel %vm828, %v5576, %v5577
        %5579 = vrot.lane.b32.xlu0 %v5578, 124
        %v5580 = vpop.permute.xlu0 %5579
        %5581 = vrot.lane.b32.xlu0 %v5577, 124
        %v5582 = vpop.permute.xlu0 %5581
        %v5585 = vrot.slane %v5548, 4
        %v5586 = vrot.slane %v5553, 4
        %v5587 = vsel %vm848, %v5585, %v5586
        %5588 = vrot.lane.b32.xlu0 %v5587, 80
        %v5589 = vpop.permute.xlu0 %5588
        %5590 = vrot.lane.b32.xlu0 %v5586, 80
        %v5591 = vpop.permute.xlu0 %5590
        %v5594 = vsel %vm1208, %v5548, %v5562
        %v5595 = vsel %vm1208, %v5553, %v5564
        %v5596 = vsel %vm987, %v5562, %v5571
        %v5597 = vsel %vm987, %v5564, %v5573
        %v5598 = vsel %vm1213, %v5596, %v5580
        %v5599 = vsel %vm1213, %v5597, %v5582
        %v5600 = vsel %vm1216, %v5580, %v5589
        %v5601 = vsel %vm1216, %v5582, %v5591
        %v5602 = vsel %vm1230, %v5589, 0
        %v5604 = vsel %vm1230, %v5591, 0
        %5606 = vmatprep.subr.mxu0 %v704
        %5607 = vmatpush1.msra.mxu0 %v703
        %5608 = vmatprep.subr.mxu0 %v702
        %5609 = vmatpush1.msra.mxu0 %v701
        %5610 = vmatprep.subr.mxu0 %v700
        %5611 = vmatpush1.msra.mxu0 %v699
        %5612 = vmatprep.subr.mxu0 %v698
        %5613 = vmatpush1.msra.mxu0 %v697
        %5614 = vmatprep.subr.mxu0 %v696
        %5615 = vmatpush1.msra.mxu0 %v695
        %5616 = vmatprep.subr.mxu0 %v694
        %5617 = vmatpush1.msra.mxu0 %v693
        %5618 = vmatprep.subr.mxu0 %v692
        %5619 = vmatpush1.msra.mxu0 %v691
        %5620 = vmatprep.subr.mxu0 %v690
        %5621 = vmatpush1.msra.mxu0 %v689
        %5622 = vmatprep.subr.mxu0 %v688
        %5623 = vmatpush1.msra.mxu0 %v687
        %5624 = vmatprep.subr.mxu0 %v686
        %5625 = vmatpush1.msra.mxu0 %v685
        %5626 = vmatprep.subr.mxu0 %v684
        %5627 = vmatpush1.msra.mxu0 %v683
        %5628 = vmatprep.subr.mxu0 %v682
        %5629 = vmatpush1.msra.mxu0 %v681
        %5630 = vmatprep.subr.mxu0 %v680
        %5631 = vmatpush1.msra.mxu0 %v679
        %5632 = vmatprep.subr.mxu0 %v678
        %5633 = vmatpush1.msra.mxu0 %v677
        %5634 = vmatprep.subr.mxu0 %v676
        %5635 = vmatpush1.msra.mxu0 %v675
        %5636 = vmatprep.subr.mxu0 %v674
        %5637 = vmatpush1.msra.mxu0 %v673
        %5638 = vmatprep.subr.mxu0 %v736
        %5639 = vmatpush2.msra.mxu0 %v735
        %5640 = vmatprep.subr.mxu0 %v734
        %5641 = vmatpush2.msra.mxu0 %v733
        %5642 = vmatprep.subr.mxu0 %v732
        %5643 = vmatpush2.msra.mxu0 %v731
        %5644 = vmatprep.subr.mxu0 %v730
        %5645 = vmatpush2.msra.mxu0 %v729
        %5646 = vmatprep.subr.mxu0 %v728
        %5647 = vmatpush2.msra.mxu0 %v727
        %5648 = vmatprep.subr.mxu0 %v726
        %5649 = vmatpush2.msra.mxu0 %v725
        %5650 = vmatprep.subr.mxu0 %v724
        %5651 = vmatpush2.msra.mxu0 %v723
        %5652 = vmatprep.subr.mxu0 %v722
        %5653 = vmatpush2.msra.mxu0 %v721
        %5654 = vmatprep.subr.mxu0 %v720
        %5655 = vmatpush2.msra.mxu0 %v719
        %5656 = vmatprep.subr.mxu0 %v718
        %5657 = vmatpush2.msra.mxu0 %v717
        %5658 = vmatprep.subr.mxu0 %v716
        %5659 = vmatpush2.msra.mxu0 %v715
        %5660 = vmatprep.subr.mxu0 %v714
        %5661 = vmatpush2.msra.mxu0 %v713
        %5662 = vmatprep.subr.mxu0 %v712
        %5663 = vmatpush2.msra.mxu0 %v711
        %5664 = vmatprep.subr.mxu0 %v710
        %5665 = vmatpush2.msra.mxu0 %v709
        %5666 = vmatprep.subr.mxu0 %v708
        %5667 = vmatpush2.msra.mxu0 %v707
        %5668 = vmatprep.subr.mxu0 %v706
        %5669 = vmatpush2.msra.mxu0 %v705
        %5670 = vmatprep.mubr.f32.mxu0 %v5598
        %5671 = vmatmul.mubr.f32.gmra.mxu0 %v5594
        %v5672 = vpop.f32.mrf.mxu0
        %v5673 = vadd.f32 %v1223, %v5672
        %v5674 = vpop.f32.mrf.mxu0
        %v5675 = vadd.f32 %v1227, %v5674
        %5676 = vmatprep.mubr.f32.mxu0 %v5599
        %5677 = vmatmul.mubr.f32.gmra.mxu0 %v5595
        %v5678 = vpop.f32.mrf.mxu0
        %v5679 = vadd.f32 %v1223, %v5678
        %v5680 = vpop.f32.mrf.mxu0
        %v5681 = vadd.f32 %v1227, %v5680
        %5682 = vdwg.mxu0
        %5683 = vmatprep.subr.mxu0 %v768
        %5684 = vmatpush1.msra.mxu0 %v767
        %5685 = vmatprep.subr.mxu0 %v766
        %5686 = vmatpush1.msra.mxu0 %v765
        %5687 = vmatprep.subr.mxu0 %v764
        %5688 = vmatpush1.msra.mxu0 %v763
        %5689 = vmatprep.subr.mxu0 %v762
        %5690 = vmatpush1.msra.mxu0 %v761
        %5691 = vmatprep.subr.mxu0 %v760
        %5692 = vmatpush1.msra.mxu0 %v759
        %5693 = vmatprep.subr.mxu0 %v758
        %5694 = vmatpush1.msra.mxu0 %v757
        %5695 = vmatprep.subr.mxu0 %v756
        %5696 = vmatpush1.msra.mxu0 %v755
        %5697 = vmatprep.subr.mxu0 %v754
        %5698 = vmatpush1.msra.mxu0 %v753
        %5699 = vmatprep.subr.mxu0 %v752
        %5700 = vmatpush1.msra.mxu0 %v751
        %5701 = vmatprep.subr.mxu0 %v750
        %5702 = vmatpush1.msra.mxu0 %v749
        %5703 = vmatprep.subr.mxu0 %v748
        %5704 = vmatpush1.msra.mxu0 %v747
        %5705 = vmatprep.subr.mxu0 %v746
        %5706 = vmatpush1.msra.mxu0 %v745
        %5707 = vmatprep.subr.mxu0 %v744
        %5708 = vmatpush1.msra.mxu0 %v743
        %5709 = vmatprep.subr.mxu0 %v742
        %5710 = vmatpush1.msra.mxu0 %v741
        %5711 = vmatprep.subr.mxu0 %v740
        %5712 = vmatpush1.msra.mxu0 %v739
        %5713 = vmatprep.subr.mxu0 %v738
        %5714 = vmatpush1.msra.mxu0 %v737
        %5715 = vmatprep.subr.mxu0 0.0
        %5716 = vmatpush2.msra.mxu0 0.0
        %5717 = vmatprep.subr.mxu0 0.0
        %5718 = vmatpush2.msra.mxu0 0.0
        %5719 = vmatprep.subr.mxu0 0.0
        %5720 = vmatpush2.msra.mxu0 0.0
        %5721 = vmatprep.subr.mxu0 0.0
        %5722 = vmatpush2.msra.mxu0 0.0
        %5723 = vmatprep.subr.mxu0 0.0
        %5724 = vmatpush2.msra.mxu0 0.0
        %5725 = vmatprep.subr.mxu0 0.0
        %5726 = vmatpush2.msra.mxu0 0.0
        %5727 = vmatprep.subr.mxu0 0.0
        %5728 = vmatpush2.msra.mxu0 0.0
        %5729 = vmatprep.subr.mxu0 0.0
        %5730 = vmatpush2.msra.mxu0 0.0
        %5731 = vmatprep.subr.mxu0 0.0
        %5732 = vmatpush2.msra.mxu0 0.0
        %5733 = vmatprep.subr.mxu0 0.0
        %5734 = vmatpush2.msra.mxu0 0.0
        %5735 = vmatprep.subr.mxu0 0.0
        %5736 = vmatpush2.msra.mxu0 0.0
        %5737 = vmatprep.subr.mxu0 %v1239
        %5738 = vmatpush2.msra.mxu0 %v1236
        %5739 = vmatprep.subr.mxu0 %v776
        %5740 = vmatpush2.msra.mxu0 %v775
        %5741 = vmatprep.subr.mxu0 %v774
        %5742 = vmatpush2.msra.mxu0 %v773
        %5743 = vmatprep.subr.mxu0 %v772
        %5744 = vmatpush2.msra.mxu0 %v771
        %5745 = vmatprep.subr.mxu0 %v770
        %5746 = vmatpush2.msra.mxu0 %v769
        %5747 = vmatprep.mubr.f32.mxu0 %v5602
        %5748 = vmatmul.mubr.f32.gmra.mxu0 %v5600
        %v5749 = vpop.f32.mrf.mxu0
        %v5750 = vadd.f32 %v5673, %v5749
        %v5751 = vpop.f32.mrf.mxu0
        %v5752 = vadd.f32 %v5675, %v5751
        %5753 = vmatprep.mubr.f32.mxu0 %v5604
        %5754 = vmatmul.mubr.f32.gmra.mxu0 %v5601
        %v5755 = vpop.f32.mrf.mxu0
        %v5756 = vadd.f32 %v5679, %v5755
        %v5757 = vpop.f32.mrf.mxu0
        %v5758 = vadd.f32 %v5681, %v5757
        %5759 = vdwg.mxu0
        %v5760 = vmax.f32 %v5750, 0.0
        %v5761 = vmax.f32 %v5752, 0.0
        %v5762 = vmax.f32 %v5756, 0.0
        %v5763 = vmax.f32 %v5758, 0.0
        %v5766 = vrot.slane %v5760, 1
        %v5767 = vrot.slane %v5761, 1
        %v5768 = vrot.slane %v5760, 2
        %v5769 = vrot.slane %v5761, 2
        %v5770 = vrot.slane %v5760, 3
        %v5771 = vrot.slane %v5761, 3
        %v5772 = vrot.slane %v5760, 4
        %v5773 = vrot.slane %v5761, 4
        %v5774 = vrot.slane %v5760, 5
        %v5775 = vrot.slane %v5761, 5
        %v5776 = vrot.slane %v5760, 6
        %v5777 = vrot.slane %v5761, 6
        %v5778 = vrot.slane %v5760, 7
        %v5779 = vrot.slane %v5761, 7
        %v5782 = vrot.slane %v5762, 1
        %v5783 = vrot.slane %v5763, 1
        %v5784 = vcombine.low %v5760, %v5761
        %v5785 = vcombine.low %v5766, %v5767
        %v5786 = vcombine.low %v5768, %v5769
        %v5787 = vcombine.low %v5770, %v5771
        %v5789 = vunpack.c.l.s4 1966171168
        %v5790 = vunpack.c.0.s8 %v5789
        %v5791 = vlaneseq
        %v5792 = vshrl.u32 %v5791, 7
        %v5793 = vsub.s32 %v5790, %v5792
        %v5794 = vrot.slane %v5784, %v5793
        %v5796 = vunpack.c.l.s4 1966171168
        %v5797 = vunpack.c.0.s8 %v5796
        %v5798 = vlaneseq
        %v5799 = vshrl.u32 %v5798, 7
        %v5800 = vsub.s32 %v5797, %v5799
        %v5801 = vrot.slane %v5785, %v5800
        %v5803 = vunpack.c.l.s4 1966171168
        %v5804 = vunpack.c.0.s8 %v5803
        %v5805 = vlaneseq
        %v5806 = vshrl.u32 %v5805, 7
        %v5807 = vsub.s32 %v5804, %v5806
        %v5808 = vrot.slane %v5786, %v5807
        %v5810 = vunpack.c.l.s4 1966171168
        %v5811 = vunpack.c.0.s8 %v5810
        %v5812 = vlaneseq
        %v5813 = vshrl.u32 %v5812, 7
        %v5814 = vsub.s32 %v5811, %v5813
        %v5815 = vrot.slane %v5787, %v5814
        %v5816 = vcombine.low %v5794, %v5801
        %v5817 = vcombine.low %v5808, %v5815
        %v5819 = vunpack.c.l.s4 1966171168
        %v5820 = vunpack.c.0.s8 %v5819
        %v5821 = vlaneseq
        %v5822 = vshrl.u32 %v5821, 7
        %v5823 = vsub.s32 %v5820, %v5822
        %v5824 = vrot.slane %v5816, %v5823
        %v5826 = vunpack.c.l.s4 1966171168
        %v5827 = vunpack.c.0.s8 %v5826
        %v5828 = vlaneseq
        %v5829 = vshrl.u32 %v5828, 7
        %v5830 = vsub.s32 %v5827, %v5829
        %v5831 = vrot.slane %v5817, %v5830
        %v5832 = vcombine.low %v5824, %v5831
        %v5833 = vcombine.low %v5772, %v5773
        %v5834 = vcombine.low %v5774, %v5775
        %v5835 = vcombine.low %v5776, %v5777
        %v5836 = vcombine.low %v5778, %v5779
        %v5838 = vunpack.c.l.s4 1966171168
        %v5839 = vunpack.c.0.s8 %v5838
        %v5840 = vlaneseq
        %v5841 = vshrl.u32 %v5840, 7
        %v5842 = vsub.s32 %v5839, %v5841
        %v5843 = vrot.slane %v5833, %v5842
        %v5845 = vunpack.c.l.s4 1966171168
        %v5846 = vunpack.c.0.s8 %v5845
        %v5847 = vlaneseq
        %v5848 = vshrl.u32 %v5847, 7
        %v5849 = vsub.s32 %v5846, %v5848
        %v5850 = vrot.slane %v5834, %v5849
        %v5852 = vunpack.c.l.s4 1966171168
        %v5853 = vunpack.c.0.s8 %v5852
        %v5854 = vlaneseq
        %v5855 = vshrl.u32 %v5854, 7
        %v5856 = vsub.s32 %v5853, %v5855
        %v5857 = vrot.slane %v5835, %v5856
        %v5859 = vunpack.c.l.s4 1966171168
        %v5860 = vunpack.c.0.s8 %v5859
        %v5861 = vlaneseq
        %v5862 = vshrl.u32 %v5861, 7
        %v5863 = vsub.s32 %v5860, %v5862
        %v5864 = vrot.slane %v5836, %v5863
        %v5865 = vcombine.low %v5843, %v5850
        %v5866 = vcombine.low %v5857, %v5864
        %v5868 = vunpack.c.l.s4 1966171168
        %v5869 = vunpack.c.0.s8 %v5868
        %v5870 = vlaneseq
        %v5871 = vshrl.u32 %v5870, 7
        %v5872 = vsub.s32 %v5869, %v5871
        %v5873 = vrot.slane %v5865, %v5872
        %v5875 = vunpack.c.l.s4 1966171168
        %v5876 = vunpack.c.0.s8 %v5875
        %v5877 = vlaneseq
        %v5878 = vshrl.u32 %v5877, 7
        %v5879 = vsub.s32 %v5876, %v5878
        %v5880 = vrot.slane %v5866, %v5879
        %v5881 = vcombine.low %v5873, %v5880
        %v5882 = vcombine.low %v5762, %v5763
        %v5883 = vcombine.low %v5782, %v5783
        %v5885 = vunpack.c.l.s4 1966171168
        %v5886 = vunpack.c.0.s8 %v5885
        %v5887 = vlaneseq
        %v5888 = vshrl.u32 %v5887, 7
        %v5889 = vsub.s32 %v5886, %v5888
        %v5890 = vrot.slane %v5882, %v5889
        %v5892 = vunpack.c.l.s4 1966171168
        %v5893 = vunpack.c.0.s8 %v5892
        %v5894 = vlaneseq
        %v5895 = vshrl.u32 %v5894, 7
        %v5896 = vsub.s32 %v5893, %v5895
        %v5897 = vrot.slane %v5883, %v5896
        %v5898 = vcombine.low %v5890, %v5897
        %v5900 = vunpack.c.l.s4 1966171168
        %v5901 = vunpack.c.0.s8 %v5900
        %v5902 = vlaneseq
        %v5903 = vshrl.u32 %v5902, 7
        %v5904 = vsub.s32 %v5901, %v5903
        %v5905 = vrot.slane %v5898, %v5904
        %s5909 = scalar_lea.vmem [#allocation2], 6
        %5910 = vst [vmem:[%s5909] ss:$8 sm:$0xf] %v5832
        %5911 = vst [vmem:[%s5909] ss:$8 sm:$0xf0] %v5832
        %s5912 = scalar_lea.vmem [#allocation2], 70
        %5913 = vst [vmem:[%s5912] ss:$8 sm:$0xf] %v5881
        %5914 = vst [vmem:[%s5912] ss:$8 sm:$0xf0] %v5881
        %s5915 = scalar_lea.vmem [#allocation2], 134
        %5916 = vst.msk [vmem:[%s5915] ss:$8 sm:$0xf] %vm1552, %v5905
        %5917 = vst.msk [vmem:[%s5915] ss:$8 sm:$0x0] %vm1552, %v5905
        %s5918 = scalar_lea.vmem %s607, 224
        %v5919 = vld [vmem:[%s5918] sm:$0xff]
        %v5920 = vld [vmem:[%s5918 + $0x8] sm:$0xff]
        %v5921 = vld [vmem:[%s5918 + $0x10] sm:$0xff]
        %v5922 = vld [vmem:[%s5918 + $0x18] sm:$0xff]
        %v5927 = vrot.slane %v5919, 1
        %v5928 = vrot.slane %v5920, 1
        %v5929 = vsel %vm788, %v5927, %v5928
        %v5930 = vrot.slane %v5921, 1
        %v5931 = vsel %vm788, %v5928, %v5930
        %v5932 = vrot.slane %v5922, 1
        %v5933 = vsel %vm788, %v5930, %v5932
        %5934 = vrot.lane.b32.xlu0 %v5929, 32
        %v5935 = vpop.permute.xlu0 %5934
        %5936 = vrot.lane.b32.xlu0 %v5931, 32
        %v5937 = vpop.permute.xlu0 %5936
        %5938 = vrot.lane.b32.xlu0 %v5933, 32
        %v5939 = vpop.permute.xlu0 %5938
        %5940 = vrot.lane.b32.xlu0 %v5932, 32
        %v5941 = vpop.permute.xlu0 %5940
        %v5946 = vrot.slane %v5919, 2
        %v5947 = vrot.slane %v5920, 2
        %v5948 = vsel %vm808, %v5946, %v5947
        %v5949 = vrot.slane %v5921, 2
        %v5950 = vsel %vm808, %v5947, %v5949
        %v5951 = vrot.slane %v5922, 2
        %v5952 = vsel %vm808, %v5949, %v5951
        %5953 = vrot.lane.b32.xlu0 %v5948, 64
        %v5954 = vpop.permute.xlu0 %5953
        %5955 = vrot.lane.b32.xlu0 %v5950, 64
        %v5956 = vpop.permute.xlu0 %5955
        %5957 = vrot.lane.b32.xlu0 %v5952, 64
        %v5958 = vpop.permute.xlu0 %5957
        %5959 = vrot.lane.b32.xlu0 %v5951, 64
        %v5960 = vpop.permute.xlu0 %5959
        %v5965 = vrot.slane %v5919, 3
        %v5966 = vrot.slane %v5920, 3
        %v5967 = vsel %vm828, %v5965, %v5966
        %v5968 = vrot.slane %v5921, 3
        %v5969 = vsel %vm828, %v5966, %v5968
        %v5970 = vrot.slane %v5922, 3
        %v5971 = vsel %vm828, %v5968, %v5970
        %5972 = vrot.lane.b32.xlu0 %v5967, 96
        %v5973 = vpop.permute.xlu0 %5972
        %5974 = vrot.lane.b32.xlu0 %v5969, 96
        %v5975 = vpop.permute.xlu0 %5974
        %5976 = vrot.lane.b32.xlu0 %v5971, 96
        %v5977 = vpop.permute.xlu0 %5976
        %5978 = vrot.lane.b32.xlu0 %v5970, 96
        %v5979 = vpop.permute.xlu0 %5978
        %v5984 = vrot.slane %v5919, 4
        %v5985 = vrot.slane %v5920, 4
        %v5986 = vsel %vm848, %v5984, %v5985
        %v5987 = vrot.slane %v5921, 4
        %v5988 = vsel %vm848, %v5985, %v5987
        %v5989 = vrot.slane %v5922, 4
        %v5990 = vsel %vm848, %v5987, %v5989
        %v5991 = vsel %vm856, %v5919, %v5935
        %v5992 = vsel %vm856, %v5920, %v5937
        %v5993 = vsel %vm856, %v5921, %v5939
        %v5994 = vsel %vm856, %v5922, %v5941
        %v5995 = vsel %vm861, %v5991, %v5954
        %v5996 = vsel %vm861, %v5992, %v5956
        %v5997 = vsel %vm861, %v5993, %v5958
        %v5998 = vsel %vm861, %v5994, %v5960
        %v5999 = vsel %vm866, %v5995, %v5973
        %v6000 = vsel %vm866, %v5996, %v5975
        %v6001 = vsel %vm866, %v5997, %v5977
        %v6002 = vsel %vm866, %v5998, %v5979
        %v6003 = vsel %vm856, %v5986, 0
        %v6005 = vsel %vm856, %v5988, 0
        %v6007 = vsel %vm856, %v5990, 0
        %v6009 = vsel %vm856, %v5989, 0
        %6011 = vmatprep.subr.mxu0 %v640
        %6012 = vmatpush1.msra.mxu0 %v639
        %6013 = vmatprep.subr.mxu0 %v638
        %6014 = vmatpush1.msra.mxu0 %v637
        %6015 = vmatprep.subr.mxu0 %v636
        %6016 = vmatpush1.msra.mxu0 %v635
        %6017 = vmatprep.subr.mxu0 %v634
        %6018 = vmatpush1.msra.mxu0 %v633
        %6019 = vmatprep.subr.mxu0 %v632
        %6020 = vmatpush1.msra.mxu0 %v631
        %6021 = vmatprep.subr.mxu0 %v630
        %6022 = vmatpush1.msra.mxu0 %v629
        %6023 = vmatprep.subr.mxu0 %v628
        %6024 = vmatpush1.msra.mxu0 %v627
        %6025 = vmatprep.subr.mxu0 %v626
        %6026 = vmatpush1.msra.mxu0 %v625
        %6027 = vmatprep.subr.mxu0 %v624
        %6028 = vmatpush1.msra.mxu0 %v623
        %6029 = vmatprep.subr.mxu0 %v622
        %6030 = vmatpush1.msra.mxu0 %v621
        %6031 = vmatprep.subr.mxu0 %v620
        %6032 = vmatpush1.msra.mxu0 %v619
        %6033 = vmatprep.subr.mxu0 %v618
        %6034 = vmatpush1.msra.mxu0 %v617
        %6035 = vmatprep.subr.mxu0 %v616
        %6036 = vmatpush1.msra.mxu0 %v615
        %6037 = vmatprep.subr.mxu0 %v614
        %6038 = vmatpush1.msra.mxu0 %v613
        %6039 = vmatprep.subr.mxu0 %v612
        %6040 = vmatpush1.msra.mxu0 %v611
        %6041 = vmatprep.subr.mxu0 %v610
        %6042 = vmatpush1.msra.mxu0 %v609
        %6043 = vmatprep.subr.mxu0 0.0
        %6044 = vmatpush2.msra.mxu0 0.0
        %6045 = vmatprep.subr.mxu0 0.0
        %6046 = vmatpush2.msra.mxu0 0.0
        %6047 = vmatprep.subr.mxu0 0.0
        %6048 = vmatpush2.msra.mxu0 0.0
        %6049 = vmatprep.subr.mxu0 0.0
        %6050 = vmatpush2.msra.mxu0 0.0
        %6051 = vmatprep.subr.mxu0 0.0
        %6052 = vmatpush2.msra.mxu0 0.0
        %6053 = vmatprep.subr.mxu0 0.0
        %6054 = vmatpush2.msra.mxu0 0.0
        %6055 = vmatprep.subr.mxu0 0.0
        %6056 = vmatpush2.msra.mxu0 0.0
        %6057 = vmatprep.subr.mxu0 0.0
        %6058 = vmatpush2.msra.mxu0 0.0
        %6059 = vmatprep.subr.mxu0 0.0
        %6060 = vmatpush2.msra.mxu0 0.0
        %6061 = vmatprep.subr.mxu0 0.0
        %6062 = vmatpush2.msra.mxu0 0.0
        %6063 = vmatprep.subr.mxu0 0.0
        %6064 = vmatpush2.msra.mxu0 0.0
        %6065 = vmatprep.subr.mxu0 0.0
        %6066 = vmatpush2.msra.mxu0 0.0
        %6067 = vmatprep.subr.mxu0 %v648
        %6068 = vmatpush2.msra.mxu0 %v647
        %6069 = vmatprep.subr.mxu0 %v646
        %6070 = vmatpush2.msra.mxu0 %v645
        %6071 = vmatprep.subr.mxu0 %v644
        %6072 = vmatpush2.msra.mxu0 %v643
        %6073 = vmatprep.subr.mxu0 %v642
        %6074 = vmatpush2.msra.mxu0 %v641
        %6075 = vmatprep.mubr.f32.mxu0 %v6003
        %6076 = vmatmul.mubr.f32.gmra.mxu0 %v5999
        %v6077 = vpop.f32.mrf.mxu0
        %v6078 = vadd.f32 %v875, %v6077
        %v6079 = vpop.f32.mrf.mxu0
        %v6080 = vadd.f32 %v879, %v6079
        %6081 = vmatprep.mubr.f32.mxu0 %v6005
        %6082 = vmatmul.mubr.f32.gmra.mxu0 %v6000
        %v6083 = vpop.f32.mrf.mxu0
        %v6084 = vadd.f32 %v875, %v6083
        %v6085 = vpop.f32.mrf.mxu0
        %v6086 = vadd.f32 %v879, %v6085
        %6087 = vmatprep.mubr.f32.mxu0 %v6007
        %6088 = vmatmul.mubr.f32.gmra.mxu0 %v6001
        %v6089 = vpop.f32.mrf.mxu0
        %v6090 = vadd.f32 %v875, %v6089
        %v6091 = vpop.f32.mrf.mxu0
        %v6092 = vadd.f32 %v879, %v6091
        %6093 = vmatprep.mubr.f32.mxu0 %v6009
        %6094 = vmatmul.mubr.f32.gmra.mxu0 %v6002
        %v6095 = vpop.f32.mrf.mxu0
        %v6096 = vadd.f32 %v875, %v6095
        %v6097 = vpop.f32.mrf.mxu0
        %v6098 = vadd.f32 %v879, %v6097
        %6099 = vdwg.mxu0
        %v6100 = vmax.f32 %v6078, 0.0
        %v6101 = vmax.f32 %v6080, 0.0
        %v6102 = vmax.f32 %v6084, 0.0
        %v6103 = vmax.f32 %v6086, 0.0
        %v6104 = vmax.f32 %v6090, 0.0
        %v6105 = vmax.f32 %v6092, 0.0
        %v6106 = vmax.f32 %v6096, 0.0
        %v6107 = vmax.f32 %v6098, 0.0
        %v6109 = vsel %vm987, %v6101, 0
        %v6112 = vsel %vm987, %v6103, 0
        %v6115 = vsel %vm987, %v6105, 0
        %v6118 = vsel %vm987, %v6107, 0
        %6120 = vmatprep.subr.mxu0 0.0
        %6121 = vmatpush1.msra.mxu0 %v665
        %6122 = vmatprep.subr.mxu0 0.0
        %6123 = vmatpush1.msra.mxu0 %v664
        %6124 = vmatprep.subr.mxu0 0.0
        %6125 = vmatpush1.msra.mxu0 %v663
        %6126 = vmatprep.subr.mxu0 0.0
        %6127 = vmatpush1.msra.mxu0 %v662
        %6128 = vmatprep.subr.mxu0 0.0
        %6129 = vmatpush1.msra.mxu0 %v661
        %6130 = vmatprep.subr.mxu0 0.0
        %6131 = vmatpush1.msra.mxu0 %v660
        %6132 = vmatprep.subr.mxu0 0.0
        %6133 = vmatpush1.msra.mxu0 %v659
        %6134 = vmatprep.subr.mxu0 0.0
        %6135 = vmatpush1.msra.mxu0 %v658
        %6136 = vmatprep.subr.mxu0 0.0
        %6137 = vmatpush1.msra.mxu0 %v657
        %6138 = vmatprep.subr.mxu0 0.0
        %6139 = vmatpush1.msra.mxu0 %v656
        %6140 = vmatprep.subr.mxu0 0.0
        %6141 = vmatpush1.msra.mxu0 %v655
        %6142 = vmatprep.subr.mxu0 0.0
        %6143 = vmatpush1.msra.mxu0 %v654
        %6144 = vmatprep.subr.mxu0 0.0
        %6145 = vmatpush1.msra.mxu0 %v653
        %6146 = vmatprep.subr.mxu0 0.0
        %6147 = vmatpush1.msra.mxu0 %v652
        %6148 = vmatprep.subr.mxu0 0.0
        %6149 = vmatpush1.msra.mxu0 %v651
        %6150 = vmatprep.subr.mxu0 0.0
        %6151 = vmatpush1.msra.mxu0 %v650
        %6152 = vmatprep.subr.mxu0 0.0
        %6153 = vmatpush2.msra.mxu0 0.0
        %6154 = vmatprep.subr.mxu0 0.0
        %6155 = vmatpush2.msra.mxu0 0.0
        %6156 = vmatprep.subr.mxu0 0.0
        %6157 = vmatpush2.msra.mxu0 0.0
        %6158 = vmatprep.subr.mxu0 0.0
        %6159 = vmatpush2.msra.mxu0 0.0
        %6160 = vmatprep.subr.mxu0 0.0
        %6161 = vmatpush2.msra.mxu0 0.0
        %6162 = vmatprep.subr.mxu0 0.0
        %6163 = vmatpush2.msra.mxu0 0.0
        %6164 = vmatprep.subr.mxu0 0.0
        %6165 = vmatpush2.msra.mxu0 0.0
        %6166 = vmatprep.subr.mxu0 0.0
        %6167 = vmatpush2.msra.mxu0 0.0
        %6168 = vmatprep.subr.mxu0 0.0
        %6169 = vmatpush2.msra.mxu0 0.0
        %6170 = vmatprep.subr.mxu0 0.0
        %6171 = vmatpush2.msra.mxu0 0.0
        %6172 = vmatprep.subr.mxu0 0.0
        %6173 = vmatpush2.msra.mxu0 0.0
        %6174 = vmatprep.subr.mxu0 0.0
        %6175 = vmatpush2.msra.mxu0 %v670
        %6176 = vmatprep.subr.mxu0 0.0
        %6177 = vmatpush2.msra.mxu0 %v669
        %6178 = vmatprep.subr.mxu0 0.0
        %6179 = vmatpush2.msra.mxu0 %v668
        %6180 = vmatprep.subr.mxu0 0.0
        %6181 = vmatpush2.msra.mxu0 %v667
        %6182 = vmatprep.subr.mxu0 0.0
        %6183 = vmatpush2.msra.mxu0 %v666
        %6184 = vmatprep.mubr.f32.mxu0 %v6109
        %6185 = vmatmul.mubr.f32.gmra.mxu0 %v6100
        %v6186 = vpop.f32.mrf.mxu0
        %v6187 = vadd.f32 0.0, %v6186
        %v6188 = vpop.f32.mrf.mxu0
        %6189 = vmatprep.mubr.f32.mxu0 %v6112
        %6190 = vmatmul.mubr.f32.gmra.mxu0 %v6102
        %v6191 = vpop.f32.mrf.mxu0
        %v6192 = vadd.f32 0.0, %v6191
        %v6193 = vpop.f32.mrf.mxu0
        %6194 = vmatprep.mubr.f32.mxu0 %v6115
        %6195 = vmatmul.mubr.f32.gmra.mxu0 %v6104
        %v6196 = vpop.f32.mrf.mxu0
        %v6197 = vadd.f32 0.0, %v6196
        %v6198 = vpop.f32.mrf.mxu0
        %6199 = vmatprep.mubr.f32.mxu0 %v6118
        %6200 = vmatmul.mubr.f32.gmra.mxu0 %v6106
        %v6201 = vpop.f32.mrf.mxu0
        %v6202 = vadd.f32 0.0, %v6201
        %v6203 = vpop.f32.mrf.mxu0
        %6204 = vdwg.mxu0
        %v6206 = vsel %vm848, %v6202, 0
        %6208 = vmatprep.subr.mxu0 0.0
        %6209 = vmatpush1.msra.mxu0 0.0
        %6210 = vmatprep.subr.mxu0 0.0
        %6211 = vmatpush1.msra.mxu0 0.0
        %6212 = vmatprep.subr.mxu0 0.0
        %6213 = vmatpush1.msra.mxu0 0.0
        %6214 = vmatprep.subr.mxu0 0.0
        %6215 = vmatpush1.msra.mxu0 0.0
        %6216 = vmatprep.subr.mxu0 0.0
        %6217 = vmatpush1.msra.mxu0 0.0
        %6218 = vmatprep.subr.mxu0 0.0
        %6219 = vmatpush1.msra.mxu0 0.0
        %6220 = vmatprep.subr.mxu0 0.0
        %6221 = vmatpush1.msra.mxu0 0.0
        %6222 = vmatprep.subr.mxu0 0.0
        %6223 = vmatpush1.msra.mxu0 0.0
        %6224 = vmatprep.subr.mxu0 0.0
        %6225 = vmatpush1.msra.mxu0 0.0
        %6226 = vmatprep.subr.mxu0 0.0
        %6227 = vmatpush1.msra.mxu0 0.0
        %6228 = vmatprep.subr.mxu0 0.0
        %6229 = vmatpush1.msra.mxu0 0.0
        %6230 = vmatprep.subr.mxu0 0.0
        %6231 = vmatpush1.msra.mxu0 0.0
        %6232 = vmatprep.subr.mxu0 0.0
        %6233 = vmatpush1.msra.mxu0 %v6206
        %6234 = vmatprep.subr.mxu0 0.0
        %6235 = vmatpush1.msra.mxu0 %v6197
        %6236 = vmatprep.subr.mxu0 0.0
        %6237 = vmatpush1.msra.mxu0 %v6192
        %6238 = vmatprep.subr.mxu0 0.0
        %6239 = vmatpush1.msra.mxu0 %v6187
        %6240 = vmatprep.subr.mxu0 0.0
        %6241 = vmatpush2.msra.mxu0 0.0
        %6242 = vmatprep.subr.mxu0 0.0
        %6243 = vmatpush2.msra.mxu0 0.0
        %6244 = vmatprep.subr.mxu0 0.0
        %6245 = vmatpush2.msra.mxu0 0.0
        %6246 = vmatprep.subr.mxu0 0.0
        %6247 = vmatpush2.msra.mxu0 0.0
        %6248 = vmatprep.subr.mxu0 0.0
        %6249 = vmatpush2.msra.mxu0 0.0
        %6250 = vmatprep.subr.mxu0 0.0
        %6251 = vmatpush2.msra.mxu0 0.0
        %6252 = vmatprep.subr.mxu0 0.0
        %6253 = vmatpush2.msra.mxu0 0.0
        %6254 = vmatprep.subr.mxu0 0.0
        %6255 = vmatpush2.msra.mxu0 0.0
        %6256 = vmatprep.subr.mxu0 0.0
        %6257 = vmatpush2.msra.mxu0 0.0
        %6258 = vmatprep.subr.mxu0 0.0
        %6259 = vmatpush2.msra.mxu0 0.0
        %6260 = vmatprep.subr.mxu0 0.0
        %6261 = vmatpush2.msra.mxu0 0.0
        %6262 = vmatprep.subr.mxu0 0.0
        %6263 = vmatpush2.msra.mxu0 0.0
        %6264 = vmatprep.subr.mxu0 0.0
        %6265 = vmatpush2.msra.mxu0 0.0
        %6266 = vmatprep.subr.mxu0 0.0
        %6267 = vmatpush2.msra.mxu0 0.0
        %6268 = vmatprep.subr.mxu0 0.0
        %6269 = vmatpush2.msra.mxu0 0.0
        %6270 = vmatprep.subr.mxu0 0.0
        %6271 = vmatpush2.msra.mxu0 0.0
        %6272 = vmatprep.mubr.f32.mxu0 0.0
        %6273 = vmatmul.mubr.f32.gmra.mxu0 %v1087
        %v6274 = vpop.f32.mrf.mxu0
        %v6275 = vadd.f32 0.0, %v6274
        %v6276 = vpop.f32.mrf.mxu0
        %6277 = vmatprep.mubr.f32.mxu0 0.0
        %6278 = vmatmul.mubr.f32.gmra.mxu0 %v1090
        %v6279 = vpop.f32.mrf.mxu0
        %v6280 = vadd.f32 0.0, %v6279
        %v6281 = vpop.f32.mrf.mxu0
        %6282 = vdwg.mxu0
        %v6285 = vrot.slane %v6275, 1
        %v6286 = vrot.slane %v6280, 1
        %v6287 = vsel %vm788, %v6285, %v6286
        %6288 = vrot.lane.b32.xlu0 %v6287, 84
        %v6289 = vpop.permute.xlu0 %6288
        %6290 = vrot.lane.b32.xlu0 %v6286, 84
        %v6291 = vpop.permute.xlu0 %6290
        %v6294 = vrot.slane %v6275, 2
        %v6295 = vrot.slane %v6280, 2
        %v6296 = vsel %vm808, %v6294, %v6295
        %6297 = vrot.lane.b32.xlu0 %v6296, 40
        %v6298 = vpop.permute.xlu0 %6297
        %6299 = vrot.lane.b32.xlu0 %v6295, 40
        %v6300 = vpop.permute.xlu0 %6299
        %v6303 = vrot.slane %v6275, 3
        %v6304 = vrot.slane %v6280, 3
        %v6305 = vsel %vm828, %v6303, %v6304
        %6306 = vrot.lane.b32.xlu0 %v6305, 124
        %v6307 = vpop.permute.xlu0 %6306
        %6308 = vrot.lane.b32.xlu0 %v6304, 124
        %v6309 = vpop.permute.xlu0 %6308
        %v6312 = vrot.slane %v6275, 4
        %v6313 = vrot.slane %v6280, 4
        %v6314 = vsel %vm848, %v6312, %v6313
        %6315 = vrot.lane.b32.xlu0 %v6314, 80
        %v6316 = vpop.permute.xlu0 %6315
        %6317 = vrot.lane.b32.xlu0 %v6313, 80
        %v6318 = vpop.permute.xlu0 %6317
        %v6321 = vsel %vm1208, %v6275, %v6289
        %v6322 = vsel %vm1208, %v6280, %v6291
        %v6323 = vsel %vm987, %v6289, %v6298
        %v6324 = vsel %vm987, %v6291, %v6300
        %v6325 = vsel %vm1213, %v6323, %v6307
        %v6326 = vsel %vm1213, %v6324, %v6309
        %v6327 = vsel %vm1216, %v6307, %v6316
        %v6328 = vsel %vm1216, %v6309, %v6318
        %v6329 = vsel %vm1230, %v6316, 0
        %v6331 = vsel %vm1230, %v6318, 0
        %6333 = vmatprep.subr.mxu0 %v704
        %6334 = vmatpush1.msra.mxu0 %v703
        %6335 = vmatprep.subr.mxu0 %v702
        %6336 = vmatpush1.msra.mxu0 %v701
        %6337 = vmatprep.subr.mxu0 %v700
        %6338 = vmatpush1.msra.mxu0 %v699
        %6339 = vmatprep.subr.mxu0 %v698
        %6340 = vmatpush1.msra.mxu0 %v697
        %6341 = vmatprep.subr.mxu0 %v696
        %6342 = vmatpush1.msra.mxu0 %v695
        %6343 = vmatprep.subr.mxu0 %v694
        %6344 = vmatpush1.msra.mxu0 %v693
        %6345 = vmatprep.subr.mxu0 %v692
        %6346 = vmatpush1.msra.mxu0 %v691
        %6347 = vmatprep.subr.mxu0 %v690
        %6348 = vmatpush1.msra.mxu0 %v689
        %6349 = vmatprep.subr.mxu0 %v688
        %6350 = vmatpush1.msra.mxu0 %v687
        %6351 = vmatprep.subr.mxu0 %v686
        %6352 = vmatpush1.msra.mxu0 %v685
        %6353 = vmatprep.subr.mxu0 %v684
        %6354 = vmatpush1.msra.mxu0 %v683
        %6355 = vmatprep.subr.mxu0 %v682
        %6356 = vmatpush1.msra.mxu0 %v681
        %6357 = vmatprep.subr.mxu0 %v680
        %6358 = vmatpush1.msra.mxu0 %v679
        %6359 = vmatprep.subr.mxu0 %v678
        %6360 = vmatpush1.msra.mxu0 %v677
        %6361 = vmatprep.subr.mxu0 %v676
        %6362 = vmatpush1.msra.mxu0 %v675
        %6363 = vmatprep.subr.mxu0 %v674
        %6364 = vmatpush1.msra.mxu0 %v673
        %6365 = vmatprep.subr.mxu0 %v736
        %6366 = vmatpush2.msra.mxu0 %v735
        %6367 = vmatprep.subr.mxu0 %v734
        %6368 = vmatpush2.msra.mxu0 %v733
        %6369 = vmatprep.subr.mxu0 %v732
        %6370 = vmatpush2.msra.mxu0 %v731
        %6371 = vmatprep.subr.mxu0 %v730
        %6372 = vmatpush2.msra.mxu0 %v729
        %6373 = vmatprep.subr.mxu0 %v728
        %6374 = vmatpush2.msra.mxu0 %v727
        %6375 = vmatprep.subr.mxu0 %v726
        %6376 = vmatpush2.msra.mxu0 %v725
        %6377 = vmatprep.subr.mxu0 %v724
        %6378 = vmatpush2.msra.mxu0 %v723
        %6379 = vmatprep.subr.mxu0 %v722
        %6380 = vmatpush2.msra.mxu0 %v721
        %6381 = vmatprep.subr.mxu0 %v720
        %6382 = vmatpush2.msra.mxu0 %v719
        %6383 = vmatprep.subr.mxu0 %v718
        %6384 = vmatpush2.msra.mxu0 %v717
        %6385 = vmatprep.subr.mxu0 %v716
        %6386 = vmatpush2.msra.mxu0 %v715
        %6387 = vmatprep.subr.mxu0 %v714
        %6388 = vmatpush2.msra.mxu0 %v713
        %6389 = vmatprep.subr.mxu0 %v712
        %6390 = vmatpush2.msra.mxu0 %v711
        %6391 = vmatprep.subr.mxu0 %v710
        %6392 = vmatpush2.msra.mxu0 %v709
        %6393 = vmatprep.subr.mxu0 %v708
        %6394 = vmatpush2.msra.mxu0 %v707
        %6395 = vmatprep.subr.mxu0 %v706
        %6396 = vmatpush2.msra.mxu0 %v705
        %6397 = vmatprep.mubr.f32.mxu0 %v6325
        %6398 = vmatmul.mubr.f32.gmra.mxu0 %v6321
        %v6399 = vpop.f32.mrf.mxu0
        %v6400 = vadd.f32 %v1223, %v6399
        %v6401 = vpop.f32.mrf.mxu0
        %v6402 = vadd.f32 %v1227, %v6401
        %6403 = vmatprep.mubr.f32.mxu0 %v6326
        %6404 = vmatmul.mubr.f32.gmra.mxu0 %v6322
        %v6405 = vpop.f32.mrf.mxu0
        %v6406 = vadd.f32 %v1223, %v6405
        %v6407 = vpop.f32.mrf.mxu0
        %v6408 = vadd.f32 %v1227, %v6407
        %6409 = vdwg.mxu0
        %6410 = vmatprep.subr.mxu0 %v768
        %6411 = vmatpush1.msra.mxu0 %v767
        %6412 = vmatprep.subr.mxu0 %v766
        %6413 = vmatpush1.msra.mxu0 %v765
        %6414 = vmatprep.subr.mxu0 %v764
        %6415 = vmatpush1.msra.mxu0 %v763
        %6416 = vmatprep.subr.mxu0 %v762
        %6417 = vmatpush1.msra.mxu0 %v761
        %6418 = vmatprep.subr.mxu0 %v760
        %6419 = vmatpush1.msra.mxu0 %v759
        %6420 = vmatprep.subr.mxu0 %v758
        %6421 = vmatpush1.msra.mxu0 %v757
        %6422 = vmatprep.subr.mxu0 %v756
        %6423 = vmatpush1.msra.mxu0 %v755
        %6424 = vmatprep.subr.mxu0 %v754
        %6425 = vmatpush1.msra.mxu0 %v753
        %6426 = vmatprep.subr.mxu0 %v752
        %6427 = vmatpush1.msra.mxu0 %v751
        %6428 = vmatprep.subr.mxu0 %v750
        %6429 = vmatpush1.msra.mxu0 %v749
        %6430 = vmatprep.subr.mxu0 %v748
        %6431 = vmatpush1.msra.mxu0 %v747
        %6432 = vmatprep.subr.mxu0 %v746
        %6433 = vmatpush1.msra.mxu0 %v745
        %6434 = vmatprep.subr.mxu0 %v744
        %6435 = vmatpush1.msra.mxu0 %v743
        %6436 = vmatprep.subr.mxu0 %v742
        %6437 = vmatpush1.msra.mxu0 %v741
        %6438 = vmatprep.subr.mxu0 %v740
        %6439 = vmatpush1.msra.mxu0 %v739
        %6440 = vmatprep.subr.mxu0 %v738
        %6441 = vmatpush1.msra.mxu0 %v737
        %6442 = vmatprep.subr.mxu0 0.0
        %6443 = vmatpush2.msra.mxu0 0.0
        %6444 = vmatprep.subr.mxu0 0.0
        %6445 = vmatpush2.msra.mxu0 0.0
        %6446 = vmatprep.subr.mxu0 0.0
        %6447 = vmatpush2.msra.mxu0 0.0
        %6448 = vmatprep.subr.mxu0 0.0
        %6449 = vmatpush2.msra.mxu0 0.0
        %6450 = vmatprep.subr.mxu0 0.0
        %6451 = vmatpush2.msra.mxu0 0.0
        %6452 = vmatprep.subr.mxu0 0.0
        %6453 = vmatpush2.msra.mxu0 0.0
        %6454 = vmatprep.subr.mxu0 0.0
        %6455 = vmatpush2.msra.mxu0 0.0
        %6456 = vmatprep.subr.mxu0 0.0
        %6457 = vmatpush2.msra.mxu0 0.0
        %6458 = vmatprep.subr.mxu0 0.0
        %6459 = vmatpush2.msra.mxu0 0.0
        %6460 = vmatprep.subr.mxu0 0.0
        %6461 = vmatpush2.msra.mxu0 0.0
        %6462 = vmatprep.subr.mxu0 0.0
        %6463 = vmatpush2.msra.mxu0 0.0
        %6464 = vmatprep.subr.mxu0 %v1239
        %6465 = vmatpush2.msra.mxu0 %v1236
        %6466 = vmatprep.subr.mxu0 %v776
        %6467 = vmatpush2.msra.mxu0 %v775
        %6468 = vmatprep.subr.mxu0 %v774
        %6469 = vmatpush2.msra.mxu0 %v773
        %6470 = vmatprep.subr.mxu0 %v772
        %6471 = vmatpush2.msra.mxu0 %v771
        %6472 = vmatprep.subr.mxu0 %v770
        %6473 = vmatpush2.msra.mxu0 %v769
        %6474 = vmatprep.mubr.f32.mxu0 %v6329
        %6475 = vmatmul.mubr.f32.gmra.mxu0 %v6327
        %v6476 = vpop.f32.mrf.mxu0
        %v6477 = vadd.f32 %v6400, %v6476
        %v6478 = vpop.f32.mrf.mxu0
        %v6479 = vadd.f32 %v6402, %v6478
        %6480 = vmatprep.mubr.f32.mxu0 %v6331
        %6481 = vmatmul.mubr.f32.gmra.mxu0 %v6328
        %v6482 = vpop.f32.mrf.mxu0
        %v6483 = vadd.f32 %v6406, %v6482
        %v6484 = vpop.f32.mrf.mxu0
        %v6485 = vadd.f32 %v6408, %v6484
        %6486 = vdwg.mxu0
        %v6487 = vmax.f32 %v6477, 0.0
        %v6488 = vmax.f32 %v6479, 0.0
        %v6489 = vmax.f32 %v6483, 0.0
        %v6490 = vmax.f32 %v6485, 0.0
        %v6493 = vrot.slane %v6487, 1
        %v6494 = vrot.slane %v6488, 1
        %v6495 = vrot.slane %v6487, 2
        %v6496 = vrot.slane %v6488, 2
        %v6497 = vrot.slane %v6487, 3
        %v6498 = vrot.slane %v6488, 3
        %v6499 = vrot.slane %v6487, 4
        %v6500 = vrot.slane %v6488, 4
        %v6501 = vrot.slane %v6487, 5
        %v6502 = vrot.slane %v6488, 5
        %v6503 = vrot.slane %v6487, 6
        %v6504 = vrot.slane %v6488, 6
        %v6505 = vrot.slane %v6487, 7
        %v6506 = vrot.slane %v6488, 7
        %v6509 = vrot.slane %v6489, 1
        %v6510 = vrot.slane %v6490, 1
        %v6511 = vcombine.low %v6487, %v6488
        %v6512 = vcombine.low %v6493, %v6494
        %v6513 = vcombine.low %v6495, %v6496
        %v6514 = vcombine.low %v6497, %v6498
        %v6516 = vunpack.c.l.s4 1966171168
        %v6517 = vunpack.c.0.s8 %v6516
        %v6518 = vlaneseq
        %v6519 = vshrl.u32 %v6518, 7
        %v6520 = vsub.s32 %v6517, %v6519
        %v6521 = vrot.slane %v6511, %v6520
        %v6523 = vunpack.c.l.s4 1966171168
        %v6524 = vunpack.c.0.s8 %v6523
        %v6525 = vlaneseq
        %v6526 = vshrl.u32 %v6525, 7
        %v6527 = vsub.s32 %v6524, %v6526
        %v6528 = vrot.slane %v6512, %v6527
        %v6530 = vunpack.c.l.s4 1966171168
        %v6531 = vunpack.c.0.s8 %v6530
        %v6532 = vlaneseq
        %v6533 = vshrl.u32 %v6532, 7
        %v6534 = vsub.s32 %v6531, %v6533
        %v6535 = vrot.slane %v6513, %v6534
        %v6537 = vunpack.c.l.s4 1966171168
        %v6538 = vunpack.c.0.s8 %v6537
        %v6539 = vlaneseq
        %v6540 = vshrl.u32 %v6539, 7
        %v6541 = vsub.s32 %v6538, %v6540
        %v6542 = vrot.slane %v6514, %v6541
        %v6543 = vcombine.low %v6521, %v6528
        %v6544 = vcombine.low %v6535, %v6542
        %v6546 = vunpack.c.l.s4 1966171168
        %v6547 = vunpack.c.0.s8 %v6546
        %v6548 = vlaneseq
        %v6549 = vshrl.u32 %v6548, 7
        %v6550 = vsub.s32 %v6547, %v6549
        %v6551 = vrot.slane %v6543, %v6550
        %v6553 = vunpack.c.l.s4 1966171168
        %v6554 = vunpack.c.0.s8 %v6553
        %v6555 = vlaneseq
        %v6556 = vshrl.u32 %v6555, 7
        %v6557 = vsub.s32 %v6554, %v6556
        %v6558 = vrot.slane %v6544, %v6557
        %v6559 = vcombine.low %v6551, %v6558
        %v6560 = vcombine.low %v6499, %v6500
        %v6561 = vcombine.low %v6501, %v6502
        %v6562 = vcombine.low %v6503, %v6504
        %v6563 = vcombine.low %v6505, %v6506
        %v6565 = vunpack.c.l.s4 1966171168
        %v6566 = vunpack.c.0.s8 %v6565
        %v6567 = vlaneseq
        %v6568 = vshrl.u32 %v6567, 7
        %v6569 = vsub.s32 %v6566, %v6568
        %v6570 = vrot.slane %v6560, %v6569
        %v6572 = vunpack.c.l.s4 1966171168
        %v6573 = vunpack.c.0.s8 %v6572
        %v6574 = vlaneseq
        %v6575 = vshrl.u32 %v6574, 7
        %v6576 = vsub.s32 %v6573, %v6575
        %v6577 = vrot.slane %v6561, %v6576
        %v6579 = vunpack.c.l.s4 1966171168
        %v6580 = vunpack.c.0.s8 %v6579
        %v6581 = vlaneseq
        %v6582 = vshrl.u32 %v6581, 7
        %v6583 = vsub.s32 %v6580, %v6582
        %v6584 = vrot.slane %v6562, %v6583
        %v6586 = vunpack.c.l.s4 1966171168
        %v6587 = vunpack.c.0.s8 %v6586
        %v6588 = vlaneseq
        %v6589 = vshrl.u32 %v6588, 7
        %v6590 = vsub.s32 %v6587, %v6589
        %v6591 = vrot.slane %v6563, %v6590
        %v6592 = vcombine.low %v6570, %v6577
        %v6593 = vcombine.low %v6584, %v6591
        %v6595 = vunpack.c.l.s4 1966171168
        %v6596 = vunpack.c.0.s8 %v6595
        %v6597 = vlaneseq
        %v6598 = vshrl.u32 %v6597, 7
        %v6599 = vsub.s32 %v6596, %v6598
        %v6600 = vrot.slane %v6592, %v6599
        %v6602 = vunpack.c.l.s4 1966171168
        %v6603 = vunpack.c.0.s8 %v6602
        %v6604 = vlaneseq
        %v6605 = vshrl.u32 %v6604, 7
        %v6606 = vsub.s32 %v6603, %v6605
        %v6607 = vrot.slane %v6593, %v6606
        %v6608 = vcombine.low %v6600, %v6607
        %v6609 = vcombine.low %v6489, %v6490
        %v6610 = vcombine.low %v6509, %v6510
        %v6612 = vunpack.c.l.s4 1966171168
        %v6613 = vunpack.c.0.s8 %v6612
        %v6614 = vlaneseq
        %v6615 = vshrl.u32 %v6614, 7
        %v6616 = vsub.s32 %v6613, %v6615
        %v6617 = vrot.slane %v6609, %v6616
        %v6619 = vunpack.c.l.s4 1966171168
        %v6620 = vunpack.c.0.s8 %v6619
        %v6621 = vlaneseq
        %v6622 = vshrl.u32 %v6621, 7
        %v6623 = vsub.s32 %v6620, %v6622
        %v6624 = vrot.slane %v6610, %v6623
        %v6625 = vcombine.low %v6617, %v6624
        %v6627 = vunpack.c.l.s4 1966171168
        %v6628 = vunpack.c.0.s8 %v6627
        %v6629 = vlaneseq
        %v6630 = vshrl.u32 %v6629, 7
        %v6631 = vsub.s32 %v6628, %v6630
        %v6632 = vrot.slane %v6625, %v6631
        %s6636 = scalar_lea.vmem [#allocation2], 7
        %6637 = vst [vmem:[%s6636] ss:$8 sm:$0xf] %v6559
        %6638 = vst [vmem:[%s6636] ss:$8 sm:$0xf0] %v6559
        %s6639 = scalar_lea.vmem [#allocation2], 71
        %6640 = vst [vmem:[%s6639] ss:$8 sm:$0xf] %v6608
        %6641 = vst [vmem:[%s6639] ss:$8 sm:$0xf0] %v6608
        %s6642 = scalar_lea.vmem [#allocation2], 135
        %6643 = vst.msk [vmem:[%s6642] ss:$8 sm:$0xf] %vm1552, %v6632
        %6644 = vst.msk [vmem:[%s6642] ss:$8 sm:$0x0] %vm1552, %v6632
        %v6645 = vld [vmem:[#allocation2] sm:$0xff]
        %v6646 = vld [vmem:[#allocation2 + $0x8] sm:$0xff]
        %v6647 = vld [vmem:[#allocation2 + $0x10] sm:$0xff]
        %v6648 = vld [vmem:[#allocation2 + $0x18] sm:$0xff]
        %v6649 = vld [vmem:[#allocation2 + $0x20] sm:$0xff]
        %v6650 = vld [vmem:[#allocation2 + $0x28] sm:$0xff]
        %v6651 = vld [vmem:[#allocation2 + $0x30] sm:$0xff]
        %v6652 = vld [vmem:[#allocation2 + $0x38] sm:$0xff]
        %v6653 = vld [vmem:[#allocation2 + $0x40] sm:$0xff]
        %v6654 = vld [vmem:[#allocation2 + $0x48] sm:$0xff]
        %v6655 = vld [vmem:[#allocation2 + $0x50] sm:$0xff]
        %v6656 = vld [vmem:[#allocation2 + $0x58] sm:$0xff]
        %v6657 = vld [vmem:[#allocation2 + $0x60] sm:$0xff]
        %v6658 = vld [vmem:[#allocation2 + $0x68] sm:$0xff]
        %v6659 = vld [vmem:[#allocation2 + $0x70] sm:$0xff]
        %v6660 = vld [vmem:[#allocation2 + $0x78] sm:$0xff]
        %v6661 = vld [vmem:[#allocation2 + $0x80] sm:$0xff]
        %v6662 = vld [vmem:[#allocation2 + $0x88] sm:$0xff]
        %v6663 = vld [vmem:[#allocation2 + $0x90] sm:$0xff]
        %v6664 = vld [vmem:[#allocation2 + $0x98] sm:$0xff]
        %v6665 = vld [vmem:[#allocation14] sm:$0xff]
        %v6666 = vld [vmem:[#allocation14 + $0x8] sm:$0xff]
        %v6667 = vld [vmem:[#allocation14 + $0x10] sm:$0xff]
        %v6668 = vld [vmem:[#allocation14 + $0x18] sm:$0xff]
        %v6669 = vld [vmem:[#allocation14 + $0x20] sm:$0xff]
        %v6670 = vld [vmem:[#allocation14 + $0x28] sm:$0xff]
        %v6671 = vld [vmem:[#allocation14 + $0x30] sm:$0xff]
        %v6672 = vld [vmem:[#allocation14 + $0x38] sm:$0xff]
        %v6673 = vld [vmem:[#allocation14 + $0x40] sm:$0xff]
        %v6674 = vld [vmem:[#allocation14 + $0x48] sm:$0xff]
        %v6675 = vld [vmem:[#allocation14 + $0x50] sm:$0xff]
        %v6676 = vld [vmem:[#allocation14 + $0x58] sm:$0xff]
        %v6677 = vld [vmem:[#allocation14 + $0x60] sm:$0xff]
        %v6678 = vld [vmem:[#allocation14 + $0x68] sm:$0xff]
        %v6679 = vld [vmem:[#allocation14 + $0x70] sm:$0xff]
        %v6680 = vld [vmem:[#allocation14 + $0x78] sm:$0xff]
        %v6681 = vld [vmem:[#allocation14 + $0x80] sm:$0xff]
        %v6682 = vld [vmem:[#allocation14 + $0x88] sm:$0xff]
        %v6683 = vld [vmem:[#allocation14 + $0x90] sm:$0xff]
        %v6684 = vld [vmem:[#allocation14 + $0x98] sm:$0xff]
        %v6685 = vld [vmem:[#allocation14 + $0xa0] sm:$0xff]
        %v6686 = vld [vmem:[#allocation14 + $0xa8] sm:$0xff]
        %v6687 = vld [vmem:[#allocation14 + $0xb0] sm:$0xff]
        %v6688 = vld [vmem:[#allocation14 + $0xb8] sm:$0xff]
        %v6689 = vld [vmem:[#allocation14 + $0xc0] sm:$0xff]
        %v6690 = vld [vmem:[#allocation14 + $0xc8] sm:$0xff]
        %v6691 = vld [vmem:[#allocation14 + $0xd0] sm:$0xff]
        %v6692 = vld [vmem:[#allocation14 + $0xd8] sm:$0xff]
        %v6693 = vld [vmem:[#allocation14 + $0xe0] sm:$0xff]
        %v6694 = vld [vmem:[#allocation14 + $0xe8] sm:$0xff]
        %v6695 = vld [vmem:[#allocation14 + $0xf0] sm:$0xff]
        %v6696 = vld [vmem:[#allocation14 + $0xf8] sm:$0xff]
        %v6697 = vld [vmem:[#allocation14 + $0x100] sm:$0xff]
        %v6698 = vld [vmem:[#allocation14 + $0x108] sm:$0xff]
        %v6699 = vld [vmem:[#allocation14 + $0x110] sm:$0xff]
        %v6700 = vld [vmem:[#allocation14 + $0x118] sm:$0xff]
        %v6701 = vld [vmem:[#allocation14 + $0x120] sm:$0xff]
        %v6702 = vld [vmem:[#allocation14 + $0x128] sm:$0xff]
        %v6703 = vld [vmem:[#allocation14 + $0x130] sm:$0xff]
        %v6704 = vld [vmem:[#allocation14 + $0x138] sm:$0xff]
        %v6705 = vld [vmem:[#allocation14 + $0x140] sm:$0xff]
        %v6706 = vld [vmem:[#allocation14 + $0x148] sm:$0xff]
        %v6707 = vld [vmem:[#allocation14 + $0x150] sm:$0xff]
        %v6708 = vld [vmem:[#allocation14 + $0x158] sm:$0xff]
        %v6709 = vld [vmem:[#allocation14 + $0x160] sm:$0xff]
        %v6710 = vld [vmem:[#allocation14 + $0x168] sm:$0xff]
        %v6711 = vld [vmem:[#allocation14 + $0x170] sm:$0xff]
        %v6712 = vld [vmem:[#allocation14 + $0x178] sm:$0xff]
        %v6713 = vld [vmem:[#allocation14 + $0x180] sm:$0xff]
        %v6714 = vld [vmem:[#allocation14 + $0x188] sm:$0xff]
        %v6715 = vld [vmem:[#allocation14 + $0x190] sm:$0xff]
        %v6716 = vld [vmem:[#allocation14 + $0x198] sm:$0xff]
        %v6717 = vld [vmem:[#allocation14 + $0x1a0] sm:$0xff]
        %v6718 = vld [vmem:[#allocation14 + $0x1a8] sm:$0xff]
        %v6719 = vld [vmem:[#allocation14 + $0x1b0] sm:$0xff]
        %v6720 = vld [vmem:[#allocation14 + $0x1b8] sm:$0xff]
        %v6721 = vld [vmem:[#allocation14 + $0x1c0] sm:$0xff]
        %v6722 = vld [vmem:[#allocation14 + $0x1c8] sm:$0xff]
        %v6723 = vld [vmem:[#allocation14 + $0x1d0] sm:$0xff]
        %v6724 = vld [vmem:[#allocation14 + $0x1d8] sm:$0xff]
        %v6725 = vld [vmem:[#allocation14 + $0x1e0] sm:$0xff]
        %v6726 = vld [vmem:[#allocation14 + $0x1e8] sm:$0xff]
        %v6727 = vld [vmem:[#allocation14 + $0x1f0] sm:$0xff]
        %v6728 = vld [vmem:[#allocation14 + $0x1f8] sm:$0xff]
        %v6729 = vld [vmem:[#allocation14 + $0x200] sm:$0xff]
        %v6730 = vld [vmem:[#allocation14 + $0x208] sm:$0xff]
        %v6731 = vld [vmem:[#allocation14 + $0x210] sm:$0xff]
        %v6732 = vld [vmem:[#allocation14 + $0x218] sm:$0xff]
        %v6733 = vld [vmem:[#allocation14 + $0x220] sm:$0xff]
        %v6734 = vld [vmem:[#allocation14 + $0x228] sm:$0xff]
        %v6735 = vld [vmem:[#allocation14 + $0x230] sm:$0xff]
        %v6736 = vld [vmem:[#allocation14 + $0x238] sm:$0xff]
        %v6737 = vld [vmem:[#allocation14 + $0x240] sm:$0xff]
        %v6738 = vld [vmem:[#allocation14 + $0x248] sm:$0xff]
        %v6739 = vld [vmem:[#allocation14 + $0x250] sm:$0xff]
        %v6740 = vld [vmem:[#allocation14 + $0x258] sm:$0xff]
        %v6741 = vld [vmem:[#allocation14 + $0x260] sm:$0xff]
        %v6742 = vld [vmem:[#allocation14 + $0x268] sm:$0xff]
        %v6743 = vld [vmem:[#allocation14 + $0x270] sm:$0xff]
        %v6744 = vld [vmem:[#allocation14 + $0x278] sm:$0xff]
        %v6745 = vld [vmem:[#allocation14 + $0x280] sm:$0xff]
        %v6746 = vld [vmem:[#allocation14 + $0x288] sm:$0xff]
        %v6747 = vld [vmem:[#allocation14 + $0x290] sm:$0xff]
        %v6748 = vld [vmem:[#allocation14 + $0x298] sm:$0xff]
        %v6749 = vld [vmem:[#allocation14 + $0x2a0] sm:$0xff]
        %v6750 = vld [vmem:[#allocation14 + $0x2a8] sm:$0xff]
        %v6751 = vld [vmem:[#allocation14 + $0x2b0] sm:$0xff]
        %v6752 = vld [vmem:[#allocation14 + $0x2b8] sm:$0xff]
        %v6753 = vld [vmem:[#allocation14 + $0x2c0] sm:$0xff]
        %v6754 = vld [vmem:[#allocation14 + $0x2c8] sm:$0xff]
        %v6755 = vld [vmem:[#allocation14 + $0x2d0] sm:$0xff]
        %v6756 = vld [vmem:[#allocation14 + $0x2d8] sm:$0xff]
        %v6757 = vld [vmem:[#allocation14 + $0x2e0] sm:$0xff]
        %v6758 = vld [vmem:[#allocation14 + $0x2e8] sm:$0xff]
        %v6759 = vld [vmem:[#allocation14 + $0x2f0] sm:$0xff]
        %v6760 = vld [vmem:[#allocation14 + $0x2f8] sm:$0xff]
        %v6761 = vld [vmem:[#allocation14 + $0x300] sm:$0xff]
        %v6762 = vld [vmem:[#allocation14 + $0x308] sm:$0xff]
        %v6763 = vld [vmem:[#allocation14 + $0x310] sm:$0xff]
        %v6764 = vld [vmem:[#allocation14 + $0x318] sm:$0xff]
        %v6765 = vld [vmem:[#allocation14 + $0x320] sm:$0xff]
        %v6766 = vld [vmem:[#allocation14 + $0x328] sm:$0xff]
        %v6767 = vld [vmem:[#allocation14 + $0x330] sm:$0xff]
        %v6768 = vld [vmem:[#allocation14 + $0x338] sm:$0xff]
        %v6769 = vld [vmem:[#allocation14 + $0x340] sm:$0xff]
        %v6770 = vld [vmem:[#allocation14 + $0x348] sm:$0xff]
        %v6771 = vld [vmem:[#allocation14 + $0x350] sm:$0xff]
        %v6772 = vld [vmem:[#allocation14 + $0x358] sm:$0xff]
        %v6773 = vld [vmem:[#allocation14 + $0x360] sm:$0xff]
        %v6774 = vld [vmem:[#allocation14 + $0x368] sm:$0xff]
        %v6775 = vld [vmem:[#allocation14 + $0x370] sm:$0xff]
        %v6776 = vld [vmem:[#allocation14 + $0x378] sm:$0xff]
        %v6777 = vld [vmem:[#allocation14 + $0x380] sm:$0xff]
        %v6778 = vld [vmem:[#allocation14 + $0x388] sm:$0xff]
        %v6779 = vld [vmem:[#allocation14 + $0x390] sm:$0xff]
        %v6780 = vld [vmem:[#allocation14 + $0x398] sm:$0xff]
        %v6781 = vld [vmem:[#allocation14 + $0x3a0] sm:$0xff]
        %v6782 = vld [vmem:[#allocation14 + $0x3a8] sm:$0xff]
        %v6783 = vld [vmem:[#allocation14 + $0x3b0] sm:$0xff]
        %v6784 = vld [vmem:[#allocation14 + $0x3b8] sm:$0xff]
        %v6785 = vld [vmem:[#allocation14 + $0x3c0] sm:$0xff]
        %v6786 = vld [vmem:[#allocation14 + $0x3c8] sm:$0xff]
        %v6787 = vld [vmem:[#allocation14 + $0x3d0] sm:$0xff]
        %v6788 = vld [vmem:[#allocation14 + $0x3d8] sm:$0xff]
        %v6789 = vld [vmem:[#allocation14 + $0x3e0] sm:$0xff]
        %v6790 = vld [vmem:[#allocation14 + $0x3e8] sm:$0xff]
        %v6791 = vld [vmem:[#allocation14 + $0x3f0] sm:$0xff]
        %v6792 = vld [vmem:[#allocation14 + $0x3f8] sm:$0xff]
        %v6793 = vld [vmem:[#allocation14 + $0x400] sm:$0xff]
        %v6794 = vld [vmem:[#allocation14 + $0x408] sm:$0xff]
        %v6795 = vld [vmem:[#allocation14 + $0x410] sm:$0xff]
        %v6796 = vld [vmem:[#allocation14 + $0x418] sm:$0xff]
        %v6797 = vld [vmem:[#allocation14 + $0x420] sm:$0xff]
        %v6798 = vld [vmem:[#allocation14 + $0x428] sm:$0xff]
        %v6799 = vld [vmem:[#allocation14 + $0x430] sm:$0xff]
        %v6800 = vld [vmem:[#allocation14 + $0x438] sm:$0xff]
        %v6801 = vld [vmem:[#allocation14 + $0x440] sm:$0xff]
        %v6802 = vld [vmem:[#allocation14 + $0x448] sm:$0xff]
        %v6803 = vld [vmem:[#allocation14 + $0x450] sm:$0xff]
        %v6804 = vld [vmem:[#allocation14 + $0x458] sm:$0xff]
        %v6805 = vld [vmem:[#allocation14 + $0x460] sm:$0xff]
        %v6806 = vld [vmem:[#allocation14 + $0x468] sm:$0xff]
        %v6807 = vld [vmem:[#allocation14 + $0x470] sm:$0xff]
        %v6808 = vld [vmem:[#allocation14 + $0x478] sm:$0xff]
        %v6809 = vld [vmem:[#allocation14 + $0x480] sm:$0xff]
        %v6810 = vld [vmem:[#allocation14 + $0x488] sm:$0xff]
        %v6811 = vld [vmem:[#allocation14 + $0x490] sm:$0xff]
        %v6812 = vld [vmem:[#allocation14 + $0x498] sm:$0xff]
        %v6813 = vld [vmem:[#allocation14 + $0x4a0] sm:$0xff]
        %v6814 = vld [vmem:[#allocation14 + $0x4a8] sm:$0xff]
        %v6815 = vld [vmem:[#allocation14 + $0x4b0] sm:$0xff]
        %v6816 = vld [vmem:[#allocation14 + $0x4b8] sm:$0xff]
        %v6817 = vld [vmem:[#allocation14 + $0x4c0] sm:$0xff]
        %v6818 = vld [vmem:[#allocation14 + $0x4c8] sm:$0xff]
        %v6819 = vld [vmem:[#allocation14 + $0x4d0] sm:$0xff]
        %v6820 = vld [vmem:[#allocation14 + $0x4d8] sm:$0xff]
        %v6821 = vld [vmem:[#allocation14 + $0x4e0] sm:$0xff]
        %v6822 = vld [vmem:[#allocation14 + $0x4e8] sm:$0xff]
        %v6823 = vld [vmem:[#allocation14 + $0x4f0] sm:$0xff]
        %v6824 = vld [vmem:[#allocation14 + $0x4f8] sm:$0xff]
        %v6825 = vld [vmem:[#allocation14 + $0x500] sm:$0xff]
        %v6826 = vld [vmem:[#allocation14 + $0x508] sm:$0xff]
        %v6827 = vld [vmem:[#allocation14 + $0x510] sm:$0xff]
        %v6828 = vld [vmem:[#allocation14 + $0x518] sm:$0xff]
        %v6829 = vld [vmem:[#allocation14 + $0x520] sm:$0xff]
        %v6830 = vld [vmem:[#allocation14 + $0x528] sm:$0xff]
        %v6831 = vld [vmem:[#allocation14 + $0x530] sm:$0xff]
        %v6832 = vld [vmem:[#allocation14 + $0x538] sm:$0xff]
        %v6833 = vld [vmem:[#allocation14 + $0x540] sm:$0xff]
        %v6834 = vld [vmem:[#allocation14 + $0x548] sm:$0xff]
        %v6835 = vld [vmem:[#allocation14 + $0x550] sm:$0xff]
        %v6836 = vld [vmem:[#allocation14 + $0x558] sm:$0xff]
        %v6837 = vld [vmem:[#allocation14 + $0x560] sm:$0xff]
        %v6838 = vld [vmem:[#allocation14 + $0x568] sm:$0xff]
        %v6839 = vld [vmem:[#allocation14 + $0x570] sm:$0xff]
        %v6840 = vld [vmem:[#allocation14 + $0x578] sm:$0xff]
        %v6841 = vld [vmem:[#allocation14 + $0x580] sm:$0xff]
        %v6842 = vld [vmem:[#allocation14 + $0x588] sm:$0xff]
        %v6843 = vld [vmem:[#allocation14 + $0x590] sm:$0xff]
        %v6844 = vld [vmem:[#allocation14 + $0x598] sm:$0xff]
        %v6845 = vld [vmem:[#allocation14 + $0x5a0] sm:$0xff]
        %v6846 = vld [vmem:[#allocation14 + $0x5a8] sm:$0xff]
        %v6847 = vld [vmem:[#allocation14 + $0x5b0] sm:$0xff]
        %v6848 = vld [vmem:[#allocation14 + $0x5b8] sm:$0xff]
        %v6849 = vld [vmem:[#allocation14 + $0x5c0] sm:$0xff]
        %v6850 = vld [vmem:[#allocation14 + $0x5c8] sm:$0xff]
        %v6851 = vld [vmem:[#allocation14 + $0x5d0] sm:$0xff]
        %v6852 = vld [vmem:[#allocation14 + $0x5d8] sm:$0xff]
        %v6853 = vld [vmem:[#allocation14 + $0x5e0] sm:$0xff]
        %v6854 = vld [vmem:[#allocation14 + $0x5e8] sm:$0xff]
        %v6855 = vld [vmem:[#allocation14 + $0x5f0] sm:$0xff]
        %v6856 = vld [vmem:[#allocation14 + $0x5f8] sm:$0xff]
        %v6857 = vld [vmem:[#allocation14 + $0x600] sm:$0xff]
        %v6858 = vld [vmem:[#allocation14 + $0x608] sm:$0xff]
        %v6859 = vld [vmem:[#allocation14 + $0x610] sm:$0xff]
        %v6860 = vld [vmem:[#allocation14 + $0x618] sm:$0xff]
        %v6861 = vld [vmem:[#allocation14 + $0x620] sm:$0xff]
        %v6862 = vld [vmem:[#allocation14 + $0x628] sm:$0xff]
        %v6863 = vld [vmem:[#allocation14 + $0x630] sm:$0xff]
        %v6864 = vld [vmem:[#allocation14 + $0x638] sm:$0xff]
        %v6865 = vld [vmem:[#allocation14 + $0x640] sm:$0xff]
        %v6866 = vld [vmem:[#allocation14 + $0x648] sm:$0xff]
        %v6867 = vld [vmem:[#allocation14 + $0x650] sm:$0xff]
        %v6868 = vld [vmem:[#allocation14 + $0x658] sm:$0xff]
        %v6869 = vld [vmem:[#allocation14 + $0x660] sm:$0xff]
        %v6870 = vld [vmem:[#allocation14 + $0x668] sm:$0xff]
        %v6871 = vld [vmem:[#allocation14 + $0x670] sm:$0xff]
        %v6872 = vld [vmem:[#allocation14 + $0x678] sm:$0xff]
        %v6873 = vld [vmem:[#allocation14 + $0x680] sm:$0xff]
        %v6874 = vld [vmem:[#allocation14 + $0x688] sm:$0xff]
        %v6875 = vld [vmem:[#allocation14 + $0x690] sm:$0xff]
        %v6876 = vld [vmem:[#allocation14 + $0x698] sm:$0xff]
        %v6877 = vld [vmem:[#allocation14 + $0x6a0] sm:$0xff]
        %v6878 = vld [vmem:[#allocation14 + $0x6a8] sm:$0xff]
        %v6879 = vld [vmem:[#allocation14 + $0x6b0] sm:$0xff]
        %v6880 = vld [vmem:[#allocation14 + $0x6b8] sm:$0xff]
        %v6881 = vld [vmem:[#allocation14 + $0x6c0] sm:$0xff]
        %v6882 = vld [vmem:[#allocation14 + $0x6c8] sm:$0xff]
        %v6883 = vld [vmem:[#allocation14 + $0x6d0] sm:$0xff]
        %v6884 = vld [vmem:[#allocation14 + $0x6d8] sm:$0xff]
        %v6885 = vld [vmem:[#allocation14 + $0x6e0] sm:$0xff]
        %v6886 = vld [vmem:[#allocation14 + $0x6e8] sm:$0xff]
        %v6887 = vld [vmem:[#allocation14 + $0x6f0] sm:$0xff]
        %v6888 = vld [vmem:[#allocation14 + $0x6f8] sm:$0xff]
        %v6889 = vld [vmem:[#allocation14 + $0x700] sm:$0xff]
        %v6890 = vld [vmem:[#allocation14 + $0x708] sm:$0xff]
        %v6891 = vld [vmem:[#allocation14 + $0x710] sm:$0xff]
        %v6892 = vld [vmem:[#allocation14 + $0x718] sm:$0xff]
        %v6893 = vld [vmem:[#allocation14 + $0x720] sm:$0xff]
        %v6894 = vld [vmem:[#allocation14 + $0x728] sm:$0xff]
        %v6895 = vld [vmem:[#allocation14 + $0x730] sm:$0xff]
        %v6896 = vld [vmem:[#allocation14 + $0x738] sm:$0xff]
        %v6897 = vld [vmem:[#allocation14 + $0x740] sm:$0xff]
        %v6898 = vld [vmem:[#allocation14 + $0x748] sm:$0xff]
        %v6899 = vld [vmem:[#allocation14 + $0x750] sm:$0xff]
        %v6900 = vld [vmem:[#allocation14 + $0x758] sm:$0xff]
        %v6901 = vld [vmem:[#allocation14 + $0x760] sm:$0xff]
        %v6902 = vld [vmem:[#allocation14 + $0x768] sm:$0xff]
        %v6903 = vld [vmem:[#allocation14 + $0x770] sm:$0xff]
        %v6904 = vld [vmem:[#allocation14 + $0x778] sm:$0xff]
        %v6905 = vld [vmem:[#allocation14 + $0x780] sm:$0xff]
        %v6906 = vld [vmem:[#allocation14 + $0x788] sm:$0xff]
        %v6907 = vld [vmem:[#allocation14 + $0x790] sm:$0xff]
        %v6908 = vld [vmem:[#allocation14 + $0x798] sm:$0xff]
        %v6909 = vld [vmem:[#allocation14 + $0x7a0] sm:$0xff]
        %v6910 = vld [vmem:[#allocation14 + $0x7a8] sm:$0xff]
        %v6911 = vld [vmem:[#allocation14 + $0x7b0] sm:$0xff]
        %v6912 = vld [vmem:[#allocation14 + $0x7b8] sm:$0xff]
        %v6913 = vld [vmem:[#allocation14 + $0x7c0] sm:$0xff]
        %v6914 = vld [vmem:[#allocation14 + $0x7c8] sm:$0xff]
        %v6915 = vld [vmem:[#allocation14 + $0x7d0] sm:$0xff]
        %v6916 = vld [vmem:[#allocation14 + $0x7d8] sm:$0xff]
        %v6917 = vld [vmem:[#allocation14 + $0x7e0] sm:$0xff]
        %v6918 = vld [vmem:[#allocation14 + $0x7e8] sm:$0xff]
        %v6919 = vld [vmem:[#allocation14 + $0x7f0] sm:$0xff]
        %v6920 = vld [vmem:[#allocation14 + $0x7f8] sm:$0xff]
        %v6921 = vld [vmem:[#allocation14 + $0x800] sm:$0xff]
        %v6922 = vld [vmem:[#allocation14 + $0x808] sm:$0xff]
        %v6923 = vld [vmem:[#allocation14 + $0x810] sm:$0xff]
        %v6924 = vld [vmem:[#allocation14 + $0x818] sm:$0xff]
        %v6925 = vld [vmem:[#allocation14 + $0x820] sm:$0xff]
        %v6926 = vld [vmem:[#allocation14 + $0x828] sm:$0xff]
        %v6927 = vld [vmem:[#allocation14 + $0x830] sm:$0xff]
        %v6928 = vld [vmem:[#allocation14 + $0x838] sm:$0xff]
        %v6929 = vld [vmem:[#allocation14 + $0x840] sm:$0xff]
        %v6930 = vld [vmem:[#allocation14 + $0x848] sm:$0xff]
        %v6931 = vld [vmem:[#allocation14 + $0x850] sm:$0xff]
        %v6932 = vld [vmem:[#allocation14 + $0x858] sm:$0xff]
        %v6933 = vld [vmem:[#allocation14 + $0x860] sm:$0xff]
        %v6934 = vld [vmem:[#allocation14 + $0x868] sm:$0xff]
        %v6935 = vld [vmem:[#allocation14 + $0x870] sm:$0xff]
        %v6936 = vld [vmem:[#allocation14 + $0x878] sm:$0xff]
        %v6937 = vld [vmem:[#allocation14 + $0x880] sm:$0xff]
        %v6938 = vld [vmem:[#allocation14 + $0x888] sm:$0xff]
        %v6939 = vld [vmem:[#allocation14 + $0x890] sm:$0xff]
        %v6940 = vld [vmem:[#allocation14 + $0x898] sm:$0xff]
        %v6941 = vld [vmem:[#allocation14 + $0x8a0] sm:$0xff]
        %v6942 = vld [vmem:[#allocation14 + $0x8a8] sm:$0xff]
        %v6943 = vld [vmem:[#allocation14 + $0x8b0] sm:$0xff]
        %v6944 = vld [vmem:[#allocation14 + $0x8b8] sm:$0xff]
        %v6945 = vld [vmem:[#allocation14 + $0x8c0] sm:$0xff]
        %v6946 = vld [vmem:[#allocation14 + $0x8c8] sm:$0xff]
        %v6947 = vld [vmem:[#allocation14 + $0x8d0] sm:$0xff]
        %v6948 = vld [vmem:[#allocation14 + $0x8d8] sm:$0xff]
        %v6949 = vld [vmem:[#allocation14 + $0x8e0] sm:$0xff]
        %v6950 = vld [vmem:[#allocation14 + $0x8e8] sm:$0xff]
        %v6951 = vld [vmem:[#allocation14 + $0x8f0] sm:$0xff]
        %v6952 = vld [vmem:[#allocation14 + $0x8f8] sm:$0xff]
        %v6953 = vld [vmem:[#allocation14 + $0x900] sm:$0xff]
        %v6954 = vld [vmem:[#allocation14 + $0x908] sm:$0xff]
        %v6955 = vld [vmem:[#allocation14 + $0x910] sm:$0xff]
        %v6956 = vld [vmem:[#allocation14 + $0x918] sm:$0xff]
        %v6957 = vld [vmem:[#allocation14 + $0x920] sm:$0xff]
        %v6958 = vld [vmem:[#allocation14 + $0x928] sm:$0xff]
        %v6959 = vld [vmem:[#allocation14 + $0x930] sm:$0xff]
        %v6960 = vld [vmem:[#allocation14 + $0x938] sm:$0xff]
        %v6961 = vld [vmem:[#allocation14 + $0x940] sm:$0xff]
        %v6962 = vld [vmem:[#allocation14 + $0x948] sm:$0xff]
        %v6963 = vld [vmem:[#allocation14 + $0x950] sm:$0xff]
        %v6964 = vld [vmem:[#allocation14 + $0x958] sm:$0xff]
        %v6965 = vld [vmem:[#allocation14 + $0x960] sm:$0xff]
        %v6966 = vld [vmem:[#allocation14 + $0x968] sm:$0xff]
        %v6967 = vld [vmem:[#allocation14 + $0x970] sm:$0xff]
        %v6968 = vld [vmem:[#allocation14 + $0x978] sm:$0xff]
        %v6969 = vld [vmem:[#allocation14 + $0x980] sm:$0xff]
        %v6970 = vld [vmem:[#allocation14 + $0x988] sm:$0xff]
        %v6971 = vld [vmem:[#allocation14 + $0x990] sm:$0xff]
        %v6972 = vld [vmem:[#allocation14 + $0x998] sm:$0xff]
        %v6973 = vld [vmem:[#allocation14 + $0x9a0] sm:$0xff]
        %v6974 = vld [vmem:[#allocation14 + $0x9a8] sm:$0xff]
        %v6975 = vld [vmem:[#allocation14 + $0x9b0] sm:$0xff]
        %v6976 = vld [vmem:[#allocation14 + $0x9b8] sm:$0xff]
        %v6977 = vld [vmem:[#allocation14 + $0x9c0] sm:$0xff]
        %v6978 = vld [vmem:[#allocation14 + $0x9c8] sm:$0xff]
        %v6979 = vld [vmem:[#allocation14 + $0x9d0] sm:$0xff]
        %v6980 = vld [vmem:[#allocation14 + $0x9d8] sm:$0xff]
        %v6981 = vld [vmem:[#allocation14 + $0x9e0] sm:$0xff]
        %v6982 = vld [vmem:[#allocation14 + $0x9e8] sm:$0xff]
        %v6983 = vld [vmem:[#allocation14 + $0x9f0] sm:$0xff]
        %v6984 = vld [vmem:[#allocation14 + $0x9f8] sm:$0xff]
        %v6985 = vld [vmem:[#allocation15] sm:$0x1]
        %v6987 = vlaneseq
        %v6988 = vshrl.u32 %v6987, 7
        %v6989 = vsub.s32 0, %v6988
        %v6990 = vrot.slane %v6985, %v6989
        %6992 = vmatprep.subr.mxu0 0.0
        %6993 = vmatpush1.msra.mxu0 %v6680
        %6994 = vmatprep.subr.mxu0 0.0
        %6995 = vmatpush1.msra.mxu0 %v6679
        %6996 = vmatprep.subr.mxu0 0.0
        %6997 = vmatpush1.msra.mxu0 %v6678
        %6998 = vmatprep.subr.mxu0 0.0
        %6999 = vmatpush1.msra.mxu0 %v6677
        %7000 = vmatprep.subr.mxu0 0.0
        %7001 = vmatpush1.msra.mxu0 %v6676
        %7002 = vmatprep.subr.mxu0 0.0
        %7003 = vmatpush1.msra.mxu0 %v6675
        %7004 = vmatprep.subr.mxu0 0.0
        %7005 = vmatpush1.msra.mxu0 %v6674
        %7006 = vmatprep.subr.mxu0 0.0
        %7007 = vmatpush1.msra.mxu0 %v6673
        %7008 = vmatprep.subr.mxu0 0.0
        %7009 = vmatpush1.msra.mxu0 %v6672
        %7010 = vmatprep.subr.mxu0 0.0
        %7011 = vmatpush1.msra.mxu0 %v6671
        %7012 = vmatprep.subr.mxu0 0.0
        %7013 = vmatpush1.msra.mxu0 %v6670
        %7014 = vmatprep.subr.mxu0 0.0
        %7015 = vmatpush1.msra.mxu0 %v6669
        %7016 = vmatprep.subr.mxu0 0.0
        %7017 = vmatpush1.msra.mxu0 %v6668
        %7018 = vmatprep.subr.mxu0 0.0
        %7019 = vmatpush1.msra.mxu0 %v6667
        %7020 = vmatprep.subr.mxu0 0.0
        %7021 = vmatpush1.msra.mxu0 %v6666
        %7022 = vmatprep.subr.mxu0 0.0
        %7023 = vmatpush1.msra.mxu0 %v6665
        %7024 = vmatprep.subr.mxu0 0.0
        %7025 = vmatpush2.msra.mxu0 %v6696
        %7026 = vmatprep.subr.mxu0 0.0
        %7027 = vmatpush2.msra.mxu0 %v6695
        %7028 = vmatprep.subr.mxu0 0.0
        %7029 = vmatpush2.msra.mxu0 %v6694
        %7030 = vmatprep.subr.mxu0 0.0
        %7031 = vmatpush2.msra.mxu0 %v6693
        %7032 = vmatprep.subr.mxu0 0.0
        %7033 = vmatpush2.msra.mxu0 %v6692
        %7034 = vmatprep.subr.mxu0 0.0
        %7035 = vmatpush2.msra.mxu0 %v6691
        %7036 = vmatprep.subr.mxu0 0.0
        %7037 = vmatpush2.msra.mxu0 %v6690
        %7038 = vmatprep.subr.mxu0 0.0
        %7039 = vmatpush2.msra.mxu0 %v6689
        %7040 = vmatprep.subr.mxu0 0.0
        %7041 = vmatpush2.msra.mxu0 %v6688
        %7042 = vmatprep.subr.mxu0 0.0
        %7043 = vmatpush2.msra.mxu0 %v6687
        %7044 = vmatprep.subr.mxu0 0.0
        %7045 = vmatpush2.msra.mxu0 %v6686
        %7046 = vmatprep.subr.mxu0 0.0
        %7047 = vmatpush2.msra.mxu0 %v6685
        %7048 = vmatprep.subr.mxu0 0.0
        %7049 = vmatpush2.msra.mxu0 %v6684
        %7050 = vmatprep.subr.mxu0 0.0
        %7051 = vmatpush2.msra.mxu0 %v6683
        %7052 = vmatprep.subr.mxu0 0.0
        %7053 = vmatpush2.msra.mxu0 %v6682
        %7054 = vmatprep.subr.mxu0 0.0
        %7055 = vmatpush2.msra.mxu0 %v6681
        %7056 = vmatprep.mubr.f32.mxu0 %v6646
        %7057 = vmatmul.mubr.f32.gmra.mxu0 %v6645
        %v7058 = vpop.f32.mrf.mxu0
        %v7059 = vadd.f32 %v6990, %v7058
        %v7060 = vpop.f32.mrf.mxu0
        %7061 = vdwg.mxu0
        %7062 = vmatprep.subr.mxu0 0.0
        %7063 = vmatpush1.msra.mxu0 %v6712
        %7064 = vmatprep.subr.mxu0 0.0
        %7065 = vmatpush1.msra.mxu0 %v6711
        %7066 = vmatprep.subr.mxu0 0.0
        %7067 = vmatpush1.msra.mxu0 %v6710
        %7068 = vmatprep.subr.mxu0 0.0
        %7069 = vmatpush1.msra.mxu0 %v6709
        %7070 = vmatprep.subr.mxu0 0.0
        %7071 = vmatpush1.msra.mxu0 %v6708
        %7072 = vmatprep.subr.mxu0 0.0
        %7073 = vmatpush1.msra.mxu0 %v6707
        %7074 = vmatprep.subr.mxu0 0.0
        %7075 = vmatpush1.msra.mxu0 %v6706
        %7076 = vmatprep.subr.mxu0 0.0
        %7077 = vmatpush1.msra.mxu0 %v6705
        %7078 = vmatprep.subr.mxu0 0.0
        %7079 = vmatpush1.msra.mxu0 %v6704
        %7080 = vmatprep.subr.mxu0 0.0
        %7081 = vmatpush1.msra.mxu0 %v6703
        %7082 = vmatprep.subr.mxu0 0.0
        %7083 = vmatpush1.msra.mxu0 %v6702
        %7084 = vmatprep.subr.mxu0 0.0
        %7085 = vmatpush1.msra.mxu0 %v6701
        %7086 = vmatprep.subr.mxu0 0.0
        %7087 = vmatpush1.msra.mxu0 %v6700
        %7088 = vmatprep.subr.mxu0 0.0
        %7089 = vmatpush1.msra.mxu0 %v6699
        %7090 = vmatprep.subr.mxu0 0.0
        %7091 = vmatpush1.msra.mxu0 %v6698
        %7092 = vmatprep.subr.mxu0 0.0
        %7093 = vmatpush1.msra.mxu0 %v6697
        %7094 = vmatprep.subr.mxu0 0.0
        %7095 = vmatpush2.msra.mxu0 %v6728
        %7096 = vmatprep.subr.mxu0 0.0
        %7097 = vmatpush2.msra.mxu0 %v6727
        %7098 = vmatprep.subr.mxu0 0.0
        %7099 = vmatpush2.msra.mxu0 %v6726
        %7100 = vmatprep.subr.mxu0 0.0
        %7101 = vmatpush2.msra.mxu0 %v6725
        %7102 = vmatprep.subr.mxu0 0.0
        %7103 = vmatpush2.msra.mxu0 %v6724
        %7104 = vmatprep.subr.mxu0 0.0
        %7105 = vmatpush2.msra.mxu0 %v6723
        %7106 = vmatprep.subr.mxu0 0.0
        %7107 = vmatpush2.msra.mxu0 %v6722
        %7108 = vmatprep.subr.mxu0 0.0
        %7109 = vmatpush2.msra.mxu0 %v6721
        %7110 = vmatprep.subr.mxu0 0.0
        %7111 = vmatpush2.msra.mxu0 %v6720
        %7112 = vmatprep.subr.mxu0 0.0
        %7113 = vmatpush2.msra.mxu0 %v6719
        %7114 = vmatprep.subr.mxu0 0.0
        %7115 = vmatpush2.msra.mxu0 %v6718
        %7116 = vmatprep.subr.mxu0 0.0
        %7117 = vmatpush2.msra.mxu0 %v6717
        %7118 = vmatprep.subr.mxu0 0.0
        %7119 = vmatpush2.msra.mxu0 %v6716
        %7120 = vmatprep.subr.mxu0 0.0
        %7121 = vmatpush2.msra.mxu0 %v6715
        %7122 = vmatprep.subr.mxu0 0.0
        %7123 = vmatpush2.msra.mxu0 %v6714
        %7124 = vmatprep.subr.mxu0 0.0
        %7125 = vmatpush2.msra.mxu0 %v6713
        %7126 = vmatprep.mubr.f32.mxu0 %v6648
        %7127 = vmatmul.mubr.f32.gmra.mxu0 %v6647
        %v7128 = vpop.f32.mrf.mxu0
        %v7129 = vadd.f32 %v7059, %v7128
        %v7130 = vpop.f32.mrf.mxu0
        %7131 = vdwg.mxu0
        %7132 = vmatprep.subr.mxu0 0.0
        %7133 = vmatpush1.msra.mxu0 %v6744
        %7134 = vmatprep.subr.mxu0 0.0
        %7135 = vmatpush1.msra.mxu0 %v6743
        %7136 = vmatprep.subr.mxu0 0.0
        %7137 = vmatpush1.msra.mxu0 %v6742
        %7138 = vmatprep.subr.mxu0 0.0
        %7139 = vmatpush1.msra.mxu0 %v6741
        %7140 = vmatprep.subr.mxu0 0.0
        %7141 = vmatpush1.msra.mxu0 %v6740
        %7142 = vmatprep.subr.mxu0 0.0
        %7143 = vmatpush1.msra.mxu0 %v6739
        %7144 = vmatprep.subr.mxu0 0.0
        %7145 = vmatpush1.msra.mxu0 %v6738
        %7146 = vmatprep.subr.mxu0 0.0
        %7147 = vmatpush1.msra.mxu0 %v6737
        %7148 = vmatprep.subr.mxu0 0.0
        %7149 = vmatpush1.msra.mxu0 %v6736
        %7150 = vmatprep.subr.mxu0 0.0
        %7151 = vmatpush1.msra.mxu0 %v6735
        %7152 = vmatprep.subr.mxu0 0.0
        %7153 = vmatpush1.msra.mxu0 %v6734
        %7154 = vmatprep.subr.mxu0 0.0
        %7155 = vmatpush1.msra.mxu0 %v6733
        %7156 = vmatprep.subr.mxu0 0.0
        %7157 = vmatpush1.msra.mxu0 %v6732
        %7158 = vmatprep.subr.mxu0 0.0
        %7159 = vmatpush1.msra.mxu0 %v6731
        %7160 = vmatprep.subr.mxu0 0.0
        %7161 = vmatpush1.msra.mxu0 %v6730
        %7162 = vmatprep.subr.mxu0 0.0
        %7163 = vmatpush1.msra.mxu0 %v6729
        %7164 = vmatprep.subr.mxu0 0.0
        %7165 = vmatpush2.msra.mxu0 %v6760
        %7166 = vmatprep.subr.mxu0 0.0
        %7167 = vmatpush2.msra.mxu0 %v6759
        %7168 = vmatprep.subr.mxu0 0.0
        %7169 = vmatpush2.msra.mxu0 %v6758
        %7170 = vmatprep.subr.mxu0 0.0
        %7171 = vmatpush2.msra.mxu0 %v6757
        %7172 = vmatprep.subr.mxu0 0.0
        %7173 = vmatpush2.msra.mxu0 %v6756
        %7174 = vmatprep.subr.mxu0 0.0
        %7175 = vmatpush2.msra.mxu0 %v6755
        %7176 = vmatprep.subr.mxu0 0.0
        %7177 = vmatpush2.msra.mxu0 %v6754
        %7178 = vmatprep.subr.mxu0 0.0
        %7179 = vmatpush2.msra.mxu0 %v6753
        %7180 = vmatprep.subr.mxu0 0.0
        %7181 = vmatpush2.msra.mxu0 %v6752
        %7182 = vmatprep.subr.mxu0 0.0
        %7183 = vmatpush2.msra.mxu0 %v6751
        %7184 = vmatprep.subr.mxu0 0.0
        %7185 = vmatpush2.msra.mxu0 %v6750
        %7186 = vmatprep.subr.mxu0 0.0
        %7187 = vmatpush2.msra.mxu0 %v6749
        %7188 = vmatprep.subr.mxu0 0.0
        %7189 = vmatpush2.msra.mxu0 %v6748
        %7190 = vmatprep.subr.mxu0 0.0
        %7191 = vmatpush2.msra.mxu0 %v6747
        %7192 = vmatprep.subr.mxu0 0.0
        %7193 = vmatpush2.msra.mxu0 %v6746
        %7194 = vmatprep.subr.mxu0 0.0
        %7195 = vmatpush2.msra.mxu0 %v6745
        %7196 = vmatprep.mubr.f32.mxu0 %v6650
        %7197 = vmatmul.mubr.f32.gmra.mxu0 %v6649
        %v7198 = vpop.f32.mrf.mxu0
        %v7199 = vadd.f32 %v7129, %v7198
        %v7200 = vpop.f32.mrf.mxu0
        %7201 = vdwg.mxu0
        %7202 = vmatprep.subr.mxu0 0.0
        %7203 = vmatpush1.msra.mxu0 %v6776
        %7204 = vmatprep.subr.mxu0 0.0
        %7205 = vmatpush1.msra.mxu0 %v6775
        %7206 = vmatprep.subr.mxu0 0.0
        %7207 = vmatpush1.msra.mxu0 %v6774
        %7208 = vmatprep.subr.mxu0 0.0
        %7209 = vmatpush1.msra.mxu0 %v6773
        %7210 = vmatprep.subr.mxu0 0.0
        %7211 = vmatpush1.msra.mxu0 %v6772
        %7212 = vmatprep.subr.mxu0 0.0
        %7213 = vmatpush1.msra.mxu0 %v6771
        %7214 = vmatprep.subr.mxu0 0.0
        %7215 = vmatpush1.msra.mxu0 %v6770
        %7216 = vmatprep.subr.mxu0 0.0
        %7217 = vmatpush1.msra.mxu0 %v6769
        %7218 = vmatprep.subr.mxu0 0.0
        %7219 = vmatpush1.msra.mxu0 %v6768
        %7220 = vmatprep.subr.mxu0 0.0
        %7221 = vmatpush1.msra.mxu0 %v6767
        %7222 = vmatprep.subr.mxu0 0.0
        %7223 = vmatpush1.msra.mxu0 %v6766
        %7224 = vmatprep.subr.mxu0 0.0
        %7225 = vmatpush1.msra.mxu0 %v6765
        %7226 = vmatprep.subr.mxu0 0.0
        %7227 = vmatpush1.msra.mxu0 %v6764
        %7228 = vmatprep.subr.mxu0 0.0
        %7229 = vmatpush1.msra.mxu0 %v6763
        %7230 = vmatprep.subr.mxu0 0.0
        %7231 = vmatpush1.msra.mxu0 %v6762
        %7232 = vmatprep.subr.mxu0 0.0
        %7233 = vmatpush1.msra.mxu0 %v6761
        %7234 = vmatprep.subr.mxu0 0.0
        %7235 = vmatpush2.msra.mxu0 %v6792
        %7236 = vmatprep.subr.mxu0 0.0
        %7237 = vmatpush2.msra.mxu0 %v6791
        %7238 = vmatprep.subr.mxu0 0.0
        %7239 = vmatpush2.msra.mxu0 %v6790
        %7240 = vmatprep.subr.mxu0 0.0
        %7241 = vmatpush2.msra.mxu0 %v6789
        %7242 = vmatprep.subr.mxu0 0.0
        %7243 = vmatpush2.msra.mxu0 %v6788
        %7244 = vmatprep.subr.mxu0 0.0
        %7245 = vmatpush2.msra.mxu0 %v6787
        %7246 = vmatprep.subr.mxu0 0.0
        %7247 = vmatpush2.msra.mxu0 %v6786
        %7248 = vmatprep.subr.mxu0 0.0
        %7249 = vmatpush2.msra.mxu0 %v6785
        %7250 = vmatprep.subr.mxu0 0.0
        %7251 = vmatpush2.msra.mxu0 %v6784
        %7252 = vmatprep.subr.mxu0 0.0
        %7253 = vmatpush2.msra.mxu0 %v6783
        %7254 = vmatprep.subr.mxu0 0.0
        %7255 = vmatpush2.msra.mxu0 %v6782
        %7256 = vmatprep.subr.mxu0 0.0
        %7257 = vmatpush2.msra.mxu0 %v6781
        %7258 = vmatprep.subr.mxu0 0.0
        %7259 = vmatpush2.msra.mxu0 %v6780
        %7260 = vmatprep.subr.mxu0 0.0
        %7261 = vmatpush2.msra.mxu0 %v6779
        %7262 = vmatprep.subr.mxu0 0.0
        %7263 = vmatpush2.msra.mxu0 %v6778
        %7264 = vmatprep.subr.mxu0 0.0
        %7265 = vmatpush2.msra.mxu0 %v6777
        %7266 = vmatprep.mubr.f32.mxu0 %v6652
        %7267 = vmatmul.mubr.f32.gmra.mxu0 %v6651
        %v7268 = vpop.f32.mrf.mxu0
        %v7269 = vadd.f32 %v7199, %v7268
        %v7270 = vpop.f32.mrf.mxu0
        %7271 = vdwg.mxu0
        %7272 = vmatprep.subr.mxu0 0.0
        %7273 = vmatpush1.msra.mxu0 %v6808
        %7274 = vmatprep.subr.mxu0 0.0
        %7275 = vmatpush1.msra.mxu0 %v6807
        %7276 = vmatprep.subr.mxu0 0.0
        %7277 = vmatpush1.msra.mxu0 %v6806
        %7278 = vmatprep.subr.mxu0 0.0
        %7279 = vmatpush1.msra.mxu0 %v6805
        %7280 = vmatprep.subr.mxu0 0.0
        %7281 = vmatpush1.msra.mxu0 %v6804
        %7282 = vmatprep.subr.mxu0 0.0
        %7283 = vmatpush1.msra.mxu0 %v6803
        %7284 = vmatprep.subr.mxu0 0.0
        %7285 = vmatpush1.msra.mxu0 %v6802
        %7286 = vmatprep.subr.mxu0 0.0
        %7287 = vmatpush1.msra.mxu0 %v6801
        %7288 = vmatprep.subr.mxu0 0.0
        %7289 = vmatpush1.msra.mxu0 %v6800
        %7290 = vmatprep.subr.mxu0 0.0
        %7291 = vmatpush1.msra.mxu0 %v6799
        %7292 = vmatprep.subr.mxu0 0.0
        %7293 = vmatpush1.msra.mxu0 %v6798
        %7294 = vmatprep.subr.mxu0 0.0
        %7295 = vmatpush1.msra.mxu0 %v6797
        %7296 = vmatprep.subr.mxu0 0.0
        %7297 = vmatpush1.msra.mxu0 %v6796
        %7298 = vmatprep.subr.mxu0 0.0
        %7299 = vmatpush1.msra.mxu0 %v6795
        %7300 = vmatprep.subr.mxu0 0.0
        %7301 = vmatpush1.msra.mxu0 %v6794
        %7302 = vmatprep.subr.mxu0 0.0
        %7303 = vmatpush1.msra.mxu0 %v6793
        %7304 = vmatprep.subr.mxu0 0.0
        %7305 = vmatpush2.msra.mxu0 %v6824
        %7306 = vmatprep.subr.mxu0 0.0
        %7307 = vmatpush2.msra.mxu0 %v6823
        %7308 = vmatprep.subr.mxu0 0.0
        %7309 = vmatpush2.msra.mxu0 %v6822
        %7310 = vmatprep.subr.mxu0 0.0
        %7311 = vmatpush2.msra.mxu0 %v6821
        %7312 = vmatprep.subr.mxu0 0.0
        %7313 = vmatpush2.msra.mxu0 %v6820
        %7314 = vmatprep.subr.mxu0 0.0
        %7315 = vmatpush2.msra.mxu0 %v6819
        %7316 = vmatprep.subr.mxu0 0.0
        %7317 = vmatpush2.msra.mxu0 %v6818
        %7318 = vmatprep.subr.mxu0 0.0
        %7319 = vmatpush2.msra.mxu0 %v6817
        %7320 = vmatprep.subr.mxu0 0.0
        %7321 = vmatpush2.msra.mxu0 %v6816
        %7322 = vmatprep.subr.mxu0 0.0
        %7323 = vmatpush2.msra.mxu0 %v6815
        %7324 = vmatprep.subr.mxu0 0.0
        %7325 = vmatpush2.msra.mxu0 %v6814
        %7326 = vmatprep.subr.mxu0 0.0
        %7327 = vmatpush2.msra.mxu0 %v6813
        %7328 = vmatprep.subr.mxu0 0.0
        %7329 = vmatpush2.msra.mxu0 %v6812
        %7330 = vmatprep.subr.mxu0 0.0
        %7331 = vmatpush2.msra.mxu0 %v6811
        %7332 = vmatprep.subr.mxu0 0.0
        %7333 = vmatpush2.msra.mxu0 %v6810
        %7334 = vmatprep.subr.mxu0 0.0
        %7335 = vmatpush2.msra.mxu0 %v6809
        %7336 = vmatprep.mubr.f32.mxu0 %v6654
        %7337 = vmatmul.mubr.f32.gmra.mxu0 %v6653
        %v7338 = vpop.f32.mrf.mxu0
        %v7339 = vadd.f32 %v7269, %v7338
        %v7340 = vpop.f32.mrf.mxu0
        %7341 = vdwg.mxu0
        %7342 = vmatprep.subr.mxu0 0.0
        %7343 = vmatpush1.msra.mxu0 %v6840
        %7344 = vmatprep.subr.mxu0 0.0
        %7345 = vmatpush1.msra.mxu0 %v6839
        %7346 = vmatprep.subr.mxu0 0.0
        %7347 = vmatpush1.msra.mxu0 %v6838
        %7348 = vmatprep.subr.mxu0 0.0
        %7349 = vmatpush1.msra.mxu0 %v6837
        %7350 = vmatprep.subr.mxu0 0.0
        %7351 = vmatpush1.msra.mxu0 %v6836
        %7352 = vmatprep.subr.mxu0 0.0
        %7353 = vmatpush1.msra.mxu0 %v6835
        %7354 = vmatprep.subr.mxu0 0.0
        %7355 = vmatpush1.msra.mxu0 %v6834
        %7356 = vmatprep.subr.mxu0 0.0
        %7357 = vmatpush1.msra.mxu0 %v6833
        %7358 = vmatprep.subr.mxu0 0.0
        %7359 = vmatpush1.msra.mxu0 %v6832
        %7360 = vmatprep.subr.mxu0 0.0
        %7361 = vmatpush1.msra.mxu0 %v6831
        %7362 = vmatprep.subr.mxu0 0.0
        %7363 = vmatpush1.msra.mxu0 %v6830
        %7364 = vmatprep.subr.mxu0 0.0
        %7365 = vmatpush1.msra.mxu0 %v6829
        %7366 = vmatprep.subr.mxu0 0.0
        %7367 = vmatpush1.msra.mxu0 %v6828
        %7368 = vmatprep.subr.mxu0 0.0
        %7369 = vmatpush1.msra.mxu0 %v6827
        %7370 = vmatprep.subr.mxu0 0.0
        %7371 = vmatpush1.msra.mxu0 %v6826
        %7372 = vmatprep.subr.mxu0 0.0
        %7373 = vmatpush1.msra.mxu0 %v6825
        %7374 = vmatprep.subr.mxu0 0.0
        %7375 = vmatpush2.msra.mxu0 %v6856
        %7376 = vmatprep.subr.mxu0 0.0
        %7377 = vmatpush2.msra.mxu0 %v6855
        %7378 = vmatprep.subr.mxu0 0.0
        %7379 = vmatpush2.msra.mxu0 %v6854
        %7380 = vmatprep.subr.mxu0 0.0
        %7381 = vmatpush2.msra.mxu0 %v6853
        %7382 = vmatprep.subr.mxu0 0.0
        %7383 = vmatpush2.msra.mxu0 %v6852
        %7384 = vmatprep.subr.mxu0 0.0
        %7385 = vmatpush2.msra.mxu0 %v6851
        %7386 = vmatprep.subr.mxu0 0.0
        %7387 = vmatpush2.msra.mxu0 %v6850
        %7388 = vmatprep.subr.mxu0 0.0
        %7389 = vmatpush2.msra.mxu0 %v6849
        %7390 = vmatprep.subr.mxu0 0.0
        %7391 = vmatpush2.msra.mxu0 %v6848
        %7392 = vmatprep.subr.mxu0 0.0
        %7393 = vmatpush2.msra.mxu0 %v6847
        %7394 = vmatprep.subr.mxu0 0.0
        %7395 = vmatpush2.msra.mxu0 %v6846
        %7396 = vmatprep.subr.mxu0 0.0
        %7397 = vmatpush2.msra.mxu0 %v6845
        %7398 = vmatprep.subr.mxu0 0.0
        %7399 = vmatpush2.msra.mxu0 %v6844
        %7400 = vmatprep.subr.mxu0 0.0
        %7401 = vmatpush2.msra.mxu0 %v6843
        %7402 = vmatprep.subr.mxu0 0.0
        %7403 = vmatpush2.msra.mxu0 %v6842
        %7404 = vmatprep.subr.mxu0 0.0
        %7405 = vmatpush2.msra.mxu0 %v6841
        %7406 = vmatprep.mubr.f32.mxu0 %v6656
        %7407 = vmatmul.mubr.f32.gmra.mxu0 %v6655
        %v7408 = vpop.f32.mrf.mxu0
        %v7409 = vadd.f32 %v7339, %v7408
        %v7410 = vpop.f32.mrf.mxu0
        %7411 = vdwg.mxu0
        %7412 = vmatprep.subr.mxu0 0.0
        %7413 = vmatpush1.msra.mxu0 %v6872
        %7414 = vmatprep.subr.mxu0 0.0
        %7415 = vmatpush1.msra.mxu0 %v6871
        %7416 = vmatprep.subr.mxu0 0.0
        %7417 = vmatpush1.msra.mxu0 %v6870
        %7418 = vmatprep.subr.mxu0 0.0
        %7419 = vmatpush1.msra.mxu0 %v6869
        %7420 = vmatprep.subr.mxu0 0.0
        %7421 = vmatpush1.msra.mxu0 %v6868
        %7422 = vmatprep.subr.mxu0 0.0
        %7423 = vmatpush1.msra.mxu0 %v6867
        %7424 = vmatprep.subr.mxu0 0.0
        %7425 = vmatpush1.msra.mxu0 %v6866
        %7426 = vmatprep.subr.mxu0 0.0
        %7427 = vmatpush1.msra.mxu0 %v6865
        %7428 = vmatprep.subr.mxu0 0.0
        %7429 = vmatpush1.msra.mxu0 %v6864
        %7430 = vmatprep.subr.mxu0 0.0
        %7431 = vmatpush1.msra.mxu0 %v6863
        %7432 = vmatprep.subr.mxu0 0.0
        %7433 = vmatpush1.msra.mxu0 %v6862
        %7434 = vmatprep.subr.mxu0 0.0
        %7435 = vmatpush1.msra.mxu0 %v6861
        %7436 = vmatprep.subr.mxu0 0.0
        %7437 = vmatpush1.msra.mxu0 %v6860
        %7438 = vmatprep.subr.mxu0 0.0
        %7439 = vmatpush1.msra.mxu0 %v6859
        %7440 = vmatprep.subr.mxu0 0.0
        %7441 = vmatpush1.msra.mxu0 %v6858
        %7442 = vmatprep.subr.mxu0 0.0
        %7443 = vmatpush1.msra.mxu0 %v6857
        %7444 = vmatprep.subr.mxu0 0.0
        %7445 = vmatpush2.msra.mxu0 %v6888
        %7446 = vmatprep.subr.mxu0 0.0
        %7447 = vmatpush2.msra.mxu0 %v6887
        %7448 = vmatprep.subr.mxu0 0.0
        %7449 = vmatpush2.msra.mxu0 %v6886
        %7450 = vmatprep.subr.mxu0 0.0
        %7451 = vmatpush2.msra.mxu0 %v6885
        %7452 = vmatprep.subr.mxu0 0.0
        %7453 = vmatpush2.msra.mxu0 %v6884
        %7454 = vmatprep.subr.mxu0 0.0
        %7455 = vmatpush2.msra.mxu0 %v6883
        %7456 = vmatprep.subr.mxu0 0.0
        %7457 = vmatpush2.msra.mxu0 %v6882
        %7458 = vmatprep.subr.mxu0 0.0
        %7459 = vmatpush2.msra.mxu0 %v6881
        %7460 = vmatprep.subr.mxu0 0.0
        %7461 = vmatpush2.msra.mxu0 %v6880
        %7462 = vmatprep.subr.mxu0 0.0
        %7463 = vmatpush2.msra.mxu0 %v6879
        %7464 = vmatprep.subr.mxu0 0.0
        %7465 = vmatpush2.msra.mxu0 %v6878
        %7466 = vmatprep.subr.mxu0 0.0
        %7467 = vmatpush2.msra.mxu0 %v6877
        %7468 = vmatprep.subr.mxu0 0.0
        %7469 = vmatpush2.msra.mxu0 %v6876
        %7470 = vmatprep.subr.mxu0 0.0
        %7471 = vmatpush2.msra.mxu0 %v6875
        %7472 = vmatprep.subr.mxu0 0.0
        %7473 = vmatpush2.msra.mxu0 %v6874
        %7474 = vmatprep.subr.mxu0 0.0
        %7475 = vmatpush2.msra.mxu0 %v6873
        %7476 = vmatprep.mubr.f32.mxu0 %v6658
        %7477 = vmatmul.mubr.f32.gmra.mxu0 %v6657
        %v7478 = vpop.f32.mrf.mxu0
        %v7479 = vadd.f32 %v7409, %v7478
        %v7480 = vpop.f32.mrf.mxu0
        %7481 = vdwg.mxu0
        %7482 = vmatprep.subr.mxu0 0.0
        %7483 = vmatpush1.msra.mxu0 %v6904
        %7484 = vmatprep.subr.mxu0 0.0
        %7485 = vmatpush1.msra.mxu0 %v6903
        %7486 = vmatprep.subr.mxu0 0.0
        %7487 = vmatpush1.msra.mxu0 %v6902
        %7488 = vmatprep.subr.mxu0 0.0
        %7489 = vmatpush1.msra.mxu0 %v6901
        %7490 = vmatprep.subr.mxu0 0.0
        %7491 = vmatpush1.msra.mxu0 %v6900
        %7492 = vmatprep.subr.mxu0 0.0
        %7493 = vmatpush1.msra.mxu0 %v6899
        %7494 = vmatprep.subr.mxu0 0.0
        %7495 = vmatpush1.msra.mxu0 %v6898
        %7496 = vmatprep.subr.mxu0 0.0
        %7497 = vmatpush1.msra.mxu0 %v6897
        %7498 = vmatprep.subr.mxu0 0.0
        %7499 = vmatpush1.msra.mxu0 %v6896
        %7500 = vmatprep.subr.mxu0 0.0
        %7501 = vmatpush1.msra.mxu0 %v6895
        %7502 = vmatprep.subr.mxu0 0.0
        %7503 = vmatpush1.msra.mxu0 %v6894
        %7504 = vmatprep.subr.mxu0 0.0
        %7505 = vmatpush1.msra.mxu0 %v6893
        %7506 = vmatprep.subr.mxu0 0.0
        %7507 = vmatpush1.msra.mxu0 %v6892
        %7508 = vmatprep.subr.mxu0 0.0
        %7509 = vmatpush1.msra.mxu0 %v6891
        %7510 = vmatprep.subr.mxu0 0.0
        %7511 = vmatpush1.msra.mxu0 %v6890
        %7512 = vmatprep.subr.mxu0 0.0
        %7513 = vmatpush1.msra.mxu0 %v6889
        %7514 = vmatprep.subr.mxu0 0.0
        %7515 = vmatpush2.msra.mxu0 %v6920
        %7516 = vmatprep.subr.mxu0 0.0
        %7517 = vmatpush2.msra.mxu0 %v6919
        %7518 = vmatprep.subr.mxu0 0.0
        %7519 = vmatpush2.msra.mxu0 %v6918
        %7520 = vmatprep.subr.mxu0 0.0
        %7521 = vmatpush2.msra.mxu0 %v6917
        %7522 = vmatprep.subr.mxu0 0.0
        %7523 = vmatpush2.msra.mxu0 %v6916
        %7524 = vmatprep.subr.mxu0 0.0
        %7525 = vmatpush2.msra.mxu0 %v6915
        %7526 = vmatprep.subr.mxu0 0.0
        %7527 = vmatpush2.msra.mxu0 %v6914
        %7528 = vmatprep.subr.mxu0 0.0
        %7529 = vmatpush2.msra.mxu0 %v6913
        %7530 = vmatprep.subr.mxu0 0.0
        %7531 = vmatpush2.msra.mxu0 %v6912
        %7532 = vmatprep.subr.mxu0 0.0
        %7533 = vmatpush2.msra.mxu0 %v6911
        %7534 = vmatprep.subr.mxu0 0.0
        %7535 = vmatpush2.msra.mxu0 %v6910
        %7536 = vmatprep.subr.mxu0 0.0
        %7537 = vmatpush2.msra.mxu0 %v6909
        %7538 = vmatprep.subr.mxu0 0.0
        %7539 = vmatpush2.msra.mxu0 %v6908
        %7540 = vmatprep.subr.mxu0 0.0
        %7541 = vmatpush2.msra.mxu0 %v6907
        %7542 = vmatprep.subr.mxu0 0.0
        %7543 = vmatpush2.msra.mxu0 %v6906
        %7544 = vmatprep.subr.mxu0 0.0
        %7545 = vmatpush2.msra.mxu0 %v6905
        %7546 = vmatprep.mubr.f32.mxu0 %v6660
        %7547 = vmatmul.mubr.f32.gmra.mxu0 %v6659
        %v7548 = vpop.f32.mrf.mxu0
        %v7549 = vadd.f32 %v7479, %v7548
        %v7550 = vpop.f32.mrf.mxu0
        %7551 = vdwg.mxu0
        %7552 = vmatprep.subr.mxu0 0.0
        %7553 = vmatpush1.msra.mxu0 %v6936
        %7554 = vmatprep.subr.mxu0 0.0
        %7555 = vmatpush1.msra.mxu0 %v6935
        %7556 = vmatprep.subr.mxu0 0.0
        %7557 = vmatpush1.msra.mxu0 %v6934
        %7558 = vmatprep.subr.mxu0 0.0
        %7559 = vmatpush1.msra.mxu0 %v6933
        %7560 = vmatprep.subr.mxu0 0.0
        %7561 = vmatpush1.msra.mxu0 %v6932
        %7562 = vmatprep.subr.mxu0 0.0
        %7563 = vmatpush1.msra.mxu0 %v6931
        %7564 = vmatprep.subr.mxu0 0.0
        %7565 = vmatpush1.msra.mxu0 %v6930
        %7566 = vmatprep.subr.mxu0 0.0
        %7567 = vmatpush1.msra.mxu0 %v6929
        %7568 = vmatprep.subr.mxu0 0.0
        %7569 = vmatpush1.msra.mxu0 %v6928
        %7570 = vmatprep.subr.mxu0 0.0
        %7571 = vmatpush1.msra.mxu0 %v6927
        %7572 = vmatprep.subr.mxu0 0.0
        %7573 = vmatpush1.msra.mxu0 %v6926
        %7574 = vmatprep.subr.mxu0 0.0
        %7575 = vmatpush1.msra.mxu0 %v6925
        %7576 = vmatprep.subr.mxu0 0.0
        %7577 = vmatpush1.msra.mxu0 %v6924
        %7578 = vmatprep.subr.mxu0 0.0
        %7579 = vmatpush1.msra.mxu0 %v6923
        %7580 = vmatprep.subr.mxu0 0.0
        %7581 = vmatpush1.msra.mxu0 %v6922
        %7582 = vmatprep.subr.mxu0 0.0
        %7583 = vmatpush1.msra.mxu0 %v6921
        %7584 = vmatprep.subr.mxu0 0.0
        %7585 = vmatpush2.msra.mxu0 %v6952
        %7586 = vmatprep.subr.mxu0 0.0
        %7587 = vmatpush2.msra.mxu0 %v6951
        %7588 = vmatprep.subr.mxu0 0.0
        %7589 = vmatpush2.msra.mxu0 %v6950
        %7590 = vmatprep.subr.mxu0 0.0
        %7591 = vmatpush2.msra.mxu0 %v6949
        %7592 = vmatprep.subr.mxu0 0.0
        %7593 = vmatpush2.msra.mxu0 %v6948
        %7594 = vmatprep.subr.mxu0 0.0
        %7595 = vmatpush2.msra.mxu0 %v6947
        %7596 = vmatprep.subr.mxu0 0.0
        %7597 = vmatpush2.msra.mxu0 %v6946
        %7598 = vmatprep.subr.mxu0 0.0
        %7599 = vmatpush2.msra.mxu0 %v6945
        %7600 = vmatprep.subr.mxu0 0.0
        %7601 = vmatpush2.msra.mxu0 %v6944
        %7602 = vmatprep.subr.mxu0 0.0
        %7603 = vmatpush2.msra.mxu0 %v6943
        %7604 = vmatprep.subr.mxu0 0.0
        %7605 = vmatpush2.msra.mxu0 %v6942
        %7606 = vmatprep.subr.mxu0 0.0
        %7607 = vmatpush2.msra.mxu0 %v6941
        %7608 = vmatprep.subr.mxu0 0.0
        %7609 = vmatpush2.msra.mxu0 %v6940
        %7610 = vmatprep.subr.mxu0 0.0
        %7611 = vmatpush2.msra.mxu0 %v6939
        %7612 = vmatprep.subr.mxu0 0.0
        %7613 = vmatpush2.msra.mxu0 %v6938
        %7614 = vmatprep.subr.mxu0 0.0
        %7615 = vmatpush2.msra.mxu0 %v6937
        %7616 = vmatprep.mubr.f32.mxu0 %v6662
        %7617 = vmatmul.mubr.f32.gmra.mxu0 %v6661
        %v7618 = vpop.f32.mrf.mxu0
        %v7619 = vadd.f32 %v7549, %v7618
        %v7620 = vpop.f32.mrf.mxu0
        %7621 = vdwg.mxu0
        %7622 = vmatprep.subr.mxu0 0.0
        %7623 = vmatpush1.msra.mxu0 %v6968
        %7624 = vmatprep.subr.mxu0 0.0
        %7625 = vmatpush1.msra.mxu0 %v6967
        %7626 = vmatprep.subr.mxu0 0.0
        %7627 = vmatpush1.msra.mxu0 %v6966
        %7628 = vmatprep.subr.mxu0 0.0
        %7629 = vmatpush1.msra.mxu0 %v6965
        %7630 = vmatprep.subr.mxu0 0.0
        %7631 = vmatpush1.msra.mxu0 %v6964
        %7632 = vmatprep.subr.mxu0 0.0
        %7633 = vmatpush1.msra.mxu0 %v6963
        %7634 = vmatprep.subr.mxu0 0.0
        %7635 = vmatpush1.msra.mxu0 %v6962
        %7636 = vmatprep.subr.mxu0 0.0
        %7637 = vmatpush1.msra.mxu0 %v6961
        %7638 = vmatprep.subr.mxu0 0.0
        %7639 = vmatpush1.msra.mxu0 %v6960
        %7640 = vmatprep.subr.mxu0 0.0
        %7641 = vmatpush1.msra.mxu0 %v6959
        %7642 = vmatprep.subr.mxu0 0.0
        %7643 = vmatpush1.msra.mxu0 %v6958
        %7644 = vmatprep.subr.mxu0 0.0
        %7645 = vmatpush1.msra.mxu0 %v6957
        %7646 = vmatprep.subr.mxu0 0.0
        %7647 = vmatpush1.msra.mxu0 %v6956
        %7648 = vmatprep.subr.mxu0 0.0
        %7649 = vmatpush1.msra.mxu0 %v6955
        %7650 = vmatprep.subr.mxu0 0.0
        %7651 = vmatpush1.msra.mxu0 %v6954
        %7652 = vmatprep.subr.mxu0 0.0
        %7653 = vmatpush1.msra.mxu0 %v6953
        %7654 = vmatprep.subr.mxu0 0.0
        %7655 = vmatpush2.msra.mxu0 %v6984
        %7656 = vmatprep.subr.mxu0 0.0
        %7657 = vmatpush2.msra.mxu0 %v6983
        %7658 = vmatprep.subr.mxu0 0.0
        %7659 = vmatpush2.msra.mxu0 %v6982
        %7660 = vmatprep.subr.mxu0 0.0
        %7661 = vmatpush2.msra.mxu0 %v6981
        %7662 = vmatprep.subr.mxu0 0.0
        %7663 = vmatpush2.msra.mxu0 %v6980
        %7664 = vmatprep.subr.mxu0 0.0
        %7665 = vmatpush2.msra.mxu0 %v6979
        %7666 = vmatprep.subr.mxu0 0.0
        %7667 = vmatpush2.msra.mxu0 %v6978
        %7668 = vmatprep.subr.mxu0 0.0
        %7669 = vmatpush2.msra.mxu0 %v6977
        %7670 = vmatprep.subr.mxu0 0.0
        %7671 = vmatpush2.msra.mxu0 %v6976
        %7672 = vmatprep.subr.mxu0 0.0
        %7673 = vmatpush2.msra.mxu0 %v6975
        %7674 = vmatprep.subr.mxu0 0.0
        %7675 = vmatpush2.msra.mxu0 %v6974
        %7676 = vmatprep.subr.mxu0 0.0
        %7677 = vmatpush2.msra.mxu0 %v6973
        %7678 = vmatprep.subr.mxu0 0.0
        %7679 = vmatpush2.msra.mxu0 %v6972
        %7680 = vmatprep.subr.mxu0 0.0
        %7681 = vmatpush2.msra.mxu0 %v6971
        %7682 = vmatprep.subr.mxu0 0.0
        %7683 = vmatpush2.msra.mxu0 %v6970
        %7684 = vmatprep.subr.mxu0 0.0
        %7685 = vmatpush2.msra.mxu0 %v6969
        %7686 = vmatprep.mubr.f32.mxu0 %v6664
        %7687 = vmatmul.mubr.f32.gmra.mxu0 %v6663
        %v7688 = vpop.f32.mrf.mxu0
        %v7689 = vadd.f32 %v7619, %v7688
        %v7690 = vpop.f32.mrf.mxu0
        %7691 = vdwg.mxu0
        %v7692 = vmax.f32 %v7689, 0.0
        %v7693 = vld [vmem:[#allocation17] sm:$0xff]
        %v7694 = vld [vmem:[#allocation17 + $0x8] sm:$0xff]
        %v7695 = vld [vmem:[#allocation17 + $0x10] sm:$0xff]
        %v7696 = vld [vmem:[#allocation17 + $0x18] sm:$0xff]
        %v7697 = vld [vmem:[#allocation17 + $0x20] sm:$0xff]
        %v7698 = vld [vmem:[#allocation17 + $0x28] sm:$0xff]
        %v7699 = vld [vmem:[#allocation17 + $0x30] sm:$0xff]
        %v7700 = vld [vmem:[#allocation17 + $0x38] sm:$0xff]
        %v7701 = vld [vmem:[#allocation17 + $0x40] sm:$0xff]
        %v7702 = vld [vmem:[#allocation17 + $0x48] sm:$0xff]
        %v7703 = vld [vmem:[#allocation17 + $0x50] sm:$0xff]
        %v7704 = vld [vmem:[#allocation17 + $0x58] sm:$0xff]
        %v7705 = vld [vmem:[#allocation17 + $0x60] sm:$0xff]
        %v7706 = vld [vmem:[#allocation17 + $0x68] sm:$0xff]
        %v7707 = vld [vmem:[#allocation17 + $0x70] sm:$0xff]
        %v7708 = vld [vmem:[#allocation17 + $0x78] sm:$0xff]
        %v7709 = vld [vmem:[#allocation18] sm:$0x1]
        %v7711 = vlaneseq
        %v7712 = vshrl.u32 %v7711, 7
        %v7713 = vsub.s32 0, %v7712
        %v7714 = vrot.slane %v7709, %v7713
        %7716 = vmatprep.subr.mxu0 0.0
        %7717 = vmatpush1.msra.mxu0 %v7708
        %7718 = vmatprep.subr.mxu0 0.0
        %7719 = vmatpush1.msra.mxu0 %v7707
        %7720 = vmatprep.subr.mxu0 0.0
        %7721 = vmatpush1.msra.mxu0 %v7706
        %7722 = vmatprep.subr.mxu0 0.0
        %7723 = vmatpush1.msra.mxu0 %v7705
        %7724 = vmatprep.subr.mxu0 0.0
        %7725 = vmatpush1.msra.mxu0 %v7704
        %7726 = vmatprep.subr.mxu0 0.0
        %7727 = vmatpush1.msra.mxu0 %v7703
        %7728 = vmatprep.subr.mxu0 0.0
        %7729 = vmatpush1.msra.mxu0 %v7702
        %7730 = vmatprep.subr.mxu0 0.0
        %7731 = vmatpush1.msra.mxu0 %v7701
        %7732 = vmatprep.subr.mxu0 0.0
        %7733 = vmatpush1.msra.mxu0 %v7700
        %7734 = vmatprep.subr.mxu0 0.0
        %7735 = vmatpush1.msra.mxu0 %v7699
        %7736 = vmatprep.subr.mxu0 0.0
        %7737 = vmatpush1.msra.mxu0 %v7698
        %7738 = vmatprep.subr.mxu0 0.0
        %7739 = vmatpush1.msra.mxu0 %v7697
        %7740 = vmatprep.subr.mxu0 0.0
        %7741 = vmatpush1.msra.mxu0 %v7696
        %7742 = vmatprep.subr.mxu0 0.0
        %7743 = vmatpush1.msra.mxu0 %v7695
        %7744 = vmatprep.subr.mxu0 0.0
        %7745 = vmatpush1.msra.mxu0 %v7694
        %7746 = vmatprep.subr.mxu0 0.0
        %7747 = vmatpush1.msra.mxu0 %v7693
        %7748 = vmatprep.subr.mxu0 0.0
        %7749 = vmatpush2.msra.mxu0 0.0
        %7750 = vmatprep.subr.mxu0 0.0
        %7751 = vmatpush2.msra.mxu0 0.0
        %7752 = vmatprep.subr.mxu0 0.0
        %7753 = vmatpush2.msra.mxu0 0.0
        %7754 = vmatprep.subr.mxu0 0.0
        %7755 = vmatpush2.msra.mxu0 0.0
        %7756 = vmatprep.subr.mxu0 0.0
        %7757 = vmatpush2.msra.mxu0 0.0
        %7758 = vmatprep.subr.mxu0 0.0
        %7759 = vmatpush2.msra.mxu0 0.0
        %7760 = vmatprep.subr.mxu0 0.0
        %7761 = vmatpush2.msra.mxu0 0.0
        %7762 = vmatprep.subr.mxu0 0.0
        %7763 = vmatpush2.msra.mxu0 0.0
        %7764 = vmatprep.subr.mxu0 0.0
        %7765 = vmatpush2.msra.mxu0 0.0
        %7766 = vmatprep.subr.mxu0 0.0
        %7767 = vmatpush2.msra.mxu0 0.0
        %7768 = vmatprep.subr.mxu0 0.0
        %7769 = vmatpush2.msra.mxu0 0.0
        %7770 = vmatprep.subr.mxu0 0.0
        %7771 = vmatpush2.msra.mxu0 0.0
        %7772 = vmatprep.subr.mxu0 0.0
        %7773 = vmatpush2.msra.mxu0 0.0
        %7774 = vmatprep.subr.mxu0 0.0
        %7775 = vmatpush2.msra.mxu0 0.0
        %7776 = vmatprep.subr.mxu0 0.0
        %7777 = vmatpush2.msra.mxu0 0.0
        %7778 = vmatprep.subr.mxu0 0.0
        %7779 = vmatpush2.msra.mxu0 0.0
        %7780 = vmatprep.mubr.f32.mxu0 0.0
        %7781 = vmatmul.mubr.f32.gmra.mxu0 %v7692
        %v7782 = vpop.f32.mrf.mxu0
        %v7783 = vadd.f32 %v7714, %v7782
        %v7784 = vpop.f32.mrf.mxu0
        %7785 = vdwg.mxu0
        %v7786 = vmax.f32 %v7783, 0.0
        %v7787 = vld [vmem:[#allocation20] sm:$0xff]
        %v7788 = vld [vmem:[#allocation20 + $0x8] sm:$0xff]
        %v7789 = vld [vmem:[#allocation20 + $0x10] sm:$0xff]
        %v7790 = vld [vmem:[#allocation20 + $0x18] sm:$0xff]
        %v7791 = vld [vmem:[#allocation20 + $0x20] sm:$0xff]
        %v7792 = vld [vmem:[#allocation20 + $0x28] sm:$0xff]
        %v7793 = vld [vmem:[#allocation20 + $0x30] sm:$0xff]
        %v7794 = vld [vmem:[#allocation20 + $0x38] sm:$0xff]
        %v7795 = vld [vmem:[#allocation20 + $0x40] sm:$0xff]
        %v7796 = vld [vmem:[#allocation20 + $0x48] sm:$0xff]
        %v7797 = vld [vmem:[#allocation20 + $0x50] sm:$0xff]
        %v7798 = vld [vmem:[#allocation20 + $0x58] sm:$0xff]
        %v7799 = vld [vmem:[#allocation20 + $0x60] sm:$0xff]
        %v7800 = vld [vmem:[#allocation20 + $0x68] sm:$0xff]
        %v7801 = vld [vmem:[#allocation20 + $0x70] sm:$0xff]
        %v7802 = vld [vmem:[#allocation20 + $0x78] sm:$0xff]
        %v7803 = vld [vmem:[#allocation21] sm:$0x1]
        %v7805 = vlaneseq
        %v7806 = vshrl.u32 %v7805, 7
        %v7807 = vsub.s32 0, %v7806
        %v7808 = vrot.slane %v7803, %v7807
        %7810 = vmatprep.subr.mxu0 0.0
        %7811 = vmatpush1.msra.mxu0 %v7802
        %7812 = vmatprep.subr.mxu0 0.0
        %7813 = vmatpush1.msra.mxu0 %v7801
        %7814 = vmatprep.subr.mxu0 0.0
        %7815 = vmatpush1.msra.mxu0 %v7800
        %7816 = vmatprep.subr.mxu0 0.0
        %7817 = vmatpush1.msra.mxu0 %v7799
        %7818 = vmatprep.subr.mxu0 0.0
        %7819 = vmatpush1.msra.mxu0 %v7798
        %7820 = vmatprep.subr.mxu0 0.0
        %7821 = vmatpush1.msra.mxu0 %v7797
        %7822 = vmatprep.subr.mxu0 0.0
        %7823 = vmatpush1.msra.mxu0 %v7796
        %7824 = vmatprep.subr.mxu0 0.0
        %7825 = vmatpush1.msra.mxu0 %v7795
        %7826 = vmatprep.subr.mxu0 0.0
        %7827 = vmatpush1.msra.mxu0 %v7794
        %7828 = vmatprep.subr.mxu0 0.0
        %7829 = vmatpush1.msra.mxu0 %v7793
        %7830 = vmatprep.subr.mxu0 0.0
        %7831 = vmatpush1.msra.mxu0 %v7792
        %7832 = vmatprep.subr.mxu0 0.0
        %7833 = vmatpush1.msra.mxu0 %v7791
        %7834 = vmatprep.subr.mxu0 0.0
        %7835 = vmatpush1.msra.mxu0 %v7790
        %7836 = vmatprep.subr.mxu0 0.0
        %7837 = vmatpush1.msra.mxu0 %v7789
        %7838 = vmatprep.subr.mxu0 0.0
        %7839 = vmatpush1.msra.mxu0 %v7788
        %7840 = vmatprep.subr.mxu0 0.0
        %7841 = vmatpush1.msra.mxu0 %v7787
        %7842 = vmatprep.subr.mxu0 0.0
        %7843 = vmatpush2.msra.mxu0 0.0
        %7844 = vmatprep.subr.mxu0 0.0
        %7845 = vmatpush2.msra.mxu0 0.0
        %7846 = vmatprep.subr.mxu0 0.0
        %7847 = vmatpush2.msra.mxu0 0.0
        %7848 = vmatprep.subr.mxu0 0.0
        %7849 = vmatpush2.msra.mxu0 0.0
        %7850 = vmatprep.subr.mxu0 0.0
        %7851 = vmatpush2.msra.mxu0 0.0
        %7852 = vmatprep.subr.mxu0 0.0
        %7853 = vmatpush2.msra.mxu0 0.0
        %7854 = vmatprep.subr.mxu0 0.0
        %7855 = vmatpush2.msra.mxu0 0.0
        %7856 = vmatprep.subr.mxu0 0.0
        %7857 = vmatpush2.msra.mxu0 0.0
        %7858 = vmatprep.subr.mxu0 0.0
        %7859 = vmatpush2.msra.mxu0 0.0
        %7860 = vmatprep.subr.mxu0 0.0
        %7861 = vmatpush2.msra.mxu0 0.0
        %7862 = vmatprep.subr.mxu0 0.0
        %7863 = vmatpush2.msra.mxu0 0.0
        %7864 = vmatprep.subr.mxu0 0.0
        %7865 = vmatpush2.msra.mxu0 0.0
        %7866 = vmatprep.subr.mxu0 0.0
        %7867 = vmatpush2.msra.mxu0 0.0
        %7868 = vmatprep.subr.mxu0 0.0
        %7869 = vmatpush2.msra.mxu0 0.0
        %7870 = vmatprep.subr.mxu0 0.0
        %7871 = vmatpush2.msra.mxu0 0.0
        %7872 = vmatprep.subr.mxu0 0.0
        %7873 = vmatpush2.msra.mxu0 0.0
        %7874 = vmatprep.mubr.f32.mxu0 0.0
        %7875 = vmatmul.mubr.f32.gmra.mxu0 %v7786
        %v7876 = vpop.f32.mrf.mxu0
        %v7877 = vadd.f32 %v7808, %v7876
        %v7878 = vpop.f32.mrf.mxu0
        %7879 = vdwg.mxu0
        %7880 = vst [vmem:[%s601] sm:$0xff] %v7877
        %s7881 = sand.u32 %s320, 1
        %s7882 = scalar_lea.sflag [#allocation5], %s7881
        %s7883 = sand.u32 %s320, 1
        %s7884 = smul.addr %s7883, 8
        %s7885 = scalar_lea.vmem [#allocation23], %s7884
        // Predicated region
        $region121: #{letnet_forward.1} parent=71 // pred_check
          %p7886 = pneg %p330
        $region122: #{letnet_forward.1} parent=71 // pred_check_branch
          %7888 = sbr.rel (%p7886) target = $region124
        $region123: #{letnet_forward.1} parent=71 // pred_region
          %s7890 = ssub.s32 128, 128
          %7891 = vsyncadd %s7882, %s7890
          %s7892 = smul.addr %s34, 128
          %s7893 = scalar_lea.hbm %s13, %s7892
          %s7895 = sshll.u32 %s7885, 4
          %s7896 = int_to_ptr.vmem [resolvable:$true] %s7895
          %7898 = dma.vmem_to_hbm [thread:$0]  %s7896, 128, %s7893, %s7882
        $region124: #{letnet_forward.1} parent=71 // pred_fallthru
          _
      $region72: #{letnet_forward.1} parent=5 // pred_fallthru
        _
      %p7899 = scmp.le.s32.totalorder 2, %s29
      // Predicated region
      $region125: #{letnet_forward.1} parent=5 // pred_check
        %p7900 = pneg %p7899
      $region126: #{letnet_forward.1} parent=5 // pred_check_branch
        %7902 = sbr.rel (%p7900) target = $region128
      $region127: #{letnet_forward.1} parent=5 // pred_region
        %s7903 = ssub.s32 %s29, 2
        // Predicated region
        $region129: #{letnet_forward.1} parent=127 // pred_check
          %p7904 = pneg %p336
        $region130: #{letnet_forward.1} parent=127 // pred_check_branch
          %7906 = sbr.rel (%p7904) target = $region132
        $region131: #{letnet_forward.1} parent=127 // pred_region
          %s7907 = sand.u32 %s321, 1
          %s7908 = scalar_lea.sflag [#allocation5], %s7907
          %s7909 = sand.u32 %s321, 1
          %s7910 = smul.addr %s7909, 8
          %s7911 = scalar_lea.vmem [#allocation23], %s7910
          %7912 = dma.done %s7908, 128
        $region132: #{letnet_forward.1} parent=127 // pred_fallthru
          _
      $region128: #{letnet_forward.1} parent=5 // pred_fallthru
        _
    $region6: #{letnet_forward.1} parent=1 // loop_footer
      %s33 = sadd.s32 1, %s29
    $region7: #{letnet_forward.1} parent=1 // loop_footer_branch
      %28 = sbr.rel target = $region3
    $region8: #{letnet_forward.1} parent=1 // loop_exit
      _
    %7913 = vsyncpa [#allocation4], 1
    %s7914 = scalar_lea.sflag [#allocation4], 1
    %7915 = vsyncpa %s7914, 1
    %7916 = vsyncpa [#allocation7], 1
    %7917 = vsyncpa [#allocation10], 1
    %7918 = vsyncpa [#allocation13], 1
    %7919 = vsyncpa [#allocation16], 1
    %7920 = vsyncpa [#allocation19], 1
    %7921 = vsyncpa [#allocation22], 1
    %7922 = vsyncpa [#allocation5], 1
    %s7923 = scalar_lea.sflag [#allocation5], 1
    %7924 = vsyncpa %s7923, 1

</llo_original>
